<compile_context>
chip_gen: v6e
topology: v6e:2x2x1
jax: 0.10.0
libtpu: 0.0.40
codegen_flags: <defaults>
</compile_context>

<pallas_src>
import functools
import numpy as np

import jax
import jax.numpy as jnp
from jax.experimental import pallas as pl
from jax.experimental.pallas import tpu as pltpu


C_PAD = 128   # lane-dense padded channel width carried by every intermediate activation


# ------------------------------ in-kernel helpers --------------------------------- #

def _bn_relu_parts(parts, gamma, beta):
    """Training-mode BatchNorm2d + ReLU applied jointly to a list of (rows, C) slabs.

    Batch statistics are taken over the union of all rows (single-pass sum / sum-sq).
    Padded channels (>= real channel count) carry zeros and gamma = beta = 0, so they
    remain exactly zero after normalization.
    """
    n = float(sum(p.shape[0] for p in parts))
    s = sum(jnp.sum(p, axis=0, keepdims=True) for p in parts)
    ss = sum(jnp.sum(p * p, axis=0, keepdims=True) for p in parts)
    mean = s * (1.0 / n)
    var = ss * (1.0 / n) - mean * mean
    scale = jax.lax.rsqrt(var + 1e-5) * gamma          # rsqrt lands on the EUP slot
    shift = beta - mean * scale
    return [jnp.maximum(p * scale + shift, 0.0) for p in parts]


def _pad_hw1(x):
    """Zero-pad a (H, W, N, C) activation by 1 on each spatial side (leading-dim concats)."""
    H, W, N, C = x.shape
    zr = jnp.zeros((1, W, N, C), x.dtype)
    x = jnp.concatenate([zr, x, zr], axis=0)
    zc = jnp.zeros((H + 2, 1, N, C), x.dtype)
    return jnp.concatenate([zc, x, zc], axis=1)


def _interleave_phases(p00, p01, p10, p11):
    """Sub-pixel interleave: out[2i+ph, 2j+pw, n, c] = p_{ph,pw}[i, j, n, c].

    Shapes (H, W, N, C) -> (2H, 2W, N, C).  Only leading-dimension concatenates and
    minor-preserving reshapes are used (layout-friendly on TPU).
    """
    H, W, N, C = p00.shape

    def wmix(a, b):                                   # interleave along W
        a = a.reshape(H * W, 1, N, C)
        b = b.reshape(H * W, 1, N, C)
        return jnp.concatenate([a, b], axis=1).reshape(H, 2 * W, N, C)

    r_even = wmix(p00, p01)                           # rows 2i
    r_odd = wmix(p10, p11)                            # rows 2i+1
    y = jnp.concatenate([r_even, r_odd], axis=1)      # (H, 4W, N, C)
    return y.reshape(2 * H, 2 * W, N, C)              # row-major => rows interleave


def _convt_s2_block(xp, w_ref, gamma, beta):
    """ConvTranspose2d(k=4, s=2, p=1, bias=False) + BatchNorm + ReLU, phase-decomposed.

    xp:    zero-padded input, shape (H+2, W+2, N, C_PAD)
    w_ref: (4, 4*C_PAD, C_PAD) per-phase tap-stacked weights
    Returns the *next* layer's zero-padded input, shape (2H+2, 2W+2, N, C_PAD).
    """
    Hp, Wp, N, C = xp.shape
    H, W = Hp - 2, Wp - 2
    m = H * W * N

    # Densify each of the 9 distinct shifted views once: (m, C), channels lane-dense.
    tap = {(a, b): xp[a:a + H, b:b + W].reshape(m, C)
           for a in range(3) for b in range(3)}

    phases = []
    for ph in (0, 1):
        for pw in (0, 1):
            # im2col over the 2x2 taps of this phase -> one MXU matmul with K = 4*C_PAD.
            patch = jnp.concatenate(
                [tap[(ph + da, pw + db)] for da in (0, 1) for db in (0, 1)],
                axis=-1)                                          # (m, 4*C)
            phases.append(jnp.dot(patch, w_ref[2 * ph + pw],
                                  preferred_element_type=jnp.float32))

    phases = _bn_relu_parts(phases, gamma, beta)                  # joint batch stats
    p4 = [p.reshape(H, W, N, C) for p in phases]
    y = _interleave_phases(*p4)                                   # (2H, 2W, N, C)
    return _pad_hw1(y)


def _make_dc_gen_kernel(n_layers):
    """Build the fully-fused forward kernel for a given number of stride-2 blocks."""

    def kernel(*refs):
        z_ref = refs[0]
        w0_ref, g0_ref, b0_ref = refs[1:4]
        blk_refs = refs[4:4 + 3 * n_layers]
        wf_ref, bf_ref = refs[4 + 3 * n_layers:6 + 3 * n_layers]
        o_ref = refs[6 + 3 * n_layers]

        N = z_ref.shape[0]
        C = g0_ref.shape[1]                           # == C_PAD

        # ---- layer 0: ConvTranspose2d(z_dim, C0, 4, stride=1, bias=False) on 1x1 input.
        # Equivalent to a single (N, z_dim) @ (z_dim, 16*C) matmul whose 128-wide column
        # blocks are the 4x4 spatial grid.
        t0 = jnp.dot(z_ref[...], w0_ref[...], preferred_element_type=jnp.float32)
        chunks = [t0[:, k * C:(k + 1) * C] for k in range(16)]        # 16 x (N, C)
        chunks = _bn_relu_parts(chunks, g0_ref[...], b0_ref[...])
        x = jnp.concatenate([c.reshape(1, N, C) for c in chunks], axis=0)   # (16, N, C)
        xp = _pad_hw1(x.reshape(4, 4, N, C))                                # (6, 6, N, C)

        # ---- n_layers x [ConvTranspose2d(k=4, s=2, p=1) + BN + ReLU] ----
        for i in range(n_layers):
            w_r, g_r, b_r = blk_refs[3 * i:3 * i + 3]
            xp = _convt_s2_block(xp, w_r, g_r[...], b_r[...])

        # ---- final ConvTranspose2d(k=3, s=1, p=1) + bias + Tanh ----
        Hp, Wp, _, _ = xp.shape
        H, W = Hp - 2, Wp - 2
        m = H * W * N
        patch = jnp.concatenate(
            [xp[a:a + H, b:b + W].reshape(m, C) for a in range(3) for b in range(3)],
            axis=-1)                                              # (m, 9*C)
        y = jnp.dot(patch, wf_ref[...], preferred_element_type=jnp.float32) + bf_ref[...]
        # Output kept as a compact (m, img_ch) slab (tiny: a few KB); wrapper reorders
        # to NCHW.  Lane-padding it to 128 would write 40x more HBM bytes for no gain.
        o_ref[...] = jnp.tanh(y)

    return kernel


# ---------------------- host-side weight preparation (once) ----------------------- #

def _layer0_weight(w, c_pad):
    """(z_dim, C0, 4, 4) ConvT weight -> (z_dim, 16*c_pad) matmul weight, cols = (kh, kw, c)."""
    zdim, c0 = w.shape[0], w.shape[1]
    wt = jnp.transpose(w, (0, 2, 3, 1))                       # (zdim, 4, 4, c0)
    wt = jnp.pad(wt, ((0, 0), (0, 0), (0, 0), (0, c_pad - c0)))
    return wt.reshape(zdim, 16 * c_pad)


def _phase_weight_stack(w, c_pad):
    """(Cin, Cout, 4, 4) ConvT weight -> (4, 4*c_pad, c_pad) per-phase tap-stacked weights.

    Phase (ph, pw) of the stride-2 transposed conv reads padded-input offsets
    (ph+da, pw+db), da,db in {0,1}, with kernel taps kh = 3-ph-2*da, kw = 3-pw-2*db.
    """
    cin, cout = w.shape[0], w.shape[1]
    mats = []
    for ph in (0, 1):
        for pw in (0, 1):
            taps = []
            for da in (0, 1):
                for db in (0, 1):
                    kh = 3 - ph - 2 * da
                    kw = 3 - pw - 2 * db
                    blk = jnp.zeros((c_pad, c_pad), jnp.float32)
                    blk = blk.at[:cin, :cout].set(w[:, :, kh, kw])
                    taps.append(blk)
            mats.append(jnp.concatenate(taps, axis=0))         # (4*c_pad, c_pad)
    return jnp.stack(mats, axis=0)                              # (4, 4*c_pad, c_pad)


def _final_weight(w, c_pad):
    """(Cin, img_ch, 3, 3) ConvT weight -> (9*c_pad, img_ch); tap (a,b) uses kh=2-a, kw=2-b."""
    cin, cout = w.shape[0], w.shape[1]
    taps = []
    for a in range(3):
        for b in range(3):
            blk = jnp.zeros((c_pad, cout), jnp.float32)
            blk = blk.at[:cin, :].set(w[:, :, 2 - a, 2 - b])
            taps.append(blk)
    return jnp.concatenate(taps, axis=0)                        # (9*c_pad, img_ch)


def _pad_vec(v, c_pad):
    return jnp.pad(v, (0, c_pad - v.shape[0])).reshape(1, c_pad)


def prepare_pallas_params(layers, final):
    """One-time re-packing of PyTorch-layout parameters into the kernel's argument list."""
    first, rest = layers[0], layers[1:]
    assert first['w'].shape[1] <= C_PAD, "base_ch*8 must fit in one 128-lane tile"
    args = [_layer0_weight(first['w'], C_PAD),
            _pad_vec(first['gamma'], C_PAD), _pad_vec(first['beta'], C_PAD)]
    for lyr in rest:
        args += [_phase_weight_stack(lyr['w'], C_PAD),
                 _pad_vec(lyr['gamma'], C_PAD), _pad_vec(lyr['beta'], C_PAD)]
    args += [_final_weight(final['w'], C_PAD), final['b'].reshape(1, -1)]
    return tuple(args)


# --------------------------------- forward wrapper -------------------------------- #

def dc_generator_forward(z, pallas_args, *, n_layers, img_ch):
    """z: (N, z_dim). Returns NCHW images (N, img_ch, S, S), matching the PyTorch module."""
    N = z.shape[0]
    S = 4 * (2 ** n_layers)
    out2d = pl.pallas_call(
        _make_dc_gen_kernel(n_layers),
        out_shape=jax.ShapeDtypeStruct((S * S * N, img_ch), jnp.float32),
        compiler_params=pltpu.CompilerParams(vmem_limit_bytes=32 * 1024 * 1024),
    )(z, *pallas_args)
    # rows of out2d are ordered (h, w, n); reorder to the module's NCHW convention.
    return out2d.reshape(S, S, N, img_ch).transpose(2, 3, 0, 1)
    # TODO(synk): on v6e/v7x the MXU matmuls could take bf16 inputs (f32 accumulate) for
    #             extra headroom; kept f32 here to match the reference within tolerance.


# ------------------------------- parameter init ----------------------------------- #

def init_params(key, z_dim, img_ch, base_ch, n_layers):
    """Deterministic DCGAN-style init. ConvT weights are (Cin, Cout, K, K) like PyTorch."""
    layer_specs = []
    ch_in, ch_out = z_dim, base_ch * 8
    layer_specs.append((ch_in, ch_out, 4, 1, 0))       # first: k=4, s=1, p=0
    ch_in = ch_out
    for _ in range(n_layers):
        ch_out = ch_in // 2
        layer_specs.append((ch_in, ch_out, 4, 2, 1))   # k=4, s=2, p=1
        ch_in = ch_out

    layers = []
    for (ci, co, k, s, p) in layer_specs:
        key, kw, kg = jax.random.split(key, 3)
        layers.append(dict(
            w=0.02 * jax.random.normal(kw, (ci, co, k, k), jnp.float32),
            gamma=1.0 + 0.02 * jax.random.normal(kg, (co,), jnp.float32),
            beta=jnp.zeros((co,), jnp.float32),
            stride=s, pad=p))

    key, kw, kb = jax.random.split(key, 3)
    final = dict(
        w=0.02 * jax.random.normal(kw, (ch_in, img_ch, 3, 3), jnp.float32),
        b=0.02 * jax.random.normal(kb, (img_ch,), jnp.float32),
        stride=1, pad=1)
    return layers, final


# --------------------------- pure-JAX reference (NCHW) ----------------------------- #

def _ref_conv_transpose(x_nchw, w_t, bias, s, p):
    Cin, Cout, KH, KW = w_t.shape
    w_conv = jnp.flip(w_t, axis=(2, 3)).transpose(1, 0, 2, 3)   # (Cout, Cin, KH, KW)
    out = jax.lax.conv_general_dilated(
        x_nchw, w_conv, window_strides=(1, 1),
        padding=[(KH - 1 - p, KH - 1 - p), (KW - 1 - p, KW - 1 - p)],
        lhs_dilation=(s, s),
        dimension_numbers=('NCHW', 'OIHW', 'NCHW'),
        precision=jax.lax.Precision.HIGHEST)
    if bias is not None:
        out = out + bias.reshape(1, -1, 1, 1)
    return out


def _ref_bn_relu(x_nchw, gamma, beta):
    mean = jnp.mean(x_nchw, axis=(0, 2, 3), keepdims=True)
    var = jnp.mean(jnp.square(x_nchw - mean), axis=(0, 2, 3), keepdims=True)
    y = (x_nchw - mean) * jax.lax.rsqrt(var + 1e-5)
    y = y * gamma.reshape(1, -1, 1, 1) + beta.reshape(1, -1, 1, 1)
    return jnp.maximum(y, 0.0)


def dc_generator_reference(z, layers, final):
    N = z.shape[0]
    x = z.reshape(N, -1, 1, 1)
    for lyr in layers:
        x = _ref_conv_transpose(x, lyr['w'], None, lyr['stride'], lyr['pad'])
        x = _ref_bn_relu(x, lyr['gamma'], lyr['beta'])
    x = _ref_conv_transpose(x, final['w'], final['b'], final['stride'], final['pad'])
    return jnp.tanh(x)


# -------------------------------------- main --------------------------------------- #

if __name__ == "__main__":
    # Small config consistent with the module: z_dim=32, base_ch=8, n_layers=2, img_ch=3.
    # Spatial path: 1x1 -> 4x4 -> 8x8 -> 16x16 ; output (2, 3, 16, 16).
    Z_DIM, IMG_CH, BASE_CH, N_LAYERS, BATCH = 32, 3, 8, 2, 2

    key = jax.random.PRNGKey(0)
    key, zk = jax.random.split(key)
    z = jax.random.normal(zk, (BATCH, Z_DIM), jnp.float32)

    layers, final = init_params(key, Z_DIM, IMG_CH, BASE_CH, N_LAYERS)
    pallas_args = prepare_pallas_params(layers, final)   # weight re-packing done once

    fwd = jax.jit(functools.partial(dc_generator_forward,
                                    n_layers=N_LAYERS, img_ch=IMG_CH))
    out = jax.block_until_ready(fwd(z, pallas_args))
    assert out.shape == (BATCH, IMG_CH, 16, 16), out.shape

    # Numerical check vs. a pure-JAX reference of the same forward pass.
    ref = jax.block_until_ready(dc_generator_reference(z, layers, final))
    np.testing.assert_allclose(np.asarray(out), np.asarray(ref), atol=2e-2, rtol=2e-2)

    print("KERNEL_OK")
</pallas_src>

<mosaic_0001>
module attributes {stable_mosaic.version = 11 : i64} {
  func.func @kernel(%arg0: memref<2x32xf32, #tpu.memory_space<vmem>>, %arg1: memref<32x2048xf32, #tpu.memory_space<vmem>>, %arg2: memref<1x128xf32, #tpu.memory_space<vmem>>, %arg3: memref<1x128xf32, #tpu.memory_space<vmem>>, %arg4: memref<4x512x128xf32, #tpu.memory_space<vmem>>, %arg5: memref<1x128xf32, #tpu.memory_space<vmem>>, %arg6: memref<1x128xf32, #tpu.memory_space<vmem>>, %arg7: memref<4x512x128xf32, #tpu.memory_space<vmem>>, %arg8: memref<1x128xf32, #tpu.memory_space<vmem>>, %arg9: memref<1x128xf32, #tpu.memory_space<vmem>>, %arg10: memref<1152x3xf32, #tpu.memory_space<vmem>>, %arg11: memref<1x3xf32, #tpu.memory_space<vmem>>, %arg12: memref<512x3xf32, #tpu.memory_space<vmem>>) attributes {dimension_semantics = [], scalar_prefetch = 0 : i64, scratch_operands = 0 : i64, tpu.core_type = #tpu.core_type<tc>} {
    %c0 = arith.constant 0 : index
    %c0_0 = arith.constant 0 : index
    %0 = vector.load %arg0[%c0, %c0_0] : memref<2x32xf32, #tpu.memory_space<vmem>>, vector<2x32xf32>
    %c0_1 = arith.constant 0 : index
    %c0_2 = arith.constant 0 : index
    %1 = vector.load %arg1[%c0_1, %c0_2] : memref<32x2048xf32, #tpu.memory_space<vmem>>, vector<32x2048xf32>
    %cst = arith.constant dense<0.000000e+00> : vector<2x2048xf32>
    %2 = tpu.matmul %0, %1, %cst {dimension_numbers = #tpu.dot_dimension_numbers<[1], [0], [0], [1], [0, 0, 1, 1], [], []>} : vector<2x32xf32>, vector<32x2048xf32>, vector<2x2048xf32> -> vector<2x2048xf32>
    %3 = vector.extract_strided_slice %2 {offsets = [0, 0], sizes = [2, 128], strides = [1, 1]} : vector<2x2048xf32> to vector<2x128xf32>
    %4 = vector.extract_strided_slice %2 {offsets = [0, 128], sizes = [2, 128], strides = [1, 1]} : vector<2x2048xf32> to vector<2x128xf32>
    %5 = vector.extract_strided_slice %2 {offsets = [0, 256], sizes = [2, 128], strides = [1, 1]} : vector<2x2048xf32> to vector<2x128xf32>
    %6 = vector.extract_strided_slice %2 {offsets = [0, 384], sizes = [2, 128], strides = [1, 1]} : vector<2x2048xf32> to vector<2x128xf32>
    %7 = vector.extract_strided_slice %2 {offsets = [0, 512], sizes = [2, 128], strides = [1, 1]} : vector<2x2048xf32> to vector<2x128xf32>
    %8 = vector.extract_strided_slice %2 {offsets = [0, 640], sizes = [2, 128], strides = [1, 1]} : vector<2x2048xf32> to vector<2x128xf32>
    %9 = vector.extract_strided_slice %2 {offsets = [0, 768], sizes = [2, 128], strides = [1, 1]} : vector<2x2048xf32> to vector<2x128xf32>
    %10 = vector.extract_strided_slice %2 {offsets = [0, 896], sizes = [2, 128], strides = [1, 1]} : vector<2x2048xf32> to vector<2x128xf32>
    %11 = vector.extract_strided_slice %2 {offsets = [0, 1024], sizes = [2, 128], strides = [1, 1]} : vector<2x2048xf32> to vector<2x128xf32>
    %12 = vector.extract_strided_slice %2 {offsets = [0, 1152], sizes = [2, 128], strides = [1, 1]} : vector<2x2048xf32> to vector<2x128xf32>
    %13 = vector.extract_strided_slice %2 {offsets = [0, 1280], sizes = [2, 128], strides = [1, 1]} : vector<2x2048xf32> to vector<2x128xf32>
    %14 = vector.extract_strided_slice %2 {offsets = [0, 1408], sizes = [2, 128], strides = [1, 1]} : vector<2x2048xf32> to vector<2x128xf32>
    %15 = vector.extract_strided_slice %2 {offsets = [0, 1536], sizes = [2, 128], strides = [1, 1]} : vector<2x2048xf32> to vector<2x128xf32>
    %16 = vector.extract_strided_slice %2 {offsets = [0, 1664], sizes = [2, 128], strides = [1, 1]} : vector<2x2048xf32> to vector<2x128xf32>
    %17 = vector.extract_strided_slice %2 {offsets = [0, 1792], sizes = [2, 128], strides = [1, 1]} : vector<2x2048xf32> to vector<2x128xf32>
    %18 = vector.extract_strided_slice %2 {offsets = [0, 1920], sizes = [2, 128], strides = [1, 1]} : vector<2x2048xf32> to vector<2x128xf32>
    %c0_3 = arith.constant 0 : index
    %c0_4 = arith.constant 0 : index
    %19 = vector.load %arg2[%c0_3, %c0_4] : memref<1x128xf32, #tpu.memory_space<vmem>>, vector<1x128xf32>
    %c0_5 = arith.constant 0 : index
    %c0_6 = arith.constant 0 : index
    %20 = vector.load %arg3[%c0_5, %c0_6] : memref<1x128xf32, #tpu.memory_space<vmem>>, vector<1x128xf32>
    %cst_7 = arith.constant dense<0.000000e+00> : vector<128xf32>
    %21 = vector.multi_reduction <add>, %3, %cst_7 [0] : vector<2x128xf32> to vector<128xf32>
    %22 = vector.shape_cast %21 : vector<128xf32> to vector<1x128xf32>
    %cst_8 = arith.constant 0.000000e+00 : f32
    %23 = vector.broadcast %cst_8 : f32 to vector<1x128xf32>
    %24 = arith.addf %23, %22 : vector<1x128xf32>
    %cst_9 = arith.constant dense<0.000000e+00> : vector<128xf32>
    %25 = vector.multi_reduction <add>, %4, %cst_9 [0] : vector<2x128xf32> to vector<128xf32>
    %26 = vector.shape_cast %25 : vector<128xf32> to vector<1x128xf32>
    %27 = arith.addf %24, %26 : vector<1x128xf32>
    %cst_10 = arith.constant dense<0.000000e+00> : vector<128xf32>
    %28 = vector.multi_reduction <add>, %5, %cst_10 [0] : vector<2x128xf32> to vector<128xf32>
    %29 = vector.shape_cast %28 : vector<128xf32> to vector<1x128xf32>
    %30 = arith.addf %27, %29 : vector<1x128xf32>
    %cst_11 = arith.constant dense<0.000000e+00> : vector<128xf32>
    %31 = vector.multi_reduction <add>, %6, %cst_11 [0] : vector<2x128xf32> to vector<128xf32>
    %32 = vector.shape_cast %31 : vector<128xf32> to vector<1x128xf32>
    %33 = arith.addf %30, %32 : vector<1x128xf32>
    %cst_12 = arith.constant dense<0.000000e+00> : vector<128xf32>
    %34 = vector.multi_reduction <add>, %7, %cst_12 [0] : vector<2x128xf32> to vector<128xf32>
    %35 = vector.shape_cast %34 : vector<128xf32> to vector<1x128xf32>
    %36 = arith.addf %33, %35 : vector<1x128xf32>
    %cst_13 = arith.constant dense<0.000000e+00> : vector<128xf32>
    %37 = vector.multi_reduction <add>, %8, %cst_13 [0] : vector<2x128xf32> to vector<128xf32>
    %38 = vector.shape_cast %37 : vector<128xf32> to vector<1x128xf32>
    %39 = arith.addf %36, %38 : vector<1x128xf32>
    %cst_14 = arith.constant dense<0.000000e+00> : vector<128xf32>
    %40 = vector.multi_reduction <add>, %9, %cst_14 [0] : vector<2x128xf32> to vector<128xf32>
    %41 = vector.shape_cast %40 : vector<128xf32> to vector<1x128xf32>
    %42 = arith.addf %39, %41 : vector<1x128xf32>
    %cst_15 = arith.constant dense<0.000000e+00> : vector<128xf32>
    %43 = vector.multi_reduction <add>, %10, %cst_15 [0] : vector<2x128xf32> to vector<128xf32>
    %44 = vector.shape_cast %43 : vector<128xf32> to vector<1x128xf32>
    %45 = arith.addf %42, %44 : vector<1x128xf32>
    %cst_16 = arith.constant dense<0.000000e+00> : vector<128xf32>
    %46 = vector.multi_reduction <add>, %11, %cst_16 [0] : vector<2x128xf32> to vector<128xf32>
    %47 = vector.shape_cast %46 : vector<128xf32> to vector<1x128xf32>
    %48 = arith.addf %45, %47 : vector<1x128xf32>
    %cst_17 = arith.constant dense<0.000000e+00> : vector<128xf32>
    %49 = vector.multi_reduction <add>, %12, %cst_17 [0] : vector<2x128xf32> to vector<128xf32>
    %50 = vector.shape_cast %49 : vector<128xf32> to vector<1x128xf32>
    %51 = arith.addf %48, %50 : vector<1x128xf32>
    %cst_18 = arith.constant dense<0.000000e+00> : vector<128xf32>
    %52 = vector.multi_reduction <add>, %13, %cst_18 [0] : vector<2x128xf32> to vector<128xf32>
    %53 = vector.shape_cast %52 : vector<128xf32> to vector<1x128xf32>
    %54 = arith.addf %51, %53 : vector<1x128xf32>
    %cst_19 = arith.constant dense<0.000000e+00> : vector<128xf32>
    %55 = vector.multi_reduction <add>, %14, %cst_19 [0] : vector<2x128xf32> to vector<128xf32>
    %56 = vector.shape_cast %55 : vector<128xf32> to vector<1x128xf32>
    %57 = arith.addf %54, %56 : vector<1x128xf32>
    %cst_20 = arith.constant dense<0.000000e+00> : vector<128xf32>
    %58 = vector.multi_reduction <add>, %15, %cst_20 [0] : vector<2x128xf32> to vector<128xf32>
    %59 = vector.shape_cast %58 : vector<128xf32> to vector<1x128xf32>
    %60 = arith.addf %57, %59 : vector<1x128xf32>
    %cst_21 = arith.constant dense<0.000000e+00> : vector<128xf32>
    %61 = vector.multi_reduction <add>, %16, %cst_21 [0] : vector<2x128xf32> to vector<128xf32>
    %62 = vector.shape_cast %61 : vector<128xf32> to vector<1x128xf32>
    %63 = arith.addf %60, %62 : vector<1x128xf32>
    %cst_22 = arith.constant dense<0.000000e+00> : vector<128xf32>
    %64 = vector.multi_reduction <add>, %17, %cst_22 [0] : vector<2x128xf32> to vector<128xf32>
    %65 = vector.shape_cast %64 : vector<128xf32> to vector<1x128xf32>
    %66 = arith.addf %63, %65 : vector<1x128xf32>
    %cst_23 = arith.constant dense<0.000000e+00> : vector<128xf32>
    %67 = vector.multi_reduction <add>, %18, %cst_23 [0] : vector<2x128xf32> to vector<128xf32>
    %68 = vector.shape_cast %67 : vector<128xf32> to vector<1x128xf32>
    %69 = arith.addf %66, %68 : vector<1x128xf32>
    %70 = arith.mulf %3, %3 : vector<2x128xf32>
    %cst_24 = arith.constant dense<0.000000e+00> : vector<128xf32>
    %71 = vector.multi_reduction <add>, %70, %cst_24 [0] : vector<2x128xf32> to vector<128xf32>
    %72 = vector.shape_cast %71 : vector<128xf32> to vector<1x128xf32>
    %cst_25 = arith.constant 0.000000e+00 : f32
    %73 = vector.broadcast %cst_25 : f32 to vector<1x128xf32>
    %74 = arith.addf %73, %72 : vector<1x128xf32>
    %75 = arith.mulf %4, %4 : vector<2x128xf32>
    %cst_26 = arith.constant dense<0.000000e+00> : vector<128xf32>
    %76 = vector.multi_reduction <add>, %75, %cst_26 [0] : vector<2x128xf32> to vector<128xf32>
    %77 = vector.shape_cast %76 : vector<128xf32> to vector<1x128xf32>
    %78 = arith.addf %74, %77 : vector<1x128xf32>
    %79 = arith.mulf %5, %5 : vector<2x128xf32>
    %cst_27 = arith.constant dense<0.000000e+00> : vector<128xf32>
    %80 = vector.multi_reduction <add>, %79, %cst_27 [0] : vector<2x128xf32> to vector<128xf32>
    %81 = vector.shape_cast %80 : vector<128xf32> to vector<1x128xf32>
    %82 = arith.addf %78, %81 : vector<1x128xf32>
    %83 = arith.mulf %6, %6 : vector<2x128xf32>
    %cst_28 = arith.constant dense<0.000000e+00> : vector<128xf32>
    %84 = vector.multi_reduction <add>, %83, %cst_28 [0] : vector<2x128xf32> to vector<128xf32>
    %85 = vector.shape_cast %84 : vector<128xf32> to vector<1x128xf32>
    %86 = arith.addf %82, %85 : vector<1x128xf32>
    %87 = arith.mulf %7, %7 : vector<2x128xf32>
    %cst_29 = arith.constant dense<0.000000e+00> : vector<128xf32>
    %88 = vector.multi_reduction <add>, %87, %cst_29 [0] : vector<2x128xf32> to vector<128xf32>
    %89 = vector.shape_cast %88 : vector<128xf32> to vector<1x128xf32>
    %90 = arith.addf %86, %89 : vector<1x128xf32>
    %91 = arith.mulf %8, %8 : vector<2x128xf32>
    %cst_30 = arith.constant dense<0.000000e+00> : vector<128xf32>
    %92 = vector.multi_reduction <add>, %91, %cst_30 [0] : vector<2x128xf32> to vector<128xf32>
    %93 = vector.shape_cast %92 : vector<128xf32> to vector<1x128xf32>
    %94 = arith.addf %90, %93 : vector<1x128xf32>
    %95 = arith.mulf %9, %9 : vector<2x128xf32>
    %cst_31 = arith.constant dense<0.000000e+00> : vector<128xf32>
    %96 = vector.multi_reduction <add>, %95, %cst_31 [0] : vector<2x128xf32> to vector<128xf32>
    %97 = vector.shape_cast %96 : vector<128xf32> to vector<1x128xf32>
    %98 = arith.addf %94, %97 : vector<1x128xf32>
    %99 = arith.mulf %10, %10 : vector<2x128xf32>
    %cst_32 = arith.constant dense<0.000000e+00> : vector<128xf32>
    %100 = vector.multi_reduction <add>, %99, %cst_32 [0] : vector<2x128xf32> to vector<128xf32>
    %101 = vector.shape_cast %100 : vector<128xf32> to vector<1x128xf32>
    %102 = arith.addf %98, %101 : vector<1x128xf32>
    %103 = arith.mulf %11, %11 : vector<2x128xf32>
    %cst_33 = arith.constant dense<0.000000e+00> : vector<128xf32>
    %104 = vector.multi_reduction <add>, %103, %cst_33 [0] : vector<2x128xf32> to vector<128xf32>
    %105 = vector.shape_cast %104 : vector<128xf32> to vector<1x128xf32>
    %106 = arith.addf %102, %105 : vector<1x128xf32>
    %107 = arith.mulf %12, %12 : vector<2x128xf32>
    %cst_34 = arith.constant dense<0.000000e+00> : vector<128xf32>
    %108 = vector.multi_reduction <add>, %107, %cst_34 [0] : vector<2x128xf32> to vector<128xf32>
    %109 = vector.shape_cast %108 : vector<128xf32> to vector<1x128xf32>
    %110 = arith.addf %106, %109 : vector<1x128xf32>
    %111 = arith.mulf %13, %13 : vector<2x128xf32>
    %cst_35 = arith.constant dense<0.000000e+00> : vector<128xf32>
    %112 = vector.multi_reduction <add>, %111, %cst_35 [0] : vector<2x128xf32> to vector<128xf32>
    %113 = vector.shape_cast %112 : vector<128xf32> to vector<1x128xf32>
    %114 = arith.addf %110, %113 : vector<1x128xf32>
    %115 = arith.mulf %14, %14 : vector<2x128xf32>
    %cst_36 = arith.constant dense<0.000000e+00> : vector<128xf32>
    %116 = vector.multi_reduction <add>, %115, %cst_36 [0] : vector<2x128xf32> to vector<128xf32>
    %117 = vector.shape_cast %116 : vector<128xf32> to vector<1x128xf32>
    %118 = arith.addf %114, %117 : vector<1x128xf32>
    %119 = arith.mulf %15, %15 : vector<2x128xf32>
    %cst_37 = arith.constant dense<0.000000e+00> : vector<128xf32>
    %120 = vector.multi_reduction <add>, %119, %cst_37 [0] : vector<2x128xf32> to vector<128xf32>
    %121 = vector.shape_cast %120 : vector<128xf32> to vector<1x128xf32>
    %122 = arith.addf %118, %121 : vector<1x128xf32>
    %123 = arith.mulf %16, %16 : vector<2x128xf32>
    %cst_38 = arith.constant dense<0.000000e+00> : vector<128xf32>
    %124 = vector.multi_reduction <add>, %123, %cst_38 [0] : vector<2x128xf32> to vector<128xf32>
    %125 = vector.shape_cast %124 : vector<128xf32> to vector<1x128xf32>
    %126 = arith.addf %122, %125 : vector<1x128xf32>
    %127 = arith.mulf %17, %17 : vector<2x128xf32>
    %cst_39 = arith.constant dense<0.000000e+00> : vector<128xf32>
    %128 = vector.multi_reduction <add>, %127, %cst_39 [0] : vector<2x128xf32> to vector<128xf32>
    %129 = vector.shape_cast %128 : vector<128xf32> to vector<1x128xf32>
    %130 = arith.addf %126, %129 : vector<1x128xf32>
    %131 = arith.mulf %18, %18 : vector<2x128xf32>
    %cst_40 = arith.constant dense<0.000000e+00> : vector<128xf32>
    %132 = vector.multi_reduction <add>, %131, %cst_40 [0] : vector<2x128xf32> to vector<128xf32>
    %133 = vector.shape_cast %132 : vector<128xf32> to vector<1x128xf32>
    %134 = arith.addf %130, %133 : vector<1x128xf32>
    %cst_41 = arith.constant 3.125000e-02 : f32
    %135 = vector.broadcast %cst_41 : f32 to vector<1x128xf32>
    %136 = arith.mulf %69, %135 : vector<1x128xf32>
    %cst_42 = arith.constant 3.125000e-02 : f32
    %137 = vector.broadcast %cst_42 : f32 to vector<1x128xf32>
    %138 = arith.mulf %134, %137 : vector<1x128xf32>
    %139 = arith.mulf %136, %136 : vector<1x128xf32>
    %140 = arith.subf %138, %139 : vector<1x128xf32>
    %cst_43 = arith.constant 9.99999974E-6 : f32
    %141 = vector.broadcast %cst_43 : f32 to vector<1x128xf32>
    %142 = arith.addf %140, %141 : vector<1x128xf32>
    %143 = math.rsqrt %142 : vector<1x128xf32>
    %144 = arith.mulf %143, %19 : vector<1x128xf32>
    %145 = arith.mulf %136, %144 : vector<1x128xf32>
    %146 = arith.subf %20, %145 : vector<1x128xf32>
    %147 = vector.broadcast %144 : vector<1x128xf32> to vector<2x128xf32>
    %148 = arith.mulf %3, %147 : vector<2x128xf32>
    %149 = vector.broadcast %146 : vector<1x128xf32> to vector<2x128xf32>
    %150 = arith.addf %148, %149 : vector<2x128xf32>
    %cst_44 = arith.constant 0.000000e+00 : f32
    %151 = vector.broadcast %cst_44 : f32 to vector<2x128xf32>
    %152 = arith.maximumf %150, %151 : vector<2x128xf32>
    %153 = vector.broadcast %144 : vector<1x128xf32> to vector<2x128xf32>
    %154 = arith.mulf %4, %153 : vector<2x128xf32>
    %155 = vector.broadcast %146 : vector<1x128xf32> to vector<2x128xf32>
    %156 = arith.addf %154, %155 : vector<2x128xf32>
    %cst_45 = arith.constant 0.000000e+00 : f32
    %157 = vector.broadcast %cst_45 : f32 to vector<2x128xf32>
    %158 = arith.maximumf %156, %157 : vector<2x128xf32>
    %159 = vector.broadcast %144 : vector<1x128xf32> to vector<2x128xf32>
    %160 = arith.mulf %5, %159 : vector<2x128xf32>
    %161 = vector.broadcast %146 : vector<1x128xf32> to vector<2x128xf32>
    %162 = arith.addf %160, %161 : vector<2x128xf32>
    %cst_46 = arith.constant 0.000000e+00 : f32
    %163 = vector.broadcast %cst_46 : f32 to vector<2x128xf32>
    %164 = arith.maximumf %162, %163 : vector<2x128xf32>
    %165 = vector.broadcast %144 : vector<1x128xf32> to vector<2x128xf32>
    %166 = arith.mulf %6, %165 : vector<2x128xf32>
    %167 = vector.broadcast %146 : vector<1x128xf32> to vector<2x128xf32>
    %168 = arith.addf %166, %167 : vector<2x128xf32>
    %cst_47 = arith.constant 0.000000e+00 : f32
    %169 = vector.broadcast %cst_47 : f32 to vector<2x128xf32>
    %170 = arith.maximumf %168, %169 : vector<2x128xf32>
    %171 = vector.broadcast %144 : vector<1x128xf32> to vector<2x128xf32>
    %172 = arith.mulf %7, %171 : vector<2x128xf32>
    %173 = vector.broadcast %146 : vector<1x128xf32> to vector<2x128xf32>
    %174 = arith.addf %172, %173 : vector<2x128xf32>
    %cst_48 = arith.constant 0.000000e+00 : f32
    %175 = vector.broadcast %cst_48 : f32 to vector<2x128xf32>
    %176 = arith.maximumf %174, %175 : vector<2x128xf32>
    %177 = vector.broadcast %144 : vector<1x128xf32> to vector<2x128xf32>
    %178 = arith.mulf %8, %177 : vector<2x128xf32>
    %179 = vector.broadcast %146 : vector<1x128xf32> to vector<2x128xf32>
    %180 = arith.addf %178, %179 : vector<2x128xf32>
    %cst_49 = arith.constant 0.000000e+00 : f32
    %181 = vector.broadcast %cst_49 : f32 to vector<2x128xf32>
    %182 = arith.maximumf %180, %181 : vector<2x128xf32>
    %183 = vector.broadcast %144 : vector<1x128xf32> to vector<2x128xf32>
    %184 = arith.mulf %9, %183 : vector<2x128xf32>
    %185 = vector.broadcast %146 : vector<1x128xf32> to vector<2x128xf32>
    %186 = arith.addf %184, %185 : vector<2x128xf32>
    %cst_50 = arith.constant 0.000000e+00 : f32
    %187 = vector.broadcast %cst_50 : f32 to vector<2x128xf32>
    %188 = arith.maximumf %186, %187 : vector<2x128xf32>
    %189 = vector.broadcast %144 : vector<1x128xf32> to vector<2x128xf32>
    %190 = arith.mulf %10, %189 : vector<2x128xf32>
    %191 = vector.broadcast %146 : vector<1x128xf32> to vector<2x128xf32>
    %192 = arith.addf %190, %191 : vector<2x128xf32>
    %cst_51 = arith.constant 0.000000e+00 : f32
    %193 = vector.broadcast %cst_51 : f32 to vector<2x128xf32>
    %194 = arith.maximumf %192, %193 : vector<2x128xf32>
    %195 = vector.broadcast %144 : vector<1x128xf32> to vector<2x128xf32>
    %196 = arith.mulf %11, %195 : vector<2x128xf32>
    %197 = vector.broadcast %146 : vector<1x128xf32> to vector<2x128xf32>
    %198 = arith.addf %196, %197 : vector<2x128xf32>
    %cst_52 = arith.constant 0.000000e+00 : f32
    %199 = vector.broadcast %cst_52 : f32 to vector<2x128xf32>
    %200 = arith.maximumf %198, %199 : vector<2x128xf32>
    %201 = vector.broadcast %144 : vector<1x128xf32> to vector<2x128xf32>
    %202 = arith.mulf %12, %201 : vector<2x128xf32>
    %203 = vector.broadcast %146 : vector<1x128xf32> to vector<2x128xf32>
    %204 = arith.addf %202, %203 : vector<2x128xf32>
    %cst_53 = arith.constant 0.000000e+00 : f32
    %205 = vector.broadcast %cst_53 : f32 to vector<2x128xf32>
    %206 = arith.maximumf %204, %205 : vector<2x128xf32>
    %207 = vector.broadcast %144 : vector<1x128xf32> to vector<2x128xf32>
    %208 = arith.mulf %13, %207 : vector<2x128xf32>
    %209 = vector.broadcast %146 : vector<1x128xf32> to vector<2x128xf32>
    %210 = arith.addf %208, %209 : vector<2x128xf32>
    %cst_54 = arith.constant 0.000000e+00 : f32
    %211 = vector.broadcast %cst_54 : f32 to vector<2x128xf32>
    %212 = arith.maximumf %210, %211 : vector<2x128xf32>
    %213 = vector.broadcast %144 : vector<1x128xf32> to vector<2x128xf32>
    %214 = arith.mulf %14, %213 : vector<2x128xf32>
    %215 = vector.broadcast %146 : vector<1x128xf32> to vector<2x128xf32>
    %216 = arith.addf %214, %215 : vector<2x128xf32>
    %cst_55 = arith.constant 0.000000e+00 : f32
    %217 = vector.broadcast %cst_55 : f32 to vector<2x128xf32>
    %218 = arith.maximumf %216, %217 : vector<2x128xf32>
    %219 = vector.broadcast %144 : vector<1x128xf32> to vector<2x128xf32>
    %220 = arith.mulf %15, %219 : vector<2x128xf32>
    %221 = vector.broadcast %146 : vector<1x128xf32> to vector<2x128xf32>
    %222 = arith.addf %220, %221 : vector<2x128xf32>
    %cst_56 = arith.constant 0.000000e+00 : f32
    %223 = vector.broadcast %cst_56 : f32 to vector<2x128xf32>
    %224 = arith.maximumf %222, %223 : vector<2x128xf32>
    %225 = vector.broadcast %144 : vector<1x128xf32> to vector<2x128xf32>
    %226 = arith.mulf %16, %225 : vector<2x128xf32>
    %227 = vector.broadcast %146 : vector<1x128xf32> to vector<2x128xf32>
    %228 = arith.addf %226, %227 : vector<2x128xf32>
    %cst_57 = arith.constant 0.000000e+00 : f32
    %229 = vector.broadcast %cst_57 : f32 to vector<2x128xf32>
    %230 = arith.maximumf %228, %229 : vector<2x128xf32>
    %231 = vector.broadcast %144 : vector<1x128xf32> to vector<2x128xf32>
    %232 = arith.mulf %17, %231 : vector<2x128xf32>
    %233 = vector.broadcast %146 : vector<1x128xf32> to vector<2x128xf32>
    %234 = arith.addf %232, %233 : vector<2x128xf32>
    %cst_58 = arith.constant 0.000000e+00 : f32
    %235 = vector.broadcast %cst_58 : f32 to vector<2x128xf32>
    %236 = arith.maximumf %234, %235 : vector<2x128xf32>
    %237 = vector.broadcast %144 : vector<1x128xf32> to vector<2x128xf32>
    %238 = arith.mulf %18, %237 : vector<2x128xf32>
    %239 = vector.broadcast %146 : vector<1x128xf32> to vector<2x128xf32>
    %240 = arith.addf %238, %239 : vector<2x128xf32>
    %cst_59 = arith.constant 0.000000e+00 : f32
    %241 = vector.broadcast %cst_59 : f32 to vector<2x128xf32>
    %242 = arith.maximumf %240, %241 : vector<2x128xf32>
    %243 = vector.shape_cast %152 : vector<2x128xf32> to vector<1x2x128xf32>
    %244 = vector.shape_cast %158 : vector<2x128xf32> to vector<1x2x128xf32>
    %245 = vector.shape_cast %164 : vector<2x128xf32> to vector<1x2x128xf32>
    %246 = vector.shape_cast %170 : vector<2x128xf32> to vector<1x2x128xf32>
    %247 = vector.shape_cast %176 : vector<2x128xf32> to vector<1x2x128xf32>
    %248 = vector.shape_cast %182 : vector<2x128xf32> to vector<1x2x128xf32>
    %249 = vector.shape_cast %188 : vector<2x128xf32> to vector<1x2x128xf32>
    %250 = vector.shape_cast %194 : vector<2x128xf32> to vector<1x2x128xf32>
    %251 = vector.shape_cast %200 : vector<2x128xf32> to vector<1x2x128xf32>
    %252 = vector.shape_cast %206 : vector<2x128xf32> to vector<1x2x128xf32>
    %253 = vector.shape_cast %212 : vector<2x128xf32> to vector<1x2x128xf32>
    %254 = vector.shape_cast %218 : vector<2x128xf32> to vector<1x2x128xf32>
    %255 = vector.shape_cast %224 : vector<2x128xf32> to vector<1x2x128xf32>
    %256 = vector.shape_cast %230 : vector<2x128xf32> to vector<1x2x128xf32>
    %257 = vector.shape_cast %236 : vector<2x128xf32> to vector<1x2x128xf32>
    %258 = vector.shape_cast %242 : vector<2x128xf32> to vector<1x2x128xf32>
    %259 = tpu.concatenate %243, %244, %245, %246, %247, %248, %249, %250, %251, %252, %253, %254, %255, %256, %257, %258 in 0 : vector<1x2x128xf32>, vector<1x2x128xf32>, vector<1x2x128xf32>, vector<1x2x128xf32>, vector<1x2x128xf32>, vector<1x2x128xf32>, vector<1x2x128xf32>, vector<1x2x128xf32>, vector<1x2x128xf32>, vector<1x2x128xf32>, vector<1x2x128xf32>, vector<1x2x128xf32>, vector<1x2x128xf32>, vector<1x2x128xf32>, vector<1x2x128xf32>, vector<1x2x128xf32> -> vector<16x2x128xf32>
    %260 = vector.shape_cast %259 : vector<16x2x128xf32> to vector<4x4x2x128xf32>
    %cst_60 = arith.constant 0.000000e+00 : f32
    %261 = vector.broadcast %cst_60 : f32 to vector<1x4x2x128xf32>
    %262 = tpu.concatenate %261, %260, %261 in 0 : vector<1x4x2x128xf32>, vector<4x4x2x128xf32>, vector<1x4x2x128xf32> -> vector<6x4x2x128xf32>
    %cst_61 = arith.constant 0.000000e+00 : f32
    %263 = vector.broadcast %cst_61 : f32 to vector<6x1x2x128xf32>
    %264 = tpu.concatenate %263, %262, %263 in 1 : vector<6x1x2x128xf32>, vector<6x4x2x128xf32>, vector<6x1x2x128xf32> -> vector<6x6x2x128xf32>
    %c0_62 = arith.constant 0 : index
    %c0_63 = arith.constant 0 : index
    %265 = vector.load %arg5[%c0_62, %c0_63] : memref<1x128xf32, #tpu.memory_space<vmem>>, vector<1x128xf32>
    %c0_64 = arith.constant 0 : index
    %c0_65 = arith.constant 0 : index
    %266 = vector.load %arg6[%c0_64, %c0_65] : memref<1x128xf32, #tpu.memory_space<vmem>>, vector<1x128xf32>
    %267 = vector.extract_strided_slice %264 {offsets = [0, 0, 0, 0], sizes = [4, 4, 2, 128], strides = [1, 1, 1, 1]} : vector<6x6x2x128xf32> to vector<4x4x2x128xf32>
    %268 = vector.shape_cast %267 : vector<4x4x2x128xf32> to vector<32x128xf32>
    %269 = vector.extract_strided_slice %264 {offsets = [0, 1, 0, 0], sizes = [4, 4, 2, 128], strides = [1, 1, 1, 1]} : vector<6x6x2x128xf32> to vector<4x4x2x128xf32>
    %270 = vector.shape_cast %269 : vector<4x4x2x128xf32> to vector<32x128xf32>
    %271 = vector.extract_strided_slice %264 {offsets = [0, 2, 0, 0], sizes = [4, 4, 2, 128], strides = [1, 1, 1, 1]} : vector<6x6x2x128xf32> to vector<4x4x2x128xf32>
    %272 = vector.shape_cast %271 : vector<4x4x2x128xf32> to vector<32x128xf32>
    %273 = vector.extract_strided_slice %264 {offsets = [1, 0, 0, 0], sizes = [4, 4, 2, 128], strides = [1, 1, 1, 1]} : vector<6x6x2x128xf32> to vector<4x4x2x128xf32>
    %274 = vector.shape_cast %273 : vector<4x4x2x128xf32> to vector<32x128xf32>
    %275 = vector.extract_strided_slice %264 {offsets = [1, 1, 0, 0], sizes = [4, 4, 2, 128], strides = [1, 1, 1, 1]} : vector<6x6x2x128xf32> to vector<4x4x2x128xf32>
    %276 = vector.shape_cast %275 : vector<4x4x2x128xf32> to vector<32x128xf32>
    %277 = vector.extract_strided_slice %264 {offsets = [1, 2, 0, 0], sizes = [4, 4, 2, 128], strides = [1, 1, 1, 1]} : vector<6x6x2x128xf32> to vector<4x4x2x128xf32>
    %278 = vector.shape_cast %277 : vector<4x4x2x128xf32> to vector<32x128xf32>
    %279 = vector.extract_strided_slice %264 {offsets = [2, 0, 0, 0], sizes = [4, 4, 2, 128], strides = [1, 1, 1, 1]} : vector<6x6x2x128xf32> to vector<4x4x2x128xf32>
    %280 = vector.shape_cast %279 : vector<4x4x2x128xf32> to vector<32x128xf32>
    %281 = vector.extract_strided_slice %264 {offsets = [2, 1, 0, 0], sizes = [4, 4, 2, 128], strides = [1, 1, 1, 1]} : vector<6x6x2x128xf32> to vector<4x4x2x128xf32>
    %282 = vector.shape_cast %281 : vector<4x4x2x128xf32> to vector<32x128xf32>
    %283 = vector.extract_strided_slice %264 {offsets = [2, 2, 0, 0], sizes = [4, 4, 2, 128], strides = [1, 1, 1, 1]} : vector<6x6x2x128xf32> to vector<4x4x2x128xf32>
    %284 = vector.shape_cast %283 : vector<4x4x2x128xf32> to vector<32x128xf32>
    %285 = tpu.concatenate %268, %270, %274, %276 in 1 : vector<32x128xf32>, vector<32x128xf32>, vector<32x128xf32>, vector<32x128xf32> -> vector<32x512xf32>
    %c0_66 = arith.constant 0 : index
    %c0_67 = arith.constant 0 : index
    %c0_68 = arith.constant 0 : index
    %286 = vector.load %arg4[%c0_66, %c0_67, %c0_68] : memref<4x512x128xf32, #tpu.memory_space<vmem>>, vector<1x512x128xf32>
    %287 = vector.shape_cast %286 : vector<1x512x128xf32> to vector<512x128xf32>
    %cst_69 = arith.constant dense<0.000000e+00> : vector<32x128xf32>
    %288 = tpu.matmul %285, %287, %cst_69 {dimension_numbers = #tpu.dot_dimension_numbers<[1], [0], [0], [1], [0, 0, 1, 1], [], []>} : vector<32x512xf32>, vector<512x128xf32>, vector<32x128xf32> -> vector<32x128xf32>
    %289 = tpu.concatenate %270, %272, %276, %278 in 1 : vector<32x128xf32>, vector<32x128xf32>, vector<32x128xf32>, vector<32x128xf32> -> vector<32x512xf32>
    %c1 = arith.constant 1 : index
    %c0_70 = arith.constant 0 : index
    %c0_71 = arith.constant 0 : index
    %290 = vector.load %arg4[%c1, %c0_70, %c0_71] : memref<4x512x128xf32, #tpu.memory_space<vmem>>, vector<1x512x128xf32>
    %291 = vector.shape_cast %290 : vector<1x512x128xf32> to vector<512x128xf32>
    %cst_72 = arith.constant dense<0.000000e+00> : vector<32x128xf32>
    %292 = tpu.matmul %289, %291, %cst_72 {dimension_numbers = #tpu.dot_dimension_numbers<[1], [0], [0], [1], [0, 0, 1, 1], [], []>} : vector<32x512xf32>, vector<512x128xf32>, vector<32x128xf32> -> vector<32x128xf32>
    %293 = tpu.concatenate %274, %276, %280, %282 in 1 : vector<32x128xf32>, vector<32x128xf32>, vector<32x128xf32>, vector<32x128xf32> -> vector<32x512xf32>
    %c2 = arith.constant 2 : index
    %c0_73 = arith.constant 0 : index
    %c0_74 = arith.constant 0 : index
    %294 = vector.load %arg4[%c2, %c0_73, %c0_74] : memref<4x512x128xf32, #tpu.memory_space<vmem>>, vector<1x512x128xf32>
    %295 = vector.shape_cast %294 : vector<1x512x128xf32> to vector<512x128xf32>
    %cst_75 = arith.constant dense<0.000000e+00> : vector<32x128xf32>
    %296 = tpu.matmul %293, %295, %cst_75 {dimension_numbers = #tpu.dot_dimension_numbers<[1], [0], [0], [1], [0, 0, 1, 1], [], []>} : vector<32x512xf32>, vector<512x128xf32>, vector<32x128xf32> -> vector<32x128xf32>
    %297 = tpu.concatenate %276, %278, %282, %284 in 1 : vector<32x128xf32>, vector<32x128xf32>, vector<32x128xf32>, vector<32x128xf32> -> vector<32x512xf32>
    %c3 = arith.constant 3 : index
    %c0_76 = arith.constant 0 : index
    %c0_77 = arith.constant 0 : index
    %298 = vector.load %arg4[%c3, %c0_76, %c0_77] : memref<4x512x128xf32, #tpu.memory_space<vmem>>, vector<1x512x128xf32>
    %299 = vector.shape_cast %298 : vector<1x512x128xf32> to vector<512x128xf32>
    %cst_78 = arith.constant dense<0.000000e+00> : vector<32x128xf32>
    %300 = tpu.matmul %297, %299, %cst_78 {dimension_numbers = #tpu.dot_dimension_numbers<[1], [0], [0], [1], [0, 0, 1, 1], [], []>} : vector<32x512xf32>, vector<512x128xf32>, vector<32x128xf32> -> vector<32x128xf32>
    %cst_79 = arith.constant dense<0.000000e+00> : vector<128xf32>
    %301 = vector.multi_reduction <add>, %288, %cst_79 [0] : vector<32x128xf32> to vector<128xf32>
    %302 = vector.shape_cast %301 : vector<128xf32> to vector<1x128xf32>
    %cst_80 = arith.constant 0.000000e+00 : f32
    %303 = vector.broadcast %cst_80 : f32 to vector<1x128xf32>
    %304 = arith.addf %303, %302 : vector<1x128xf32>
    %cst_81 = arith.constant dense<0.000000e+00> : vector<128xf32>
    %305 = vector.multi_reduction <add>, %292, %cst_81 [0] : vector<32x128xf32> to vector<128xf32>
    %306 = vector.shape_cast %305 : vector<128xf32> to vector<1x128xf32>
    %307 = arith.addf %304, %306 : vector<1x128xf32>
    %cst_82 = arith.constant dense<0.000000e+00> : vector<128xf32>
    %308 = vector.multi_reduction <add>, %296, %cst_82 [0] : vector<32x128xf32> to vector<128xf32>
    %309 = vector.shape_cast %308 : vector<128xf32> to vector<1x128xf32>
    %310 = arith.addf %307, %309 : vector<1x128xf32>
    %cst_83 = arith.constant dense<0.000000e+00> : vector<128xf32>
    %311 = vector.multi_reduction <add>, %300, %cst_83 [0] : vector<32x128xf32> to vector<128xf32>
    %312 = vector.shape_cast %311 : vector<128xf32> to vector<1x128xf32>
    %313 = arith.addf %310, %312 : vector<1x128xf32>
    %314 = arith.mulf %288, %288 : vector<32x128xf32>
    %cst_84 = arith.constant dense<0.000000e+00> : vector<128xf32>
    %315 = vector.multi_reduction <add>, %314, %cst_84 [0] : vector<32x128xf32> to vector<128xf32>
    %316 = vector.shape_cast %315 : vector<128xf32> to vector<1x128xf32>
    %cst_85 = arith.constant 0.000000e+00 : f32
    %317 = vector.broadcast %cst_85 : f32 to vector<1x128xf32>
    %318 = arith.addf %317, %316 : vector<1x128xf32>
    %319 = arith.mulf %292, %292 : vector<32x128xf32>
    %cst_86 = arith.constant dense<0.000000e+00> : vector<128xf32>
    %320 = vector.multi_reduction <add>, %319, %cst_86 [0] : vector<32x128xf32> to vector<128xf32>
    %321 = vector.shape_cast %320 : vector<128xf32> to vector<1x128xf32>
    %322 = arith.addf %318, %321 : vector<1x128xf32>
    %323 = arith.mulf %296, %296 : vector<32x128xf32>
    %cst_87 = arith.constant dense<0.000000e+00> : vector<128xf32>
    %324 = vector.multi_reduction <add>, %323, %cst_87 [0] : vector<32x128xf32> to vector<128xf32>
    %325 = vector.shape_cast %324 : vector<128xf32> to vector<1x128xf32>
    %326 = arith.addf %322, %325 : vector<1x128xf32>
    %327 = arith.mulf %300, %300 : vector<32x128xf32>
    %cst_88 = arith.constant dense<0.000000e+00> : vector<128xf32>
    %328 = vector.multi_reduction <add>, %327, %cst_88 [0] : vector<32x128xf32> to vector<128xf32>
    %329 = vector.shape_cast %328 : vector<128xf32> to vector<1x128xf32>
    %330 = arith.addf %326, %329 : vector<1x128xf32>
    %cst_89 = arith.constant 7.812500e-03 : f32
    %331 = vector.broadcast %cst_89 : f32 to vector<1x128xf32>
    %332 = arith.mulf %313, %331 : vector<1x128xf32>
    %cst_90 = arith.constant 7.812500e-03 : f32
    %333 = vector.broadcast %cst_90 : f32 to vector<1x128xf32>
    %334 = arith.mulf %330, %333 : vector<1x128xf32>
    %335 = arith.mulf %332, %332 : vector<1x128xf32>
    %336 = arith.subf %334, %335 : vector<1x128xf32>
    %cst_91 = arith.constant 9.99999974E-6 : f32
    %337 = vector.broadcast %cst_91 : f32 to vector<1x128xf32>
    %338 = arith.addf %336, %337 : vector<1x128xf32>
    %339 = math.rsqrt %338 : vector<1x128xf32>
    %340 = arith.mulf %339, %265 : vector<1x128xf32>
    %341 = arith.mulf %332, %340 : vector<1x128xf32>
    %342 = arith.subf %266, %341 : vector<1x128xf32>
    %343 = vector.broadcast %340 : vector<1x128xf32> to vector<32x128xf32>
    %344 = arith.mulf %288, %343 : vector<32x128xf32>
    %345 = vector.broadcast %342 : vector<1x128xf32> to vector<32x128xf32>
    %346 = arith.addf %344, %345 : vector<32x128xf32>
    %cst_92 = arith.constant 0.000000e+00 : f32
    %347 = vector.broadcast %cst_92 : f32 to vector<32x128xf32>
    %348 = arith.maximumf %346, %347 : vector<32x128xf32>
    %349 = vector.broadcast %340 : vector<1x128xf32> to vector<32x128xf32>
    %350 = arith.mulf %292, %349 : vector<32x128xf32>
    %351 = vector.broadcast %342 : vector<1x128xf32> to vector<32x128xf32>
    %352 = arith.addf %350, %351 : vector<32x128xf32>
    %cst_93 = arith.constant 0.000000e+00 : f32
    %353 = vector.broadcast %cst_93 : f32 to vector<32x128xf32>
    %354 = arith.maximumf %352, %353 : vector<32x128xf32>
    %355 = vector.broadcast %340 : vector<1x128xf32> to vector<32x128xf32>
    %356 = arith.mulf %296, %355 : vector<32x128xf32>
    %357 = vector.broadcast %342 : vector<1x128xf32> to vector<32x128xf32>
    %358 = arith.addf %356, %357 : vector<32x128xf32>
    %cst_94 = arith.constant 0.000000e+00 : f32
    %359 = vector.broadcast %cst_94 : f32 to vector<32x128xf32>
    %360 = arith.maximumf %358, %359 : vector<32x128xf32>
    %361 = vector.broadcast %340 : vector<1x128xf32> to vector<32x128xf32>
    %362 = arith.mulf %300, %361 : vector<32x128xf32>
    %363 = vector.broadcast %342 : vector<1x128xf32> to vector<32x128xf32>
    %364 = arith.addf %362, %363 : vector<32x128xf32>
    %cst_95 = arith.constant 0.000000e+00 : f32
    %365 = vector.broadcast %cst_95 : f32 to vector<32x128xf32>
    %366 = arith.maximumf %364, %365 : vector<32x128xf32>
    %367 = vector.shape_cast %348 : vector<32x128xf32> to vector<4x4x2x128xf32>
    %368 = vector.shape_cast %354 : vector<32x128xf32> to vector<4x4x2x128xf32>
    %369 = vector.shape_cast %360 : vector<32x128xf32> to vector<4x4x2x128xf32>
    %370 = vector.shape_cast %366 : vector<32x128xf32> to vector<4x4x2x128xf32>
    %371 = vector.shape_cast %367 : vector<4x4x2x128xf32> to vector<16x1x2x128xf32>
    %372 = vector.shape_cast %368 : vector<4x4x2x128xf32> to vector<16x1x2x128xf32>
    %373 = tpu.concatenate %371, %372 in 1 : vector<16x1x2x128xf32>, vector<16x1x2x128xf32> -> vector<16x2x2x128xf32>
    %374 = vector.shape_cast %373 : vector<16x2x2x128xf32> to vector<4x8x2x128xf32>
    %375 = vector.shape_cast %369 : vector<4x4x2x128xf32> to vector<16x1x2x128xf32>
    %376 = vector.shape_cast %370 : vector<4x4x2x128xf32> to vector<16x1x2x128xf32>
    %377 = tpu.concatenate %375, %376 in 1 : vector<16x1x2x128xf32>, vector<16x1x2x128xf32> -> vector<16x2x2x128xf32>
    %378 = vector.shape_cast %377 : vector<16x2x2x128xf32> to vector<4x8x2x128xf32>
    %379 = tpu.concatenate %374, %378 in 1 : vector<4x8x2x128xf32>, vector<4x8x2x128xf32> -> vector<4x16x2x128xf32>
    %380 = vector.shape_cast %379 : vector<4x16x2x128xf32> to vector<8x8x2x128xf32>
    %cst_96 = arith.constant 0.000000e+00 : f32
    %381 = vector.broadcast %cst_96 : f32 to vector<1x8x2x128xf32>
    %382 = tpu.concatenate %381, %380, %381 in 0 : vector<1x8x2x128xf32>, vector<8x8x2x128xf32>, vector<1x8x2x128xf32> -> vector<10x8x2x128xf32>
    %cst_97 = arith.constant 0.000000e+00 : f32
    %383 = vector.broadcast %cst_97 : f32 to vector<10x1x2x128xf32>
    %384 = tpu.concatenate %383, %382, %383 in 1 : vector<10x1x2x128xf32>, vector<10x8x2x128xf32>, vector<10x1x2x128xf32> -> vector<10x10x2x128xf32>
    %c0_98 = arith.constant 0 : index
    %c0_99 = arith.constant 0 : index
    %385 = vector.load %arg8[%c0_98, %c0_99] : memref<1x128xf32, #tpu.memory_space<vmem>>, vector<1x128xf32>
    %c0_100 = arith.constant 0 : index
    %c0_101 = arith.constant 0 : index
    %386 = vector.load %arg9[%c0_100, %c0_101] : memref<1x128xf32, #tpu.memory_space<vmem>>, vector<1x128xf32>
    %387 = vector.extract_strided_slice %384 {offsets = [0, 0, 0, 0], sizes = [8, 8, 2, 128], strides = [1, 1, 1, 1]} : vector<10x10x2x128xf32> to vector<8x8x2x128xf32>
    %388 = vector.shape_cast %387 : vector<8x8x2x128xf32> to vector<128x128xf32>
    %389 = vector.extract_strided_slice %384 {offsets = [0, 1, 0, 0], sizes = [8, 8, 2, 128], strides = [1, 1, 1, 1]} : vector<10x10x2x128xf32> to vector<8x8x2x128xf32>
    %390 = vector.shape_cast %389 : vector<8x8x2x128xf32> to vector<128x128xf32>
    %391 = vector.extract_strided_slice %384 {offsets = [0, 2, 0, 0], sizes = [8, 8, 2, 128], strides = [1, 1, 1, 1]} : vector<10x10x2x128xf32> to vector<8x8x2x128xf32>
    %392 = vector.shape_cast %391 : vector<8x8x2x128xf32> to vector<128x128xf32>
    %393 = vector.extract_strided_slice %384 {offsets = [1, 0, 0, 0], sizes = [8, 8, 2, 128], strides = [1, 1, 1, 1]} : vector<10x10x2x128xf32> to vector<8x8x2x128xf32>
    %394 = vector.shape_cast %393 : vector<8x8x2x128xf32> to vector<128x128xf32>
    %395 = vector.extract_strided_slice %384 {offsets = [1, 1, 0, 0], sizes = [8, 8, 2, 128], strides = [1, 1, 1, 1]} : vector<10x10x2x128xf32> to vector<8x8x2x128xf32>
    %396 = vector.shape_cast %395 : vector<8x8x2x128xf32> to vector<128x128xf32>
    %397 = vector.extract_strided_slice %384 {offsets = [1, 2, 0, 0], sizes = [8, 8, 2, 128], strides = [1, 1, 1, 1]} : vector<10x10x2x128xf32> to vector<8x8x2x128xf32>
    %398 = vector.shape_cast %397 : vector<8x8x2x128xf32> to vector<128x128xf32>
    %399 = vector.extract_strided_slice %384 {offsets = [2, 0, 0, 0], sizes = [8, 8, 2, 128], strides = [1, 1, 1, 1]} : vector<10x10x2x128xf32> to vector<8x8x2x128xf32>
    %400 = vector.shape_cast %399 : vector<8x8x2x128xf32> to vector<128x128xf32>
    %401 = vector.extract_strided_slice %384 {offsets = [2, 1, 0, 0], sizes = [8, 8, 2, 128], strides = [1, 1, 1, 1]} : vector<10x10x2x128xf32> to vector<8x8x2x128xf32>
    %402 = vector.shape_cast %401 : vector<8x8x2x128xf32> to vector<128x128xf32>
    %403 = vector.extract_strided_slice %384 {offsets = [2, 2, 0, 0], sizes = [8, 8, 2, 128], strides = [1, 1, 1, 1]} : vector<10x10x2x128xf32> to vector<8x8x2x128xf32>
    %404 = vector.shape_cast %403 : vector<8x8x2x128xf32> to vector<128x128xf32>
    %405 = tpu.concatenate %388, %390, %394, %396 in 1 : vector<128x128xf32>, vector<128x128xf32>, vector<128x128xf32>, vector<128x128xf32> -> vector<128x512xf32>
    %c0_102 = arith.constant 0 : index
    %c0_103 = arith.constant 0 : index
    %c0_104 = arith.constant 0 : index
    %406 = vector.load %arg7[%c0_102, %c0_103, %c0_104] : memref<4x512x128xf32, #tpu.memory_space<vmem>>, vector<1x512x128xf32>
    %407 = vector.shape_cast %406 : vector<1x512x128xf32> to vector<512x128xf32>
    %cst_105 = arith.constant dense<0.000000e+00> : vector<128x128xf32>
    %408 = tpu.matmul %405, %407, %cst_105 {dimension_numbers = #tpu.dot_dimension_numbers<[1], [0], [0], [1], [0, 0, 1, 1], [], []>} : vector<128x512xf32>, vector<512x128xf32>, vector<128x128xf32> -> vector<128x128xf32>
    %409 = tpu.concatenate %390, %392, %396, %398 in 1 : vector<128x128xf32>, vector<128x128xf32>, vector<128x128xf32>, vector<128x128xf32> -> vector<128x512xf32>
    %c1_106 = arith.constant 1 : index
    %c0_107 = arith.constant 0 : index
    %c0_108 = arith.constant 0 : index
    %410 = vector.load %arg7[%c1_106, %c0_107, %c0_108] : memref<4x512x128xf32, #tpu.memory_space<vmem>>, vector<1x512x128xf32>
    %411 = vector.shape_cast %410 : vector<1x512x128xf32> to vector<512x128xf32>
    %cst_109 = arith.constant dense<0.000000e+00> : vector<128x128xf32>
    %412 = tpu.matmul %409, %411, %cst_109 {dimension_numbers = #tpu.dot_dimension_numbers<[1], [0], [0], [1], [0, 0, 1, 1], [], []>} : vector<128x512xf32>, vector<512x128xf32>, vector<128x128xf32> -> vector<128x128xf32>
    %413 = tpu.concatenate %394, %396, %400, %402 in 1 : vector<128x128xf32>, vector<128x128xf32>, vector<128x128xf32>, vector<128x128xf32> -> vector<128x512xf32>
    %c2_110 = arith.constant 2 : index
    %c0_111 = arith.constant 0 : index
    %c0_112 = arith.constant 0 : index
    %414 = vector.load %arg7[%c2_110, %c0_111, %c0_112] : memref<4x512x128xf32, #tpu.memory_space<vmem>>, vector<1x512x128xf32>
    %415 = vector.shape_cast %414 : vector<1x512x128xf32> to vector<512x128xf32>
    %cst_113 = arith.constant dense<0.000000e+00> : vector<128x128xf32>
    %416 = tpu.matmul %413, %415, %cst_113 {dimension_numbers = #tpu.dot_dimension_numbers<[1], [0], [0], [1], [0, 0, 1, 1], [], []>} : vector<128x512xf32>, vector<512x128xf32>, vector<128x128xf32> -> vector<128x128xf32>
    %417 = tpu.concatenate %396, %398, %402, %404 in 1 : vector<128x128xf32>, vector<128x128xf32>, vector<128x128xf32>, vector<128x128xf32> -> vector<128x512xf32>
    %c3_114 = arith.constant 3 : index
    %c0_115 = arith.constant 0 : index
    %c0_116 = arith.constant 0 : index
    %418 = vector.load %arg7[%c3_114, %c0_115, %c0_116] : memref<4x512x128xf32, #tpu.memory_space<vmem>>, vector<1x512x128xf32>
    %419 = vector.shape_cast %418 : vector<1x512x128xf32> to vector<512x128xf32>
    %cst_117 = arith.constant dense<0.000000e+00> : vector<128x128xf32>
    %420 = tpu.matmul %417, %419, %cst_117 {dimension_numbers = #tpu.dot_dimension_numbers<[1], [0], [0], [1], [0, 0, 1, 1], [], []>} : vector<128x512xf32>, vector<512x128xf32>, vector<128x128xf32> -> vector<128x128xf32>
    %cst_118 = arith.constant dense<0.000000e+00> : vector<128xf32>
    %421 = vector.multi_reduction <add>, %408, %cst_118 [0] : vector<128x128xf32> to vector<128xf32>
    %422 = vector.shape_cast %421 : vector<128xf32> to vector<1x128xf32>
    %cst_119 = arith.constant 0.000000e+00 : f32
    %423 = vector.broadcast %cst_119 : f32 to vector<1x128xf32>
    %424 = arith.addf %423, %422 : vector<1x128xf32>
    %cst_120 = arith.constant dense<0.000000e+00> : vector<128xf32>
    %425 = vector.multi_reduction <add>, %412, %cst_120 [0] : vector<128x128xf32> to vector<128xf32>
    %426 = vector.shape_cast %425 : vector<128xf32> to vector<1x128xf32>
    %427 = arith.addf %424, %426 : vector<1x128xf32>
    %cst_121 = arith.constant dense<0.000000e+00> : vector<128xf32>
    %428 = vector.multi_reduction <add>, %416, %cst_121 [0] : vector<128x128xf32> to vector<128xf32>
    %429 = vector.shape_cast %428 : vector<128xf32> to vector<1x128xf32>
    %430 = arith.addf %427, %429 : vector<1x128xf32>
    %cst_122 = arith.constant dense<0.000000e+00> : vector<128xf32>
    %431 = vector.multi_reduction <add>, %420, %cst_122 [0] : vector<128x128xf32> to vector<128xf32>
    %432 = vector.shape_cast %431 : vector<128xf32> to vector<1x128xf32>
    %433 = arith.addf %430, %432 : vector<1x128xf32>
    %434 = arith.mulf %408, %408 : vector<128x128xf32>
    %cst_123 = arith.constant dense<0.000000e+00> : vector<128xf32>
    %435 = vector.multi_reduction <add>, %434, %cst_123 [0] : vector<128x128xf32> to vector<128xf32>
    %436 = vector.shape_cast %435 : vector<128xf32> to vector<1x128xf32>
    %cst_124 = arith.constant 0.000000e+00 : f32
    %437 = vector.broadcast %cst_124 : f32 to vector<1x128xf32>
    %438 = arith.addf %437, %436 : vector<1x128xf32>
    %439 = arith.mulf %412, %412 : vector<128x128xf32>
    %cst_125 = arith.constant dense<0.000000e+00> : vector<128xf32>
    %440 = vector.multi_reduction <add>, %439, %cst_125 [0] : vector<128x128xf32> to vector<128xf32>
    %441 = vector.shape_cast %440 : vector<128xf32> to vector<1x128xf32>
    %442 = arith.addf %438, %441 : vector<1x128xf32>
    %443 = arith.mulf %416, %416 : vector<128x128xf32>
    %cst_126 = arith.constant dense<0.000000e+00> : vector<128xf32>
    %444 = vector.multi_reduction <add>, %443, %cst_126 [0] : vector<128x128xf32> to vector<128xf32>
    %445 = vector.shape_cast %444 : vector<128xf32> to vector<1x128xf32>
    %446 = arith.addf %442, %445 : vector<1x128xf32>
    %447 = arith.mulf %420, %420 : vector<128x128xf32>
    %cst_127 = arith.constant dense<0.000000e+00> : vector<128xf32>
    %448 = vector.multi_reduction <add>, %447, %cst_127 [0] : vector<128x128xf32> to vector<128xf32>
    %449 = vector.shape_cast %448 : vector<128xf32> to vector<1x128xf32>
    %450 = arith.addf %446, %449 : vector<1x128xf32>
    %cst_128 = arith.constant 0.001953125 : f32
    %451 = vector.broadcast %cst_128 : f32 to vector<1x128xf32>
    %452 = arith.mulf %433, %451 : vector<1x128xf32>
    %cst_129 = arith.constant 0.001953125 : f32
    %453 = vector.broadcast %cst_129 : f32 to vector<1x128xf32>
    %454 = arith.mulf %450, %453 : vector<1x128xf32>
    %455 = arith.mulf %452, %452 : vector<1x128xf32>
    %456 = arith.subf %454, %455 : vector<1x128xf32>
    %cst_130 = arith.constant 9.99999974E-6 : f32
    %457 = vector.broadcast %cst_130 : f32 to vector<1x128xf32>
    %458 = arith.addf %456, %457 : vector<1x128xf32>
    %459 = math.rsqrt %458 : vector<1x128xf32>
    %460 = arith.mulf %459, %385 : vector<1x128xf32>
    %461 = arith.mulf %452, %460 : vector<1x128xf32>
    %462 = arith.subf %386, %461 : vector<1x128xf32>
    %463 = vector.broadcast %460 : vector<1x128xf32> to vector<128x128xf32>
    %464 = arith.mulf %408, %463 : vector<128x128xf32>
    %465 = vector.broadcast %462 : vector<1x128xf32> to vector<128x128xf32>
    %466 = arith.addf %464, %465 : vector<128x128xf32>
    %cst_131 = arith.constant 0.000000e+00 : f32
    %467 = vector.broadcast %cst_131 : f32 to vector<128x128xf32>
    %468 = arith.maximumf %466, %467 : vector<128x128xf32>
    %469 = vector.broadcast %460 : vector<1x128xf32> to vector<128x128xf32>
    %470 = arith.mulf %412, %469 : vector<128x128xf32>
    %471 = vector.broadcast %462 : vector<1x128xf32> to vector<128x128xf32>
    %472 = arith.addf %470, %471 : vector<128x128xf32>
    %cst_132 = arith.constant 0.000000e+00 : f32
    %473 = vector.broadcast %cst_132 : f32 to vector<128x128xf32>
    %474 = arith.maximumf %472, %473 : vector<128x128xf32>
    %475 = vector.broadcast %460 : vector<1x128xf32> to vector<128x128xf32>
    %476 = arith.mulf %416, %475 : vector<128x128xf32>
    %477 = vector.broadcast %462 : vector<1x128xf32> to vector<128x128xf32>
    %478 = arith.addf %476, %477 : vector<128x128xf32>
    %cst_133 = arith.constant 0.000000e+00 : f32
    %479 = vector.broadcast %cst_133 : f32 to vector<128x128xf32>
    %480 = arith.maximumf %478, %479 : vector<128x128xf32>
    %481 = vector.broadcast %460 : vector<1x128xf32> to vector<128x128xf32>
    %482 = arith.mulf %420, %481 : vector<128x128xf32>
    %483 = vector.broadcast %462 : vector<1x128xf32> to vector<128x128xf32>
    %484 = arith.addf %482, %483 : vector<128x128xf32>
    %cst_134 = arith.constant 0.000000e+00 : f32
    %485 = vector.broadcast %cst_134 : f32 to vector<128x128xf32>
    %486 = arith.maximumf %484, %485 : vector<128x128xf32>
    %487 = vector.shape_cast %468 : vector<128x128xf32> to vector<8x8x2x128xf32>
    %488 = vector.shape_cast %474 : vector<128x128xf32> to vector<8x8x2x128xf32>
    %489 = vector.shape_cast %480 : vector<128x128xf32> to vector<8x8x2x128xf32>
    %490 = vector.shape_cast %486 : vector<128x128xf32> to vector<8x8x2x128xf32>
    %491 = vector.shape_cast %487 : vector<8x8x2x128xf32> to vector<64x1x2x128xf32>
    %492 = vector.shape_cast %488 : vector<8x8x2x128xf32> to vector<64x1x2x128xf32>
    %493 = tpu.concatenate %491, %492 in 1 : vector<64x1x2x128xf32>, vector<64x1x2x128xf32> -> vector<64x2x2x128xf32>
    %494 = vector.shape_cast %493 : vector<64x2x2x128xf32> to vector<8x16x2x128xf32>
    %495 = vector.shape_cast %489 : vector<8x8x2x128xf32> to vector<64x1x2x128xf32>
    %496 = vector.shape_cast %490 : vector<8x8x2x128xf32> to vector<64x1x2x128xf32>
    %497 = tpu.concatenate %495, %496 in 1 : vector<64x1x2x128xf32>, vector<64x1x2x128xf32> -> vector<64x2x2x128xf32>
    %498 = vector.shape_cast %497 : vector<64x2x2x128xf32> to vector<8x16x2x128xf32>
    %499 = tpu.concatenate %494, %498 in 1 : vector<8x16x2x128xf32>, vector<8x16x2x128xf32> -> vector<8x32x2x128xf32>
    %500 = vector.shape_cast %499 : vector<8x32x2x128xf32> to vector<16x16x2x128xf32>
    %cst_135 = arith.constant 0.000000e+00 : f32
    %501 = vector.broadcast %cst_135 : f32 to vector<1x16x2x128xf32>
    %502 = tpu.concatenate %501, %500, %501 in 0 : vector<1x16x2x128xf32>, vector<16x16x2x128xf32>, vector<1x16x2x128xf32> -> vector<18x16x2x128xf32>
    %cst_136 = arith.constant 0.000000e+00 : f32
    %503 = vector.broadcast %cst_136 : f32 to vector<18x1x2x128xf32>
    %504 = tpu.concatenate %503, %502, %503 in 1 : vector<18x1x2x128xf32>, vector<18x16x2x128xf32>, vector<18x1x2x128xf32> -> vector<18x18x2x128xf32>
    %505 = vector.extract_strided_slice %504 {offsets = [0, 0, 0, 0], sizes = [16, 16, 2, 128], strides = [1, 1, 1, 1]} : vector<18x18x2x128xf32> to vector<16x16x2x128xf32>
    %506 = vector.shape_cast %505 : vector<16x16x2x128xf32> to vector<512x128xf32>
    %507 = vector.extract_strided_slice %504 {offsets = [0, 1, 0, 0], sizes = [16, 16, 2, 128], strides = [1, 1, 1, 1]} : vector<18x18x2x128xf32> to vector<16x16x2x128xf32>
    %508 = vector.shape_cast %507 : vector<16x16x2x128xf32> to vector<512x128xf32>
    %509 = vector.extract_strided_slice %504 {offsets = [0, 2, 0, 0], sizes = [16, 16, 2, 128], strides = [1, 1, 1, 1]} : vector<18x18x2x128xf32> to vector<16x16x2x128xf32>
    %510 = vector.shape_cast %509 : vector<16x16x2x128xf32> to vector<512x128xf32>
    %511 = vector.extract_strided_slice %504 {offsets = [1, 0, 0, 0], sizes = [16, 16, 2, 128], strides = [1, 1, 1, 1]} : vector<18x18x2x128xf32> to vector<16x16x2x128xf32>
    %512 = vector.shape_cast %511 : vector<16x16x2x128xf32> to vector<512x128xf32>
    %513 = vector.extract_strided_slice %504 {offsets = [1, 1, 0, 0], sizes = [16, 16, 2, 128], strides = [1, 1, 1, 1]} : vector<18x18x2x128xf32> to vector<16x16x2x128xf32>
    %514 = vector.shape_cast %513 : vector<16x16x2x128xf32> to vector<512x128xf32>
    %515 = vector.extract_strided_slice %504 {offsets = [1, 2, 0, 0], sizes = [16, 16, 2, 128], strides = [1, 1, 1, 1]} : vector<18x18x2x128xf32> to vector<16x16x2x128xf32>
    %516 = vector.shape_cast %515 : vector<16x16x2x128xf32> to vector<512x128xf32>
    %517 = vector.extract_strided_slice %504 {offsets = [2, 0, 0, 0], sizes = [16, 16, 2, 128], strides = [1, 1, 1, 1]} : vector<18x18x2x128xf32> to vector<16x16x2x128xf32>
    %518 = vector.shape_cast %517 : vector<16x16x2x128xf32> to vector<512x128xf32>
    %519 = vector.extract_strided_slice %504 {offsets = [2, 1, 0, 0], sizes = [16, 16, 2, 128], strides = [1, 1, 1, 1]} : vector<18x18x2x128xf32> to vector<16x16x2x128xf32>
    %520 = vector.shape_cast %519 : vector<16x16x2x128xf32> to vector<512x128xf32>
    %521 = vector.extract_strided_slice %504 {offsets = [2, 2, 0, 0], sizes = [16, 16, 2, 128], strides = [1, 1, 1, 1]} : vector<18x18x2x128xf32> to vector<16x16x2x128xf32>
    %522 = vector.shape_cast %521 : vector<16x16x2x128xf32> to vector<512x128xf32>
    %523 = tpu.concatenate %506, %508, %510, %512, %514, %516, %518, %520, %522 in 1 : vector<512x128xf32>, vector<512x128xf32>, vector<512x128xf32>, vector<512x128xf32>, vector<512x128xf32>, vector<512x128xf32>, vector<512x128xf32>, vector<512x128xf32>, vector<512x128xf32> -> vector<512x1152xf32>
    %c0_137 = arith.constant 0 : index
    %c0_138 = arith.constant 0 : index
    %524 = vector.load %arg10[%c0_137, %c0_138] : memref<1152x3xf32, #tpu.memory_space<vmem>>, vector<1152x3xf32>
    %cst_139 = arith.constant dense<0.000000e+00> : vector<512x3xf32>
    %525 = tpu.matmul %523, %524, %cst_139 {dimension_numbers = #tpu.dot_dimension_numbers<[1], [0], [0], [1], [0, 0, 1, 1], [], []>} : vector<512x1152xf32>, vector<1152x3xf32>, vector<512x3xf32> -> vector<512x3xf32>
    %c0_140 = arith.constant 0 : index
    %c0_141 = arith.constant 0 : index
    %526 = vector.load %arg11[%c0_140, %c0_141] : memref<1x3xf32, #tpu.memory_space<vmem>>, vector<1x3xf32>
    %527 = vector.broadcast %526 : vector<1x3xf32> to vector<512x3xf32>
    %528 = arith.addf %525, %527 : vector<512x3xf32>
    %529 = math.tanh %528 : vector<512x3xf32>
    %c0_142 = arith.constant 0 : index
    %c0_143 = arith.constant 0 : index
    %530 = vector.load %arg12[%c0_142, %c0_143] : memref<512x3xf32, #tpu.memory_space<vmem>>, vector<512x3xf32>
    tpu.vector_store %arg12[%c0_142, %c0_143], %529 {strides = array<i32>} : memref<512x3xf32, #tpu.memory_space<vmem>>, vector<512x3xf32>,
    return
  }
}

</mosaic_0001>

<llo_original>
// kernel: dc_generator_forward.1
$region0: #{dc_generator_forward.1}
  #allocation0 [shape = 'u32[]', space=smem, size = 0x4, offset = 0x4, fixed_abs, tag = 'smem constant byte address 0x4 - core index']
  #allocation1 [shape = 'u32[144,128]{1,0:T(1,128)}', space=vmem, size = 0x12000, scoped, tag = 'internal scratch']
  %s0 = inlined_call_operand.vmem [shape: f32[2,32], index: 0, kind: input, shape index: {}]
  %s1 = inlined_call_operand.vmem [shape: f32[32,2048], index: 1, kind: input, shape index: {}]
  %s2 = inlined_call_operand.vmem [shape: f32[1,128], index: 2, kind: input, shape index: {}]
  %s3 = inlined_call_operand.vmem [shape: f32[1,128], index: 3, kind: input, shape index: {}]
  %s4 = inlined_call_operand.hbm [shape: f32[4,512,128], index: 4, kind: input, shape index: {}]
  %s5 = inlined_call_operand.vmem [shape: f32[1,128], index: 5, kind: input, shape index: {}]
  %s6 = inlined_call_operand.vmem [shape: f32[1,128], index: 6, kind: input, shape index: {}]
  %s7 = inlined_call_operand.hbm [shape: f32[4,512,128], index: 7, kind: input, shape index: {}]
  %s8 = inlined_call_operand.vmem [shape: f32[1,128], index: 8, kind: input, shape index: {}]
  %s9 = inlined_call_operand.vmem [shape: f32[1,128], index: 9, kind: input, shape index: {}]
  %s10 = inlined_call_operand.vmem [shape: f32[1152,3], index: 10, kind: input, shape index: {}]
  %s11 = inlined_call_operand.vmem [shape: f32[1,3], index: 11, kind: input, shape index: {}]
  %s12 = inlined_call_operand.vmem [shape: f32[512,3], index: 12, kind: output, shape index: {}]
  %s13 = sld [smem:[#allocation0]]
  $region66: #{dc_generator_forward.1} parent=0
    _
  %s15 = ssub.s32 1, %s13
  %s16 = scalar_select 0, %s15, %s13
  $region1: #{dc_generator_forward.1} parent=0
    #allocation2 [shape = 'u8[1048576]{0}', space=vmem, size = 0x100000, scoped, tag = 'input window, operand 4, single buffered']
    #allocation3 [shape = 's32[1]{0}', space=sflag, size = 0x4, scoped, tag = 'scoped memory for dc_generator_forward.1']
    #allocation4 [shape = 'u8[1048576]{0}', space=vmem, size = 0x100000, scoped, tag = 'input window, operand 7, single buffered']
    #allocation5 [shape = 's32[1]{0}', space=sflag, size = 0x4, scoped, tag = 'scoped memory for dc_generator_forward.1']
    %17 = vsyncpa [#allocation3], 0
    %18 = vsyncpa [#allocation5], 0
    // Predicated region
    $region2: #{dc_generator_forward.1} parent=1 // pred_check
      _
    $region3: #{dc_generator_forward.1} parent=1 // pred_check_branch
      %20 = sbr.rel (0) target = $region5
    $region4: #{dc_generator_forward.1} parent=1 // pred_region
      _
    $region5: #{dc_generator_forward.1} parent=1 // pred_fallthru
      _
    // Predicated region
    $region6: #{dc_generator_forward.1} parent=1 // pred_check
      _
    $region7: #{dc_generator_forward.1} parent=1 // pred_check_branch
      %22 = sbr.rel (0) target = $region9
    $region8: #{dc_generator_forward.1} parent=1 // pred_region
      _
    $region9: #{dc_generator_forward.1} parent=1 // pred_fallthru
      _
    // Predicated region
    $region10: #{dc_generator_forward.1} parent=1 // pred_check
      _
    $region11: #{dc_generator_forward.1} parent=1 // pred_check_branch
      %24 = sbr.rel (0) target = $region13
    $region12: #{dc_generator_forward.1} parent=1 // pred_region
      _
    $region13: #{dc_generator_forward.1} parent=1 // pred_fallthru
      _
    // Predicated region
    $region14: #{dc_generator_forward.1} parent=1 // pred_check
      _
    $region15: #{dc_generator_forward.1} parent=1 // pred_check_branch
      %26 = sbr.rel (0) target = $region17
    $region16: #{dc_generator_forward.1} parent=1 // pred_region
      _
    $region17: #{dc_generator_forward.1} parent=1 // pred_fallthru
      _
    // Predicated region
    $region18: #{dc_generator_forward.1} parent=1 // pred_check
      _
    $region19: #{dc_generator_forward.1} parent=1 // pred_check_branch
      %28 = sbr.rel (0) target = $region21
    $region20: #{dc_generator_forward.1} parent=1 // pred_region
      %s30 = ssub.s32 32768, 32768
      %31 = vsyncadd [#allocation3], %s30
      %s32 = sshll.u32 [#allocation2], 4
      %s33 = int_to_ptr.vmem [resolvable:$true] %s32
      %38 = dma.hbm_to_vmem [thread:$0]  %s4, 32768, %s33, [#allocation3], 128, 128, 8
    $region21: #{dc_generator_forward.1} parent=1 // pred_fallthru
      _
    // Predicated region
    $region22: #{dc_generator_forward.1} parent=1 // pred_check
      _
    $region23: #{dc_generator_forward.1} parent=1 // pred_check_branch
      %40 = sbr.rel (0) target = $region25
    $region24: #{dc_generator_forward.1} parent=1 // pred_region
      _
    $region25: #{dc_generator_forward.1} parent=1 // pred_fallthru
      _
    // Predicated region
    $region26: #{dc_generator_forward.1} parent=1 // pred_check
      _
    $region27: #{dc_generator_forward.1} parent=1 // pred_check_branch
      %42 = sbr.rel (0) target = $region29
    $region28: #{dc_generator_forward.1} parent=1 // pred_region
      _
    $region29: #{dc_generator_forward.1} parent=1 // pred_fallthru
      _
    // Predicated region
    $region30: #{dc_generator_forward.1} parent=1 // pred_check
      _
    $region31: #{dc_generator_forward.1} parent=1 // pred_check_branch
      %44 = sbr.rel (0) target = $region33
    $region32: #{dc_generator_forward.1} parent=1 // pred_region
      %s46 = ssub.s32 32768, 32768
      %47 = vsyncadd [#allocation5], %s46
      %s48 = sshll.u32 [#allocation4], 4
      %s49 = int_to_ptr.vmem [resolvable:$true] %s48
      %54 = dma.hbm_to_vmem [thread:$0]  %s7, 32768, %s49, [#allocation5], 128, 128, 8
    $region33: #{dc_generator_forward.1} parent=1 // pred_fallthru
      _
    // Predicated region
    $region34: #{dc_generator_forward.1} parent=1 // pred_check
      _
    $region35: #{dc_generator_forward.1} parent=1 // pred_check_branch
      %56 = sbr.rel (0) target = $region37
    $region36: #{dc_generator_forward.1} parent=1 // pred_region
      _
    $region37: #{dc_generator_forward.1} parent=1 // pred_fallthru
      _
    // Predicated region
    $region38: #{dc_generator_forward.1} parent=1 // pred_check
      _
    $region39: #{dc_generator_forward.1} parent=1 // pred_check_branch
      %58 = sbr.rel (0) target = $region41
    $region40: #{dc_generator_forward.1} parent=1 // pred_region
      _
    $region41: #{dc_generator_forward.1} parent=1 // pred_fallthru
      _
    // Predicated region
    $region42: #{dc_generator_forward.1} parent=1 // pred_check
      _
    $region43: #{dc_generator_forward.1} parent=1 // pred_check_branch
      %60 = sbr.rel (0) target = $region45
    $region44: #{dc_generator_forward.1} parent=1 // pred_region
      _
    $region45: #{dc_generator_forward.1} parent=1 // pred_fallthru
      _
    // Predicated region
    $region46: #{dc_generator_forward.1} parent=1 // pred_check
      _
    $region47: #{dc_generator_forward.1} parent=1 // pred_check_branch
      %62 = sbr.rel (0) target = $region49
    $region48: #{dc_generator_forward.1} parent=1 // pred_region
      _
    $region49: #{dc_generator_forward.1} parent=1 // pred_fallthru
      _
    // Predicated region
    $region50: #{dc_generator_forward.1} parent=1 // pred_check
      _
    $region51: #{dc_generator_forward.1} parent=1 // pred_check_branch
      %64 = sbr.rel (0) target = $region53
    $region52: #{dc_generator_forward.1} parent=1 // pred_region
      %65 = dma.done [#allocation3], 32768
    $region53: #{dc_generator_forward.1} parent=1 // pred_fallthru
      _
    // Predicated region
    $region54: #{dc_generator_forward.1} parent=1 // pred_check
      _
    $region55: #{dc_generator_forward.1} parent=1 // pred_check_branch
      %67 = sbr.rel (0) target = $region57
    $region56: #{dc_generator_forward.1} parent=1 // pred_region
      %68 = dma.done [#allocation5], 32768
    $region57: #{dc_generator_forward.1} parent=1 // pred_fallthru
      _
    %v69 = vld [vmem:[%s0] sm:$0x3]
    %v70 = vld [vmem:[%s1] sm:$0xff]
    %v71 = vld [vmem:[%s1 + $0x8] sm:$0xff]
    %v72 = vld [vmem:[%s1 + $0x10] sm:$0xff]
    %v73 = vld [vmem:[%s1 + $0x18] sm:$0xff]
    %v74 = vld [vmem:[%s1 + $0x20] sm:$0xff]
    %v75 = vld [vmem:[%s1 + $0x28] sm:$0xff]
    %v76 = vld [vmem:[%s1 + $0x30] sm:$0xff]
    %v77 = vld [vmem:[%s1 + $0x38] sm:$0xff]
    %v78 = vld [vmem:[%s1 + $0x40] sm:$0xff]
    %v79 = vld [vmem:[%s1 + $0x48] sm:$0xff]
    %v80 = vld [vmem:[%s1 + $0x50] sm:$0xff]
    %v81 = vld [vmem:[%s1 + $0x58] sm:$0xff]
    %v82 = vld [vmem:[%s1 + $0x60] sm:$0xff]
    %v83 = vld [vmem:[%s1 + $0x68] sm:$0xff]
    %v84 = vld [vmem:[%s1 + $0x70] sm:$0xff]
    %v85 = vld [vmem:[%s1 + $0x78] sm:$0xff]
    %v86 = vld [vmem:[%s1 + $0x80] sm:$0xff]
    %v87 = vld [vmem:[%s1 + $0x88] sm:$0xff]
    %v88 = vld [vmem:[%s1 + $0x90] sm:$0xff]
    %v89 = vld [vmem:[%s1 + $0x98] sm:$0xff]
    %v90 = vld [vmem:[%s1 + $0xa0] sm:$0xff]
    %v91 = vld [vmem:[%s1 + $0xa8] sm:$0xff]
    %v92 = vld [vmem:[%s1 + $0xb0] sm:$0xff]
    %v93 = vld [vmem:[%s1 + $0xb8] sm:$0xff]
    %v94 = vld [vmem:[%s1 + $0xc0] sm:$0xff]
    %v95 = vld [vmem:[%s1 + $0xc8] sm:$0xff]
    %v96 = vld [vmem:[%s1 + $0xd0] sm:$0xff]
    %v97 = vld [vmem:[%s1 + $0xd8] sm:$0xff]
    %v98 = vld [vmem:[%s1 + $0xe0] sm:$0xff]
    %v99 = vld [vmem:[%s1 + $0xe8] sm:$0xff]
    %v100 = vld [vmem:[%s1 + $0xf0] sm:$0xff]
    %v101 = vld [vmem:[%s1 + $0xf8] sm:$0xff]
    %v102 = vld [vmem:[%s1 + $0x100] sm:$0xff]
    %v103 = vld [vmem:[%s1 + $0x108] sm:$0xff]
    %v104 = vld [vmem:[%s1 + $0x110] sm:$0xff]
    %v105 = vld [vmem:[%s1 + $0x118] sm:$0xff]
    %v106 = vld [vmem:[%s1 + $0x120] sm:$0xff]
    %v107 = vld [vmem:[%s1 + $0x128] sm:$0xff]
    %v108 = vld [vmem:[%s1 + $0x130] sm:$0xff]
    %v109 = vld [vmem:[%s1 + $0x138] sm:$0xff]
    %v110 = vld [vmem:[%s1 + $0x140] sm:$0xff]
    %v111 = vld [vmem:[%s1 + $0x148] sm:$0xff]
    %v112 = vld [vmem:[%s1 + $0x150] sm:$0xff]
    %v113 = vld [vmem:[%s1 + $0x158] sm:$0xff]
    %v114 = vld [vmem:[%s1 + $0x160] sm:$0xff]
    %v115 = vld [vmem:[%s1 + $0x168] sm:$0xff]
    %v116 = vld [vmem:[%s1 + $0x170] sm:$0xff]
    %v117 = vld [vmem:[%s1 + $0x178] sm:$0xff]
    %v118 = vld [vmem:[%s1 + $0x180] sm:$0xff]
    %v119 = vld [vmem:[%s1 + $0x188] sm:$0xff]
    %v120 = vld [vmem:[%s1 + $0x190] sm:$0xff]
    %v121 = vld [vmem:[%s1 + $0x198] sm:$0xff]
    %v122 = vld [vmem:[%s1 + $0x1a0] sm:$0xff]
    %v123 = vld [vmem:[%s1 + $0x1a8] sm:$0xff]
    %v124 = vld [vmem:[%s1 + $0x1b0] sm:$0xff]
    %v125 = vld [vmem:[%s1 + $0x1b8] sm:$0xff]
    %v126 = vld [vmem:[%s1 + $0x1c0] sm:$0xff]
    %v127 = vld [vmem:[%s1 + $0x1c8] sm:$0xff]
    %v128 = vld [vmem:[%s1 + $0x1d0] sm:$0xff]
    %v129 = vld [vmem:[%s1 + $0x1d8] sm:$0xff]
    %v130 = vld [vmem:[%s1 + $0x1e0] sm:$0xff]
    %v131 = vld [vmem:[%s1 + $0x1e8] sm:$0xff]
    %v132 = vld [vmem:[%s1 + $0x1f0] sm:$0xff]
    %v133 = vld [vmem:[%s1 + $0x1f8] sm:$0xff]
    %vm134 = vcmask 261120
    %v136 = vsel %vm134, %v69, 0
    %138 = vmatprep.subr.mxu0 0.0
    %139 = vmatpush1.msra.mxu0 0.0
    %140 = vmatprep.subr.mxu0 0.0
    %141 = vmatpush1.msra.mxu0 0.0
    %142 = vmatprep.subr.mxu0 0.0
    %143 = vmatpush1.msra.mxu0 0.0
    %144 = vmatprep.subr.mxu0 0.0
    %145 = vmatpush1.msra.mxu0 0.0
    %146 = vmatprep.subr.mxu0 0.0
    %147 = vmatpush1.msra.mxu0 0.0
    %148 = vmatprep.subr.mxu0 0.0
    %149 = vmatpush1.msra.mxu0 0.0
    %150 = vmatprep.subr.mxu0 0.0
    %151 = vmatpush1.msra.mxu0 0.0
    %152 = vmatprep.subr.mxu0 0.0
    %153 = vmatpush1.msra.mxu0 0.0
    %154 = vmatprep.subr.mxu0 0.0
    %155 = vmatpush1.msra.mxu0 0.0
    %156 = vmatprep.subr.mxu0 0.0
    %157 = vmatpush1.msra.mxu0 0.0
    %158 = vmatprep.subr.mxu0 0.0
    %159 = vmatpush1.msra.mxu0 0.0
    %160 = vmatprep.subr.mxu0 0.0
    %161 = vmatpush1.msra.mxu0 0.0
    %162 = vmatprep.subr.mxu0 %v119
    %163 = vmatpush1.msra.mxu0 %v118
    %164 = vmatprep.subr.mxu0 %v103
    %165 = vmatpush1.msra.mxu0 %v102
    %166 = vmatprep.subr.mxu0 %v87
    %167 = vmatpush1.msra.mxu0 %v86
    %168 = vmatprep.subr.mxu0 %v71
    %169 = vmatpush1.msra.mxu0 %v70
    %170 = vmatprep.subr.mxu0 0.0
    %171 = vmatpush2.msra.mxu0 0.0
    %172 = vmatprep.subr.mxu0 0.0
    %173 = vmatpush2.msra.mxu0 0.0
    %174 = vmatprep.subr.mxu0 0.0
    %175 = vmatpush2.msra.mxu0 0.0
    %176 = vmatprep.subr.mxu0 0.0
    %177 = vmatpush2.msra.mxu0 0.0
    %178 = vmatprep.subr.mxu0 0.0
    %179 = vmatpush2.msra.mxu0 0.0
    %180 = vmatprep.subr.mxu0 0.0
    %181 = vmatpush2.msra.mxu0 0.0
    %182 = vmatprep.subr.mxu0 0.0
    %183 = vmatpush2.msra.mxu0 0.0
    %184 = vmatprep.subr.mxu0 0.0
    %185 = vmatpush2.msra.mxu0 0.0
    %186 = vmatprep.subr.mxu0 0.0
    %187 = vmatpush2.msra.mxu0 0.0
    %188 = vmatprep.subr.mxu0 0.0
    %189 = vmatpush2.msra.mxu0 0.0
    %190 = vmatprep.subr.mxu0 0.0
    %191 = vmatpush2.msra.mxu0 0.0
    %192 = vmatprep.subr.mxu0 0.0
    %193 = vmatpush2.msra.mxu0 0.0
    %194 = vmatprep.subr.mxu0 0.0
    %195 = vmatpush2.msra.mxu0 0.0
    %196 = vmatprep.subr.mxu0 0.0
    %197 = vmatpush2.msra.mxu0 0.0
    %198 = vmatprep.subr.mxu0 0.0
    %199 = vmatpush2.msra.mxu0 0.0
    %200 = vmatprep.subr.mxu0 0.0
    %201 = vmatpush2.msra.mxu0 0.0
    %202 = vmatprep.mubr.f32.mxu0 0.0
    %203 = vmatmul.mubr.f32.gmra.mxu0 %v136
    %v204 = vpop.f32.mrf.mxu0
    %v205 = vadd.f32 0.0, %v204
    %v206 = vpop.f32.mrf.mxu0
    %v207 = vadd.f32 0.0, %v206
    %208 = vdwg.mxu0
    %209 = vmatprep.subr.mxu0 0.0
    %210 = vmatpush1.msra.mxu0 0.0
    %211 = vmatprep.subr.mxu0 0.0
    %212 = vmatpush1.msra.mxu0 0.0
    %213 = vmatprep.subr.mxu0 0.0
    %214 = vmatpush1.msra.mxu0 0.0
    %215 = vmatprep.subr.mxu0 0.0
    %216 = vmatpush1.msra.mxu0 0.0
    %217 = vmatprep.subr.mxu0 0.0
    %218 = vmatpush1.msra.mxu0 0.0
    %219 = vmatprep.subr.mxu0 0.0
    %220 = vmatpush1.msra.mxu0 0.0
    %221 = vmatprep.subr.mxu0 0.0
    %222 = vmatpush1.msra.mxu0 0.0
    %223 = vmatprep.subr.mxu0 0.0
    %224 = vmatpush1.msra.mxu0 0.0
    %225 = vmatprep.subr.mxu0 0.0
    %226 = vmatpush1.msra.mxu0 0.0
    %227 = vmatprep.subr.mxu0 0.0
    %228 = vmatpush1.msra.mxu0 0.0
    %229 = vmatprep.subr.mxu0 0.0
    %230 = vmatpush1.msra.mxu0 0.0
    %231 = vmatprep.subr.mxu0 0.0
    %232 = vmatpush1.msra.mxu0 0.0
    %233 = vmatprep.subr.mxu0 %v121
    %234 = vmatpush1.msra.mxu0 %v120
    %235 = vmatprep.subr.mxu0 %v105
    %236 = vmatpush1.msra.mxu0 %v104
    %237 = vmatprep.subr.mxu0 %v89
    %238 = vmatpush1.msra.mxu0 %v88
    %239 = vmatprep.subr.mxu0 %v73
    %240 = vmatpush1.msra.mxu0 %v72
    %241 = vmatprep.subr.mxu0 0.0
    %242 = vmatpush2.msra.mxu0 0.0
    %243 = vmatprep.subr.mxu0 0.0
    %244 = vmatpush2.msra.mxu0 0.0
    %245 = vmatprep.subr.mxu0 0.0
    %246 = vmatpush2.msra.mxu0 0.0
    %247 = vmatprep.subr.mxu0 0.0
    %248 = vmatpush2.msra.mxu0 0.0
    %249 = vmatprep.subr.mxu0 0.0
    %250 = vmatpush2.msra.mxu0 0.0
    %251 = vmatprep.subr.mxu0 0.0
    %252 = vmatpush2.msra.mxu0 0.0
    %253 = vmatprep.subr.mxu0 0.0
    %254 = vmatpush2.msra.mxu0 0.0
    %255 = vmatprep.subr.mxu0 0.0
    %256 = vmatpush2.msra.mxu0 0.0
    %257 = vmatprep.subr.mxu0 0.0
    %258 = vmatpush2.msra.mxu0 0.0
    %259 = vmatprep.subr.mxu0 0.0
    %260 = vmatpush2.msra.mxu0 0.0
    %261 = vmatprep.subr.mxu0 0.0
    %262 = vmatpush2.msra.mxu0 0.0
    %263 = vmatprep.subr.mxu0 0.0
    %264 = vmatpush2.msra.mxu0 0.0
    %265 = vmatprep.subr.mxu0 0.0
    %266 = vmatpush2.msra.mxu0 0.0
    %267 = vmatprep.subr.mxu0 0.0
    %268 = vmatpush2.msra.mxu0 0.0
    %269 = vmatprep.subr.mxu0 0.0
    %270 = vmatpush2.msra.mxu0 0.0
    %271 = vmatprep.subr.mxu0 0.0
    %272 = vmatpush2.msra.mxu0 0.0
    %273 = vmatprep.mubr.f32.mxu0 0.0
    %274 = vmatmul.mubr.f32.gmra.mxu0 %v136
    %v275 = vpop.f32.mrf.mxu0
    %v276 = vadd.f32 0.0, %v275
    %v277 = vpop.f32.mrf.mxu0
    %v278 = vadd.f32 0.0, %v277
    %279 = vdwg.mxu0
    %280 = vmatprep.subr.mxu0 0.0
    %281 = vmatpush1.msra.mxu0 0.0
    %282 = vmatprep.subr.mxu0 0.0
    %283 = vmatpush1.msra.mxu0 0.0
    %284 = vmatprep.subr.mxu0 0.0
    %285 = vmatpush1.msra.mxu0 0.0
    %286 = vmatprep.subr.mxu0 0.0
    %287 = vmatpush1.msra.mxu0 0.0
    %288 = vmatprep.subr.mxu0 0.0
    %289 = vmatpush1.msra.mxu0 0.0
    %290 = vmatprep.subr.mxu0 0.0
    %291 = vmatpush1.msra.mxu0 0.0
    %292 = vmatprep.subr.mxu0 0.0
    %293 = vmatpush1.msra.mxu0 0.0
    %294 = vmatprep.subr.mxu0 0.0
    %295 = vmatpush1.msra.mxu0 0.0
    %296 = vmatprep.subr.mxu0 0.0
    %297 = vmatpush1.msra.mxu0 0.0
    %298 = vmatprep.subr.mxu0 0.0
    %299 = vmatpush1.msra.mxu0 0.0
    %300 = vmatprep.subr.mxu0 0.0
    %301 = vmatpush1.msra.mxu0 0.0
    %302 = vmatprep.subr.mxu0 0.0
    %303 = vmatpush1.msra.mxu0 0.0
    %304 = vmatprep.subr.mxu0 %v123
    %305 = vmatpush1.msra.mxu0 %v122
    %306 = vmatprep.subr.mxu0 %v107
    %307 = vmatpush1.msra.mxu0 %v106
    %308 = vmatprep.subr.mxu0 %v91
    %309 = vmatpush1.msra.mxu0 %v90
    %310 = vmatprep.subr.mxu0 %v75
    %311 = vmatpush1.msra.mxu0 %v74
    %312 = vmatprep.subr.mxu0 0.0
    %313 = vmatpush2.msra.mxu0 0.0
    %314 = vmatprep.subr.mxu0 0.0
    %315 = vmatpush2.msra.mxu0 0.0
    %316 = vmatprep.subr.mxu0 0.0
    %317 = vmatpush2.msra.mxu0 0.0
    %318 = vmatprep.subr.mxu0 0.0
    %319 = vmatpush2.msra.mxu0 0.0
    %320 = vmatprep.subr.mxu0 0.0
    %321 = vmatpush2.msra.mxu0 0.0
    %322 = vmatprep.subr.mxu0 0.0
    %323 = vmatpush2.msra.mxu0 0.0
    %324 = vmatprep.subr.mxu0 0.0
    %325 = vmatpush2.msra.mxu0 0.0
    %326 = vmatprep.subr.mxu0 0.0
    %327 = vmatpush2.msra.mxu0 0.0
    %328 = vmatprep.subr.mxu0 0.0
    %329 = vmatpush2.msra.mxu0 0.0
    %330 = vmatprep.subr.mxu0 0.0
    %331 = vmatpush2.msra.mxu0 0.0
    %332 = vmatprep.subr.mxu0 0.0
    %333 = vmatpush2.msra.mxu0 0.0
    %334 = vmatprep.subr.mxu0 0.0
    %335 = vmatpush2.msra.mxu0 0.0
    %336 = vmatprep.subr.mxu0 0.0
    %337 = vmatpush2.msra.mxu0 0.0
    %338 = vmatprep.subr.mxu0 0.0
    %339 = vmatpush2.msra.mxu0 0.0
    %340 = vmatprep.subr.mxu0 0.0
    %341 = vmatpush2.msra.mxu0 0.0
    %342 = vmatprep.subr.mxu0 0.0
    %343 = vmatpush2.msra.mxu0 0.0
    %344 = vmatprep.mubr.f32.mxu0 0.0
    %345 = vmatmul.mubr.f32.gmra.mxu0 %v136
    %v346 = vpop.f32.mrf.mxu0
    %v347 = vadd.f32 0.0, %v346
    %v348 = vpop.f32.mrf.mxu0
    %v349 = vadd.f32 0.0, %v348
    %350 = vdwg.mxu0
    %351 = vmatprep.subr.mxu0 0.0
    %352 = vmatpush1.msra.mxu0 0.0
    %353 = vmatprep.subr.mxu0 0.0
    %354 = vmatpush1.msra.mxu0 0.0
    %355 = vmatprep.subr.mxu0 0.0
    %356 = vmatpush1.msra.mxu0 0.0
    %357 = vmatprep.subr.mxu0 0.0
    %358 = vmatpush1.msra.mxu0 0.0
    %359 = vmatprep.subr.mxu0 0.0
    %360 = vmatpush1.msra.mxu0 0.0
    %361 = vmatprep.subr.mxu0 0.0
    %362 = vmatpush1.msra.mxu0 0.0
    %363 = vmatprep.subr.mxu0 0.0
    %364 = vmatpush1.msra.mxu0 0.0
    %365 = vmatprep.subr.mxu0 0.0
    %366 = vmatpush1.msra.mxu0 0.0
    %367 = vmatprep.subr.mxu0 0.0
    %368 = vmatpush1.msra.mxu0 0.0
    %369 = vmatprep.subr.mxu0 0.0
    %370 = vmatpush1.msra.mxu0 0.0
    %371 = vmatprep.subr.mxu0 0.0
    %372 = vmatpush1.msra.mxu0 0.0
    %373 = vmatprep.subr.mxu0 0.0
    %374 = vmatpush1.msra.mxu0 0.0
    %375 = vmatprep.subr.mxu0 %v125
    %376 = vmatpush1.msra.mxu0 %v124
    %377 = vmatprep.subr.mxu0 %v109
    %378 = vmatpush1.msra.mxu0 %v108
    %379 = vmatprep.subr.mxu0 %v93
    %380 = vmatpush1.msra.mxu0 %v92
    %381 = vmatprep.subr.mxu0 %v77
    %382 = vmatpush1.msra.mxu0 %v76
    %383 = vmatprep.subr.mxu0 0.0
    %384 = vmatpush2.msra.mxu0 0.0
    %385 = vmatprep.subr.mxu0 0.0
    %386 = vmatpush2.msra.mxu0 0.0
    %387 = vmatprep.subr.mxu0 0.0
    %388 = vmatpush2.msra.mxu0 0.0
    %389 = vmatprep.subr.mxu0 0.0
    %390 = vmatpush2.msra.mxu0 0.0
    %391 = vmatprep.subr.mxu0 0.0
    %392 = vmatpush2.msra.mxu0 0.0
    %393 = vmatprep.subr.mxu0 0.0
    %394 = vmatpush2.msra.mxu0 0.0
    %395 = vmatprep.subr.mxu0 0.0
    %396 = vmatpush2.msra.mxu0 0.0
    %397 = vmatprep.subr.mxu0 0.0
    %398 = vmatpush2.msra.mxu0 0.0
    %399 = vmatprep.subr.mxu0 0.0
    %400 = vmatpush2.msra.mxu0 0.0
    %401 = vmatprep.subr.mxu0 0.0
    %402 = vmatpush2.msra.mxu0 0.0
    %403 = vmatprep.subr.mxu0 0.0
    %404 = vmatpush2.msra.mxu0 0.0
    %405 = vmatprep.subr.mxu0 0.0
    %406 = vmatpush2.msra.mxu0 0.0
    %407 = vmatprep.subr.mxu0 0.0
    %408 = vmatpush2.msra.mxu0 0.0
    %409 = vmatprep.subr.mxu0 0.0
    %410 = vmatpush2.msra.mxu0 0.0
    %411 = vmatprep.subr.mxu0 0.0
    %412 = vmatpush2.msra.mxu0 0.0
    %413 = vmatprep.subr.mxu0 0.0
    %414 = vmatpush2.msra.mxu0 0.0
    %415 = vmatprep.mubr.f32.mxu0 0.0
    %416 = vmatmul.mubr.f32.gmra.mxu0 %v136
    %v417 = vpop.f32.mrf.mxu0
    %v418 = vadd.f32 0.0, %v417
    %v419 = vpop.f32.mrf.mxu0
    %v420 = vadd.f32 0.0, %v419
    %421 = vdwg.mxu0
    %422 = vmatprep.subr.mxu0 0.0
    %423 = vmatpush1.msra.mxu0 0.0
    %424 = vmatprep.subr.mxu0 0.0
    %425 = vmatpush1.msra.mxu0 0.0
    %426 = vmatprep.subr.mxu0 0.0
    %427 = vmatpush1.msra.mxu0 0.0
    %428 = vmatprep.subr.mxu0 0.0
    %429 = vmatpush1.msra.mxu0 0.0
    %430 = vmatprep.subr.mxu0 0.0
    %431 = vmatpush1.msra.mxu0 0.0
    %432 = vmatprep.subr.mxu0 0.0
    %433 = vmatpush1.msra.mxu0 0.0
    %434 = vmatprep.subr.mxu0 0.0
    %435 = vmatpush1.msra.mxu0 0.0
    %436 = vmatprep.subr.mxu0 0.0
    %437 = vmatpush1.msra.mxu0 0.0
    %438 = vmatprep.subr.mxu0 0.0
    %439 = vmatpush1.msra.mxu0 0.0
    %440 = vmatprep.subr.mxu0 0.0
    %441 = vmatpush1.msra.mxu0 0.0
    %442 = vmatprep.subr.mxu0 0.0
    %443 = vmatpush1.msra.mxu0 0.0
    %444 = vmatprep.subr.mxu0 0.0
    %445 = vmatpush1.msra.mxu0 0.0
    %446 = vmatprep.subr.mxu0 %v127
    %447 = vmatpush1.msra.mxu0 %v126
    %448 = vmatprep.subr.mxu0 %v111
    %449 = vmatpush1.msra.mxu0 %v110
    %450 = vmatprep.subr.mxu0 %v95
    %451 = vmatpush1.msra.mxu0 %v94
    %452 = vmatprep.subr.mxu0 %v79
    %453 = vmatpush1.msra.mxu0 %v78
    %454 = vmatprep.subr.mxu0 0.0
    %455 = vmatpush2.msra.mxu0 0.0
    %456 = vmatprep.subr.mxu0 0.0
    %457 = vmatpush2.msra.mxu0 0.0
    %458 = vmatprep.subr.mxu0 0.0
    %459 = vmatpush2.msra.mxu0 0.0
    %460 = vmatprep.subr.mxu0 0.0
    %461 = vmatpush2.msra.mxu0 0.0
    %462 = vmatprep.subr.mxu0 0.0
    %463 = vmatpush2.msra.mxu0 0.0
    %464 = vmatprep.subr.mxu0 0.0
    %465 = vmatpush2.msra.mxu0 0.0
    %466 = vmatprep.subr.mxu0 0.0
    %467 = vmatpush2.msra.mxu0 0.0
    %468 = vmatprep.subr.mxu0 0.0
    %469 = vmatpush2.msra.mxu0 0.0
    %470 = vmatprep.subr.mxu0 0.0
    %471 = vmatpush2.msra.mxu0 0.0
    %472 = vmatprep.subr.mxu0 0.0
    %473 = vmatpush2.msra.mxu0 0.0
    %474 = vmatprep.subr.mxu0 0.0
    %475 = vmatpush2.msra.mxu0 0.0
    %476 = vmatprep.subr.mxu0 0.0
    %477 = vmatpush2.msra.mxu0 0.0
    %478 = vmatprep.subr.mxu0 0.0
    %479 = vmatpush2.msra.mxu0 0.0
    %480 = vmatprep.subr.mxu0 0.0
    %481 = vmatpush2.msra.mxu0 0.0
    %482 = vmatprep.subr.mxu0 0.0
    %483 = vmatpush2.msra.mxu0 0.0
    %484 = vmatprep.subr.mxu0 0.0
    %485 = vmatpush2.msra.mxu0 0.0
    %486 = vmatprep.mubr.f32.mxu0 0.0
    %487 = vmatmul.mubr.f32.gmra.mxu0 %v136
    %v488 = vpop.f32.mrf.mxu0
    %v489 = vadd.f32 0.0, %v488
    %v490 = vpop.f32.mrf.mxu0
    %v491 = vadd.f32 0.0, %v490
    %492 = vdwg.mxu0
    %493 = vmatprep.subr.mxu0 0.0
    %494 = vmatpush1.msra.mxu0 0.0
    %495 = vmatprep.subr.mxu0 0.0
    %496 = vmatpush1.msra.mxu0 0.0
    %497 = vmatprep.subr.mxu0 0.0
    %498 = vmatpush1.msra.mxu0 0.0
    %499 = vmatprep.subr.mxu0 0.0
    %500 = vmatpush1.msra.mxu0 0.0
    %501 = vmatprep.subr.mxu0 0.0
    %502 = vmatpush1.msra.mxu0 0.0
    %503 = vmatprep.subr.mxu0 0.0
    %504 = vmatpush1.msra.mxu0 0.0
    %505 = vmatprep.subr.mxu0 0.0
    %506 = vmatpush1.msra.mxu0 0.0
    %507 = vmatprep.subr.mxu0 0.0
    %508 = vmatpush1.msra.mxu0 0.0
    %509 = vmatprep.subr.mxu0 0.0
    %510 = vmatpush1.msra.mxu0 0.0
    %511 = vmatprep.subr.mxu0 0.0
    %512 = vmatpush1.msra.mxu0 0.0
    %513 = vmatprep.subr.mxu0 0.0
    %514 = vmatpush1.msra.mxu0 0.0
    %515 = vmatprep.subr.mxu0 0.0
    %516 = vmatpush1.msra.mxu0 0.0
    %517 = vmatprep.subr.mxu0 %v129
    %518 = vmatpush1.msra.mxu0 %v128
    %519 = vmatprep.subr.mxu0 %v113
    %520 = vmatpush1.msra.mxu0 %v112
    %521 = vmatprep.subr.mxu0 %v97
    %522 = vmatpush1.msra.mxu0 %v96
    %523 = vmatprep.subr.mxu0 %v81
    %524 = vmatpush1.msra.mxu0 %v80
    %525 = vmatprep.subr.mxu0 0.0
    %526 = vmatpush2.msra.mxu0 0.0
    %527 = vmatprep.subr.mxu0 0.0
    %528 = vmatpush2.msra.mxu0 0.0
    %529 = vmatprep.subr.mxu0 0.0
    %530 = vmatpush2.msra.mxu0 0.0
    %531 = vmatprep.subr.mxu0 0.0
    %532 = vmatpush2.msra.mxu0 0.0
    %533 = vmatprep.subr.mxu0 0.0
    %534 = vmatpush2.msra.mxu0 0.0
    %535 = vmatprep.subr.mxu0 0.0
    %536 = vmatpush2.msra.mxu0 0.0
    %537 = vmatprep.subr.mxu0 0.0
    %538 = vmatpush2.msra.mxu0 0.0
    %539 = vmatprep.subr.mxu0 0.0
    %540 = vmatpush2.msra.mxu0 0.0
    %541 = vmatprep.subr.mxu0 0.0
    %542 = vmatpush2.msra.mxu0 0.0
    %543 = vmatprep.subr.mxu0 0.0
    %544 = vmatpush2.msra.mxu0 0.0
    %545 = vmatprep.subr.mxu0 0.0
    %546 = vmatpush2.msra.mxu0 0.0
    %547 = vmatprep.subr.mxu0 0.0
    %548 = vmatpush2.msra.mxu0 0.0
    %549 = vmatprep.subr.mxu0 0.0
    %550 = vmatpush2.msra.mxu0 0.0
    %551 = vmatprep.subr.mxu0 0.0
    %552 = vmatpush2.msra.mxu0 0.0
    %553 = vmatprep.subr.mxu0 0.0
    %554 = vmatpush2.msra.mxu0 0.0
    %555 = vmatprep.subr.mxu0 0.0
    %556 = vmatpush2.msra.mxu0 0.0
    %557 = vmatprep.mubr.f32.mxu0 0.0
    %558 = vmatmul.mubr.f32.gmra.mxu0 %v136
    %v559 = vpop.f32.mrf.mxu0
    %v560 = vadd.f32 0.0, %v559
    %v561 = vpop.f32.mrf.mxu0
    %v562 = vadd.f32 0.0, %v561
    %563 = vdwg.mxu0
    %564 = vmatprep.subr.mxu0 0.0
    %565 = vmatpush1.msra.mxu0 0.0
    %566 = vmatprep.subr.mxu0 0.0
    %567 = vmatpush1.msra.mxu0 0.0
    %568 = vmatprep.subr.mxu0 0.0
    %569 = vmatpush1.msra.mxu0 0.0
    %570 = vmatprep.subr.mxu0 0.0
    %571 = vmatpush1.msra.mxu0 0.0
    %572 = vmatprep.subr.mxu0 0.0
    %573 = vmatpush1.msra.mxu0 0.0
    %574 = vmatprep.subr.mxu0 0.0
    %575 = vmatpush1.msra.mxu0 0.0
    %576 = vmatprep.subr.mxu0 0.0
    %577 = vmatpush1.msra.mxu0 0.0
    %578 = vmatprep.subr.mxu0 0.0
    %579 = vmatpush1.msra.mxu0 0.0
    %580 = vmatprep.subr.mxu0 0.0
    %581 = vmatpush1.msra.mxu0 0.0
    %582 = vmatprep.subr.mxu0 0.0
    %583 = vmatpush1.msra.mxu0 0.0
    %584 = vmatprep.subr.mxu0 0.0
    %585 = vmatpush1.msra.mxu0 0.0
    %586 = vmatprep.subr.mxu0 0.0
    %587 = vmatpush1.msra.mxu0 0.0
    %588 = vmatprep.subr.mxu0 %v131
    %589 = vmatpush1.msra.mxu0 %v130
    %590 = vmatprep.subr.mxu0 %v115
    %591 = vmatpush1.msra.mxu0 %v114
    %592 = vmatprep.subr.mxu0 %v99
    %593 = vmatpush1.msra.mxu0 %v98
    %594 = vmatprep.subr.mxu0 %v83
    %595 = vmatpush1.msra.mxu0 %v82
    %596 = vmatprep.subr.mxu0 0.0
    %597 = vmatpush2.msra.mxu0 0.0
    %598 = vmatprep.subr.mxu0 0.0
    %599 = vmatpush2.msra.mxu0 0.0
    %600 = vmatprep.subr.mxu0 0.0
    %601 = vmatpush2.msra.mxu0 0.0
    %602 = vmatprep.subr.mxu0 0.0
    %603 = vmatpush2.msra.mxu0 0.0
    %604 = vmatprep.subr.mxu0 0.0
    %605 = vmatpush2.msra.mxu0 0.0
    %606 = vmatprep.subr.mxu0 0.0
    %607 = vmatpush2.msra.mxu0 0.0
    %608 = vmatprep.subr.mxu0 0.0
    %609 = vmatpush2.msra.mxu0 0.0
    %610 = vmatprep.subr.mxu0 0.0
    %611 = vmatpush2.msra.mxu0 0.0
    %612 = vmatprep.subr.mxu0 0.0
    %613 = vmatpush2.msra.mxu0 0.0
    %614 = vmatprep.subr.mxu0 0.0
    %615 = vmatpush2.msra.mxu0 0.0
    %616 = vmatprep.subr.mxu0 0.0
    %617 = vmatpush2.msra.mxu0 0.0
    %618 = vmatprep.subr.mxu0 0.0
    %619 = vmatpush2.msra.mxu0 0.0
    %620 = vmatprep.subr.mxu0 0.0
    %621 = vmatpush2.msra.mxu0 0.0
    %622 = vmatprep.subr.mxu0 0.0
    %623 = vmatpush2.msra.mxu0 0.0
    %624 = vmatprep.subr.mxu0 0.0
    %625 = vmatpush2.msra.mxu0 0.0
    %626 = vmatprep.subr.mxu0 0.0
    %627 = vmatpush2.msra.mxu0 0.0
    %628 = vmatprep.mubr.f32.mxu0 0.0
    %629 = vmatmul.mubr.f32.gmra.mxu0 %v136
    %v630 = vpop.f32.mrf.mxu0
    %v631 = vadd.f32 0.0, %v630
    %v632 = vpop.f32.mrf.mxu0
    %v633 = vadd.f32 0.0, %v632
    %634 = vdwg.mxu0
    %635 = vmatprep.subr.mxu0 0.0
    %636 = vmatpush1.msra.mxu0 0.0
    %637 = vmatprep.subr.mxu0 0.0
    %638 = vmatpush1.msra.mxu0 0.0
    %639 = vmatprep.subr.mxu0 0.0
    %640 = vmatpush1.msra.mxu0 0.0
    %641 = vmatprep.subr.mxu0 0.0
    %642 = vmatpush1.msra.mxu0 0.0
    %643 = vmatprep.subr.mxu0 0.0
    %644 = vmatpush1.msra.mxu0 0.0
    %645 = vmatprep.subr.mxu0 0.0
    %646 = vmatpush1.msra.mxu0 0.0
    %647 = vmatprep.subr.mxu0 0.0
    %648 = vmatpush1.msra.mxu0 0.0
    %649 = vmatprep.subr.mxu0 0.0
    %650 = vmatpush1.msra.mxu0 0.0
    %651 = vmatprep.subr.mxu0 0.0
    %652 = vmatpush1.msra.mxu0 0.0
    %653 = vmatprep.subr.mxu0 0.0
    %654 = vmatpush1.msra.mxu0 0.0
    %655 = vmatprep.subr.mxu0 0.0
    %656 = vmatpush1.msra.mxu0 0.0
    %657 = vmatprep.subr.mxu0 0.0
    %658 = vmatpush1.msra.mxu0 0.0
    %659 = vmatprep.subr.mxu0 %v133
    %660 = vmatpush1.msra.mxu0 %v132
    %661 = vmatprep.subr.mxu0 %v117
    %662 = vmatpush1.msra.mxu0 %v116
    %663 = vmatprep.subr.mxu0 %v101
    %664 = vmatpush1.msra.mxu0 %v100
    %665 = vmatprep.subr.mxu0 %v85
    %666 = vmatpush1.msra.mxu0 %v84
    %667 = vmatprep.subr.mxu0 0.0
    %668 = vmatpush2.msra.mxu0 0.0
    %669 = vmatprep.subr.mxu0 0.0
    %670 = vmatpush2.msra.mxu0 0.0
    %671 = vmatprep.subr.mxu0 0.0
    %672 = vmatpush2.msra.mxu0 0.0
    %673 = vmatprep.subr.mxu0 0.0
    %674 = vmatpush2.msra.mxu0 0.0
    %675 = vmatprep.subr.mxu0 0.0
    %676 = vmatpush2.msra.mxu0 0.0
    %677 = vmatprep.subr.mxu0 0.0
    %678 = vmatpush2.msra.mxu0 0.0
    %679 = vmatprep.subr.mxu0 0.0
    %680 = vmatpush2.msra.mxu0 0.0
    %681 = vmatprep.subr.mxu0 0.0
    %682 = vmatpush2.msra.mxu0 0.0
    %683 = vmatprep.subr.mxu0 0.0
    %684 = vmatpush2.msra.mxu0 0.0
    %685 = vmatprep.subr.mxu0 0.0
    %686 = vmatpush2.msra.mxu0 0.0
    %687 = vmatprep.subr.mxu0 0.0
    %688 = vmatpush2.msra.mxu0 0.0
    %689 = vmatprep.subr.mxu0 0.0
    %690 = vmatpush2.msra.mxu0 0.0
    %691 = vmatprep.subr.mxu0 0.0
    %692 = vmatpush2.msra.mxu0 0.0
    %693 = vmatprep.subr.mxu0 0.0
    %694 = vmatpush2.msra.mxu0 0.0
    %695 = vmatprep.subr.mxu0 0.0
    %696 = vmatpush2.msra.mxu0 0.0
    %697 = vmatprep.subr.mxu0 0.0
    %698 = vmatpush2.msra.mxu0 0.0
    %699 = vmatprep.mubr.f32.mxu0 0.0
    %700 = vmatmul.mubr.f32.gmra.mxu0 %v136
    %v701 = vpop.f32.mrf.mxu0
    %v702 = vadd.f32 0.0, %v701
    %v703 = vpop.f32.mrf.mxu0
    %v704 = vadd.f32 0.0, %v703
    %705 = vdwg.mxu0
    %v706 = vld [vmem:[%s2] sm:$0x1]
    %v707 = vld [vmem:[%s3] sm:$0x1]
    %vm708 = vcmask 1041408
    %v709 = vsel %vm708, %v205, 0.0
    %v710 = vrot.slane %v709, 4
    %v711 = vadd.f32 %v709, %v710
    %v712 = vrot.slane %v711, 2
    %v713 = vadd.f32 %v711, %v712
    %v714 = vrot.slane %v713, 1
    %v715 = vadd.f32 %v713, %v714
    %v716 = vadd.f32 %v715, 0.0
    %v717 = vsel %vm708, %v207, 0.0
    %v718 = vrot.slane %v717, 4
    %v719 = vadd.f32 %v717, %v718
    %v720 = vrot.slane %v719, 2
    %v721 = vadd.f32 %v719, %v720
    %v722 = vrot.slane %v721, 1
    %v723 = vadd.f32 %v721, %v722
    %v724 = vadd.f32 %v716, %v723
    %v725 = vsel %vm708, %v276, 0.0
    %v726 = vrot.slane %v725, 4
    %v727 = vadd.f32 %v725, %v726
    %v728 = vrot.slane %v727, 2
    %v729 = vadd.f32 %v727, %v728
    %v730 = vrot.slane %v729, 1
    %v731 = vadd.f32 %v729, %v730
    %v732 = vadd.f32 %v724, %v731
    %v733 = vsel %vm708, %v278, 0.0
    %v734 = vrot.slane %v733, 4
    %v735 = vadd.f32 %v733, %v734
    %v736 = vrot.slane %v735, 2
    %v737 = vadd.f32 %v735, %v736
    %v738 = vrot.slane %v737, 1
    %v739 = vadd.f32 %v737, %v738
    %v740 = vadd.f32 %v732, %v739
    %v741 = vsel %vm708, %v347, 0.0
    %v742 = vrot.slane %v741, 4
    %v743 = vadd.f32 %v741, %v742
    %v744 = vrot.slane %v743, 2
    %v745 = vadd.f32 %v743, %v744
    %v746 = vrot.slane %v745, 1
    %v747 = vadd.f32 %v745, %v746
    %v748 = vadd.f32 %v740, %v747
    %v749 = vsel %vm708, %v349, 0.0
    %v750 = vrot.slane %v749, 4
    %v751 = vadd.f32 %v749, %v750
    %v752 = vrot.slane %v751, 2
    %v753 = vadd.f32 %v751, %v752
    %v754 = vrot.slane %v753, 1
    %v755 = vadd.f32 %v753, %v754
    %v756 = vadd.f32 %v748, %v755
    %v757 = vsel %vm708, %v418, 0.0
    %v758 = vrot.slane %v757, 4
    %v759 = vadd.f32 %v757, %v758
    %v760 = vrot.slane %v759, 2
    %v761 = vadd.f32 %v759, %v760
    %v762 = vrot.slane %v761, 1
    %v763 = vadd.f32 %v761, %v762
    %v764 = vadd.f32 %v756, %v763
    %v765 = vsel %vm708, %v420, 0.0
    %v766 = vrot.slane %v765, 4
    %v767 = vadd.f32 %v765, %v766
    %v768 = vrot.slane %v767, 2
    %v769 = vadd.f32 %v767, %v768
    %v770 = vrot.slane %v769, 1
    %v771 = vadd.f32 %v769, %v770
    %v772 = vadd.f32 %v764, %v771
    %v773 = vsel %vm708, %v489, 0.0
    %v774 = vrot.slane %v773, 4
    %v775 = vadd.f32 %v773, %v774
    %v776 = vrot.slane %v775, 2
    %v777 = vadd.f32 %v775, %v776
    %v778 = vrot.slane %v777, 1
    %v779 = vadd.f32 %v777, %v778
    %v780 = vadd.f32 %v772, %v779
    %v781 = vsel %vm708, %v491, 0.0
    %v782 = vrot.slane %v781, 4
    %v783 = vadd.f32 %v781, %v782
    %v784 = vrot.slane %v783, 2
    %v785 = vadd.f32 %v783, %v784
    %v786 = vrot.slane %v785, 1
    %v787 = vadd.f32 %v785, %v786
    %v788 = vadd.f32 %v780, %v787
    %v789 = vsel %vm708, %v560, 0.0
    %v790 = vrot.slane %v789, 4
    %v791 = vadd.f32 %v789, %v790
    %v792 = vrot.slane %v791, 2
    %v793 = vadd.f32 %v791, %v792
    %v794 = vrot.slane %v793, 1
    %v795 = vadd.f32 %v793, %v794
    %v796 = vadd.f32 %v788, %v795
    %v797 = vsel %vm708, %v562, 0.0
    %v798 = vrot.slane %v797, 4
    %v799 = vadd.f32 %v797, %v798
    %v800 = vrot.slane %v799, 2
    %v801 = vadd.f32 %v799, %v800
    %v802 = vrot.slane %v801, 1
    %v803 = vadd.f32 %v801, %v802
    %v804 = vadd.f32 %v796, %v803
    %v805 = vsel %vm708, %v631, 0.0
    %v806 = vrot.slane %v805, 4
    %v807 = vadd.f32 %v805, %v806
    %v808 = vrot.slane %v807, 2
    %v809 = vadd.f32 %v807, %v808
    %v810 = vrot.slane %v809, 1
    %v811 = vadd.f32 %v809, %v810
    %v812 = vadd.f32 %v804, %v811
    %v813 = vsel %vm708, %v633, 0.0
    %v814 = vrot.slane %v813, 4
    %v815 = vadd.f32 %v813, %v814
    %v816 = vrot.slane %v815, 2
    %v817 = vadd.f32 %v815, %v816
    %v818 = vrot.slane %v817, 1
    %v819 = vadd.f32 %v817, %v818
    %v820 = vadd.f32 %v812, %v819
    %v821 = vsel %vm708, %v702, 0.0
    %v822 = vrot.slane %v821, 4
    %v823 = vadd.f32 %v821, %v822
    %v824 = vrot.slane %v823, 2
    %v825 = vadd.f32 %v823, %v824
    %v826 = vrot.slane %v825, 1
    %v827 = vadd.f32 %v825, %v826
    %v828 = vadd.f32 %v820, %v827
    %v829 = vsel %vm708, %v704, 0.0
    %v830 = vrot.slane %v829, 4
    %v831 = vadd.f32 %v829, %v830
    %v832 = vrot.slane %v831, 2
    %v833 = vadd.f32 %v831, %v832
    %v834 = vrot.slane %v833, 1
    %v835 = vadd.f32 %v833, %v834
    %v836 = vadd.f32 %v828, %v835
    %v837 = vmul.f32 %v205, %v205
    %v838 = vsel %vm708, %v837, 0.0
    %v839 = vrot.slane %v838, 4
    %v840 = vadd.f32 %v838, %v839
    %v841 = vrot.slane %v840, 2
    %v842 = vadd.f32 %v840, %v841
    %v843 = vrot.slane %v842, 1
    %v844 = vadd.f32 %v842, %v843
    %v845 = vadd.f32 %v844, 0.0
    %v846 = vmul.f32 %v207, %v207
    %v847 = vsel %vm708, %v846, 0.0
    %v848 = vrot.slane %v847, 4
    %v849 = vadd.f32 %v847, %v848
    %v850 = vrot.slane %v849, 2
    %v851 = vadd.f32 %v849, %v850
    %v852 = vrot.slane %v851, 1
    %v853 = vadd.f32 %v851, %v852
    %v854 = vadd.f32 %v845, %v853
    %v855 = vmul.f32 %v276, %v276
    %v856 = vsel %vm708, %v855, 0.0
    %v857 = vrot.slane %v856, 4
    %v858 = vadd.f32 %v856, %v857
    %v859 = vrot.slane %v858, 2
    %v860 = vadd.f32 %v858, %v859
    %v861 = vrot.slane %v860, 1
    %v862 = vadd.f32 %v860, %v861
    %v863 = vadd.f32 %v854, %v862
    %v864 = vmul.f32 %v278, %v278
    %v865 = vsel %vm708, %v864, 0.0
    %v866 = vrot.slane %v865, 4
    %v867 = vadd.f32 %v865, %v866
    %v868 = vrot.slane %v867, 2
    %v869 = vadd.f32 %v867, %v868
    %v870 = vrot.slane %v869, 1
    %v871 = vadd.f32 %v869, %v870
    %v872 = vadd.f32 %v863, %v871
    %v873 = vmul.f32 %v347, %v347
    %v874 = vsel %vm708, %v873, 0.0
    %v875 = vrot.slane %v874, 4
    %v876 = vadd.f32 %v874, %v875
    %v877 = vrot.slane %v876, 2
    %v878 = vadd.f32 %v876, %v877
    %v879 = vrot.slane %v878, 1
    %v880 = vadd.f32 %v878, %v879
    %v881 = vadd.f32 %v872, %v880
    %v882 = vmul.f32 %v349, %v349
    %v883 = vsel %vm708, %v882, 0.0
    %v884 = vrot.slane %v883, 4
    %v885 = vadd.f32 %v883, %v884
    %v886 = vrot.slane %v885, 2
    %v887 = vadd.f32 %v885, %v886
    %v888 = vrot.slane %v887, 1
    %v889 = vadd.f32 %v887, %v888
    %v890 = vadd.f32 %v881, %v889
    %v891 = vmul.f32 %v418, %v418
    %v892 = vsel %vm708, %v891, 0.0
    %v893 = vrot.slane %v892, 4
    %v894 = vadd.f32 %v892, %v893
    %v895 = vrot.slane %v894, 2
    %v896 = vadd.f32 %v894, %v895
    %v897 = vrot.slane %v896, 1
    %v898 = vadd.f32 %v896, %v897
    %v899 = vadd.f32 %v890, %v898
    %v900 = vmul.f32 %v420, %v420
    %v901 = vsel %vm708, %v900, 0.0
    %v902 = vrot.slane %v901, 4
    %v903 = vadd.f32 %v901, %v902
    %v904 = vrot.slane %v903, 2
    %v905 = vadd.f32 %v903, %v904
    %v906 = vrot.slane %v905, 1
    %v907 = vadd.f32 %v905, %v906
    %v908 = vadd.f32 %v899, %v907
    %v909 = vmul.f32 %v489, %v489
    %v910 = vsel %vm708, %v909, 0.0
    %v911 = vrot.slane %v910, 4
    %v912 = vadd.f32 %v910, %v911
    %v913 = vrot.slane %v912, 2
    %v914 = vadd.f32 %v912, %v913
    %v915 = vrot.slane %v914, 1
    %v916 = vadd.f32 %v914, %v915
    %v917 = vadd.f32 %v908, %v916
    %v918 = vmul.f32 %v491, %v491
    %v919 = vsel %vm708, %v918, 0.0
    %v920 = vrot.slane %v919, 4
    %v921 = vadd.f32 %v919, %v920
    %v922 = vrot.slane %v921, 2
    %v923 = vadd.f32 %v921, %v922
    %v924 = vrot.slane %v923, 1
    %v925 = vadd.f32 %v923, %v924
    %v926 = vadd.f32 %v917, %v925
    %v927 = vmul.f32 %v560, %v560
    %v928 = vsel %vm708, %v927, 0.0
    %v929 = vrot.slane %v928, 4
    %v930 = vadd.f32 %v928, %v929
    %v931 = vrot.slane %v930, 2
    %v932 = vadd.f32 %v930, %v931
    %v933 = vrot.slane %v932, 1
    %v934 = vadd.f32 %v932, %v933
    %v935 = vadd.f32 %v926, %v934
    %v936 = vmul.f32 %v562, %v562
    %v937 = vsel %vm708, %v936, 0.0
    %v938 = vrot.slane %v937, 4
    %v939 = vadd.f32 %v937, %v938
    %v940 = vrot.slane %v939, 2
    %v941 = vadd.f32 %v939, %v940
    %v942 = vrot.slane %v941, 1
    %v943 = vadd.f32 %v941, %v942
    %v944 = vadd.f32 %v935, %v943
    %v945 = vmul.f32 %v631, %v631
    %v946 = vsel %vm708, %v945, 0.0
    %v947 = vrot.slane %v946, 4
    %v948 = vadd.f32 %v946, %v947
    %v949 = vrot.slane %v948, 2
    %v950 = vadd.f32 %v948, %v949
    %v951 = vrot.slane %v950, 1
    %v952 = vadd.f32 %v950, %v951
    %v953 = vadd.f32 %v944, %v952
    %v954 = vmul.f32 %v633, %v633
    %v955 = vsel %vm708, %v954, 0.0
    %v956 = vrot.slane %v955, 4
    %v957 = vadd.f32 %v955, %v956
    %v958 = vrot.slane %v957, 2
    %v959 = vadd.f32 %v957, %v958
    %v960 = vrot.slane %v959, 1
    %v961 = vadd.f32 %v959, %v960
    %v962 = vadd.f32 %v953, %v961
    %v963 = vmul.f32 %v702, %v702
    %v964 = vsel %vm708, %v963, 0.0
    %v965 = vrot.slane %v964, 4
    %v966 = vadd.f32 %v964, %v965
    %v967 = vrot.slane %v966, 2
    %v968 = vadd.f32 %v966, %v967
    %v969 = vrot.slane %v968, 1
    %v970 = vadd.f32 %v968, %v969
    %v971 = vadd.f32 %v962, %v970
    %v972 = vmul.f32 %v704, %v704
    %v973 = vsel %vm708, %v972, 0.0
    %v974 = vrot.slane %v973, 4
    %v975 = vadd.f32 %v973, %v974
    %v976 = vrot.slane %v975, 2
    %v977 = vadd.f32 %v975, %v976
    %v978 = vrot.slane %v977, 1
    %v979 = vadd.f32 %v977, %v978
    %v980 = vadd.f32 %v971, %v979
    %v981 = vmul.f32 %v836, 0.03125
    %v982 = vmul.f32 %v980, 0.03125
    %v983 = vmul.f32 %v981, %v981
    %v984 = vsub.f32 %v982, %v983
    %v985 = vadd.f32 %v984, 1e-05
    %v986 = vrsqrt.pop %v985
    %v987 = vmul.f32 %v986, %v706
    %v988 = vmul.f32 %v981, %v987
    %v989 = vsub.f32 %v707, %v988
    %v990 = vlaneseq
    %v991 = vshrl.u32 %v990, 7
    %v992 = vsub.s32 0, %v991
    %v993 = vrot.slane %v987, %v992
    %v994 = vmul.f32 %v205, %v993
    %v996 = vlaneseq
    %v997 = vshrl.u32 %v996, 7
    %v998 = vsub.s32 0, %v997
    %v999 = vrot.slane %v989, %v998
    %v1001 = vadd.f32 %v994, %v999
    %v1002 = vmax.f32 %v1001, 0.0
    %v1003 = vmul.f32 %v207, %v993
    %v1004 = vadd.f32 %v1003, %v999
    %v1005 = vmax.f32 %v1004, 0.0
    %v1006 = vmul.f32 %v276, %v993
    %v1007 = vadd.f32 %v1006, %v999
    %v1008 = vmax.f32 %v1007, 0.0
    %v1009 = vmul.f32 %v278, %v993
    %v1010 = vadd.f32 %v1009, %v999
    %v1011 = vmax.f32 %v1010, 0.0
    %v1012 = vmul.f32 %v347, %v993
    %v1013 = vadd.f32 %v1012, %v999
    %v1014 = vmax.f32 %v1013, 0.0
    %v1015 = vmul.f32 %v349, %v993
    %v1016 = vadd.f32 %v1015, %v999
    %v1017 = vmax.f32 %v1016, 0.0
    %v1018 = vmul.f32 %v418, %v993
    %v1019 = vadd.f32 %v1018, %v999
    %v1020 = vmax.f32 %v1019, 0.0
    %v1021 = vmul.f32 %v420, %v993
    %v1022 = vadd.f32 %v1021, %v999
    %v1023 = vmax.f32 %v1022, 0.0
    %v1024 = vmul.f32 %v489, %v993
    %v1025 = vadd.f32 %v1024, %v999
    %v1026 = vmax.f32 %v1025, 0.0
    %v1027 = vmul.f32 %v491, %v993
    %v1028 = vadd.f32 %v1027, %v999
    %v1029 = vmax.f32 %v1028, 0.0
    %v1030 = vmul.f32 %v560, %v993
    %v1031 = vadd.f32 %v1030, %v999
    %v1032 = vmax.f32 %v1031, 0.0
    %v1033 = vmul.f32 %v562, %v993
    %v1034 = vadd.f32 %v1033, %v999
    %v1035 = vmax.f32 %v1034, 0.0
    %v1036 = vmul.f32 %v631, %v993
    %v1037 = vadd.f32 %v1036, %v999
    %v1038 = vmax.f32 %v1037, 0.0
    %v1039 = vmul.f32 %v633, %v993
    %v1040 = vadd.f32 %v1039, %v999
    %v1041 = vmax.f32 %v1040, 0.0
    %v1042 = vmul.f32 %v702, %v993
    %v1043 = vadd.f32 %v1042, %v999
    %v1044 = vmax.f32 %v1043, 0.0
    %v1045 = vmul.f32 %v704, %v993
    %v1046 = vadd.f32 %v1045, %v999
    %v1047 = vmax.f32 %v1046, 0.0
    %v1048 = vld [vmem:[%s5] sm:$0x1]
    %v1049 = vld [vmem:[%s6] sm:$0x1]
    %v1060 = vcombine.low 0.0, 0.0
    %v1062 = vunpack.c.l.s4 1983009808
    %v1063 = vunpack.c.0.s8 %v1062
    %v1064 = vlaneseq
    %v1065 = vshrl.u32 %v1064, 7
    %v1066 = vsub.s32 %v1063, %v1065
    %v1067 = vrot.slane %v1060, %v1066
    %v1068 = vcombine.low %v1067, %v1067
    %v1069 = vcombine.low 0.0, %v1002
    %v1070 = vcombine.low %v1005, %v1008
    %v1072 = vunpack.c.l.s4 1983009808
    %v1073 = vunpack.c.0.s8 %v1072
    %v1074 = vlaneseq
    %v1075 = vshrl.u32 %v1074, 7
    %v1076 = vsub.s32 %v1073, %v1075
    %v1077 = vrot.slane %v1069, %v1076
    %v1079 = vunpack.c.l.s4 1983009808
    %v1080 = vunpack.c.0.s8 %v1079
    %v1081 = vlaneseq
    %v1082 = vshrl.u32 %v1081, 7
    %v1083 = vsub.s32 %v1080, %v1082
    %v1084 = vrot.slane %v1070, %v1083
    %v1085 = vcombine.low %v1077, %v1084
    %v1086 = vcombine.low 0.0, %v1014
    %v1087 = vcombine.low %v1017, %v1020
    %v1089 = vunpack.c.l.s4 1983009808
    %v1090 = vunpack.c.0.s8 %v1089
    %v1091 = vlaneseq
    %v1092 = vshrl.u32 %v1091, 7
    %v1093 = vsub.s32 %v1090, %v1092
    %v1094 = vrot.slane %v1086, %v1093
    %v1096 = vunpack.c.l.s4 1983009808
    %v1097 = vunpack.c.0.s8 %v1096
    %v1098 = vlaneseq
    %v1099 = vshrl.u32 %v1098, 7
    %v1100 = vsub.s32 %v1097, %v1099
    %v1101 = vrot.slane %v1087, %v1100
    %v1102 = vcombine.low %v1094, %v1101
    %v1103 = vcombine.low 0.0, %v1026
    %v1104 = vcombine.low %v1029, %v1032
    %v1106 = vunpack.c.l.s4 1983009808
    %v1107 = vunpack.c.0.s8 %v1106
    %v1108 = vlaneseq
    %v1109 = vshrl.u32 %v1108, 7
    %v1110 = vsub.s32 %v1107, %v1109
    %v1111 = vrot.slane %v1103, %v1110
    %v1113 = vunpack.c.l.s4 1983009808
    %v1114 = vunpack.c.0.s8 %v1113
    %v1115 = vlaneseq
    %v1116 = vshrl.u32 %v1115, 7
    %v1117 = vsub.s32 %v1114, %v1116
    %v1118 = vrot.slane %v1104, %v1117
    %v1119 = vcombine.low %v1111, %v1118
    %v1127 = vcombine.low %v1002, %v1005
    %v1128 = vcombine.low %v1008, %v1011
    %v1130 = vunpack.c.l.s4 1983009808
    %v1131 = vunpack.c.0.s8 %v1130
    %v1132 = vlaneseq
    %v1133 = vshrl.u32 %v1132, 7
    %v1134 = vsub.s32 %v1131, %v1133
    %v1135 = vrot.slane %v1127, %v1134
    %v1137 = vunpack.c.l.s4 1983009808
    %v1138 = vunpack.c.0.s8 %v1137
    %v1139 = vlaneseq
    %v1140 = vshrl.u32 %v1139, 7
    %v1141 = vsub.s32 %v1138, %v1140
    %v1142 = vrot.slane %v1128, %v1141
    %v1143 = vcombine.low %v1135, %v1142
    %v1144 = vcombine.low %v1014, %v1017
    %v1145 = vcombine.low %v1020, %v1023
    %v1147 = vunpack.c.l.s4 1983009808
    %v1148 = vunpack.c.0.s8 %v1147
    %v1149 = vlaneseq
    %v1150 = vshrl.u32 %v1149, 7
    %v1151 = vsub.s32 %v1148, %v1150
    %v1152 = vrot.slane %v1144, %v1151
    %v1154 = vunpack.c.l.s4 1983009808
    %v1155 = vunpack.c.0.s8 %v1154
    %v1156 = vlaneseq
    %v1157 = vshrl.u32 %v1156, 7
    %v1158 = vsub.s32 %v1155, %v1157
    %v1159 = vrot.slane %v1145, %v1158
    %v1160 = vcombine.low %v1152, %v1159
    %v1161 = vcombine.low %v1026, %v1029
    %v1162 = vcombine.low %v1032, %v1035
    %v1164 = vunpack.c.l.s4 1983009808
    %v1165 = vunpack.c.0.s8 %v1164
    %v1166 = vlaneseq
    %v1167 = vshrl.u32 %v1166, 7
    %v1168 = vsub.s32 %v1165, %v1167
    %v1169 = vrot.slane %v1161, %v1168
    %v1171 = vunpack.c.l.s4 1983009808
    %v1172 = vunpack.c.0.s8 %v1171
    %v1173 = vlaneseq
    %v1174 = vshrl.u32 %v1173, 7
    %v1175 = vsub.s32 %v1172, %v1174
    %v1176 = vrot.slane %v1162, %v1175
    %v1177 = vcombine.low %v1169, %v1176
    %v1184 = vcombine.low 0.0, %v1038
    %v1185 = vcombine.low %v1041, %v1044
    %v1187 = vunpack.c.l.s4 1983009808
    %v1188 = vunpack.c.0.s8 %v1187
    %v1189 = vlaneseq
    %v1190 = vshrl.u32 %v1189, 7
    %v1191 = vsub.s32 %v1188, %v1190
    %v1192 = vrot.slane %v1184, %v1191
    %v1194 = vunpack.c.l.s4 1983009808
    %v1195 = vunpack.c.0.s8 %v1194
    %v1196 = vlaneseq
    %v1197 = vshrl.u32 %v1196, 7
    %v1198 = vsub.s32 %v1195, %v1197
    %v1199 = vrot.slane %v1185, %v1198
    %v1200 = vcombine.low %v1192, %v1199
    %v1203 = vcombine.low %v1038, %v1041
    %v1204 = vcombine.low %v1044, %v1047
    %v1206 = vunpack.c.l.s4 1983009808
    %v1207 = vunpack.c.0.s8 %v1206
    %v1208 = vlaneseq
    %v1209 = vshrl.u32 %v1208, 7
    %v1210 = vsub.s32 %v1207, %v1209
    %v1211 = vrot.slane %v1203, %v1210
    %v1213 = vunpack.c.l.s4 1983009808
    %v1214 = vunpack.c.0.s8 %v1213
    %v1215 = vlaneseq
    %v1216 = vshrl.u32 %v1215, 7
    %v1217 = vsub.s32 %v1214, %v1216
    %v1218 = vrot.slane %v1204, %v1217
    %v1219 = vcombine.low %v1211, %v1218
    %v1221 = vld [vmem:[#allocation2] sm:$0xff]
    %v1222 = vld [vmem:[#allocation2 + $0x8] sm:$0xff]
    %v1223 = vld [vmem:[#allocation2 + $0x10] sm:$0xff]
    %v1224 = vld [vmem:[#allocation2 + $0x18] sm:$0xff]
    %v1225 = vld [vmem:[#allocation2 + $0x20] sm:$0xff]
    %v1226 = vld [vmem:[#allocation2 + $0x28] sm:$0xff]
    %v1227 = vld [vmem:[#allocation2 + $0x30] sm:$0xff]
    %v1228 = vld [vmem:[#allocation2 + $0x38] sm:$0xff]
    %v1229 = vld [vmem:[#allocation2 + $0x40] sm:$0xff]
    %v1230 = vld [vmem:[#allocation2 + $0x48] sm:$0xff]
    %v1231 = vld [vmem:[#allocation2 + $0x50] sm:$0xff]
    %v1232 = vld [vmem:[#allocation2 + $0x58] sm:$0xff]
    %v1233 = vld [vmem:[#allocation2 + $0x60] sm:$0xff]
    %v1234 = vld [vmem:[#allocation2 + $0x68] sm:$0xff]
    %v1235 = vld [vmem:[#allocation2 + $0x70] sm:$0xff]
    %v1236 = vld [vmem:[#allocation2 + $0x78] sm:$0xff]
    %v1237 = vld [vmem:[#allocation2 + $0x80] sm:$0xff]
    %v1238 = vld [vmem:[#allocation2 + $0x88] sm:$0xff]
    %v1239 = vld [vmem:[#allocation2 + $0x90] sm:$0xff]
    %v1240 = vld [vmem:[#allocation2 + $0x98] sm:$0xff]
    %v1241 = vld [vmem:[#allocation2 + $0xa0] sm:$0xff]
    %v1242 = vld [vmem:[#allocation2 + $0xa8] sm:$0xff]
    %v1243 = vld [vmem:[#allocation2 + $0xb0] sm:$0xff]
    %v1244 = vld [vmem:[#allocation2 + $0xb8] sm:$0xff]
    %v1245 = vld [vmem:[#allocation2 + $0xc0] sm:$0xff]
    %v1246 = vld [vmem:[#allocation2 + $0xc8] sm:$0xff]
    %v1247 = vld [vmem:[#allocation2 + $0xd0] sm:$0xff]
    %v1248 = vld [vmem:[#allocation2 + $0xd8] sm:$0xff]
    %v1249 = vld [vmem:[#allocation2 + $0xe0] sm:$0xff]
    %v1250 = vld [vmem:[#allocation2 + $0xe8] sm:$0xff]
    %v1251 = vld [vmem:[#allocation2 + $0xf0] sm:$0xff]
    %v1252 = vld [vmem:[#allocation2 + $0xf8] sm:$0xff]
    %v1253 = vld [vmem:[#allocation2 + $0x100] sm:$0xff]
    %v1254 = vld [vmem:[#allocation2 + $0x108] sm:$0xff]
    %v1255 = vld [vmem:[#allocation2 + $0x110] sm:$0xff]
    %v1256 = vld [vmem:[#allocation2 + $0x118] sm:$0xff]
    %v1257 = vld [vmem:[#allocation2 + $0x120] sm:$0xff]
    %v1258 = vld [vmem:[#allocation2 + $0x128] sm:$0xff]
    %v1259 = vld [vmem:[#allocation2 + $0x130] sm:$0xff]
    %v1260 = vld [vmem:[#allocation2 + $0x138] sm:$0xff]
    %v1261 = vld [vmem:[#allocation2 + $0x140] sm:$0xff]
    %v1262 = vld [vmem:[#allocation2 + $0x148] sm:$0xff]
    %v1263 = vld [vmem:[#allocation2 + $0x150] sm:$0xff]
    %v1264 = vld [vmem:[#allocation2 + $0x158] sm:$0xff]
    %v1265 = vld [vmem:[#allocation2 + $0x160] sm:$0xff]
    %v1266 = vld [vmem:[#allocation2 + $0x168] sm:$0xff]
    %v1267 = vld [vmem:[#allocation2 + $0x170] sm:$0xff]
    %v1268 = vld [vmem:[#allocation2 + $0x178] sm:$0xff]
    %v1269 = vld [vmem:[#allocation2 + $0x180] sm:$0xff]
    %v1270 = vld [vmem:[#allocation2 + $0x188] sm:$0xff]
    %v1271 = vld [vmem:[#allocation2 + $0x190] sm:$0xff]
    %v1272 = vld [vmem:[#allocation2 + $0x198] sm:$0xff]
    %v1273 = vld [vmem:[#allocation2 + $0x1a0] sm:$0xff]
    %v1274 = vld [vmem:[#allocation2 + $0x1a8] sm:$0xff]
    %v1275 = vld [vmem:[#allocation2 + $0x1b0] sm:$0xff]
    %v1276 = vld [vmem:[#allocation2 + $0x1b8] sm:$0xff]
    %v1277 = vld [vmem:[#allocation2 + $0x1c0] sm:$0xff]
    %v1278 = vld [vmem:[#allocation2 + $0x1c8] sm:$0xff]
    %v1279 = vld [vmem:[#allocation2 + $0x1d0] sm:$0xff]
    %v1280 = vld [vmem:[#allocation2 + $0x1d8] sm:$0xff]
    %v1281 = vld [vmem:[#allocation2 + $0x1e0] sm:$0xff]
    %v1282 = vld [vmem:[#allocation2 + $0x1e8] sm:$0xff]
    %v1283 = vld [vmem:[#allocation2 + $0x1f0] sm:$0xff]
    %v1284 = vld [vmem:[#allocation2 + $0x1f8] sm:$0xff]
    %1285 = vmatprep.subr.mxu0 0.0
    %1286 = vmatpush1.msra.mxu0 %v1236
    %1287 = vmatprep.subr.mxu0 0.0
    %1288 = vmatpush1.msra.mxu0 %v1235
    %1289 = vmatprep.subr.mxu0 0.0
    %1290 = vmatpush1.msra.mxu0 %v1234
    %1291 = vmatprep.subr.mxu0 0.0
    %1292 = vmatpush1.msra.mxu0 %v1233
    %1293 = vmatprep.subr.mxu0 0.0
    %1294 = vmatpush1.msra.mxu0 %v1232
    %1295 = vmatprep.subr.mxu0 0.0
    %1296 = vmatpush1.msra.mxu0 %v1231
    %1297 = vmatprep.subr.mxu0 0.0
    %1298 = vmatpush1.msra.mxu0 %v1230
    %1299 = vmatprep.subr.mxu0 0.0
    %1300 = vmatpush1.msra.mxu0 %v1229
    %1301 = vmatprep.subr.mxu0 0.0
    %1302 = vmatpush1.msra.mxu0 %v1228
    %1303 = vmatprep.subr.mxu0 0.0
    %1304 = vmatpush1.msra.mxu0 %v1227
    %1305 = vmatprep.subr.mxu0 0.0
    %1306 = vmatpush1.msra.mxu0 %v1226
    %1307 = vmatprep.subr.mxu0 0.0
    %1308 = vmatpush1.msra.mxu0 %v1225
    %1309 = vmatprep.subr.mxu0 0.0
    %1310 = vmatpush1.msra.mxu0 %v1224
    %1311 = vmatprep.subr.mxu0 0.0
    %1312 = vmatpush1.msra.mxu0 %v1223
    %1313 = vmatprep.subr.mxu0 0.0
    %1314 = vmatpush1.msra.mxu0 %v1222
    %1315 = vmatprep.subr.mxu0 0.0
    %1316 = vmatpush1.msra.mxu0 %v1221
    %1317 = vmatprep.subr.mxu0 0.0
    %1318 = vmatpush2.msra.mxu0 %v1252
    %1319 = vmatprep.subr.mxu0 0.0
    %1320 = vmatpush2.msra.mxu0 %v1251
    %1321 = vmatprep.subr.mxu0 0.0
    %1322 = vmatpush2.msra.mxu0 %v1250
    %1323 = vmatprep.subr.mxu0 0.0
    %1324 = vmatpush2.msra.mxu0 %v1249
    %1325 = vmatprep.subr.mxu0 0.0
    %1326 = vmatpush2.msra.mxu0 %v1248
    %1327 = vmatprep.subr.mxu0 0.0
    %1328 = vmatpush2.msra.mxu0 %v1247
    %1329 = vmatprep.subr.mxu0 0.0
    %1330 = vmatpush2.msra.mxu0 %v1246
    %1331 = vmatprep.subr.mxu0 0.0
    %1332 = vmatpush2.msra.mxu0 %v1245
    %1333 = vmatprep.subr.mxu0 0.0
    %1334 = vmatpush2.msra.mxu0 %v1244
    %1335 = vmatprep.subr.mxu0 0.0
    %1336 = vmatpush2.msra.mxu0 %v1243
    %1337 = vmatprep.subr.mxu0 0.0
    %1338 = vmatpush2.msra.mxu0 %v1242
    %1339 = vmatprep.subr.mxu0 0.0
    %1340 = vmatpush2.msra.mxu0 %v1241
    %1341 = vmatprep.subr.mxu0 0.0
    %1342 = vmatpush2.msra.mxu0 %v1240
    %1343 = vmatprep.subr.mxu0 0.0
    %1344 = vmatpush2.msra.mxu0 %v1239
    %1345 = vmatprep.subr.mxu0 0.0
    %1346 = vmatpush2.msra.mxu0 %v1238
    %1347 = vmatprep.subr.mxu0 0.0
    %1348 = vmatpush2.msra.mxu0 %v1237
    %1349 = vmatprep.mubr.f32.mxu0 %v1068
    %1350 = vmatmul.mubr.f32.gmra.mxu0 %v1068
    %v1351 = vpop.f32.mrf.mxu0
    %v1352 = vadd.f32 0.0, %v1351
    %v1353 = vpop.f32.mrf.mxu0
    %1354 = vmatprep.mubr.f32.mxu0 %v1143
    %1355 = vmatmul.mubr.f32.gmra.mxu0 %v1085
    %v1356 = vpop.f32.mrf.mxu0
    %v1357 = vadd.f32 0.0, %v1356
    %v1358 = vpop.f32.mrf.mxu0
    %1359 = vmatprep.mubr.f32.mxu0 %v1160
    %1360 = vmatmul.mubr.f32.gmra.mxu0 %v1102
    %v1361 = vpop.f32.mrf.mxu0
    %v1362 = vadd.f32 0.0, %v1361
    %v1363 = vpop.f32.mrf.mxu0
    %1364 = vmatprep.mubr.f32.mxu0 %v1177
    %1365 = vmatmul.mubr.f32.gmra.mxu0 %v1119
    %v1366 = vpop.f32.mrf.mxu0
    %v1367 = vadd.f32 0.0, %v1366
    %v1368 = vpop.f32.mrf.mxu0
    %1369 = vdwg.mxu0
    %1370 = vmatprep.subr.mxu0 0.0
    %1371 = vmatpush1.msra.mxu0 %v1268
    %1372 = vmatprep.subr.mxu0 0.0
    %1373 = vmatpush1.msra.mxu0 %v1267
    %1374 = vmatprep.subr.mxu0 0.0
    %1375 = vmatpush1.msra.mxu0 %v1266
    %1376 = vmatprep.subr.mxu0 0.0
    %1377 = vmatpush1.msra.mxu0 %v1265
    %1378 = vmatprep.subr.mxu0 0.0
    %1379 = vmatpush1.msra.mxu0 %v1264
    %1380 = vmatprep.subr.mxu0 0.0
    %1381 = vmatpush1.msra.mxu0 %v1263
    %1382 = vmatprep.subr.mxu0 0.0
    %1383 = vmatpush1.msra.mxu0 %v1262
    %1384 = vmatprep.subr.mxu0 0.0
    %1385 = vmatpush1.msra.mxu0 %v1261
    %1386 = vmatprep.subr.mxu0 0.0
    %1387 = vmatpush1.msra.mxu0 %v1260
    %1388 = vmatprep.subr.mxu0 0.0
    %1389 = vmatpush1.msra.mxu0 %v1259
    %1390 = vmatprep.subr.mxu0 0.0
    %1391 = vmatpush1.msra.mxu0 %v1258
    %1392 = vmatprep.subr.mxu0 0.0
    %1393 = vmatpush1.msra.mxu0 %v1257
    %1394 = vmatprep.subr.mxu0 0.0
    %1395 = vmatpush1.msra.mxu0 %v1256
    %1396 = vmatprep.subr.mxu0 0.0
    %1397 = vmatpush1.msra.mxu0 %v1255
    %1398 = vmatprep.subr.mxu0 0.0
    %1399 = vmatpush1.msra.mxu0 %v1254
    %1400 = vmatprep.subr.mxu0 0.0
    %1401 = vmatpush1.msra.mxu0 %v1253
    %1402 = vmatprep.subr.mxu0 0.0
    %1403 = vmatpush2.msra.mxu0 %v1284
    %1404 = vmatprep.subr.mxu0 0.0
    %1405 = vmatpush2.msra.mxu0 %v1283
    %1406 = vmatprep.subr.mxu0 0.0
    %1407 = vmatpush2.msra.mxu0 %v1282
    %1408 = vmatprep.subr.mxu0 0.0
    %1409 = vmatpush2.msra.mxu0 %v1281
    %1410 = vmatprep.subr.mxu0 0.0
    %1411 = vmatpush2.msra.mxu0 %v1280
    %1412 = vmatprep.subr.mxu0 0.0
    %1413 = vmatpush2.msra.mxu0 %v1279
    %1414 = vmatprep.subr.mxu0 0.0
    %1415 = vmatpush2.msra.mxu0 %v1278
    %1416 = vmatprep.subr.mxu0 0.0
    %1417 = vmatpush2.msra.mxu0 %v1277
    %1418 = vmatprep.subr.mxu0 0.0
    %1419 = vmatpush2.msra.mxu0 %v1276
    %1420 = vmatprep.subr.mxu0 0.0
    %1421 = vmatpush2.msra.mxu0 %v1275
    %1422 = vmatprep.subr.mxu0 0.0
    %1423 = vmatpush2.msra.mxu0 %v1274
    %1424 = vmatprep.subr.mxu0 0.0
    %1425 = vmatpush2.msra.mxu0 %v1273
    %1426 = vmatprep.subr.mxu0 0.0
    %1427 = vmatpush2.msra.mxu0 %v1272
    %1428 = vmatprep.subr.mxu0 0.0
    %1429 = vmatpush2.msra.mxu0 %v1271
    %1430 = vmatprep.subr.mxu0 0.0
    %1431 = vmatpush2.msra.mxu0 %v1270
    %1432 = vmatprep.subr.mxu0 0.0
    %1433 = vmatpush2.msra.mxu0 %v1269
    %1434 = vmatprep.mubr.f32.mxu0 %v1143
    %1435 = vmatmul.mubr.f32.gmra.mxu0 %v1085
    %v1436 = vpop.f32.mrf.mxu0
    %v1437 = vadd.f32 %v1352, %v1436
    %v1438 = vpop.f32.mrf.mxu0
    %1439 = vmatprep.mubr.f32.mxu0 %v1160
    %1440 = vmatmul.mubr.f32.gmra.mxu0 %v1102
    %v1441 = vpop.f32.mrf.mxu0
    %v1442 = vadd.f32 %v1357, %v1441
    %v1443 = vpop.f32.mrf.mxu0
    %1444 = vmatprep.mubr.f32.mxu0 %v1177
    %1445 = vmatmul.mubr.f32.gmra.mxu0 %v1119
    %v1446 = vpop.f32.mrf.mxu0
    %v1447 = vadd.f32 %v1362, %v1446
    %v1448 = vpop.f32.mrf.mxu0
    %1449 = vmatprep.mubr.f32.mxu0 %v1219
    %1450 = vmatmul.mubr.f32.gmra.mxu0 %v1200
    %v1451 = vpop.f32.mrf.mxu0
    %v1452 = vadd.f32 %v1367, %v1451
    %v1453 = vpop.f32.mrf.mxu0
    %1454 = vdwg.mxu0
    %v1455 = vcombine.low %v1011, 0.0
    %v1457 = vunpack.c.l.s4 1983009808
    %v1458 = vunpack.c.0.s8 %v1457
    %v1459 = vlaneseq
    %v1460 = vshrl.u32 %v1459, 7
    %v1461 = vsub.s32 %v1458, %v1460
    %v1462 = vrot.slane %v1455, %v1461
    %v1463 = vcombine.low %v1084, %v1462
    %v1464 = vcombine.low %v1023, 0.0
    %v1466 = vunpack.c.l.s4 1983009808
    %v1467 = vunpack.c.0.s8 %v1466
    %v1468 = vlaneseq
    %v1469 = vshrl.u32 %v1468, 7
    %v1470 = vsub.s32 %v1467, %v1469
    %v1471 = vrot.slane %v1464, %v1470
    %v1472 = vcombine.low %v1101, %v1471
    %v1473 = vcombine.low %v1035, 0.0
    %v1475 = vunpack.c.l.s4 1983009808
    %v1476 = vunpack.c.0.s8 %v1475
    %v1477 = vlaneseq
    %v1478 = vshrl.u32 %v1477, 7
    %v1479 = vsub.s32 %v1476, %v1478
    %v1480 = vrot.slane %v1473, %v1479
    %v1481 = vcombine.low %v1118, %v1480
    %v1485 = vcombine.low %v1047, 0.0
    %v1487 = vunpack.c.l.s4 1983009808
    %v1488 = vunpack.c.0.s8 %v1487
    %v1489 = vlaneseq
    %v1490 = vshrl.u32 %v1489, 7
    %v1491 = vsub.s32 %v1488, %v1490
    %v1492 = vrot.slane %v1485, %v1491
    %v1493 = vcombine.low %v1199, %v1492
    %s1495 = scalar_lea.vmem [#allocation2], 512
    %v1496 = vld [vmem:[%s1495] sm:$0xff]
    %v1497 = vld [vmem:[%s1495 + $0x8] sm:$0xff]
    %v1498 = vld [vmem:[%s1495 + $0x10] sm:$0xff]
    %v1499 = vld [vmem:[%s1495 + $0x18] sm:$0xff]
    %v1500 = vld [vmem:[%s1495 + $0x20] sm:$0xff]
    %v1501 = vld [vmem:[%s1495 + $0x28] sm:$0xff]
    %v1502 = vld [vmem:[%s1495 + $0x30] sm:$0xff]
    %v1503 = vld [vmem:[%s1495 + $0x38] sm:$0xff]
    %v1504 = vld [vmem:[%s1495 + $0x40] sm:$0xff]
    %v1505 = vld [vmem:[%s1495 + $0x48] sm:$0xff]
    %v1506 = vld [vmem:[%s1495 + $0x50] sm:$0xff]
    %v1507 = vld [vmem:[%s1495 + $0x58] sm:$0xff]
    %v1508 = vld [vmem:[%s1495 + $0x60] sm:$0xff]
    %v1509 = vld [vmem:[%s1495 + $0x68] sm:$0xff]
    %v1510 = vld [vmem:[%s1495 + $0x70] sm:$0xff]
    %v1511 = vld [vmem:[%s1495 + $0x78] sm:$0xff]
    %v1512 = vld [vmem:[%s1495 + $0x80] sm:$0xff]
    %v1513 = vld [vmem:[%s1495 + $0x88] sm:$0xff]
    %v1514 = vld [vmem:[%s1495 + $0x90] sm:$0xff]
    %v1515 = vld [vmem:[%s1495 + $0x98] sm:$0xff]
    %v1516 = vld [vmem:[%s1495 + $0xa0] sm:$0xff]
    %v1517 = vld [vmem:[%s1495 + $0xa8] sm:$0xff]
    %v1518 = vld [vmem:[%s1495 + $0xb0] sm:$0xff]
    %v1519 = vld [vmem:[%s1495 + $0xb8] sm:$0xff]
    %v1520 = vld [vmem:[%s1495 + $0xc0] sm:$0xff]
    %v1521 = vld [vmem:[%s1495 + $0xc8] sm:$0xff]
    %v1522 = vld [vmem:[%s1495 + $0xd0] sm:$0xff]
    %v1523 = vld [vmem:[%s1495 + $0xd8] sm:$0xff]
    %v1524 = vld [vmem:[%s1495 + $0xe0] sm:$0xff]
    %v1525 = vld [vmem:[%s1495 + $0xe8] sm:$0xff]
    %v1526 = vld [vmem:[%s1495 + $0xf0] sm:$0xff]
    %v1527 = vld [vmem:[%s1495 + $0xf8] sm:$0xff]
    %v1528 = vld [vmem:[%s1495 + $0x100] sm:$0xff]
    %v1529 = vld [vmem:[%s1495 + $0x108] sm:$0xff]
    %v1530 = vld [vmem:[%s1495 + $0x110] sm:$0xff]
    %v1531 = vld [vmem:[%s1495 + $0x118] sm:$0xff]
    %v1532 = vld [vmem:[%s1495 + $0x120] sm:$0xff]
    %v1533 = vld [vmem:[%s1495 + $0x128] sm:$0xff]
    %v1534 = vld [vmem:[%s1495 + $0x130] sm:$0xff]
    %v1535 = vld [vmem:[%s1495 + $0x138] sm:$0xff]
    %v1536 = vld [vmem:[%s1495 + $0x140] sm:$0xff]
    %v1537 = vld [vmem:[%s1495 + $0x148] sm:$0xff]
    %v1538 = vld [vmem:[%s1495 + $0x150] sm:$0xff]
    %v1539 = vld [vmem:[%s1495 + $0x158] sm:$0xff]
    %v1540 = vld [vmem:[%s1495 + $0x160] sm:$0xff]
    %v1541 = vld [vmem:[%s1495 + $0x168] sm:$0xff]
    %v1542 = vld [vmem:[%s1495 + $0x170] sm:$0xff]
    %v1543 = vld [vmem:[%s1495 + $0x178] sm:$0xff]
    %v1544 = vld [vmem:[%s1495 + $0x180] sm:$0xff]
    %v1545 = vld [vmem:[%s1495 + $0x188] sm:$0xff]
    %v1546 = vld [vmem:[%s1495 + $0x190] sm:$0xff]
    %v1547 = vld [vmem:[%s1495 + $0x198] sm:$0xff]
    %v1548 = vld [vmem:[%s1495 + $0x1a0] sm:$0xff]
    %v1549 = vld [vmem:[%s1495 + $0x1a8] sm:$0xff]
    %v1550 = vld [vmem:[%s1495 + $0x1b0] sm:$0xff]
    %v1551 = vld [vmem:[%s1495 + $0x1b8] sm:$0xff]
    %v1552 = vld [vmem:[%s1495 + $0x1c0] sm:$0xff]
    %v1553 = vld [vmem:[%s1495 + $0x1c8] sm:$0xff]
    %v1554 = vld [vmem:[%s1495 + $0x1d0] sm:$0xff]
    %v1555 = vld [vmem:[%s1495 + $0x1d8] sm:$0xff]
    %v1556 = vld [vmem:[%s1495 + $0x1e0] sm:$0xff]
    %v1557 = vld [vmem:[%s1495 + $0x1e8] sm:$0xff]
    %v1558 = vld [vmem:[%s1495 + $0x1f0] sm:$0xff]
    %v1559 = vld [vmem:[%s1495 + $0x1f8] sm:$0xff]
    %1560 = vmatprep.subr.mxu0 0.0
    %1561 = vmatpush1.msra.mxu0 %v1511
    %1562 = vmatprep.subr.mxu0 0.0
    %1563 = vmatpush1.msra.mxu0 %v1510
    %1564 = vmatprep.subr.mxu0 0.0
    %1565 = vmatpush1.msra.mxu0 %v1509
    %1566 = vmatprep.subr.mxu0 0.0
    %1567 = vmatpush1.msra.mxu0 %v1508
    %1568 = vmatprep.subr.mxu0 0.0
    %1569 = vmatpush1.msra.mxu0 %v1507
    %1570 = vmatprep.subr.mxu0 0.0
    %1571 = vmatpush1.msra.mxu0 %v1506
    %1572 = vmatprep.subr.mxu0 0.0
    %1573 = vmatpush1.msra.mxu0 %v1505
    %1574 = vmatprep.subr.mxu0 0.0
    %1575 = vmatpush1.msra.mxu0 %v1504
    %1576 = vmatprep.subr.mxu0 0.0
    %1577 = vmatpush1.msra.mxu0 %v1503
    %1578 = vmatprep.subr.mxu0 0.0
    %1579 = vmatpush1.msra.mxu0 %v1502
    %1580 = vmatprep.subr.mxu0 0.0
    %1581 = vmatpush1.msra.mxu0 %v1501
    %1582 = vmatprep.subr.mxu0 0.0
    %1583 = vmatpush1.msra.mxu0 %v1500
    %1584 = vmatprep.subr.mxu0 0.0
    %1585 = vmatpush1.msra.mxu0 %v1499
    %1586 = vmatprep.subr.mxu0 0.0
    %1587 = vmatpush1.msra.mxu0 %v1498
    %1588 = vmatprep.subr.mxu0 0.0
    %1589 = vmatpush1.msra.mxu0 %v1497
    %1590 = vmatprep.subr.mxu0 0.0
    %1591 = vmatpush1.msra.mxu0 %v1496
    %1592 = vmatprep.subr.mxu0 0.0
    %1593 = vmatpush2.msra.mxu0 %v1527
    %1594 = vmatprep.subr.mxu0 0.0
    %1595 = vmatpush2.msra.mxu0 %v1526
    %1596 = vmatprep.subr.mxu0 0.0
    %1597 = vmatpush2.msra.mxu0 %v1525
    %1598 = vmatprep.subr.mxu0 0.0
    %1599 = vmatpush2.msra.mxu0 %v1524
    %1600 = vmatprep.subr.mxu0 0.0
    %1601 = vmatpush2.msra.mxu0 %v1523
    %1602 = vmatprep.subr.mxu0 0.0
    %1603 = vmatpush2.msra.mxu0 %v1522
    %1604 = vmatprep.subr.mxu0 0.0
    %1605 = vmatpush2.msra.mxu0 %v1521
    %1606 = vmatprep.subr.mxu0 0.0
    %1607 = vmatpush2.msra.mxu0 %v1520
    %1608 = vmatprep.subr.mxu0 0.0
    %1609 = vmatpush2.msra.mxu0 %v1519
    %1610 = vmatprep.subr.mxu0 0.0
    %1611 = vmatpush2.msra.mxu0 %v1518
    %1612 = vmatprep.subr.mxu0 0.0
    %1613 = vmatpush2.msra.mxu0 %v1517
    %1614 = vmatprep.subr.mxu0 0.0
    %1615 = vmatpush2.msra.mxu0 %v1516
    %1616 = vmatprep.subr.mxu0 0.0
    %1617 = vmatpush2.msra.mxu0 %v1515
    %1618 = vmatprep.subr.mxu0 0.0
    %1619 = vmatpush2.msra.mxu0 %v1514
    %1620 = vmatprep.subr.mxu0 0.0
    %1621 = vmatpush2.msra.mxu0 %v1513
    %1622 = vmatprep.subr.mxu0 0.0
    %1623 = vmatpush2.msra.mxu0 %v1512
    %1624 = vmatprep.mubr.f32.mxu0 %v1068
    %1625 = vmatmul.mubr.f32.gmra.mxu0 %v1068
    %v1626 = vpop.f32.mrf.mxu0
    %v1627 = vadd.f32 0.0, %v1626
    %v1628 = vpop.f32.mrf.mxu0
    %1629 = vmatprep.mubr.f32.mxu0 %v1463
    %1630 = vmatmul.mubr.f32.gmra.mxu0 %v1143
    %v1631 = vpop.f32.mrf.mxu0
    %v1632 = vadd.f32 0.0, %v1631
    %v1633 = vpop.f32.mrf.mxu0
    %1634 = vmatprep.mubr.f32.mxu0 %v1472
    %1635 = vmatmul.mubr.f32.gmra.mxu0 %v1160
    %v1636 = vpop.f32.mrf.mxu0
    %v1637 = vadd.f32 0.0, %v1636
    %v1638 = vpop.f32.mrf.mxu0
    %1639 = vmatprep.mubr.f32.mxu0 %v1481
    %1640 = vmatmul.mubr.f32.gmra.mxu0 %v1177
    %v1641 = vpop.f32.mrf.mxu0
    %v1642 = vadd.f32 0.0, %v1641
    %v1643 = vpop.f32.mrf.mxu0
    %1644 = vdwg.mxu0
    %1645 = vmatprep.subr.mxu0 0.0
    %1646 = vmatpush1.msra.mxu0 %v1543
    %1647 = vmatprep.subr.mxu0 0.0
    %1648 = vmatpush1.msra.mxu0 %v1542
    %1649 = vmatprep.subr.mxu0 0.0
    %1650 = vmatpush1.msra.mxu0 %v1541
    %1651 = vmatprep.subr.mxu0 0.0
    %1652 = vmatpush1.msra.mxu0 %v1540
    %1653 = vmatprep.subr.mxu0 0.0
    %1654 = vmatpush1.msra.mxu0 %v1539
    %1655 = vmatprep.subr.mxu0 0.0
    %1656 = vmatpush1.msra.mxu0 %v1538
    %1657 = vmatprep.subr.mxu0 0.0
    %1658 = vmatpush1.msra.mxu0 %v1537
    %1659 = vmatprep.subr.mxu0 0.0
    %1660 = vmatpush1.msra.mxu0 %v1536
    %1661 = vmatprep.subr.mxu0 0.0
    %1662 = vmatpush1.msra.mxu0 %v1535
    %1663 = vmatprep.subr.mxu0 0.0
    %1664 = vmatpush1.msra.mxu0 %v1534
    %1665 = vmatprep.subr.mxu0 0.0
    %1666 = vmatpush1.msra.mxu0 %v1533
    %1667 = vmatprep.subr.mxu0 0.0
    %1668 = vmatpush1.msra.mxu0 %v1532
    %1669 = vmatprep.subr.mxu0 0.0
    %1670 = vmatpush1.msra.mxu0 %v1531
    %1671 = vmatprep.subr.mxu0 0.0
    %1672 = vmatpush1.msra.mxu0 %v1530
    %1673 = vmatprep.subr.mxu0 0.0
    %1674 = vmatpush1.msra.mxu0 %v1529
    %1675 = vmatprep.subr.mxu0 0.0
    %1676 = vmatpush1.msra.mxu0 %v1528
    %1677 = vmatprep.subr.mxu0 0.0
    %1678 = vmatpush2.msra.mxu0 %v1559
    %1679 = vmatprep.subr.mxu0 0.0
    %1680 = vmatpush2.msra.mxu0 %v1558
    %1681 = vmatprep.subr.mxu0 0.0
    %1682 = vmatpush2.msra.mxu0 %v1557
    %1683 = vmatprep.subr.mxu0 0.0
    %1684 = vmatpush2.msra.mxu0 %v1556
    %1685 = vmatprep.subr.mxu0 0.0
    %1686 = vmatpush2.msra.mxu0 %v1555
    %1687 = vmatprep.subr.mxu0 0.0
    %1688 = vmatpush2.msra.mxu0 %v1554
    %1689 = vmatprep.subr.mxu0 0.0
    %1690 = vmatpush2.msra.mxu0 %v1553
    %1691 = vmatprep.subr.mxu0 0.0
    %1692 = vmatpush2.msra.mxu0 %v1552
    %1693 = vmatprep.subr.mxu0 0.0
    %1694 = vmatpush2.msra.mxu0 %v1551
    %1695 = vmatprep.subr.mxu0 0.0
    %1696 = vmatpush2.msra.mxu0 %v1550
    %1697 = vmatprep.subr.mxu0 0.0
    %1698 = vmatpush2.msra.mxu0 %v1549
    %1699 = vmatprep.subr.mxu0 0.0
    %1700 = vmatpush2.msra.mxu0 %v1548
    %1701 = vmatprep.subr.mxu0 0.0
    %1702 = vmatpush2.msra.mxu0 %v1547
    %1703 = vmatprep.subr.mxu0 0.0
    %1704 = vmatpush2.msra.mxu0 %v1546
    %1705 = vmatprep.subr.mxu0 0.0
    %1706 = vmatpush2.msra.mxu0 %v1545
    %1707 = vmatprep.subr.mxu0 0.0
    %1708 = vmatpush2.msra.mxu0 %v1544
    %1709 = vmatprep.mubr.f32.mxu0 %v1463
    %1710 = vmatmul.mubr.f32.gmra.mxu0 %v1143
    %v1711 = vpop.f32.mrf.mxu0
    %v1712 = vadd.f32 %v1627, %v1711
    %v1713 = vpop.f32.mrf.mxu0
    %1714 = vmatprep.mubr.f32.mxu0 %v1472
    %1715 = vmatmul.mubr.f32.gmra.mxu0 %v1160
    %v1716 = vpop.f32.mrf.mxu0
    %v1717 = vadd.f32 %v1632, %v1716
    %v1718 = vpop.f32.mrf.mxu0
    %1719 = vmatprep.mubr.f32.mxu0 %v1481
    %1720 = vmatmul.mubr.f32.gmra.mxu0 %v1177
    %v1721 = vpop.f32.mrf.mxu0
    %v1722 = vadd.f32 %v1637, %v1721
    %v1723 = vpop.f32.mrf.mxu0
    %1724 = vmatprep.mubr.f32.mxu0 %v1493
    %1725 = vmatmul.mubr.f32.gmra.mxu0 %v1219
    %v1726 = vpop.f32.mrf.mxu0
    %v1727 = vadd.f32 %v1642, %v1726
    %v1728 = vpop.f32.mrf.mxu0
    %1729 = vdwg.mxu0
    %s1730 = scalar_lea.vmem [#allocation2], 1024
    %v1731 = vld [vmem:[%s1730] sm:$0xff]
    %v1732 = vld [vmem:[%s1730 + $0x8] sm:$0xff]
    %v1733 = vld [vmem:[%s1730 + $0x10] sm:$0xff]
    %v1734 = vld [vmem:[%s1730 + $0x18] sm:$0xff]
    %v1735 = vld [vmem:[%s1730 + $0x20] sm:$0xff]
    %v1736 = vld [vmem:[%s1730 + $0x28] sm:$0xff]
    %v1737 = vld [vmem:[%s1730 + $0x30] sm:$0xff]
    %v1738 = vld [vmem:[%s1730 + $0x38] sm:$0xff]
    %v1739 = vld [vmem:[%s1730 + $0x40] sm:$0xff]
    %v1740 = vld [vmem:[%s1730 + $0x48] sm:$0xff]
    %v1741 = vld [vmem:[%s1730 + $0x50] sm:$0xff]
    %v1742 = vld [vmem:[%s1730 + $0x58] sm:$0xff]
    %v1743 = vld [vmem:[%s1730 + $0x60] sm:$0xff]
    %v1744 = vld [vmem:[%s1730 + $0x68] sm:$0xff]
    %v1745 = vld [vmem:[%s1730 + $0x70] sm:$0xff]
    %v1746 = vld [vmem:[%s1730 + $0x78] sm:$0xff]
    %v1747 = vld [vmem:[%s1730 + $0x80] sm:$0xff]
    %v1748 = vld [vmem:[%s1730 + $0x88] sm:$0xff]
    %v1749 = vld [vmem:[%s1730 + $0x90] sm:$0xff]
    %v1750 = vld [vmem:[%s1730 + $0x98] sm:$0xff]
    %v1751 = vld [vmem:[%s1730 + $0xa0] sm:$0xff]
    %v1752 = vld [vmem:[%s1730 + $0xa8] sm:$0xff]
    %v1753 = vld [vmem:[%s1730 + $0xb0] sm:$0xff]
    %v1754 = vld [vmem:[%s1730 + $0xb8] sm:$0xff]
    %v1755 = vld [vmem:[%s1730 + $0xc0] sm:$0xff]
    %v1756 = vld [vmem:[%s1730 + $0xc8] sm:$0xff]
    %v1757 = vld [vmem:[%s1730 + $0xd0] sm:$0xff]
    %v1758 = vld [vmem:[%s1730 + $0xd8] sm:$0xff]
    %v1759 = vld [vmem:[%s1730 + $0xe0] sm:$0xff]
    %v1760 = vld [vmem:[%s1730 + $0xe8] sm:$0xff]
    %v1761 = vld [vmem:[%s1730 + $0xf0] sm:$0xff]
    %v1762 = vld [vmem:[%s1730 + $0xf8] sm:$0xff]
    %v1763 = vld [vmem:[%s1730 + $0x100] sm:$0xff]
    %v1764 = vld [vmem:[%s1730 + $0x108] sm:$0xff]
    %v1765 = vld [vmem:[%s1730 + $0x110] sm:$0xff]
    %v1766 = vld [vmem:[%s1730 + $0x118] sm:$0xff]
    %v1767 = vld [vmem:[%s1730 + $0x120] sm:$0xff]
    %v1768 = vld [vmem:[%s1730 + $0x128] sm:$0xff]
    %v1769 = vld [vmem:[%s1730 + $0x130] sm:$0xff]
    %v1770 = vld [vmem:[%s1730 + $0x138] sm:$0xff]
    %v1771 = vld [vmem:[%s1730 + $0x140] sm:$0xff]
    %v1772 = vld [vmem:[%s1730 + $0x148] sm:$0xff]
    %v1773 = vld [vmem:[%s1730 + $0x150] sm:$0xff]
    %v1774 = vld [vmem:[%s1730 + $0x158] sm:$0xff]
    %v1775 = vld [vmem:[%s1730 + $0x160] sm:$0xff]
    %v1776 = vld [vmem:[%s1730 + $0x168] sm:$0xff]
    %v1777 = vld [vmem:[%s1730 + $0x170] sm:$0xff]
    %v1778 = vld [vmem:[%s1730 + $0x178] sm:$0xff]
    %v1779 = vld [vmem:[%s1730 + $0x180] sm:$0xff]
    %v1780 = vld [vmem:[%s1730 + $0x188] sm:$0xff]
    %v1781 = vld [vmem:[%s1730 + $0x190] sm:$0xff]
    %v1782 = vld [vmem:[%s1730 + $0x198] sm:$0xff]
    %v1783 = vld [vmem:[%s1730 + $0x1a0] sm:$0xff]
    %v1784 = vld [vmem:[%s1730 + $0x1a8] sm:$0xff]
    %v1785 = vld [vmem:[%s1730 + $0x1b0] sm:$0xff]
    %v1786 = vld [vmem:[%s1730 + $0x1b8] sm:$0xff]
    %v1787 = vld [vmem:[%s1730 + $0x1c0] sm:$0xff]
    %v1788 = vld [vmem:[%s1730 + $0x1c8] sm:$0xff]
    %v1789 = vld [vmem:[%s1730 + $0x1d0] sm:$0xff]
    %v1790 = vld [vmem:[%s1730 + $0x1d8] sm:$0xff]
    %v1791 = vld [vmem:[%s1730 + $0x1e0] sm:$0xff]
    %v1792 = vld [vmem:[%s1730 + $0x1e8] sm:$0xff]
    %v1793 = vld [vmem:[%s1730 + $0x1f0] sm:$0xff]
    %v1794 = vld [vmem:[%s1730 + $0x1f8] sm:$0xff]
    %1795 = vmatprep.subr.mxu0 0.0
    %1796 = vmatpush1.msra.mxu0 %v1746
    %1797 = vmatprep.subr.mxu0 0.0
    %1798 = vmatpush1.msra.mxu0 %v1745
    %1799 = vmatprep.subr.mxu0 0.0
    %1800 = vmatpush1.msra.mxu0 %v1744
    %1801 = vmatprep.subr.mxu0 0.0
    %1802 = vmatpush1.msra.mxu0 %v1743
    %1803 = vmatprep.subr.mxu0 0.0
    %1804 = vmatpush1.msra.mxu0 %v1742
    %1805 = vmatprep.subr.mxu0 0.0
    %1806 = vmatpush1.msra.mxu0 %v1741
    %1807 = vmatprep.subr.mxu0 0.0
    %1808 = vmatpush1.msra.mxu0 %v1740
    %1809 = vmatprep.subr.mxu0 0.0
    %1810 = vmatpush1.msra.mxu0 %v1739
    %1811 = vmatprep.subr.mxu0 0.0
    %1812 = vmatpush1.msra.mxu0 %v1738
    %1813 = vmatprep.subr.mxu0 0.0
    %1814 = vmatpush1.msra.mxu0 %v1737
    %1815 = vmatprep.subr.mxu0 0.0
    %1816 = vmatpush1.msra.mxu0 %v1736
    %1817 = vmatprep.subr.mxu0 0.0
    %1818 = vmatpush1.msra.mxu0 %v1735
    %1819 = vmatprep.subr.mxu0 0.0
    %1820 = vmatpush1.msra.mxu0 %v1734
    %1821 = vmatprep.subr.mxu0 0.0
    %1822 = vmatpush1.msra.mxu0 %v1733
    %1823 = vmatprep.subr.mxu0 0.0
    %1824 = vmatpush1.msra.mxu0 %v1732
    %1825 = vmatprep.subr.mxu0 0.0
    %1826 = vmatpush1.msra.mxu0 %v1731
    %1827 = vmatprep.subr.mxu0 0.0
    %1828 = vmatpush2.msra.mxu0 %v1762
    %1829 = vmatprep.subr.mxu0 0.0
    %1830 = vmatpush2.msra.mxu0 %v1761
    %1831 = vmatprep.subr.mxu0 0.0
    %1832 = vmatpush2.msra.mxu0 %v1760
    %1833 = vmatprep.subr.mxu0 0.0
    %1834 = vmatpush2.msra.mxu0 %v1759
    %1835 = vmatprep.subr.mxu0 0.0
    %1836 = vmatpush2.msra.mxu0 %v1758
    %1837 = vmatprep.subr.mxu0 0.0
    %1838 = vmatpush2.msra.mxu0 %v1757
    %1839 = vmatprep.subr.mxu0 0.0
    %1840 = vmatpush2.msra.mxu0 %v1756
    %1841 = vmatprep.subr.mxu0 0.0
    %1842 = vmatpush2.msra.mxu0 %v1755
    %1843 = vmatprep.subr.mxu0 0.0
    %1844 = vmatpush2.msra.mxu0 %v1754
    %1845 = vmatprep.subr.mxu0 0.0
    %1846 = vmatpush2.msra.mxu0 %v1753
    %1847 = vmatprep.subr.mxu0 0.0
    %1848 = vmatpush2.msra.mxu0 %v1752
    %1849 = vmatprep.subr.mxu0 0.0
    %1850 = vmatpush2.msra.mxu0 %v1751
    %1851 = vmatprep.subr.mxu0 0.0
    %1852 = vmatpush2.msra.mxu0 %v1750
    %1853 = vmatprep.subr.mxu0 0.0
    %1854 = vmatpush2.msra.mxu0 %v1749
    %1855 = vmatprep.subr.mxu0 0.0
    %1856 = vmatpush2.msra.mxu0 %v1748
    %1857 = vmatprep.subr.mxu0 0.0
    %1858 = vmatpush2.msra.mxu0 %v1747
    %1859 = vmatprep.mubr.f32.mxu0 %v1143
    %1860 = vmatmul.mubr.f32.gmra.mxu0 %v1085
    %v1861 = vpop.f32.mrf.mxu0
    %v1862 = vadd.f32 0.0, %v1861
    %v1863 = vpop.f32.mrf.mxu0
    %1864 = vmatprep.mubr.f32.mxu0 %v1160
    %1865 = vmatmul.mubr.f32.gmra.mxu0 %v1102
    %v1866 = vpop.f32.mrf.mxu0
    %v1867 = vadd.f32 0.0, %v1866
    %v1868 = vpop.f32.mrf.mxu0
    %1869 = vmatprep.mubr.f32.mxu0 %v1177
    %1870 = vmatmul.mubr.f32.gmra.mxu0 %v1119
    %v1871 = vpop.f32.mrf.mxu0
    %v1872 = vadd.f32 0.0, %v1871
    %v1873 = vpop.f32.mrf.mxu0
    %1874 = vmatprep.mubr.f32.mxu0 %v1219
    %1875 = vmatmul.mubr.f32.gmra.mxu0 %v1200
    %v1876 = vpop.f32.mrf.mxu0
    %v1877 = vadd.f32 0.0, %v1876
    %v1878 = vpop.f32.mrf.mxu0
    %1879 = vdwg.mxu0
    %1880 = vmatprep.subr.mxu0 0.0
    %1881 = vmatpush1.msra.mxu0 %v1778
    %1882 = vmatprep.subr.mxu0 0.0
    %1883 = vmatpush1.msra.mxu0 %v1777
    %1884 = vmatprep.subr.mxu0 0.0
    %1885 = vmatpush1.msra.mxu0 %v1776
    %1886 = vmatprep.subr.mxu0 0.0
    %1887 = vmatpush1.msra.mxu0 %v1775
    %1888 = vmatprep.subr.mxu0 0.0
    %1889 = vmatpush1.msra.mxu0 %v1774
    %1890 = vmatprep.subr.mxu0 0.0
    %1891 = vmatpush1.msra.mxu0 %v1773
    %1892 = vmatprep.subr.mxu0 0.0
    %1893 = vmatpush1.msra.mxu0 %v1772
    %1894 = vmatprep.subr.mxu0 0.0
    %1895 = vmatpush1.msra.mxu0 %v1771
    %1896 = vmatprep.subr.mxu0 0.0
    %1897 = vmatpush1.msra.mxu0 %v1770
    %1898 = vmatprep.subr.mxu0 0.0
    %1899 = vmatpush1.msra.mxu0 %v1769
    %1900 = vmatprep.subr.mxu0 0.0
    %1901 = vmatpush1.msra.mxu0 %v1768
    %1902 = vmatprep.subr.mxu0 0.0
    %1903 = vmatpush1.msra.mxu0 %v1767
    %1904 = vmatprep.subr.mxu0 0.0
    %1905 = vmatpush1.msra.mxu0 %v1766
    %1906 = vmatprep.subr.mxu0 0.0
    %1907 = vmatpush1.msra.mxu0 %v1765
    %1908 = vmatprep.subr.mxu0 0.0
    %1909 = vmatpush1.msra.mxu0 %v1764
    %1910 = vmatprep.subr.mxu0 0.0
    %1911 = vmatpush1.msra.mxu0 %v1763
    %1912 = vmatprep.subr.mxu0 0.0
    %1913 = vmatpush2.msra.mxu0 %v1794
    %1914 = vmatprep.subr.mxu0 0.0
    %1915 = vmatpush2.msra.mxu0 %v1793
    %1916 = vmatprep.subr.mxu0 0.0
    %1917 = vmatpush2.msra.mxu0 %v1792
    %1918 = vmatprep.subr.mxu0 0.0
    %1919 = vmatpush2.msra.mxu0 %v1791
    %1920 = vmatprep.subr.mxu0 0.0
    %1921 = vmatpush2.msra.mxu0 %v1790
    %1922 = vmatprep.subr.mxu0 0.0
    %1923 = vmatpush2.msra.mxu0 %v1789
    %1924 = vmatprep.subr.mxu0 0.0
    %1925 = vmatpush2.msra.mxu0 %v1788
    %1926 = vmatprep.subr.mxu0 0.0
    %1927 = vmatpush2.msra.mxu0 %v1787
    %1928 = vmatprep.subr.mxu0 0.0
    %1929 = vmatpush2.msra.mxu0 %v1786
    %1930 = vmatprep.subr.mxu0 0.0
    %1931 = vmatpush2.msra.mxu0 %v1785
    %1932 = vmatprep.subr.mxu0 0.0
    %1933 = vmatpush2.msra.mxu0 %v1784
    %1934 = vmatprep.subr.mxu0 0.0
    %1935 = vmatpush2.msra.mxu0 %v1783
    %1936 = vmatprep.subr.mxu0 0.0
    %1937 = vmatpush2.msra.mxu0 %v1782
    %1938 = vmatprep.subr.mxu0 0.0
    %1939 = vmatpush2.msra.mxu0 %v1781
    %1940 = vmatprep.subr.mxu0 0.0
    %1941 = vmatpush2.msra.mxu0 %v1780
    %1942 = vmatprep.subr.mxu0 0.0
    %1943 = vmatpush2.msra.mxu0 %v1779
    %1944 = vmatprep.mubr.f32.mxu0 %v1160
    %1945 = vmatmul.mubr.f32.gmra.mxu0 %v1102
    %v1946 = vpop.f32.mrf.mxu0
    %v1947 = vadd.f32 %v1862, %v1946
    %v1948 = vpop.f32.mrf.mxu0
    %1949 = vmatprep.mubr.f32.mxu0 %v1177
    %1950 = vmatmul.mubr.f32.gmra.mxu0 %v1119
    %v1951 = vpop.f32.mrf.mxu0
    %v1952 = vadd.f32 %v1867, %v1951
    %v1953 = vpop.f32.mrf.mxu0
    %1954 = vmatprep.mubr.f32.mxu0 %v1219
    %1955 = vmatmul.mubr.f32.gmra.mxu0 %v1200
    %v1956 = vpop.f32.mrf.mxu0
    %v1957 = vadd.f32 %v1872, %v1956
    %v1958 = vpop.f32.mrf.mxu0
    %1959 = vmatprep.mubr.f32.mxu0 %v1068
    %1960 = vmatmul.mubr.f32.gmra.mxu0 %v1068
    %v1961 = vpop.f32.mrf.mxu0
    %v1962 = vadd.f32 %v1877, %v1961
    %v1963 = vpop.f32.mrf.mxu0
    %1964 = vdwg.mxu0
    %s1965 = scalar_lea.vmem [#allocation2], 1536
    %v1966 = vld [vmem:[%s1965] sm:$0xff]
    %v1967 = vld [vmem:[%s1965 + $0x8] sm:$0xff]
    %v1968 = vld [vmem:[%s1965 + $0x10] sm:$0xff]
    %v1969 = vld [vmem:[%s1965 + $0x18] sm:$0xff]
    %v1970 = vld [vmem:[%s1965 + $0x20] sm:$0xff]
    %v1971 = vld [vmem:[%s1965 + $0x28] sm:$0xff]
    %v1972 = vld [vmem:[%s1965 + $0x30] sm:$0xff]
    %v1973 = vld [vmem:[%s1965 + $0x38] sm:$0xff]
    %v1974 = vld [vmem:[%s1965 + $0x40] sm:$0xff]
    %v1975 = vld [vmem:[%s1965 + $0x48] sm:$0xff]
    %v1976 = vld [vmem:[%s1965 + $0x50] sm:$0xff]
    %v1977 = vld [vmem:[%s1965 + $0x58] sm:$0xff]
    %v1978 = vld [vmem:[%s1965 + $0x60] sm:$0xff]
    %v1979 = vld [vmem:[%s1965 + $0x68] sm:$0xff]
    %v1980 = vld [vmem:[%s1965 + $0x70] sm:$0xff]
    %v1981 = vld [vmem:[%s1965 + $0x78] sm:$0xff]
    %v1982 = vld [vmem:[%s1965 + $0x80] sm:$0xff]
    %v1983 = vld [vmem:[%s1965 + $0x88] sm:$0xff]
    %v1984 = vld [vmem:[%s1965 + $0x90] sm:$0xff]
    %v1985 = vld [vmem:[%s1965 + $0x98] sm:$0xff]
    %v1986 = vld [vmem:[%s1965 + $0xa0] sm:$0xff]
    %v1987 = vld [vmem:[%s1965 + $0xa8] sm:$0xff]
    %v1988 = vld [vmem:[%s1965 + $0xb0] sm:$0xff]
    %v1989 = vld [vmem:[%s1965 + $0xb8] sm:$0xff]
    %v1990 = vld [vmem:[%s1965 + $0xc0] sm:$0xff]
    %v1991 = vld [vmem:[%s1965 + $0xc8] sm:$0xff]
    %v1992 = vld [vmem:[%s1965 + $0xd0] sm:$0xff]
    %v1993 = vld [vmem:[%s1965 + $0xd8] sm:$0xff]
    %v1994 = vld [vmem:[%s1965 + $0xe0] sm:$0xff]
    %v1995 = vld [vmem:[%s1965 + $0xe8] sm:$0xff]
    %v1996 = vld [vmem:[%s1965 + $0xf0] sm:$0xff]
    %v1997 = vld [vmem:[%s1965 + $0xf8] sm:$0xff]
    %v1998 = vld [vmem:[%s1965 + $0x100] sm:$0xff]
    %v1999 = vld [vmem:[%s1965 + $0x108] sm:$0xff]
    %v2000 = vld [vmem:[%s1965 + $0x110] sm:$0xff]
    %v2001 = vld [vmem:[%s1965 + $0x118] sm:$0xff]
    %v2002 = vld [vmem:[%s1965 + $0x120] sm:$0xff]
    %v2003 = vld [vmem:[%s1965 + $0x128] sm:$0xff]
    %v2004 = vld [vmem:[%s1965 + $0x130] sm:$0xff]
    %v2005 = vld [vmem:[%s1965 + $0x138] sm:$0xff]
    %v2006 = vld [vmem:[%s1965 + $0x140] sm:$0xff]
    %v2007 = vld [vmem:[%s1965 + $0x148] sm:$0xff]
    %v2008 = vld [vmem:[%s1965 + $0x150] sm:$0xff]
    %v2009 = vld [vmem:[%s1965 + $0x158] sm:$0xff]
    %v2010 = vld [vmem:[%s1965 + $0x160] sm:$0xff]
    %v2011 = vld [vmem:[%s1965 + $0x168] sm:$0xff]
    %v2012 = vld [vmem:[%s1965 + $0x170] sm:$0xff]
    %v2013 = vld [vmem:[%s1965 + $0x178] sm:$0xff]
    %v2014 = vld [vmem:[%s1965 + $0x180] sm:$0xff]
    %v2015 = vld [vmem:[%s1965 + $0x188] sm:$0xff]
    %v2016 = vld [vmem:[%s1965 + $0x190] sm:$0xff]
    %v2017 = vld [vmem:[%s1965 + $0x198] sm:$0xff]
    %v2018 = vld [vmem:[%s1965 + $0x1a0] sm:$0xff]
    %v2019 = vld [vmem:[%s1965 + $0x1a8] sm:$0xff]
    %v2020 = vld [vmem:[%s1965 + $0x1b0] sm:$0xff]
    %v2021 = vld [vmem:[%s1965 + $0x1b8] sm:$0xff]
    %v2022 = vld [vmem:[%s1965 + $0x1c0] sm:$0xff]
    %v2023 = vld [vmem:[%s1965 + $0x1c8] sm:$0xff]
    %v2024 = vld [vmem:[%s1965 + $0x1d0] sm:$0xff]
    %v2025 = vld [vmem:[%s1965 + $0x1d8] sm:$0xff]
    %v2026 = vld [vmem:[%s1965 + $0x1e0] sm:$0xff]
    %v2027 = vld [vmem:[%s1965 + $0x1e8] sm:$0xff]
    %v2028 = vld [vmem:[%s1965 + $0x1f0] sm:$0xff]
    %v2029 = vld [vmem:[%s1965 + $0x1f8] sm:$0xff]
    %2030 = vmatprep.subr.mxu0 0.0
    %2031 = vmatpush1.msra.mxu0 %v1981
    %2032 = vmatprep.subr.mxu0 0.0
    %2033 = vmatpush1.msra.mxu0 %v1980
    %2034 = vmatprep.subr.mxu0 0.0
    %2035 = vmatpush1.msra.mxu0 %v1979
    %2036 = vmatprep.subr.mxu0 0.0
    %2037 = vmatpush1.msra.mxu0 %v1978
    %2038 = vmatprep.subr.mxu0 0.0
    %2039 = vmatpush1.msra.mxu0 %v1977
    %2040 = vmatprep.subr.mxu0 0.0
    %2041 = vmatpush1.msra.mxu0 %v1976
    %2042 = vmatprep.subr.mxu0 0.0
    %2043 = vmatpush1.msra.mxu0 %v1975
    %2044 = vmatprep.subr.mxu0 0.0
    %2045 = vmatpush1.msra.mxu0 %v1974
    %2046 = vmatprep.subr.mxu0 0.0
    %2047 = vmatpush1.msra.mxu0 %v1973
    %2048 = vmatprep.subr.mxu0 0.0
    %2049 = vmatpush1.msra.mxu0 %v1972
    %2050 = vmatprep.subr.mxu0 0.0
    %2051 = vmatpush1.msra.mxu0 %v1971
    %2052 = vmatprep.subr.mxu0 0.0
    %2053 = vmatpush1.msra.mxu0 %v1970
    %2054 = vmatprep.subr.mxu0 0.0
    %2055 = vmatpush1.msra.mxu0 %v1969
    %2056 = vmatprep.subr.mxu0 0.0
    %2057 = vmatpush1.msra.mxu0 %v1968
    %2058 = vmatprep.subr.mxu0 0.0
    %2059 = vmatpush1.msra.mxu0 %v1967
    %2060 = vmatprep.subr.mxu0 0.0
    %2061 = vmatpush1.msra.mxu0 %v1966
    %2062 = vmatprep.subr.mxu0 0.0
    %2063 = vmatpush2.msra.mxu0 %v1997
    %2064 = vmatprep.subr.mxu0 0.0
    %2065 = vmatpush2.msra.mxu0 %v1996
    %2066 = vmatprep.subr.mxu0 0.0
    %2067 = vmatpush2.msra.mxu0 %v1995
    %2068 = vmatprep.subr.mxu0 0.0
    %2069 = vmatpush2.msra.mxu0 %v1994
    %2070 = vmatprep.subr.mxu0 0.0
    %2071 = vmatpush2.msra.mxu0 %v1993
    %2072 = vmatprep.subr.mxu0 0.0
    %2073 = vmatpush2.msra.mxu0 %v1992
    %2074 = vmatprep.subr.mxu0 0.0
    %2075 = vmatpush2.msra.mxu0 %v1991
    %2076 = vmatprep.subr.mxu0 0.0
    %2077 = vmatpush2.msra.mxu0 %v1990
    %2078 = vmatprep.subr.mxu0 0.0
    %2079 = vmatpush2.msra.mxu0 %v1989
    %2080 = vmatprep.subr.mxu0 0.0
    %2081 = vmatpush2.msra.mxu0 %v1988
    %2082 = vmatprep.subr.mxu0 0.0
    %2083 = vmatpush2.msra.mxu0 %v1987
    %2084 = vmatprep.subr.mxu0 0.0
    %2085 = vmatpush2.msra.mxu0 %v1986
    %2086 = vmatprep.subr.mxu0 0.0
    %2087 = vmatpush2.msra.mxu0 %v1985
    %2088 = vmatprep.subr.mxu0 0.0
    %2089 = vmatpush2.msra.mxu0 %v1984
    %2090 = vmatprep.subr.mxu0 0.0
    %2091 = vmatpush2.msra.mxu0 %v1983
    %2092 = vmatprep.subr.mxu0 0.0
    %2093 = vmatpush2.msra.mxu0 %v1982
    %2094 = vmatprep.mubr.f32.mxu0 %v1463
    %2095 = vmatmul.mubr.f32.gmra.mxu0 %v1143
    %v2096 = vpop.f32.mrf.mxu0
    %v2097 = vadd.f32 0.0, %v2096
    %v2098 = vpop.f32.mrf.mxu0
    %2099 = vmatprep.mubr.f32.mxu0 %v1472
    %2100 = vmatmul.mubr.f32.gmra.mxu0 %v1160
    %v2101 = vpop.f32.mrf.mxu0
    %v2102 = vadd.f32 0.0, %v2101
    %v2103 = vpop.f32.mrf.mxu0
    %2104 = vmatprep.mubr.f32.mxu0 %v1481
    %2105 = vmatmul.mubr.f32.gmra.mxu0 %v1177
    %v2106 = vpop.f32.mrf.mxu0
    %v2107 = vadd.f32 0.0, %v2106
    %v2108 = vpop.f32.mrf.mxu0
    %2109 = vmatprep.mubr.f32.mxu0 %v1493
    %2110 = vmatmul.mubr.f32.gmra.mxu0 %v1219
    %v2111 = vpop.f32.mrf.mxu0
    %v2112 = vadd.f32 0.0, %v2111
    %v2113 = vpop.f32.mrf.mxu0
    %2114 = vdwg.mxu0
    %2115 = vmatprep.subr.mxu0 0.0
    %2116 = vmatpush1.msra.mxu0 %v2013
    %2117 = vmatprep.subr.mxu0 0.0
    %2118 = vmatpush1.msra.mxu0 %v2012
    %2119 = vmatprep.subr.mxu0 0.0
    %2120 = vmatpush1.msra.mxu0 %v2011
    %2121 = vmatprep.subr.mxu0 0.0
    %2122 = vmatpush1.msra.mxu0 %v2010
    %2123 = vmatprep.subr.mxu0 0.0
    %2124 = vmatpush1.msra.mxu0 %v2009
    %2125 = vmatprep.subr.mxu0 0.0
    %2126 = vmatpush1.msra.mxu0 %v2008
    %2127 = vmatprep.subr.mxu0 0.0
    %2128 = vmatpush1.msra.mxu0 %v2007
    %2129 = vmatprep.subr.mxu0 0.0
    %2130 = vmatpush1.msra.mxu0 %v2006
    %2131 = vmatprep.subr.mxu0 0.0
    %2132 = vmatpush1.msra.mxu0 %v2005
    %2133 = vmatprep.subr.mxu0 0.0
    %2134 = vmatpush1.msra.mxu0 %v2004
    %2135 = vmatprep.subr.mxu0 0.0
    %2136 = vmatpush1.msra.mxu0 %v2003
    %2137 = vmatprep.subr.mxu0 0.0
    %2138 = vmatpush1.msra.mxu0 %v2002
    %2139 = vmatprep.subr.mxu0 0.0
    %2140 = vmatpush1.msra.mxu0 %v2001
    %2141 = vmatprep.subr.mxu0 0.0
    %2142 = vmatpush1.msra.mxu0 %v2000
    %2143 = vmatprep.subr.mxu0 0.0
    %2144 = vmatpush1.msra.mxu0 %v1999
    %2145 = vmatprep.subr.mxu0 0.0
    %2146 = vmatpush1.msra.mxu0 %v1998
    %2147 = vmatprep.subr.mxu0 0.0
    %2148 = vmatpush2.msra.mxu0 %v2029
    %2149 = vmatprep.subr.mxu0 0.0
    %2150 = vmatpush2.msra.mxu0 %v2028
    %2151 = vmatprep.subr.mxu0 0.0
    %2152 = vmatpush2.msra.mxu0 %v2027
    %2153 = vmatprep.subr.mxu0 0.0
    %2154 = vmatpush2.msra.mxu0 %v2026
    %2155 = vmatprep.subr.mxu0 0.0
    %2156 = vmatpush2.msra.mxu0 %v2025
    %2157 = vmatprep.subr.mxu0 0.0
    %2158 = vmatpush2.msra.mxu0 %v2024
    %2159 = vmatprep.subr.mxu0 0.0
    %2160 = vmatpush2.msra.mxu0 %v2023
    %2161 = vmatprep.subr.mxu0 0.0
    %2162 = vmatpush2.msra.mxu0 %v2022
    %2163 = vmatprep.subr.mxu0 0.0
    %2164 = vmatpush2.msra.mxu0 %v2021
    %2165 = vmatprep.subr.mxu0 0.0
    %2166 = vmatpush2.msra.mxu0 %v2020
    %2167 = vmatprep.subr.mxu0 0.0
    %2168 = vmatpush2.msra.mxu0 %v2019
    %2169 = vmatprep.subr.mxu0 0.0
    %2170 = vmatpush2.msra.mxu0 %v2018
    %2171 = vmatprep.subr.mxu0 0.0
    %2172 = vmatpush2.msra.mxu0 %v2017
    %2173 = vmatprep.subr.mxu0 0.0
    %2174 = vmatpush2.msra.mxu0 %v2016
    %2175 = vmatprep.subr.mxu0 0.0
    %2176 = vmatpush2.msra.mxu0 %v2015
    %2177 = vmatprep.subr.mxu0 0.0
    %2178 = vmatpush2.msra.mxu0 %v2014
    %2179 = vmatprep.mubr.f32.mxu0 %v1472
    %2180 = vmatmul.mubr.f32.gmra.mxu0 %v1160
    %v2181 = vpop.f32.mrf.mxu0
    %v2182 = vadd.f32 %v2097, %v2181
    %v2183 = vpop.f32.mrf.mxu0
    %2184 = vmatprep.mubr.f32.mxu0 %v1481
    %2185 = vmatmul.mubr.f32.gmra.mxu0 %v1177
    %v2186 = vpop.f32.mrf.mxu0
    %v2187 = vadd.f32 %v2102, %v2186
    %v2188 = vpop.f32.mrf.mxu0
    %2189 = vmatprep.mubr.f32.mxu0 %v1493
    %2190 = vmatmul.mubr.f32.gmra.mxu0 %v1219
    %v2191 = vpop.f32.mrf.mxu0
    %v2192 = vadd.f32 %v2107, %v2191
    %v2193 = vpop.f32.mrf.mxu0
    %2194 = vmatprep.mubr.f32.mxu0 %v1068
    %2195 = vmatmul.mubr.f32.gmra.mxu0 %v1068
    %v2196 = vpop.f32.mrf.mxu0
    %v2197 = vadd.f32 %v2112, %v2196
    %v2198 = vpop.f32.mrf.mxu0
    %2199 = vdwg.mxu0
    %v2200 = vadd.f32 %v1437, %v1442
    %v2201 = vadd.f32 %v2200, %v1447
    %v2202 = vadd.f32 %v2201, %v1452
    %v2203 = vrot.slane %v2202, 4
    %v2204 = vadd.f32 %v2202, %v2203
    %v2205 = vrot.slane %v2204, 2
    %v2206 = vadd.f32 %v2204, %v2205
    %v2207 = vrot.slane %v2206, 1
    %v2208 = vadd.f32 %v2206, %v2207
    %v2209 = vadd.f32 %v2208, 0.0
    %v2210 = vadd.f32 %v1712, %v1717
    %v2211 = vadd.f32 %v2210, %v1722
    %v2212 = vadd.f32 %v2211, %v1727
    %v2213 = vrot.slane %v2212, 4
    %v2214 = vadd.f32 %v2212, %v2213
    %v2215 = vrot.slane %v2214, 2
    %v2216 = vadd.f32 %v2214, %v2215
    %v2217 = vrot.slane %v2216, 1
    %v2218 = vadd.f32 %v2216, %v2217
    %v2219 = vadd.f32 %v2209, %v2218
    %v2220 = vadd.f32 %v1947, %v1952
    %v2221 = vadd.f32 %v2220, %v1957
    %v2222 = vadd.f32 %v2221, %v1962
    %v2223 = vrot.slane %v2222, 4
    %v2224 = vadd.f32 %v2222, %v2223
    %v2225 = vrot.slane %v2224, 2
    %v2226 = vadd.f32 %v2224, %v2225
    %v2227 = vrot.slane %v2226, 1
    %v2228 = vadd.f32 %v2226, %v2227
    %v2229 = vadd.f32 %v2219, %v2228
    %v2230 = vadd.f32 %v2182, %v2187
    %v2231 = vadd.f32 %v2230, %v2192
    %v2232 = vadd.f32 %v2231, %v2197
    %v2233 = vrot.slane %v2232, 4
    %v2234 = vadd.f32 %v2232, %v2233
    %v2235 = vrot.slane %v2234, 2
    %v2236 = vadd.f32 %v2234, %v2235
    %v2237 = vrot.slane %v2236, 1
    %v2238 = vadd.f32 %v2236, %v2237
    %v2239 = vadd.f32 %v2229, %v2238
    %v2240 = vmul.f32 %v1437, %v1437
    %v2241 = vmul.f32 %v1442, %v1442
    %v2242 = vmul.f32 %v1447, %v1447
    %v2243 = vmul.f32 %v1452, %v1452
    %v2244 = vadd.f32 %v2240, %v2241
    %v2245 = vadd.f32 %v2244, %v2242
    %v2246 = vadd.f32 %v2245, %v2243
    %v2247 = vrot.slane %v2246, 4
    %v2248 = vadd.f32 %v2246, %v2247
    %v2249 = vrot.slane %v2248, 2
    %v2250 = vadd.f32 %v2248, %v2249
    %v2251 = vrot.slane %v2250, 1
    %v2252 = vadd.f32 %v2250, %v2251
    %v2253 = vadd.f32 %v2252, 0.0
    %v2254 = vmul.f32 %v1712, %v1712
    %v2255 = vmul.f32 %v1717, %v1717
    %v2256 = vmul.f32 %v1722, %v1722
    %v2257 = vmul.f32 %v1727, %v1727
    %v2258 = vadd.f32 %v2254, %v2255
    %v2259 = vadd.f32 %v2258, %v2256
    %v2260 = vadd.f32 %v2259, %v2257
    %v2261 = vrot.slane %v2260, 4
    %v2262 = vadd.f32 %v2260, %v2261
    %v2263 = vrot.slane %v2262, 2
    %v2264 = vadd.f32 %v2262, %v2263
    %v2265 = vrot.slane %v2264, 1
    %v2266 = vadd.f32 %v2264, %v2265
    %v2267 = vadd.f32 %v2253, %v2266
    %v2268 = vmul.f32 %v1947, %v1947
    %v2269 = vmul.f32 %v1952, %v1952
    %v2270 = vmul.f32 %v1957, %v1957
    %v2271 = vmul.f32 %v1962, %v1962
    %v2272 = vadd.f32 %v2268, %v2269
    %v2273 = vadd.f32 %v2272, %v2270
    %v2274 = vadd.f32 %v2273, %v2271
    %v2275 = vrot.slane %v2274, 4
    %v2276 = vadd.f32 %v2274, %v2275
    %v2277 = vrot.slane %v2276, 2
    %v2278 = vadd.f32 %v2276, %v2277
    %v2279 = vrot.slane %v2278, 1
    %v2280 = vadd.f32 %v2278, %v2279
    %v2281 = vadd.f32 %v2267, %v2280
    %v2282 = vmul.f32 %v2182, %v2182
    %v2283 = vmul.f32 %v2187, %v2187
    %v2284 = vmul.f32 %v2192, %v2192
    %v2285 = vmul.f32 %v2197, %v2197
    %v2286 = vadd.f32 %v2282, %v2283
    %v2287 = vadd.f32 %v2286, %v2284
    %v2288 = vadd.f32 %v2287, %v2285
    %v2289 = vrot.slane %v2288, 4
    %v2290 = vadd.f32 %v2288, %v2289
    %v2291 = vrot.slane %v2290, 2
    %v2292 = vadd.f32 %v2290, %v2291
    %v2293 = vrot.slane %v2292, 1
    %v2294 = vadd.f32 %v2292, %v2293
    %v2295 = vadd.f32 %v2281, %v2294
    %v2296 = vmul.f32 %v2239, 0.0078125
    %v2297 = vmul.f32 %v2295, 0.0078125
    %v2298 = vmul.f32 %v2296, %v2296
    %v2299 = vsub.f32 %v2297, %v2298
    %v2300 = vadd.f32 %v2299, 1e-05
    %v2301 = vrsqrt.pop %v2300
    %v2302 = vmul.f32 %v2301, %v1048
    %v2303 = vmul.f32 %v2296, %v2302
    %v2304 = vsub.f32 %v1049, %v2303
    %v2305 = vlaneseq
    %v2306 = vshrl.u32 %v2305, 7
    %v2307 = vsub.s32 0, %v2306
    %v2308 = vrot.slane %v2302, %v2307
    %v2309 = vmul.f32 %v1437, %v2308
    %v2310 = vmul.f32 %v1442, %v2308
    %v2311 = vmul.f32 %v1447, %v2308
    %v2312 = vmul.f32 %v1452, %v2308
    %v2314 = vlaneseq
    %v2315 = vshrl.u32 %v2314, 7
    %v2316 = vsub.s32 0, %v2315
    %v2317 = vrot.slane %v2304, %v2316
    %v2319 = vadd.f32 %v2309, %v2317
    %v2320 = vadd.f32 %v2310, %v2317
    %v2321 = vadd.f32 %v2311, %v2317
    %v2322 = vadd.f32 %v2312, %v2317
    %v2323 = vmax.f32 %v2319, 0.0
    %v2324 = vmax.f32 %v2320, 0.0
    %v2325 = vmax.f32 %v2321, 0.0
    %v2326 = vmax.f32 %v2322, 0.0
    %v2327 = vmul.f32 %v1712, %v2308
    %v2328 = vmul.f32 %v1717, %v2308
    %v2329 = vmul.f32 %v1722, %v2308
    %v2330 = vmul.f32 %v1727, %v2308
    %v2331 = vadd.f32 %v2327, %v2317
    %v2332 = vadd.f32 %v2328, %v2317
    %v2333 = vadd.f32 %v2329, %v2317
    %v2334 = vadd.f32 %v2330, %v2317
    %v2335 = vmax.f32 %v2331, 0.0
    %v2336 = vmax.f32 %v2332, 0.0
    %v2337 = vmax.f32 %v2333, 0.0
    %v2338 = vmax.f32 %v2334, 0.0
    %v2339 = vmul.f32 %v1947, %v2308
    %v2340 = vmul.f32 %v1952, %v2308
    %v2341 = vmul.f32 %v1957, %v2308
    %v2342 = vmul.f32 %v1962, %v2308
    %v2343 = vadd.f32 %v2339, %v2317
    %v2344 = vadd.f32 %v2340, %v2317
    %v2345 = vadd.f32 %v2341, %v2317
    %v2346 = vadd.f32 %v2342, %v2317
    %v2347 = vmax.f32 %v2343, 0.0
    %v2348 = vmax.f32 %v2344, 0.0
    %v2349 = vmax.f32 %v2345, 0.0
    %v2350 = vmax.f32 %v2346, 0.0
    %v2351 = vmul.f32 %v2182, %v2308
    %v2352 = vmul.f32 %v2187, %v2308
    %v2353 = vmul.f32 %v2192, %v2308
    %v2354 = vmul.f32 %v2197, %v2308
    %v2355 = vadd.f32 %v2351, %v2317
    %v2356 = vadd.f32 %v2352, %v2317
    %v2357 = vadd.f32 %v2353, %v2317
    %v2358 = vadd.f32 %v2354, %v2317
    %v2359 = vmax.f32 %v2355, 0.0
    %v2360 = vmax.f32 %v2356, 0.0
    %v2361 = vmax.f32 %v2357, 0.0
    %v2362 = vmax.f32 %v2358, 0.0
    %v2367 = vcombine.high %v2323, %v2323
    %v2369 = vunpack.c.l.s4 1983009808
    %v2370 = vunpack.c.0.s8 %v2369
    %v2371 = vlaneseq
    %v2372 = vshrl.u32 %v2371, 7
    %v2373 = vsub.s32 %v2370, %v2372
    %v2374 = vrot.slane %v2323, %v2373
    %v2376 = vunpack.c.l.s4 1983009808
    %v2377 = vunpack.c.0.s8 %v2376
    %v2378 = vlaneseq
    %v2379 = vshrl.u32 %v2378, 7
    %v2380 = vsub.s32 %v2377, %v2379
    %v2381 = vrot.slane %v2367, %v2380
    %v2382 = vcombine.high %v2374, %v2374
    %v2383 = vcombine.high %v2381, %v2381
    %v2384 = vcombine.high %v2324, %v2324
    %v2386 = vunpack.c.l.s4 1983009808
    %v2387 = vunpack.c.0.s8 %v2386
    %v2388 = vlaneseq
    %v2389 = vshrl.u32 %v2388, 7
    %v2390 = vsub.s32 %v2387, %v2389
    %v2391 = vrot.slane %v2324, %v2390
    %v2393 = vunpack.c.l.s4 1983009808
    %v2394 = vunpack.c.0.s8 %v2393
    %v2395 = vlaneseq
    %v2396 = vshrl.u32 %v2395, 7
    %v2397 = vsub.s32 %v2394, %v2396
    %v2398 = vrot.slane %v2384, %v2397
    %v2399 = vcombine.high %v2391, %v2391
    %v2400 = vcombine.high %v2398, %v2398
    %v2401 = vcombine.high %v2325, %v2325
    %v2403 = vunpack.c.l.s4 1983009808
    %v2404 = vunpack.c.0.s8 %v2403
    %v2405 = vlaneseq
    %v2406 = vshrl.u32 %v2405, 7
    %v2407 = vsub.s32 %v2404, %v2406
    %v2408 = vrot.slane %v2325, %v2407
    %v2410 = vunpack.c.l.s4 1983009808
    %v2411 = vunpack.c.0.s8 %v2410
    %v2412 = vlaneseq
    %v2413 = vshrl.u32 %v2412, 7
    %v2414 = vsub.s32 %v2411, %v2413
    %v2415 = vrot.slane %v2401, %v2414
    %v2416 = vcombine.high %v2408, %v2408
    %v2417 = vcombine.high %v2415, %v2415
    %v2418 = vcombine.high %v2326, %v2326
    %v2420 = vunpack.c.l.s4 1983009808
    %v2421 = vunpack.c.0.s8 %v2420
    %v2422 = vlaneseq
    %v2423 = vshrl.u32 %v2422, 7
    %v2424 = vsub.s32 %v2421, %v2423
    %v2425 = vrot.slane %v2326, %v2424
    %v2427 = vunpack.c.l.s4 1983009808
    %v2428 = vunpack.c.0.s8 %v2427
    %v2429 = vlaneseq
    %v2430 = vshrl.u32 %v2429, 7
    %v2431 = vsub.s32 %v2428, %v2430
    %v2432 = vrot.slane %v2418, %v2431
    %v2433 = vcombine.high %v2425, %v2425
    %v2434 = vcombine.high %v2432, %v2432
    %v2439 = vcombine.high %v2335, %v2335
    %v2441 = vunpack.c.l.s4 1983009808
    %v2442 = vunpack.c.0.s8 %v2441
    %v2443 = vlaneseq
    %v2444 = vshrl.u32 %v2443, 7
    %v2445 = vsub.s32 %v2442, %v2444
    %v2446 = vrot.slane %v2335, %v2445
    %v2448 = vunpack.c.l.s4 1983009808
    %v2449 = vunpack.c.0.s8 %v2448
    %v2450 = vlaneseq
    %v2451 = vshrl.u32 %v2450, 7
    %v2452 = vsub.s32 %v2449, %v2451
    %v2453 = vrot.slane %v2439, %v2452
    %v2454 = vcombine.high %v2446, %v2446
    %v2455 = vcombine.high %v2453, %v2453
    %v2456 = vcombine.high %v2336, %v2336
    %v2458 = vunpack.c.l.s4 1983009808
    %v2459 = vunpack.c.0.s8 %v2458
    %v2460 = vlaneseq
    %v2461 = vshrl.u32 %v2460, 7
    %v2462 = vsub.s32 %v2459, %v2461
    %v2463 = vrot.slane %v2336, %v2462
    %v2465 = vunpack.c.l.s4 1983009808
    %v2466 = vunpack.c.0.s8 %v2465
    %v2467 = vlaneseq
    %v2468 = vshrl.u32 %v2467, 7
    %v2469 = vsub.s32 %v2466, %v2468
    %v2470 = vrot.slane %v2456, %v2469
    %v2471 = vcombine.high %v2463, %v2463
    %v2472 = vcombine.high %v2470, %v2470
    %v2473 = vcombine.high %v2337, %v2337
    %v2475 = vunpack.c.l.s4 1983009808
    %v2476 = vunpack.c.0.s8 %v2475
    %v2477 = vlaneseq
    %v2478 = vshrl.u32 %v2477, 7
    %v2479 = vsub.s32 %v2476, %v2478
    %v2480 = vrot.slane %v2337, %v2479
    %v2482 = vunpack.c.l.s4 1983009808
    %v2483 = vunpack.c.0.s8 %v2482
    %v2484 = vlaneseq
    %v2485 = vshrl.u32 %v2484, 7
    %v2486 = vsub.s32 %v2483, %v2485
    %v2487 = vrot.slane %v2473, %v2486
    %v2488 = vcombine.high %v2480, %v2480
    %v2489 = vcombine.high %v2487, %v2487
    %v2490 = vcombine.high %v2338, %v2338
    %v2492 = vunpack.c.l.s4 1983009808
    %v2493 = vunpack.c.0.s8 %v2492
    %v2494 = vlaneseq
    %v2495 = vshrl.u32 %v2494, 7
    %v2496 = vsub.s32 %v2493, %v2495
    %v2497 = vrot.slane %v2338, %v2496
    %v2499 = vunpack.c.l.s4 1983009808
    %v2500 = vunpack.c.0.s8 %v2499
    %v2501 = vlaneseq
    %v2502 = vshrl.u32 %v2501, 7
    %v2503 = vsub.s32 %v2500, %v2502
    %v2504 = vrot.slane %v2490, %v2503
    %v2505 = vcombine.high %v2497, %v2497
    %v2506 = vcombine.high %v2504, %v2504
    %v2511 = vcombine.high %v2347, %v2347
    %v2513 = vunpack.c.l.s4 1983009808
    %v2514 = vunpack.c.0.s8 %v2513
    %v2515 = vlaneseq
    %v2516 = vshrl.u32 %v2515, 7
    %v2517 = vsub.s32 %v2514, %v2516
    %v2518 = vrot.slane %v2347, %v2517
    %v2520 = vunpack.c.l.s4 1983009808
    %v2521 = vunpack.c.0.s8 %v2520
    %v2522 = vlaneseq
    %v2523 = vshrl.u32 %v2522, 7
    %v2524 = vsub.s32 %v2521, %v2523
    %v2525 = vrot.slane %v2511, %v2524
    %v2526 = vcombine.high %v2518, %v2518
    %v2527 = vcombine.high %v2525, %v2525
    %v2528 = vcombine.high %v2348, %v2348
    %v2530 = vunpack.c.l.s4 1983009808
    %v2531 = vunpack.c.0.s8 %v2530
    %v2532 = vlaneseq
    %v2533 = vshrl.u32 %v2532, 7
    %v2534 = vsub.s32 %v2531, %v2533
    %v2535 = vrot.slane %v2348, %v2534
    %v2537 = vunpack.c.l.s4 1983009808
    %v2538 = vunpack.c.0.s8 %v2537
    %v2539 = vlaneseq
    %v2540 = vshrl.u32 %v2539, 7
    %v2541 = vsub.s32 %v2538, %v2540
    %v2542 = vrot.slane %v2528, %v2541
    %v2543 = vcombine.high %v2535, %v2535
    %v2544 = vcombine.high %v2542, %v2542
    %v2545 = vcombine.high %v2349, %v2349
    %v2547 = vunpack.c.l.s4 1983009808
    %v2548 = vunpack.c.0.s8 %v2547
    %v2549 = vlaneseq
    %v2550 = vshrl.u32 %v2549, 7
    %v2551 = vsub.s32 %v2548, %v2550
    %v2552 = vrot.slane %v2349, %v2551
    %v2554 = vunpack.c.l.s4 1983009808
    %v2555 = vunpack.c.0.s8 %v2554
    %v2556 = vlaneseq
    %v2557 = vshrl.u32 %v2556, 7
    %v2558 = vsub.s32 %v2555, %v2557
    %v2559 = vrot.slane %v2545, %v2558
    %v2560 = vcombine.high %v2552, %v2552
    %v2561 = vcombine.high %v2559, %v2559
    %v2562 = vcombine.high %v2350, %v2350
    %v2564 = vunpack.c.l.s4 1983009808
    %v2565 = vunpack.c.0.s8 %v2564
    %v2566 = vlaneseq
    %v2567 = vshrl.u32 %v2566, 7
    %v2568 = vsub.s32 %v2565, %v2567
    %v2569 = vrot.slane %v2350, %v2568
    %v2571 = vunpack.c.l.s4 1983009808
    %v2572 = vunpack.c.0.s8 %v2571
    %v2573 = vlaneseq
    %v2574 = vshrl.u32 %v2573, 7
    %v2575 = vsub.s32 %v2572, %v2574
    %v2576 = vrot.slane %v2562, %v2575
    %v2577 = vcombine.high %v2569, %v2569
    %v2578 = vcombine.high %v2576, %v2576
    %v2583 = vcombine.high %v2359, %v2359
    %v2585 = vunpack.c.l.s4 1983009808
    %v2586 = vunpack.c.0.s8 %v2585
    %v2587 = vlaneseq
    %v2588 = vshrl.u32 %v2587, 7
    %v2589 = vsub.s32 %v2586, %v2588
    %v2590 = vrot.slane %v2359, %v2589
    %v2592 = vunpack.c.l.s4 1983009808
    %v2593 = vunpack.c.0.s8 %v2592
    %v2594 = vlaneseq
    %v2595 = vshrl.u32 %v2594, 7
    %v2596 = vsub.s32 %v2593, %v2595
    %v2597 = vrot.slane %v2583, %v2596
    %v2598 = vcombine.high %v2590, %v2590
    %v2599 = vcombine.high %v2597, %v2597
    %v2600 = vcombine.high %v2360, %v2360
    %v2602 = vunpack.c.l.s4 1983009808
    %v2603 = vunpack.c.0.s8 %v2602
    %v2604 = vlaneseq
    %v2605 = vshrl.u32 %v2604, 7
    %v2606 = vsub.s32 %v2603, %v2605
    %v2607 = vrot.slane %v2360, %v2606
    %v2609 = vunpack.c.l.s4 1983009808
    %v2610 = vunpack.c.0.s8 %v2609
    %v2611 = vlaneseq
    %v2612 = vshrl.u32 %v2611, 7
    %v2613 = vsub.s32 %v2610, %v2612
    %v2614 = vrot.slane %v2600, %v2613
    %v2615 = vcombine.high %v2607, %v2607
    %v2616 = vcombine.high %v2614, %v2614
    %v2617 = vcombine.high %v2361, %v2361
    %v2619 = vunpack.c.l.s4 1983009808
    %v2620 = vunpack.c.0.s8 %v2619
    %v2621 = vlaneseq
    %v2622 = vshrl.u32 %v2621, 7
    %v2623 = vsub.s32 %v2620, %v2622
    %v2624 = vrot.slane %v2361, %v2623
    %v2626 = vunpack.c.l.s4 1983009808
    %v2627 = vunpack.c.0.s8 %v2626
    %v2628 = vlaneseq
    %v2629 = vshrl.u32 %v2628, 7
    %v2630 = vsub.s32 %v2627, %v2629
    %v2631 = vrot.slane %v2617, %v2630
    %v2632 = vcombine.high %v2624, %v2624
    %v2633 = vcombine.high %v2631, %v2631
    %v2634 = vcombine.high %v2362, %v2362
    %v2636 = vunpack.c.l.s4 1983009808
    %v2637 = vunpack.c.0.s8 %v2636
    %v2638 = vlaneseq
    %v2639 = vshrl.u32 %v2638, 7
    %v2640 = vsub.s32 %v2637, %v2639
    %v2641 = vrot.slane %v2362, %v2640
    %v2643 = vunpack.c.l.s4 1983009808
    %v2644 = vunpack.c.0.s8 %v2643
    %v2645 = vlaneseq
    %v2646 = vshrl.u32 %v2645, 7
    %v2647 = vsub.s32 %v2644, %v2646
    %v2648 = vrot.slane %v2634, %v2647
    %v2649 = vcombine.high %v2641, %v2641
    %v2650 = vcombine.high %v2648, %v2648
    %v2651 = vld [vmem:[%s8] sm:$0x1]
    %v2652 = vld [vmem:[%s9] sm:$0x1]
    %v2653 = vcombine.low 0.0, %v2374
    %v2654 = vcombine.low %v2446, %v2382
    %v2656 = vunpack.c.l.s4 1983009808
    %v2657 = vunpack.c.0.s8 %v2656
    %v2658 = vlaneseq
    %v2659 = vshrl.u32 %v2658, 7
    %v2660 = vsub.s32 %v2657, %v2659
    %v2661 = vrot.slane %v2653, %v2660
    %v2663 = vunpack.c.l.s4 1983009808
    %v2664 = vunpack.c.0.s8 %v2663
    %v2665 = vlaneseq
    %v2666 = vshrl.u32 %v2665, 7
    %v2667 = vsub.s32 %v2664, %v2666
    %v2668 = vrot.slane %v2654, %v2667
    %v2669 = vcombine.low %v2661, %v2668
    %v2670 = vcombine.low %v2454, %v2381
    %v2671 = vcombine.low %v2453, %v2383
    %v2673 = vunpack.c.l.s4 1983009808
    %v2674 = vunpack.c.0.s8 %v2673
    %v2675 = vlaneseq
    %v2676 = vshrl.u32 %v2675, 7
    %v2677 = vsub.s32 %v2674, %v2676
    %v2678 = vrot.slane %v2670, %v2677
    %v2680 = vunpack.c.l.s4 1983009808
    %v2681 = vunpack.c.0.s8 %v2680
    %v2682 = vlaneseq
    %v2683 = vshrl.u32 %v2682, 7
    %v2684 = vsub.s32 %v2681, %v2683
    %v2685 = vrot.slane %v2671, %v2684
    %v2686 = vcombine.low %v2678, %v2685
    %v2687 = vcombine.low 0.0, %v2518
    %v2688 = vcombine.low %v2590, %v2526
    %v2690 = vunpack.c.l.s4 1983009808
    %v2691 = vunpack.c.0.s8 %v2690
    %v2692 = vlaneseq
    %v2693 = vshrl.u32 %v2692, 7
    %v2694 = vsub.s32 %v2691, %v2693
    %v2695 = vrot.slane %v2687, %v2694
    %v2697 = vunpack.c.l.s4 1983009808
    %v2698 = vunpack.c.0.s8 %v2697
    %v2699 = vlaneseq
    %v2700 = vshrl.u32 %v2699, 7
    %v2701 = vsub.s32 %v2698, %v2700
    %v2702 = vrot.slane %v2688, %v2701
    %v2703 = vcombine.low %v2695, %v2702
    %v2704 = vcombine.low %v2598, %v2525
    %v2705 = vcombine.low %v2597, %v2527
    %v2707 = vunpack.c.l.s4 1983009808
    %v2708 = vunpack.c.0.s8 %v2707
    %v2709 = vlaneseq
    %v2710 = vshrl.u32 %v2709, 7
    %v2711 = vsub.s32 %v2708, %v2710
    %v2712 = vrot.slane %v2704, %v2711
    %v2714 = vunpack.c.l.s4 1983009808
    %v2715 = vunpack.c.0.s8 %v2714
    %v2716 = vlaneseq
    %v2717 = vshrl.u32 %v2716, 7
    %v2718 = vsub.s32 %v2715, %v2717
    %v2719 = vrot.slane %v2705, %v2718
    %v2720 = vcombine.low %v2712, %v2719
    %v2721 = vcombine.low 0.0, %v2391
    %v2722 = vcombine.low %v2463, %v2399
    %v2724 = vunpack.c.l.s4 1983009808
    %v2725 = vunpack.c.0.s8 %v2724
    %v2726 = vlaneseq
    %v2727 = vshrl.u32 %v2726, 7
    %v2728 = vsub.s32 %v2725, %v2727
    %v2729 = vrot.slane %v2721, %v2728
    %v2731 = vunpack.c.l.s4 1983009808
    %v2732 = vunpack.c.0.s8 %v2731
    %v2733 = vlaneseq
    %v2734 = vshrl.u32 %v2733, 7
    %v2735 = vsub.s32 %v2732, %v2734
    %v2736 = vrot.slane %v2722, %v2735
    %v2737 = vcombine.low %v2729, %v2736
    %v2738 = vcombine.low %v2471, %v2398
    %v2739 = vcombine.low %v2470, %v2400
    %v2741 = vunpack.c.l.s4 1983009808
    %v2742 = vunpack.c.0.s8 %v2741
    %v2743 = vlaneseq
    %v2744 = vshrl.u32 %v2743, 7
    %v2745 = vsub.s32 %v2742, %v2744
    %v2746 = vrot.slane %v2738, %v2745
    %v2748 = vunpack.c.l.s4 1983009808
    %v2749 = vunpack.c.0.s8 %v2748
    %v2750 = vlaneseq
    %v2751 = vshrl.u32 %v2750, 7
    %v2752 = vsub.s32 %v2749, %v2751
    %v2753 = vrot.slane %v2739, %v2752
    %v2754 = vcombine.low %v2746, %v2753
    %v2755 = vcombine.low 0.0, %v2535
    %v2756 = vcombine.low %v2607, %v2543
    %v2758 = vunpack.c.l.s4 1983009808
    %v2759 = vunpack.c.0.s8 %v2758
    %v2760 = vlaneseq
    %v2761 = vshrl.u32 %v2760, 7
    %v2762 = vsub.s32 %v2759, %v2761
    %v2763 = vrot.slane %v2755, %v2762
    %v2765 = vunpack.c.l.s4 1983009808
    %v2766 = vunpack.c.0.s8 %v2765
    %v2767 = vlaneseq
    %v2768 = vshrl.u32 %v2767, 7
    %v2769 = vsub.s32 %v2766, %v2768
    %v2770 = vrot.slane %v2756, %v2769
    %v2771 = vcombine.low %v2763, %v2770
    %v2772 = vcombine.low %v2615, %v2542
    %v2773 = vcombine.low %v2614, %v2544
    %v2775 = vunpack.c.l.s4 1983009808
    %v2776 = vunpack.c.0.s8 %v2775
    %v2777 = vlaneseq
    %v2778 = vshrl.u32 %v2777, 7
    %v2779 = vsub.s32 %v2776, %v2778
    %v2780 = vrot.slane %v2772, %v2779
    %v2782 = vunpack.c.l.s4 1983009808
    %v2783 = vunpack.c.0.s8 %v2782
    %v2784 = vlaneseq
    %v2785 = vshrl.u32 %v2784, 7
    %v2786 = vsub.s32 %v2783, %v2785
    %v2787 = vrot.slane %v2773, %v2786
    %v2788 = vcombine.low %v2780, %v2787
    %v2789 = vcombine.low 0.0, %v2408
    %v2790 = vcombine.low %v2480, %v2416
    %v2792 = vunpack.c.l.s4 1983009808
    %v2793 = vunpack.c.0.s8 %v2792
    %v2794 = vlaneseq
    %v2795 = vshrl.u32 %v2794, 7
    %v2796 = vsub.s32 %v2793, %v2795
    %v2797 = vrot.slane %v2789, %v2796
    %v2799 = vunpack.c.l.s4 1983009808
    %v2800 = vunpack.c.0.s8 %v2799
    %v2801 = vlaneseq
    %v2802 = vshrl.u32 %v2801, 7
    %v2803 = vsub.s32 %v2800, %v2802
    %v2804 = vrot.slane %v2790, %v2803
    %v2805 = vcombine.low %v2797, %v2804
    %v2806 = vcombine.low %v2488, %v2415
    %v2807 = vcombine.low %v2487, %v2417
    %v2809 = vunpack.c.l.s4 1983009808
    %v2810 = vunpack.c.0.s8 %v2809
    %v2811 = vlaneseq
    %v2812 = vshrl.u32 %v2811, 7
    %v2813 = vsub.s32 %v2810, %v2812
    %v2814 = vrot.slane %v2806, %v2813
    %v2816 = vunpack.c.l.s4 1983009808
    %v2817 = vunpack.c.0.s8 %v2816
    %v2818 = vlaneseq
    %v2819 = vshrl.u32 %v2818, 7
    %v2820 = vsub.s32 %v2817, %v2819
    %v2821 = vrot.slane %v2807, %v2820
    %v2822 = vcombine.low %v2814, %v2821
    %v2823 = vcombine.low 0.0, %v2552
    %v2824 = vcombine.low %v2624, %v2560
    %v2826 = vunpack.c.l.s4 1983009808
    %v2827 = vunpack.c.0.s8 %v2826
    %v2828 = vlaneseq
    %v2829 = vshrl.u32 %v2828, 7
    %v2830 = vsub.s32 %v2827, %v2829
    %v2831 = vrot.slane %v2823, %v2830
    %v2833 = vunpack.c.l.s4 1983009808
    %v2834 = vunpack.c.0.s8 %v2833
    %v2835 = vlaneseq
    %v2836 = vshrl.u32 %v2835, 7
    %v2837 = vsub.s32 %v2834, %v2836
    %v2838 = vrot.slane %v2824, %v2837
    %v2839 = vcombine.low %v2831, %v2838
    %v2840 = vcombine.low %v2632, %v2559
    %v2841 = vcombine.low %v2631, %v2561
    %v2843 = vunpack.c.l.s4 1983009808
    %v2844 = vunpack.c.0.s8 %v2843
    %v2845 = vlaneseq
    %v2846 = vshrl.u32 %v2845, 7
    %v2847 = vsub.s32 %v2844, %v2846
    %v2848 = vrot.slane %v2840, %v2847
    %v2850 = vunpack.c.l.s4 1983009808
    %v2851 = vunpack.c.0.s8 %v2850
    %v2852 = vlaneseq
    %v2853 = vshrl.u32 %v2852, 7
    %v2854 = vsub.s32 %v2851, %v2853
    %v2855 = vrot.slane %v2841, %v2854
    %v2856 = vcombine.low %v2848, %v2855
    %v2857 = vcombine.low 0.0, %v2425
    %v2858 = vcombine.low %v2497, %v2433
    %v2860 = vunpack.c.l.s4 1983009808
    %v2861 = vunpack.c.0.s8 %v2860
    %v2862 = vlaneseq
    %v2863 = vshrl.u32 %v2862, 7
    %v2864 = vsub.s32 %v2861, %v2863
    %v2865 = vrot.slane %v2857, %v2864
    %v2867 = vunpack.c.l.s4 1983009808
    %v2868 = vunpack.c.0.s8 %v2867
    %v2869 = vlaneseq
    %v2870 = vshrl.u32 %v2869, 7
    %v2871 = vsub.s32 %v2868, %v2870
    %v2872 = vrot.slane %v2858, %v2871
    %v2873 = vcombine.low %v2865, %v2872
    %v2874 = vcombine.low %v2505, %v2432
    %v2875 = vcombine.low %v2504, %v2434
    %v2877 = vunpack.c.l.s4 1983009808
    %v2878 = vunpack.c.0.s8 %v2877
    %v2879 = vlaneseq
    %v2880 = vshrl.u32 %v2879, 7
    %v2881 = vsub.s32 %v2878, %v2880
    %v2882 = vrot.slane %v2874, %v2881
    %v2884 = vunpack.c.l.s4 1983009808
    %v2885 = vunpack.c.0.s8 %v2884
    %v2886 = vlaneseq
    %v2887 = vshrl.u32 %v2886, 7
    %v2888 = vsub.s32 %v2885, %v2887
    %v2889 = vrot.slane %v2875, %v2888
    %v2890 = vcombine.low %v2882, %v2889
    %v2905 = vcombine.low %v2374, %v2446
    %v2906 = vcombine.low %v2382, %v2454
    %v2908 = vunpack.c.l.s4 1983009808
    %v2909 = vunpack.c.0.s8 %v2908
    %v2910 = vlaneseq
    %v2911 = vshrl.u32 %v2910, 7
    %v2912 = vsub.s32 %v2909, %v2911
    %v2913 = vrot.slane %v2905, %v2912
    %v2915 = vunpack.c.l.s4 1983009808
    %v2916 = vunpack.c.0.s8 %v2915
    %v2917 = vlaneseq
    %v2918 = vshrl.u32 %v2917, 7
    %v2919 = vsub.s32 %v2916, %v2918
    %v2920 = vrot.slane %v2906, %v2919
    %v2921 = vcombine.low %v2913, %v2920
    %v2922 = vcombine.low %v2381, %v2453
    %v2923 = vcombine.low %v2383, %v2455
    %v2925 = vunpack.c.l.s4 1983009808
    %v2926 = vunpack.c.0.s8 %v2925
    %v2927 = vlaneseq
    %v2928 = vshrl.u32 %v2927, 7
    %v2929 = vsub.s32 %v2926, %v2928
    %v2930 = vrot.slane %v2922, %v2929
    %v2932 = vunpack.c.l.s4 1983009808
    %v2933 = vunpack.c.0.s8 %v2932
    %v2934 = vlaneseq
    %v2935 = vshrl.u32 %v2934, 7
    %v2936 = vsub.s32 %v2933, %v2935
    %v2937 = vrot.slane %v2923, %v2936
    %v2938 = vcombine.low %v2930, %v2937
    %v2939 = vcombine.low %v2518, %v2590
    %v2940 = vcombine.low %v2526, %v2598
    %v2942 = vunpack.c.l.s4 1983009808
    %v2943 = vunpack.c.0.s8 %v2942
    %v2944 = vlaneseq
    %v2945 = vshrl.u32 %v2944, 7
    %v2946 = vsub.s32 %v2943, %v2945
    %v2947 = vrot.slane %v2939, %v2946
    %v2949 = vunpack.c.l.s4 1983009808
    %v2950 = vunpack.c.0.s8 %v2949
    %v2951 = vlaneseq
    %v2952 = vshrl.u32 %v2951, 7
    %v2953 = vsub.s32 %v2950, %v2952
    %v2954 = vrot.slane %v2940, %v2953
    %v2955 = vcombine.low %v2947, %v2954
    %v2956 = vcombine.low %v2525, %v2597
    %v2957 = vcombine.low %v2527, %v2599
    %v2959 = vunpack.c.l.s4 1983009808
    %v2960 = vunpack.c.0.s8 %v2959
    %v2961 = vlaneseq
    %v2962 = vshrl.u32 %v2961, 7
    %v2963 = vsub.s32 %v2960, %v2962
    %v2964 = vrot.slane %v2956, %v2963
    %v2966 = vunpack.c.l.s4 1983009808
    %v2967 = vunpack.c.0.s8 %v2966
    %v2968 = vlaneseq
    %v2969 = vshrl.u32 %v2968, 7
    %v2970 = vsub.s32 %v2967, %v2969
    %v2971 = vrot.slane %v2957, %v2970
    %v2972 = vcombine.low %v2964, %v2971
    %v2973 = vcombine.low %v2391, %v2463
    %v2974 = vcombine.low %v2399, %v2471
    %v2976 = vunpack.c.l.s4 1983009808
    %v2977 = vunpack.c.0.s8 %v2976
    %v2978 = vlaneseq
    %v2979 = vshrl.u32 %v2978, 7
    %v2980 = vsub.s32 %v2977, %v2979
    %v2981 = vrot.slane %v2973, %v2980
    %v2983 = vunpack.c.l.s4 1983009808
    %v2984 = vunpack.c.0.s8 %v2983
    %v2985 = vlaneseq
    %v2986 = vshrl.u32 %v2985, 7
    %v2987 = vsub.s32 %v2984, %v2986
    %v2988 = vrot.slane %v2974, %v2987
    %v2989 = vcombine.low %v2981, %v2988
    %v2990 = vcombine.low %v2398, %v2470
    %v2991 = vcombine.low %v2400, %v2472
    %v2993 = vunpack.c.l.s4 1983009808
    %v2994 = vunpack.c.0.s8 %v2993
    %v2995 = vlaneseq
    %v2996 = vshrl.u32 %v2995, 7
    %v2997 = vsub.s32 %v2994, %v2996
    %v2998 = vrot.slane %v2990, %v2997
    %v3000 = vunpack.c.l.s4 1983009808
    %v3001 = vunpack.c.0.s8 %v3000
    %v3002 = vlaneseq
    %v3003 = vshrl.u32 %v3002, 7
    %v3004 = vsub.s32 %v3001, %v3003
    %v3005 = vrot.slane %v2991, %v3004
    %v3006 = vcombine.low %v2998, %v3005
    %v3007 = vcombine.low %v2535, %v2607
    %v3008 = vcombine.low %v2543, %v2615
    %v3010 = vunpack.c.l.s4 1983009808
    %v3011 = vunpack.c.0.s8 %v3010
    %v3012 = vlaneseq
    %v3013 = vshrl.u32 %v3012, 7
    %v3014 = vsub.s32 %v3011, %v3013
    %v3015 = vrot.slane %v3007, %v3014
    %v3017 = vunpack.c.l.s4 1983009808
    %v3018 = vunpack.c.0.s8 %v3017
    %v3019 = vlaneseq
    %v3020 = vshrl.u32 %v3019, 7
    %v3021 = vsub.s32 %v3018, %v3020
    %v3022 = vrot.slane %v3008, %v3021
    %v3023 = vcombine.low %v3015, %v3022
    %v3024 = vcombine.low %v2542, %v2614
    %v3025 = vcombine.low %v2544, %v2616
    %v3027 = vunpack.c.l.s4 1983009808
    %v3028 = vunpack.c.0.s8 %v3027
    %v3029 = vlaneseq
    %v3030 = vshrl.u32 %v3029, 7
    %v3031 = vsub.s32 %v3028, %v3030
    %v3032 = vrot.slane %v3024, %v3031
    %v3034 = vunpack.c.l.s4 1983009808
    %v3035 = vunpack.c.0.s8 %v3034
    %v3036 = vlaneseq
    %v3037 = vshrl.u32 %v3036, 7
    %v3038 = vsub.s32 %v3035, %v3037
    %v3039 = vrot.slane %v3025, %v3038
    %v3040 = vcombine.low %v3032, %v3039
    %v3041 = vcombine.low %v2408, %v2480
    %v3042 = vcombine.low %v2416, %v2488
    %v3044 = vunpack.c.l.s4 1983009808
    %v3045 = vunpack.c.0.s8 %v3044
    %v3046 = vlaneseq
    %v3047 = vshrl.u32 %v3046, 7
    %v3048 = vsub.s32 %v3045, %v3047
    %v3049 = vrot.slane %v3041, %v3048
    %v3051 = vunpack.c.l.s4 1983009808
    %v3052 = vunpack.c.0.s8 %v3051
    %v3053 = vlaneseq
    %v3054 = vshrl.u32 %v3053, 7
    %v3055 = vsub.s32 %v3052, %v3054
    %v3056 = vrot.slane %v3042, %v3055
    %v3057 = vcombine.low %v3049, %v3056
    %v3058 = vcombine.low %v2415, %v2487
    %v3059 = vcombine.low %v2417, %v2489
    %v3061 = vunpack.c.l.s4 1983009808
    %v3062 = vunpack.c.0.s8 %v3061
    %v3063 = vlaneseq
    %v3064 = vshrl.u32 %v3063, 7
    %v3065 = vsub.s32 %v3062, %v3064
    %v3066 = vrot.slane %v3058, %v3065
    %v3068 = vunpack.c.l.s4 1983009808
    %v3069 = vunpack.c.0.s8 %v3068
    %v3070 = vlaneseq
    %v3071 = vshrl.u32 %v3070, 7
    %v3072 = vsub.s32 %v3069, %v3071
    %v3073 = vrot.slane %v3059, %v3072
    %v3074 = vcombine.low %v3066, %v3073
    %v3075 = vcombine.low %v2552, %v2624
    %v3076 = vcombine.low %v2560, %v2632
    %v3078 = vunpack.c.l.s4 1983009808
    %v3079 = vunpack.c.0.s8 %v3078
    %v3080 = vlaneseq
    %v3081 = vshrl.u32 %v3080, 7
    %v3082 = vsub.s32 %v3079, %v3081
    %v3083 = vrot.slane %v3075, %v3082
    %v3085 = vunpack.c.l.s4 1983009808
    %v3086 = vunpack.c.0.s8 %v3085
    %v3087 = vlaneseq
    %v3088 = vshrl.u32 %v3087, 7
    %v3089 = vsub.s32 %v3086, %v3088
    %v3090 = vrot.slane %v3076, %v3089
    %v3091 = vcombine.low %v3083, %v3090
    %v3092 = vcombine.low %v2559, %v2631
    %v3093 = vcombine.low %v2561, %v2633
    %v3095 = vunpack.c.l.s4 1983009808
    %v3096 = vunpack.c.0.s8 %v3095
    %v3097 = vlaneseq
    %v3098 = vshrl.u32 %v3097, 7
    %v3099 = vsub.s32 %v3096, %v3098
    %v3100 = vrot.slane %v3092, %v3099
    %v3102 = vunpack.c.l.s4 1983009808
    %v3103 = vunpack.c.0.s8 %v3102
    %v3104 = vlaneseq
    %v3105 = vshrl.u32 %v3104, 7
    %v3106 = vsub.s32 %v3103, %v3105
    %v3107 = vrot.slane %v3093, %v3106
    %v3108 = vcombine.low %v3100, %v3107
    %v3109 = vcombine.low %v2425, %v2497
    %v3110 = vcombine.low %v2433, %v2505
    %v3112 = vunpack.c.l.s4 1983009808
    %v3113 = vunpack.c.0.s8 %v3112
    %v3114 = vlaneseq
    %v3115 = vshrl.u32 %v3114, 7
    %v3116 = vsub.s32 %v3113, %v3115
    %v3117 = vrot.slane %v3109, %v3116
    %v3119 = vunpack.c.l.s4 1983009808
    %v3120 = vunpack.c.0.s8 %v3119
    %v3121 = vlaneseq
    %v3122 = vshrl.u32 %v3121, 7
    %v3123 = vsub.s32 %v3120, %v3122
    %v3124 = vrot.slane %v3110, %v3123
    %v3125 = vcombine.low %v3117, %v3124
    %v3126 = vcombine.low %v2432, %v2504
    %v3127 = vcombine.low %v2434, %v2506
    %v3129 = vunpack.c.l.s4 1983009808
    %v3130 = vunpack.c.0.s8 %v3129
    %v3131 = vlaneseq
    %v3132 = vshrl.u32 %v3131, 7
    %v3133 = vsub.s32 %v3130, %v3132
    %v3134 = vrot.slane %v3126, %v3133
    %v3136 = vunpack.c.l.s4 1983009808
    %v3137 = vunpack.c.0.s8 %v3136
    %v3138 = vlaneseq
    %v3139 = vshrl.u32 %v3138, 7
    %v3140 = vsub.s32 %v3137, %v3139
    %v3141 = vrot.slane %v3127, %v3140
    %v3142 = vcombine.low %v3134, %v3141
    %v3157 = vcombine.low 0.0, %v2569
    %v3158 = vcombine.low %v2641, %v2577
    %v3160 = vunpack.c.l.s4 1983009808
    %v3161 = vunpack.c.0.s8 %v3160
    %v3162 = vlaneseq
    %v3163 = vshrl.u32 %v3162, 7
    %v3164 = vsub.s32 %v3161, %v3163
    %v3165 = vrot.slane %v3157, %v3164
    %v3167 = vunpack.c.l.s4 1983009808
    %v3168 = vunpack.c.0.s8 %v3167
    %v3169 = vlaneseq
    %v3170 = vshrl.u32 %v3169, 7
    %v3171 = vsub.s32 %v3168, %v3170
    %v3172 = vrot.slane %v3158, %v3171
    %v3173 = vcombine.low %v3165, %v3172
    %v3174 = vcombine.low %v2649, %v2576
    %v3175 = vcombine.low %v2648, %v2578
    %v3177 = vunpack.c.l.s4 1983009808
    %v3178 = vunpack.c.0.s8 %v3177
    %v3179 = vlaneseq
    %v3180 = vshrl.u32 %v3179, 7
    %v3181 = vsub.s32 %v3178, %v3180
    %v3182 = vrot.slane %v3174, %v3181
    %v3184 = vunpack.c.l.s4 1983009808
    %v3185 = vunpack.c.0.s8 %v3184
    %v3186 = vlaneseq
    %v3187 = vshrl.u32 %v3186, 7
    %v3188 = vsub.s32 %v3185, %v3187
    %v3189 = vrot.slane %v3175, %v3188
    %v3190 = vcombine.low %v3182, %v3189
    %v3193 = vcombine.low %v2569, %v2641
    %v3194 = vcombine.low %v2577, %v2649
    %v3196 = vunpack.c.l.s4 1983009808
    %v3197 = vunpack.c.0.s8 %v3196
    %v3198 = vlaneseq
    %v3199 = vshrl.u32 %v3198, 7
    %v3200 = vsub.s32 %v3197, %v3199
    %v3201 = vrot.slane %v3193, %v3200
    %v3203 = vunpack.c.l.s4 1983009808
    %v3204 = vunpack.c.0.s8 %v3203
    %v3205 = vlaneseq
    %v3206 = vshrl.u32 %v3205, 7
    %v3207 = vsub.s32 %v3204, %v3206
    %v3208 = vrot.slane %v3194, %v3207
    %v3209 = vcombine.low %v3201, %v3208
    %v3210 = vcombine.low %v2576, %v2648
    %v3211 = vcombine.low %v2578, %v2650
    %v3213 = vunpack.c.l.s4 1983009808
    %v3214 = vunpack.c.0.s8 %v3213
    %v3215 = vlaneseq
    %v3216 = vshrl.u32 %v3215, 7
    %v3217 = vsub.s32 %v3214, %v3216
    %v3218 = vrot.slane %v3210, %v3217
    %v3220 = vunpack.c.l.s4 1983009808
    %v3221 = vunpack.c.0.s8 %v3220
    %v3222 = vlaneseq
    %v3223 = vshrl.u32 %v3222, 7
    %v3224 = vsub.s32 %v3221, %v3223
    %v3225 = vrot.slane %v3211, %v3224
    %v3226 = vcombine.low %v3218, %v3225
    %v3229 = vld [vmem:[#allocation4] sm:$0xff]
    %v3230 = vld [vmem:[#allocation4 + $0x8] sm:$0xff]
    %v3231 = vld [vmem:[#allocation4 + $0x10] sm:$0xff]
    %v3232 = vld [vmem:[#allocation4 + $0x18] sm:$0xff]
    %v3233 = vld [vmem:[#allocation4 + $0x20] sm:$0xff]
    %v3234 = vld [vmem:[#allocation4 + $0x28] sm:$0xff]
    %v3235 = vld [vmem:[#allocation4 + $0x30] sm:$0xff]
    %v3236 = vld [vmem:[#allocation4 + $0x38] sm:$0xff]
    %v3237 = vld [vmem:[#allocation4 + $0x40] sm:$0xff]
    %v3238 = vld [vmem:[#allocation4 + $0x48] sm:$0xff]
    %v3239 = vld [vmem:[#allocation4 + $0x50] sm:$0xff]
    %v3240 = vld [vmem:[#allocation4 + $0x58] sm:$0xff]
    %v3241 = vld [vmem:[#allocation4 + $0x60] sm:$0xff]
    %v3242 = vld [vmem:[#allocation4 + $0x68] sm:$0xff]
    %v3243 = vld [vmem:[#allocation4 + $0x70] sm:$0xff]
    %v3244 = vld [vmem:[#allocation4 + $0x78] sm:$0xff]
    %v3245 = vld [vmem:[#allocation4 + $0x80] sm:$0xff]
    %v3246 = vld [vmem:[#allocation4 + $0x88] sm:$0xff]
    %v3247 = vld [vmem:[#allocation4 + $0x90] sm:$0xff]
    %v3248 = vld [vmem:[#allocation4 + $0x98] sm:$0xff]
    %v3249 = vld [vmem:[#allocation4 + $0xa0] sm:$0xff]
    %v3250 = vld [vmem:[#allocation4 + $0xa8] sm:$0xff]
    %v3251 = vld [vmem:[#allocation4 + $0xb0] sm:$0xff]
    %v3252 = vld [vmem:[#allocation4 + $0xb8] sm:$0xff]
    %v3253 = vld [vmem:[#allocation4 + $0xc0] sm:$0xff]
    %v3254 = vld [vmem:[#allocation4 + $0xc8] sm:$0xff]
    %v3255 = vld [vmem:[#allocation4 + $0xd0] sm:$0xff]
    %v3256 = vld [vmem:[#allocation4 + $0xd8] sm:$0xff]
    %v3257 = vld [vmem:[#allocation4 + $0xe0] sm:$0xff]
    %v3258 = vld [vmem:[#allocation4 + $0xe8] sm:$0xff]
    %v3259 = vld [vmem:[#allocation4 + $0xf0] sm:$0xff]
    %v3260 = vld [vmem:[#allocation4 + $0xf8] sm:$0xff]
    %v3261 = vld [vmem:[#allocation4 + $0x100] sm:$0xff]
    %v3262 = vld [vmem:[#allocation4 + $0x108] sm:$0xff]
    %v3263 = vld [vmem:[#allocation4 + $0x110] sm:$0xff]
    %v3264 = vld [vmem:[#allocation4 + $0x118] sm:$0xff]
    %v3265 = vld [vmem:[#allocation4 + $0x120] sm:$0xff]
    %v3266 = vld [vmem:[#allocation4 + $0x128] sm:$0xff]
    %v3267 = vld [vmem:[#allocation4 + $0x130] sm:$0xff]
    %v3268 = vld [vmem:[#allocation4 + $0x138] sm:$0xff]
    %v3269 = vld [vmem:[#allocation4 + $0x140] sm:$0xff]
    %v3270 = vld [vmem:[#allocation4 + $0x148] sm:$0xff]
    %v3271 = vld [vmem:[#allocation4 + $0x150] sm:$0xff]
    %v3272 = vld [vmem:[#allocation4 + $0x158] sm:$0xff]
    %v3273 = vld [vmem:[#allocation4 + $0x160] sm:$0xff]
    %v3274 = vld [vmem:[#allocation4 + $0x168] sm:$0xff]
    %v3275 = vld [vmem:[#allocation4 + $0x170] sm:$0xff]
    %v3276 = vld [vmem:[#allocation4 + $0x178] sm:$0xff]
    %v3277 = vld [vmem:[#allocation4 + $0x180] sm:$0xff]
    %v3278 = vld [vmem:[#allocation4 + $0x188] sm:$0xff]
    %v3279 = vld [vmem:[#allocation4 + $0x190] sm:$0xff]
    %v3280 = vld [vmem:[#allocation4 + $0x198] sm:$0xff]
    %v3281 = vld [vmem:[#allocation4 + $0x1a0] sm:$0xff]
    %v3282 = vld [vmem:[#allocation4 + $0x1a8] sm:$0xff]
    %v3283 = vld [vmem:[#allocation4 + $0x1b0] sm:$0xff]
    %v3284 = vld [vmem:[#allocation4 + $0x1b8] sm:$0xff]
    %v3285 = vld [vmem:[#allocation4 + $0x1c0] sm:$0xff]
    %v3286 = vld [vmem:[#allocation4 + $0x1c8] sm:$0xff]
    %v3287 = vld [vmem:[#allocation4 + $0x1d0] sm:$0xff]
    %v3288 = vld [vmem:[#allocation4 + $0x1d8] sm:$0xff]
    %v3289 = vld [vmem:[#allocation4 + $0x1e0] sm:$0xff]
    %v3290 = vld [vmem:[#allocation4 + $0x1e8] sm:$0xff]
    %v3291 = vld [vmem:[#allocation4 + $0x1f0] sm:$0xff]
    %v3292 = vld [vmem:[#allocation4 + $0x1f8] sm:$0xff]
    %3293 = vmatprep.subr.mxu0 0.0
    %3294 = vmatpush1.msra.mxu0 %v3244
    %3295 = vmatprep.subr.mxu0 0.0
    %3296 = vmatpush1.msra.mxu0 %v3243
    %3297 = vmatprep.subr.mxu0 0.0
    %3298 = vmatpush1.msra.mxu0 %v3242
    %3299 = vmatprep.subr.mxu0 0.0
    %3300 = vmatpush1.msra.mxu0 %v3241
    %3301 = vmatprep.subr.mxu0 0.0
    %3302 = vmatpush1.msra.mxu0 %v3240
    %3303 = vmatprep.subr.mxu0 0.0
    %3304 = vmatpush1.msra.mxu0 %v3239
    %3305 = vmatprep.subr.mxu0 0.0
    %3306 = vmatpush1.msra.mxu0 %v3238
    %3307 = vmatprep.subr.mxu0 0.0
    %3308 = vmatpush1.msra.mxu0 %v3237
    %3309 = vmatprep.subr.mxu0 0.0
    %3310 = vmatpush1.msra.mxu0 %v3236
    %3311 = vmatprep.subr.mxu0 0.0
    %3312 = vmatpush1.msra.mxu0 %v3235
    %3313 = vmatprep.subr.mxu0 0.0
    %3314 = vmatpush1.msra.mxu0 %v3234
    %3315 = vmatprep.subr.mxu0 0.0
    %3316 = vmatpush1.msra.mxu0 %v3233
    %3317 = vmatprep.subr.mxu0 0.0
    %3318 = vmatpush1.msra.mxu0 %v3232
    %3319 = vmatprep.subr.mxu0 0.0
    %3320 = vmatpush1.msra.mxu0 %v3231
    %3321 = vmatprep.subr.mxu0 0.0
    %3322 = vmatpush1.msra.mxu0 %v3230
    %3323 = vmatprep.subr.mxu0 0.0
    %3324 = vmatpush1.msra.mxu0 %v3229
    %3325 = vmatprep.subr.mxu0 0.0
    %3326 = vmatpush2.msra.mxu0 %v3260
    %3327 = vmatprep.subr.mxu0 0.0
    %3328 = vmatpush2.msra.mxu0 %v3259
    %3329 = vmatprep.subr.mxu0 0.0
    %3330 = vmatpush2.msra.mxu0 %v3258
    %3331 = vmatprep.subr.mxu0 0.0
    %3332 = vmatpush2.msra.mxu0 %v3257
    %3333 = vmatprep.subr.mxu0 0.0
    %3334 = vmatpush2.msra.mxu0 %v3256
    %3335 = vmatprep.subr.mxu0 0.0
    %3336 = vmatpush2.msra.mxu0 %v3255
    %3337 = vmatprep.subr.mxu0 0.0
    %3338 = vmatpush2.msra.mxu0 %v3254
    %3339 = vmatprep.subr.mxu0 0.0
    %3340 = vmatpush2.msra.mxu0 %v3253
    %3341 = vmatprep.subr.mxu0 0.0
    %3342 = vmatpush2.msra.mxu0 %v3252
    %3343 = vmatprep.subr.mxu0 0.0
    %3344 = vmatpush2.msra.mxu0 %v3251
    %3345 = vmatprep.subr.mxu0 0.0
    %3346 = vmatpush2.msra.mxu0 %v3250
    %3347 = vmatprep.subr.mxu0 0.0
    %3348 = vmatpush2.msra.mxu0 %v3249
    %3349 = vmatprep.subr.mxu0 0.0
    %3350 = vmatpush2.msra.mxu0 %v3248
    %3351 = vmatprep.subr.mxu0 0.0
    %3352 = vmatpush2.msra.mxu0 %v3247
    %3353 = vmatprep.subr.mxu0 0.0
    %3354 = vmatpush2.msra.mxu0 %v3246
    %3355 = vmatprep.subr.mxu0 0.0
    %3356 = vmatpush2.msra.mxu0 %v3245
    %3357 = vmatprep.mubr.f32.mxu0 %v1068
    %3358 = vmatmul.mubr.f32.gmra.mxu0 %v1068
    %v3359 = vpop.f32.mrf.mxu0
    %v3360 = vadd.f32 0.0, %v3359
    %v3361 = vpop.f32.mrf.mxu0
    %3362 = vmatprep.mubr.f32.mxu0 %v1068
    %3363 = vmatmul.mubr.f32.gmra.mxu0 %v1068
    %v3364 = vpop.f32.mrf.mxu0
    %v3365 = vadd.f32 0.0, %v3364
    %v3366 = vpop.f32.mrf.mxu0
    %3367 = vmatprep.mubr.f32.mxu0 %v2921
    %3368 = vmatmul.mubr.f32.gmra.mxu0 %v2669
    %v3369 = vpop.f32.mrf.mxu0
    %v3370 = vadd.f32 0.0, %v3369
    %v3371 = vpop.f32.mrf.mxu0
    %3372 = vmatprep.mubr.f32.mxu0 %v2938
    %3373 = vmatmul.mubr.f32.gmra.mxu0 %v2686
    %v3374 = vpop.f32.mrf.mxu0
    %v3375 = vadd.f32 0.0, %v3374
    %v3376 = vpop.f32.mrf.mxu0
    %3377 = vmatprep.mubr.f32.mxu0 %v2955
    %3378 = vmatmul.mubr.f32.gmra.mxu0 %v2703
    %v3379 = vpop.f32.mrf.mxu0
    %v3380 = vadd.f32 0.0, %v3379
    %v3381 = vpop.f32.mrf.mxu0
    %3382 = vmatprep.mubr.f32.mxu0 %v2972
    %3383 = vmatmul.mubr.f32.gmra.mxu0 %v2720
    %v3384 = vpop.f32.mrf.mxu0
    %v3385 = vadd.f32 0.0, %v3384
    %v3386 = vpop.f32.mrf.mxu0
    %3387 = vmatprep.mubr.f32.mxu0 %v2989
    %3388 = vmatmul.mubr.f32.gmra.mxu0 %v2737
    %v3389 = vpop.f32.mrf.mxu0
    %v3390 = vadd.f32 0.0, %v3389
    %v3391 = vpop.f32.mrf.mxu0
    %3392 = vmatprep.mubr.f32.mxu0 %v3006
    %3393 = vmatmul.mubr.f32.gmra.mxu0 %v2754
    %v3394 = vpop.f32.mrf.mxu0
    %v3395 = vadd.f32 0.0, %v3394
    %v3396 = vpop.f32.mrf.mxu0
    %3397 = vmatprep.mubr.f32.mxu0 %v3023
    %3398 = vmatmul.mubr.f32.gmra.mxu0 %v2771
    %v3399 = vpop.f32.mrf.mxu0
    %v3400 = vadd.f32 0.0, %v3399
    %v3401 = vpop.f32.mrf.mxu0
    %3402 = vmatprep.mubr.f32.mxu0 %v3040
    %3403 = vmatmul.mubr.f32.gmra.mxu0 %v2788
    %v3404 = vpop.f32.mrf.mxu0
    %v3405 = vadd.f32 0.0, %v3404
    %v3406 = vpop.f32.mrf.mxu0
    %3407 = vmatprep.mubr.f32.mxu0 %v3057
    %3408 = vmatmul.mubr.f32.gmra.mxu0 %v2805
    %v3409 = vpop.f32.mrf.mxu0
    %v3410 = vadd.f32 0.0, %v3409
    %v3411 = vpop.f32.mrf.mxu0
    %3412 = vmatprep.mubr.f32.mxu0 %v3074
    %3413 = vmatmul.mubr.f32.gmra.mxu0 %v2822
    %v3414 = vpop.f32.mrf.mxu0
    %v3415 = vadd.f32 0.0, %v3414
    %v3416 = vpop.f32.mrf.mxu0
    %3417 = vmatprep.mubr.f32.mxu0 %v3091
    %3418 = vmatmul.mubr.f32.gmra.mxu0 %v2839
    %v3419 = vpop.f32.mrf.mxu0
    %v3420 = vadd.f32 0.0, %v3419
    %v3421 = vpop.f32.mrf.mxu0
    %3422 = vmatprep.mubr.f32.mxu0 %v3108
    %3423 = vmatmul.mubr.f32.gmra.mxu0 %v2856
    %v3424 = vpop.f32.mrf.mxu0
    %v3425 = vadd.f32 0.0, %v3424
    %v3426 = vpop.f32.mrf.mxu0
    %3427 = vmatprep.mubr.f32.mxu0 %v3125
    %3428 = vmatmul.mubr.f32.gmra.mxu0 %v2873
    %v3429 = vpop.f32.mrf.mxu0
    %v3430 = vadd.f32 0.0, %v3429
    %v3431 = vpop.f32.mrf.mxu0
    %3432 = vmatprep.mubr.f32.mxu0 %v3142
    %3433 = vmatmul.mubr.f32.gmra.mxu0 %v2890
    %v3434 = vpop.f32.mrf.mxu0
    %v3435 = vadd.f32 0.0, %v3434
    %v3436 = vpop.f32.mrf.mxu0
    %3437 = vdwg.mxu0
    %3438 = vmatprep.subr.mxu0 0.0
    %3439 = vmatpush1.msra.mxu0 %v3276
    %3440 = vmatprep.subr.mxu0 0.0
    %3441 = vmatpush1.msra.mxu0 %v3275
    %3442 = vmatprep.subr.mxu0 0.0
    %3443 = vmatpush1.msra.mxu0 %v3274
    %3444 = vmatprep.subr.mxu0 0.0
    %3445 = vmatpush1.msra.mxu0 %v3273
    %3446 = vmatprep.subr.mxu0 0.0
    %3447 = vmatpush1.msra.mxu0 %v3272
    %3448 = vmatprep.subr.mxu0 0.0
    %3449 = vmatpush1.msra.mxu0 %v3271
    %3450 = vmatprep.subr.mxu0 0.0
    %3451 = vmatpush1.msra.mxu0 %v3270
    %3452 = vmatprep.subr.mxu0 0.0
    %3453 = vmatpush1.msra.mxu0 %v3269
    %3454 = vmatprep.subr.mxu0 0.0
    %3455 = vmatpush1.msra.mxu0 %v3268
    %3456 = vmatprep.subr.mxu0 0.0
    %3457 = vmatpush1.msra.mxu0 %v3267
    %3458 = vmatprep.subr.mxu0 0.0
    %3459 = vmatpush1.msra.mxu0 %v3266
    %3460 = vmatprep.subr.mxu0 0.0
    %3461 = vmatpush1.msra.mxu0 %v3265
    %3462 = vmatprep.subr.mxu0 0.0
    %3463 = vmatpush1.msra.mxu0 %v3264
    %3464 = vmatprep.subr.mxu0 0.0
    %3465 = vmatpush1.msra.mxu0 %v3263
    %3466 = vmatprep.subr.mxu0 0.0
    %3467 = vmatpush1.msra.mxu0 %v3262
    %3468 = vmatprep.subr.mxu0 0.0
    %3469 = vmatpush1.msra.mxu0 %v3261
    %3470 = vmatprep.subr.mxu0 0.0
    %3471 = vmatpush2.msra.mxu0 %v3292
    %3472 = vmatprep.subr.mxu0 0.0
    %3473 = vmatpush2.msra.mxu0 %v3291
    %3474 = vmatprep.subr.mxu0 0.0
    %3475 = vmatpush2.msra.mxu0 %v3290
    %3476 = vmatprep.subr.mxu0 0.0
    %3477 = vmatpush2.msra.mxu0 %v3289
    %3478 = vmatprep.subr.mxu0 0.0
    %3479 = vmatpush2.msra.mxu0 %v3288
    %3480 = vmatprep.subr.mxu0 0.0
    %3481 = vmatpush2.msra.mxu0 %v3287
    %3482 = vmatprep.subr.mxu0 0.0
    %3483 = vmatpush2.msra.mxu0 %v3286
    %3484 = vmatprep.subr.mxu0 0.0
    %3485 = vmatpush2.msra.mxu0 %v3285
    %3486 = vmatprep.subr.mxu0 0.0
    %3487 = vmatpush2.msra.mxu0 %v3284
    %3488 = vmatprep.subr.mxu0 0.0
    %3489 = vmatpush2.msra.mxu0 %v3283
    %3490 = vmatprep.subr.mxu0 0.0
    %3491 = vmatpush2.msra.mxu0 %v3282
    %3492 = vmatprep.subr.mxu0 0.0
    %3493 = vmatpush2.msra.mxu0 %v3281
    %3494 = vmatprep.subr.mxu0 0.0
    %3495 = vmatpush2.msra.mxu0 %v3280
    %3496 = vmatprep.subr.mxu0 0.0
    %3497 = vmatpush2.msra.mxu0 %v3279
    %3498 = vmatprep.subr.mxu0 0.0
    %3499 = vmatpush2.msra.mxu0 %v3278
    %3500 = vmatprep.subr.mxu0 0.0
    %3501 = vmatpush2.msra.mxu0 %v3277
    %3502 = vmatprep.mubr.f32.mxu0 %v2921
    %3503 = vmatmul.mubr.f32.gmra.mxu0 %v2669
    %v3504 = vpop.f32.mrf.mxu0
    %v3505 = vadd.f32 %v3360, %v3504
    %v3506 = vpop.f32.mrf.mxu0
    %3507 = vmatprep.mubr.f32.mxu0 %v2938
    %3508 = vmatmul.mubr.f32.gmra.mxu0 %v2686
    %v3509 = vpop.f32.mrf.mxu0
    %v3510 = vadd.f32 %v3365, %v3509
    %v3511 = vpop.f32.mrf.mxu0
    %3512 = vmatprep.mubr.f32.mxu0 %v2955
    %3513 = vmatmul.mubr.f32.gmra.mxu0 %v2703
    %v3514 = vpop.f32.mrf.mxu0
    %v3515 = vadd.f32 %v3370, %v3514
    %v3516 = vpop.f32.mrf.mxu0
    %3517 = vmatprep.mubr.f32.mxu0 %v2972
    %3518 = vmatmul.mubr.f32.gmra.mxu0 %v2720
    %v3519 = vpop.f32.mrf.mxu0
    %v3520 = vadd.f32 %v3375, %v3519
    %v3521 = vpop.f32.mrf.mxu0
    %3522 = vmatprep.mubr.f32.mxu0 %v2989
    %3523 = vmatmul.mubr.f32.gmra.mxu0 %v2737
    %v3524 = vpop.f32.mrf.mxu0
    %v3525 = vadd.f32 %v3380, %v3524
    %v3526 = vpop.f32.mrf.mxu0
    %3527 = vmatprep.mubr.f32.mxu0 %v3006
    %3528 = vmatmul.mubr.f32.gmra.mxu0 %v2754
    %v3529 = vpop.f32.mrf.mxu0
    %v3530 = vadd.f32 %v3385, %v3529
    %v3531 = vpop.f32.mrf.mxu0
    %3532 = vmatprep.mubr.f32.mxu0 %v3023
    %3533 = vmatmul.mubr.f32.gmra.mxu0 %v2771
    %v3534 = vpop.f32.mrf.mxu0
    %v3535 = vadd.f32 %v3390, %v3534
    %v3536 = vpop.f32.mrf.mxu0
    %3537 = vmatprep.mubr.f32.mxu0 %v3040
    %3538 = vmatmul.mubr.f32.gmra.mxu0 %v2788
    %v3539 = vpop.f32.mrf.mxu0
    %v3540 = vadd.f32 %v3395, %v3539
    %v3541 = vpop.f32.mrf.mxu0
    %3542 = vmatprep.mubr.f32.mxu0 %v3057
    %3543 = vmatmul.mubr.f32.gmra.mxu0 %v2805
    %v3544 = vpop.f32.mrf.mxu0
    %v3545 = vadd.f32 %v3400, %v3544
    %v3546 = vpop.f32.mrf.mxu0
    %3547 = vmatprep.mubr.f32.mxu0 %v3074
    %3548 = vmatmul.mubr.f32.gmra.mxu0 %v2822
    %v3549 = vpop.f32.mrf.mxu0
    %v3550 = vadd.f32 %v3405, %v3549
    %v3551 = vpop.f32.mrf.mxu0
    %3552 = vmatprep.mubr.f32.mxu0 %v3091
    %3553 = vmatmul.mubr.f32.gmra.mxu0 %v2839
    %v3554 = vpop.f32.mrf.mxu0
    %v3555 = vadd.f32 %v3410, %v3554
    %v3556 = vpop.f32.mrf.mxu0
    %3557 = vmatprep.mubr.f32.mxu0 %v3108
    %3558 = vmatmul.mubr.f32.gmra.mxu0 %v2856
    %v3559 = vpop.f32.mrf.mxu0
    %v3560 = vadd.f32 %v3415, %v3559
    %v3561 = vpop.f32.mrf.mxu0
    %3562 = vmatprep.mubr.f32.mxu0 %v3125
    %3563 = vmatmul.mubr.f32.gmra.mxu0 %v2873
    %v3564 = vpop.f32.mrf.mxu0
    %v3565 = vadd.f32 %v3420, %v3564
    %v3566 = vpop.f32.mrf.mxu0
    %3567 = vmatprep.mubr.f32.mxu0 %v3142
    %3568 = vmatmul.mubr.f32.gmra.mxu0 %v2890
    %v3569 = vpop.f32.mrf.mxu0
    %v3570 = vadd.f32 %v3425, %v3569
    %v3571 = vpop.f32.mrf.mxu0
    %3572 = vmatprep.mubr.f32.mxu0 %v3209
    %3573 = vmatmul.mubr.f32.gmra.mxu0 %v3173
    %v3574 = vpop.f32.mrf.mxu0
    %v3575 = vadd.f32 %v3430, %v3574
    %v3576 = vpop.f32.mrf.mxu0
    %3577 = vmatprep.mubr.f32.mxu0 %v3226
    %3578 = vmatmul.mubr.f32.gmra.mxu0 %v3190
    %v3579 = vpop.f32.mrf.mxu0
    %v3580 = vadd.f32 %v3435, %v3579
    %v3581 = vpop.f32.mrf.mxu0
    %3582 = vdwg.mxu0
    %v3583 = vcombine.low %v2668, %v2678
    %v3584 = vcombine.low %v2455, 0.0
    %v3586 = vunpack.c.l.s4 1983009808
    %v3587 = vunpack.c.0.s8 %v3586
    %v3588 = vlaneseq
    %v3589 = vshrl.u32 %v3588, 7
    %v3590 = vsub.s32 %v3587, %v3589
    %v3591 = vrot.slane %v3584, %v3590
    %v3592 = vcombine.low %v2685, %v3591
    %v3593 = vcombine.low %v2702, %v2712
    %v3594 = vcombine.low %v2599, 0.0
    %v3596 = vunpack.c.l.s4 1983009808
    %v3597 = vunpack.c.0.s8 %v3596
    %v3598 = vlaneseq
    %v3599 = vshrl.u32 %v3598, 7
    %v3600 = vsub.s32 %v3597, %v3599
    %v3601 = vrot.slane %v3594, %v3600
    %v3602 = vcombine.low %v2719, %v3601
    %v3603 = vcombine.low %v2736, %v2746
    %v3604 = vcombine.low %v2472, 0.0
    %v3606 = vunpack.c.l.s4 1983009808
    %v3607 = vunpack.c.0.s8 %v3606
    %v3608 = vlaneseq
    %v3609 = vshrl.u32 %v3608, 7
    %v3610 = vsub.s32 %v3607, %v3609
    %v3611 = vrot.slane %v3604, %v3610
    %v3612 = vcombine.low %v2753, %v3611
    %v3613 = vcombine.low %v2770, %v2780
    %v3614 = vcombine.low %v2616, 0.0
    %v3616 = vunpack.c.l.s4 1983009808
    %v3617 = vunpack.c.0.s8 %v3616
    %v3618 = vlaneseq
    %v3619 = vshrl.u32 %v3618, 7
    %v3620 = vsub.s32 %v3617, %v3619
    %v3621 = vrot.slane %v3614, %v3620
    %v3622 = vcombine.low %v2787, %v3621
    %v3623 = vcombine.low %v2804, %v2814
    %v3624 = vcombine.low %v2489, 0.0
    %v3626 = vunpack.c.l.s4 1983009808
    %v3627 = vunpack.c.0.s8 %v3626
    %v3628 = vlaneseq
    %v3629 = vshrl.u32 %v3628, 7
    %v3630 = vsub.s32 %v3627, %v3629
    %v3631 = vrot.slane %v3624, %v3630
    %v3632 = vcombine.low %v2821, %v3631
    %v3633 = vcombine.low %v2838, %v2848
    %v3634 = vcombine.low %v2633, 0.0
    %v3636 = vunpack.c.l.s4 1983009808
    %v3637 = vunpack.c.0.s8 %v3636
    %v3638 = vlaneseq
    %v3639 = vshrl.u32 %v3638, 7
    %v3640 = vsub.s32 %v3637, %v3639
    %v3641 = vrot.slane %v3634, %v3640
    %v3642 = vcombine.low %v2855, %v3641
    %v3643 = vcombine.low %v2872, %v2882
    %v3644 = vcombine.low %v2506, 0.0
    %v3646 = vunpack.c.l.s4 1983009808
    %v3647 = vunpack.c.0.s8 %v3646
    %v3648 = vlaneseq
    %v3649 = vshrl.u32 %v3648, 7
    %v3650 = vsub.s32 %v3647, %v3649
    %v3651 = vrot.slane %v3644, %v3650
    %v3652 = vcombine.low %v2889, %v3651
    %v3667 = vcombine.low %v3172, %v3182
    %v3668 = vcombine.low %v2650, 0.0
    %v3670 = vunpack.c.l.s4 1983009808
    %v3671 = vunpack.c.0.s8 %v3670
    %v3672 = vlaneseq
    %v3673 = vshrl.u32 %v3672, 7
    %v3674 = vsub.s32 %v3671, %v3673
    %v3675 = vrot.slane %v3668, %v3674
    %v3676 = vcombine.low %v3189, %v3675
    %s3679 = scalar_lea.vmem [#allocation4], 512
    %v3680 = vld [vmem:[%s3679] sm:$0xff]
    %v3681 = vld [vmem:[%s3679 + $0x8] sm:$0xff]
    %v3682 = vld [vmem:[%s3679 + $0x10] sm:$0xff]
    %v3683 = vld [vmem:[%s3679 + $0x18] sm:$0xff]
    %v3684 = vld [vmem:[%s3679 + $0x20] sm:$0xff]
    %v3685 = vld [vmem:[%s3679 + $0x28] sm:$0xff]
    %v3686 = vld [vmem:[%s3679 + $0x30] sm:$0xff]
    %v3687 = vld [vmem:[%s3679 + $0x38] sm:$0xff]
    %v3688 = vld [vmem:[%s3679 + $0x40] sm:$0xff]
    %v3689 = vld [vmem:[%s3679 + $0x48] sm:$0xff]
    %v3690 = vld [vmem:[%s3679 + $0x50] sm:$0xff]
    %v3691 = vld [vmem:[%s3679 + $0x58] sm:$0xff]
    %v3692 = vld [vmem:[%s3679 + $0x60] sm:$0xff]
    %v3693 = vld [vmem:[%s3679 + $0x68] sm:$0xff]
    %v3694 = vld [vmem:[%s3679 + $0x70] sm:$0xff]
    %v3695 = vld [vmem:[%s3679 + $0x78] sm:$0xff]
    %v3696 = vld [vmem:[%s3679 + $0x80] sm:$0xff]
    %v3697 = vld [vmem:[%s3679 + $0x88] sm:$0xff]
    %v3698 = vld [vmem:[%s3679 + $0x90] sm:$0xff]
    %v3699 = vld [vmem:[%s3679 + $0x98] sm:$0xff]
    %v3700 = vld [vmem:[%s3679 + $0xa0] sm:$0xff]
    %v3701 = vld [vmem:[%s3679 + $0xa8] sm:$0xff]
    %v3702 = vld [vmem:[%s3679 + $0xb0] sm:$0xff]
    %v3703 = vld [vmem:[%s3679 + $0xb8] sm:$0xff]
    %v3704 = vld [vmem:[%s3679 + $0xc0] sm:$0xff]
    %v3705 = vld [vmem:[%s3679 + $0xc8] sm:$0xff]
    %v3706 = vld [vmem:[%s3679 + $0xd0] sm:$0xff]
    %v3707 = vld [vmem:[%s3679 + $0xd8] sm:$0xff]
    %v3708 = vld [vmem:[%s3679 + $0xe0] sm:$0xff]
    %v3709 = vld [vmem:[%s3679 + $0xe8] sm:$0xff]
    %v3710 = vld [vmem:[%s3679 + $0xf0] sm:$0xff]
    %v3711 = vld [vmem:[%s3679 + $0xf8] sm:$0xff]
    %v3712 = vld [vmem:[%s3679 + $0x100] sm:$0xff]
    %v3713 = vld [vmem:[%s3679 + $0x108] sm:$0xff]
    %v3714 = vld [vmem:[%s3679 + $0x110] sm:$0xff]
    %v3715 = vld [vmem:[%s3679 + $0x118] sm:$0xff]
    %v3716 = vld [vmem:[%s3679 + $0x120] sm:$0xff]
    %v3717 = vld [vmem:[%s3679 + $0x128] sm:$0xff]
    %v3718 = vld [vmem:[%s3679 + $0x130] sm:$0xff]
    %v3719 = vld [vmem:[%s3679 + $0x138] sm:$0xff]
    %v3720 = vld [vmem:[%s3679 + $0x140] sm:$0xff]
    %v3721 = vld [vmem:[%s3679 + $0x148] sm:$0xff]
    %v3722 = vld [vmem:[%s3679 + $0x150] sm:$0xff]
    %v3723 = vld [vmem:[%s3679 + $0x158] sm:$0xff]
    %v3724 = vld [vmem:[%s3679 + $0x160] sm:$0xff]
    %v3725 = vld [vmem:[%s3679 + $0x168] sm:$0xff]
    %v3726 = vld [vmem:[%s3679 + $0x170] sm:$0xff]
    %v3727 = vld [vmem:[%s3679 + $0x178] sm:$0xff]
    %v3728 = vld [vmem:[%s3679 + $0x180] sm:$0xff]
    %v3729 = vld [vmem:[%s3679 + $0x188] sm:$0xff]
    %v3730 = vld [vmem:[%s3679 + $0x190] sm:$0xff]
    %v3731 = vld [vmem:[%s3679 + $0x198] sm:$0xff]
    %v3732 = vld [vmem:[%s3679 + $0x1a0] sm:$0xff]
    %v3733 = vld [vmem:[%s3679 + $0x1a8] sm:$0xff]
    %v3734 = vld [vmem:[%s3679 + $0x1b0] sm:$0xff]
    %v3735 = vld [vmem:[%s3679 + $0x1b8] sm:$0xff]
    %v3736 = vld [vmem:[%s3679 + $0x1c0] sm:$0xff]
    %v3737 = vld [vmem:[%s3679 + $0x1c8] sm:$0xff]
    %v3738 = vld [vmem:[%s3679 + $0x1d0] sm:$0xff]
    %v3739 = vld [vmem:[%s3679 + $0x1d8] sm:$0xff]
    %v3740 = vld [vmem:[%s3679 + $0x1e0] sm:$0xff]
    %v3741 = vld [vmem:[%s3679 + $0x1e8] sm:$0xff]
    %v3742 = vld [vmem:[%s3679 + $0x1f0] sm:$0xff]
    %v3743 = vld [vmem:[%s3679 + $0x1f8] sm:$0xff]
    %3744 = vmatprep.subr.mxu0 0.0
    %3745 = vmatpush1.msra.mxu0 %v3695
    %3746 = vmatprep.subr.mxu0 0.0
    %3747 = vmatpush1.msra.mxu0 %v3694
    %3748 = vmatprep.subr.mxu0 0.0
    %3749 = vmatpush1.msra.mxu0 %v3693
    %3750 = vmatprep.subr.mxu0 0.0
    %3751 = vmatpush1.msra.mxu0 %v3692
    %3752 = vmatprep.subr.mxu0 0.0
    %3753 = vmatpush1.msra.mxu0 %v3691
    %3754 = vmatprep.subr.mxu0 0.0
    %3755 = vmatpush1.msra.mxu0 %v3690
    %3756 = vmatprep.subr.mxu0 0.0
    %3757 = vmatpush1.msra.mxu0 %v3689
    %3758 = vmatprep.subr.mxu0 0.0
    %3759 = vmatpush1.msra.mxu0 %v3688
    %3760 = vmatprep.subr.mxu0 0.0
    %3761 = vmatpush1.msra.mxu0 %v3687
    %3762 = vmatprep.subr.mxu0 0.0
    %3763 = vmatpush1.msra.mxu0 %v3686
    %3764 = vmatprep.subr.mxu0 0.0
    %3765 = vmatpush1.msra.mxu0 %v3685
    %3766 = vmatprep.subr.mxu0 0.0
    %3767 = vmatpush1.msra.mxu0 %v3684
    %3768 = vmatprep.subr.mxu0 0.0
    %3769 = vmatpush1.msra.mxu0 %v3683
    %3770 = vmatprep.subr.mxu0 0.0
    %3771 = vmatpush1.msra.mxu0 %v3682
    %3772 = vmatprep.subr.mxu0 0.0
    %3773 = vmatpush1.msra.mxu0 %v3681
    %3774 = vmatprep.subr.mxu0 0.0
    %3775 = vmatpush1.msra.mxu0 %v3680
    %3776 = vmatprep.subr.mxu0 0.0
    %3777 = vmatpush2.msra.mxu0 %v3711
    %3778 = vmatprep.subr.mxu0 0.0
    %3779 = vmatpush2.msra.mxu0 %v3710
    %3780 = vmatprep.subr.mxu0 0.0
    %3781 = vmatpush2.msra.mxu0 %v3709
    %3782 = vmatprep.subr.mxu0 0.0
    %3783 = vmatpush2.msra.mxu0 %v3708
    %3784 = vmatprep.subr.mxu0 0.0
    %3785 = vmatpush2.msra.mxu0 %v3707
    %3786 = vmatprep.subr.mxu0 0.0
    %3787 = vmatpush2.msra.mxu0 %v3706
    %3788 = vmatprep.subr.mxu0 0.0
    %3789 = vmatpush2.msra.mxu0 %v3705
    %3790 = vmatprep.subr.mxu0 0.0
    %3791 = vmatpush2.msra.mxu0 %v3704
    %3792 = vmatprep.subr.mxu0 0.0
    %3793 = vmatpush2.msra.mxu0 %v3703
    %3794 = vmatprep.subr.mxu0 0.0
    %3795 = vmatpush2.msra.mxu0 %v3702
    %3796 = vmatprep.subr.mxu0 0.0
    %3797 = vmatpush2.msra.mxu0 %v3701
    %3798 = vmatprep.subr.mxu0 0.0
    %3799 = vmatpush2.msra.mxu0 %v3700
    %3800 = vmatprep.subr.mxu0 0.0
    %3801 = vmatpush2.msra.mxu0 %v3699
    %3802 = vmatprep.subr.mxu0 0.0
    %3803 = vmatpush2.msra.mxu0 %v3698
    %3804 = vmatprep.subr.mxu0 0.0
    %3805 = vmatpush2.msra.mxu0 %v3697
    %3806 = vmatprep.subr.mxu0 0.0
    %3807 = vmatpush2.msra.mxu0 %v3696
    %3808 = vmatprep.mubr.f32.mxu0 %v1068
    %3809 = vmatmul.mubr.f32.gmra.mxu0 %v1068
    %v3810 = vpop.f32.mrf.mxu0
    %v3811 = vadd.f32 0.0, %v3810
    %v3812 = vpop.f32.mrf.mxu0
    %3813 = vmatprep.mubr.f32.mxu0 %v1068
    %3814 = vmatmul.mubr.f32.gmra.mxu0 %v1068
    %v3815 = vpop.f32.mrf.mxu0
    %v3816 = vadd.f32 0.0, %v3815
    %v3817 = vpop.f32.mrf.mxu0
    %3818 = vmatprep.mubr.f32.mxu0 %v3583
    %3819 = vmatmul.mubr.f32.gmra.mxu0 %v2921
    %v3820 = vpop.f32.mrf.mxu0
    %v3821 = vadd.f32 0.0, %v3820
    %v3822 = vpop.f32.mrf.mxu0
    %3823 = vmatprep.mubr.f32.mxu0 %v3592
    %3824 = vmatmul.mubr.f32.gmra.mxu0 %v2938
    %v3825 = vpop.f32.mrf.mxu0
    %v3826 = vadd.f32 0.0, %v3825
    %v3827 = vpop.f32.mrf.mxu0
    %3828 = vmatprep.mubr.f32.mxu0 %v3593
    %3829 = vmatmul.mubr.f32.gmra.mxu0 %v2955
    %v3830 = vpop.f32.mrf.mxu0
    %v3831 = vadd.f32 0.0, %v3830
    %v3832 = vpop.f32.mrf.mxu0
    %3833 = vmatprep.mubr.f32.mxu0 %v3602
    %3834 = vmatmul.mubr.f32.gmra.mxu0 %v2972
    %v3835 = vpop.f32.mrf.mxu0
    %v3836 = vadd.f32 0.0, %v3835
    %v3837 = vpop.f32.mrf.mxu0
    %3838 = vmatprep.mubr.f32.mxu0 %v3603
    %3839 = vmatmul.mubr.f32.gmra.mxu0 %v2989
    %v3840 = vpop.f32.mrf.mxu0
    %v3841 = vadd.f32 0.0, %v3840
    %v3842 = vpop.f32.mrf.mxu0
    %3843 = vmatprep.mubr.f32.mxu0 %v3612
    %3844 = vmatmul.mubr.f32.gmra.mxu0 %v3006
    %v3845 = vpop.f32.mrf.mxu0
    %v3846 = vadd.f32 0.0, %v3845
    %v3847 = vpop.f32.mrf.mxu0
    %3848 = vmatprep.mubr.f32.mxu0 %v3613
    %3849 = vmatmul.mubr.f32.gmra.mxu0 %v3023
    %v3850 = vpop.f32.mrf.mxu0
    %v3851 = vadd.f32 0.0, %v3850
    %v3852 = vpop.f32.mrf.mxu0
    %3853 = vmatprep.mubr.f32.mxu0 %v3622
    %3854 = vmatmul.mubr.f32.gmra.mxu0 %v3040
    %v3855 = vpop.f32.mrf.mxu0
    %v3856 = vadd.f32 0.0, %v3855
    %v3857 = vpop.f32.mrf.mxu0
    %3858 = vmatprep.mubr.f32.mxu0 %v3623
    %3859 = vmatmul.mubr.f32.gmra.mxu0 %v3057
    %v3860 = vpop.f32.mrf.mxu0
    %v3861 = vadd.f32 0.0, %v3860
    %v3862 = vpop.f32.mrf.mxu0
    %3863 = vmatprep.mubr.f32.mxu0 %v3632
    %3864 = vmatmul.mubr.f32.gmra.mxu0 %v3074
    %v3865 = vpop.f32.mrf.mxu0
    %v3866 = vadd.f32 0.0, %v3865
    %v3867 = vpop.f32.mrf.mxu0
    %3868 = vmatprep.mubr.f32.mxu0 %v3633
    %3869 = vmatmul.mubr.f32.gmra.mxu0 %v3091
    %v3870 = vpop.f32.mrf.mxu0
    %v3871 = vadd.f32 0.0, %v3870
    %v3872 = vpop.f32.mrf.mxu0
    %3873 = vmatprep.mubr.f32.mxu0 %v3642
    %3874 = vmatmul.mubr.f32.gmra.mxu0 %v3108
    %v3875 = vpop.f32.mrf.mxu0
    %v3876 = vadd.f32 0.0, %v3875
    %v3877 = vpop.f32.mrf.mxu0
    %3878 = vmatprep.mubr.f32.mxu0 %v3643
    %3879 = vmatmul.mubr.f32.gmra.mxu0 %v3125
    %v3880 = vpop.f32.mrf.mxu0
    %v3881 = vadd.f32 0.0, %v3880
    %v3882 = vpop.f32.mrf.mxu0
    %3883 = vmatprep.mubr.f32.mxu0 %v3652
    %3884 = vmatmul.mubr.f32.gmra.mxu0 %v3142
    %v3885 = vpop.f32.mrf.mxu0
    %v3886 = vadd.f32 0.0, %v3885
    %v3887 = vpop.f32.mrf.mxu0
    %3888 = vdwg.mxu0
    %3889 = vmatprep.subr.mxu0 0.0
    %3890 = vmatpush1.msra.mxu0 %v3727
    %3891 = vmatprep.subr.mxu0 0.0
    %3892 = vmatpush1.msra.mxu0 %v3726
    %3893 = vmatprep.subr.mxu0 0.0
    %3894 = vmatpush1.msra.mxu0 %v3725
    %3895 = vmatprep.subr.mxu0 0.0
    %3896 = vmatpush1.msra.mxu0 %v3724
    %3897 = vmatprep.subr.mxu0 0.0
    %3898 = vmatpush1.msra.mxu0 %v3723
    %3899 = vmatprep.subr.mxu0 0.0
    %3900 = vmatpush1.msra.mxu0 %v3722
    %3901 = vmatprep.subr.mxu0 0.0
    %3902 = vmatpush1.msra.mxu0 %v3721
    %3903 = vmatprep.subr.mxu0 0.0
    %3904 = vmatpush1.msra.mxu0 %v3720
    %3905 = vmatprep.subr.mxu0 0.0
    %3906 = vmatpush1.msra.mxu0 %v3719
    %3907 = vmatprep.subr.mxu0 0.0
    %3908 = vmatpush1.msra.mxu0 %v3718
    %3909 = vmatprep.subr.mxu0 0.0
    %3910 = vmatpush1.msra.mxu0 %v3717
    %3911 = vmatprep.subr.mxu0 0.0
    %3912 = vmatpush1.msra.mxu0 %v3716
    %3913 = vmatprep.subr.mxu0 0.0
    %3914 = vmatpush1.msra.mxu0 %v3715
    %3915 = vmatprep.subr.mxu0 0.0
    %3916 = vmatpush1.msra.mxu0 %v3714
    %3917 = vmatprep.subr.mxu0 0.0
    %3918 = vmatpush1.msra.mxu0 %v3713
    %3919 = vmatprep.subr.mxu0 0.0
    %3920 = vmatpush1.msra.mxu0 %v3712
    %3921 = vmatprep.subr.mxu0 0.0
    %3922 = vmatpush2.msra.mxu0 %v3743
    %3923 = vmatprep.subr.mxu0 0.0
    %3924 = vmatpush2.msra.mxu0 %v3742
    %3925 = vmatprep.subr.mxu0 0.0
    %3926 = vmatpush2.msra.mxu0 %v3741
    %3927 = vmatprep.subr.mxu0 0.0
    %3928 = vmatpush2.msra.mxu0 %v3740
    %3929 = vmatprep.subr.mxu0 0.0
    %3930 = vmatpush2.msra.mxu0 %v3739
    %3931 = vmatprep.subr.mxu0 0.0
    %3932 = vmatpush2.msra.mxu0 %v3738
    %3933 = vmatprep.subr.mxu0 0.0
    %3934 = vmatpush2.msra.mxu0 %v3737
    %3935 = vmatprep.subr.mxu0 0.0
    %3936 = vmatpush2.msra.mxu0 %v3736
    %3937 = vmatprep.subr.mxu0 0.0
    %3938 = vmatpush2.msra.mxu0 %v3735
    %3939 = vmatprep.subr.mxu0 0.0
    %3940 = vmatpush2.msra.mxu0 %v3734
    %3941 = vmatprep.subr.mxu0 0.0
    %3942 = vmatpush2.msra.mxu0 %v3733
    %3943 = vmatprep.subr.mxu0 0.0
    %3944 = vmatpush2.msra.mxu0 %v3732
    %3945 = vmatprep.subr.mxu0 0.0
    %3946 = vmatpush2.msra.mxu0 %v3731
    %3947 = vmatprep.subr.mxu0 0.0
    %3948 = vmatpush2.msra.mxu0 %v3730
    %3949 = vmatprep.subr.mxu0 0.0
    %3950 = vmatpush2.msra.mxu0 %v3729
    %3951 = vmatprep.subr.mxu0 0.0
    %3952 = vmatpush2.msra.mxu0 %v3728
    %3953 = vmatprep.mubr.f32.mxu0 %v3583
    %3954 = vmatmul.mubr.f32.gmra.mxu0 %v2921
    %v3955 = vpop.f32.mrf.mxu0
    %v3956 = vadd.f32 %v3811, %v3955
    %v3957 = vpop.f32.mrf.mxu0
    %3958 = vmatprep.mubr.f32.mxu0 %v3592
    %3959 = vmatmul.mubr.f32.gmra.mxu0 %v2938
    %v3960 = vpop.f32.mrf.mxu0
    %v3961 = vadd.f32 %v3816, %v3960
    %v3962 = vpop.f32.mrf.mxu0
    %3963 = vmatprep.mubr.f32.mxu0 %v3593
    %3964 = vmatmul.mubr.f32.gmra.mxu0 %v2955
    %v3965 = vpop.f32.mrf.mxu0
    %v3966 = vadd.f32 %v3821, %v3965
    %v3967 = vpop.f32.mrf.mxu0
    %3968 = vmatprep.mubr.f32.mxu0 %v3602
    %3969 = vmatmul.mubr.f32.gmra.mxu0 %v2972
    %v3970 = vpop.f32.mrf.mxu0
    %v3971 = vadd.f32 %v3826, %v3970
    %v3972 = vpop.f32.mrf.mxu0
    %3973 = vmatprep.mubr.f32.mxu0 %v3603
    %3974 = vmatmul.mubr.f32.gmra.mxu0 %v2989
    %v3975 = vpop.f32.mrf.mxu0
    %v3976 = vadd.f32 %v3831, %v3975
    %v3977 = vpop.f32.mrf.mxu0
    %3978 = vmatprep.mubr.f32.mxu0 %v3612
    %3979 = vmatmul.mubr.f32.gmra.mxu0 %v3006
    %v3980 = vpop.f32.mrf.mxu0
    %v3981 = vadd.f32 %v3836, %v3980
    %v3982 = vpop.f32.mrf.mxu0
    %3983 = vmatprep.mubr.f32.mxu0 %v3613
    %3984 = vmatmul.mubr.f32.gmra.mxu0 %v3023
    %v3985 = vpop.f32.mrf.mxu0
    %v3986 = vadd.f32 %v3841, %v3985
    %v3987 = vpop.f32.mrf.mxu0
    %3988 = vmatprep.mubr.f32.mxu0 %v3622
    %3989 = vmatmul.mubr.f32.gmra.mxu0 %v3040
    %v3990 = vpop.f32.mrf.mxu0
    %v3991 = vadd.f32 %v3846, %v3990
    %v3992 = vpop.f32.mrf.mxu0
    %3993 = vmatprep.mubr.f32.mxu0 %v3623
    %3994 = vmatmul.mubr.f32.gmra.mxu0 %v3057
    %v3995 = vpop.f32.mrf.mxu0
    %v3996 = vadd.f32 %v3851, %v3995
    %v3997 = vpop.f32.mrf.mxu0
    %3998 = vmatprep.mubr.f32.mxu0 %v3632
    %3999 = vmatmul.mubr.f32.gmra.mxu0 %v3074
    %v4000 = vpop.f32.mrf.mxu0
    %v4001 = vadd.f32 %v3856, %v4000
    %v4002 = vpop.f32.mrf.mxu0
    %4003 = vmatprep.mubr.f32.mxu0 %v3633
    %4004 = vmatmul.mubr.f32.gmra.mxu0 %v3091
    %v4005 = vpop.f32.mrf.mxu0
    %v4006 = vadd.f32 %v3861, %v4005
    %v4007 = vpop.f32.mrf.mxu0
    %4008 = vmatprep.mubr.f32.mxu0 %v3642
    %4009 = vmatmul.mubr.f32.gmra.mxu0 %v3108
    %v4010 = vpop.f32.mrf.mxu0
    %v4011 = vadd.f32 %v3866, %v4010
    %v4012 = vpop.f32.mrf.mxu0
    %4013 = vmatprep.mubr.f32.mxu0 %v3643
    %4014 = vmatmul.mubr.f32.gmra.mxu0 %v3125
    %v4015 = vpop.f32.mrf.mxu0
    %v4016 = vadd.f32 %v3871, %v4015
    %v4017 = vpop.f32.mrf.mxu0
    %4018 = vmatprep.mubr.f32.mxu0 %v3652
    %4019 = vmatmul.mubr.f32.gmra.mxu0 %v3142
    %v4020 = vpop.f32.mrf.mxu0
    %v4021 = vadd.f32 %v3876, %v4020
    %v4022 = vpop.f32.mrf.mxu0
    %4023 = vmatprep.mubr.f32.mxu0 %v3667
    %4024 = vmatmul.mubr.f32.gmra.mxu0 %v3209
    %v4025 = vpop.f32.mrf.mxu0
    %v4026 = vadd.f32 %v3881, %v4025
    %v4027 = vpop.f32.mrf.mxu0
    %4028 = vmatprep.mubr.f32.mxu0 %v3676
    %4029 = vmatmul.mubr.f32.gmra.mxu0 %v3226
    %v4030 = vpop.f32.mrf.mxu0
    %v4031 = vadd.f32 %v3886, %v4030
    %v4032 = vpop.f32.mrf.mxu0
    %4033 = vdwg.mxu0
    %s4034 = scalar_lea.vmem [#allocation4], 1024
    %v4035 = vld [vmem:[%s4034] sm:$0xff]
    %v4036 = vld [vmem:[%s4034 + $0x8] sm:$0xff]
    %v4037 = vld [vmem:[%s4034 + $0x10] sm:$0xff]
    %v4038 = vld [vmem:[%s4034 + $0x18] sm:$0xff]
    %v4039 = vld [vmem:[%s4034 + $0x20] sm:$0xff]
    %v4040 = vld [vmem:[%s4034 + $0x28] sm:$0xff]
    %v4041 = vld [vmem:[%s4034 + $0x30] sm:$0xff]
    %v4042 = vld [vmem:[%s4034 + $0x38] sm:$0xff]
    %v4043 = vld [vmem:[%s4034 + $0x40] sm:$0xff]
    %v4044 = vld [vmem:[%s4034 + $0x48] sm:$0xff]
    %v4045 = vld [vmem:[%s4034 + $0x50] sm:$0xff]
    %v4046 = vld [vmem:[%s4034 + $0x58] sm:$0xff]
    %v4047 = vld [vmem:[%s4034 + $0x60] sm:$0xff]
    %v4048 = vld [vmem:[%s4034 + $0x68] sm:$0xff]
    %v4049 = vld [vmem:[%s4034 + $0x70] sm:$0xff]
    %v4050 = vld [vmem:[%s4034 + $0x78] sm:$0xff]
    %v4051 = vld [vmem:[%s4034 + $0x80] sm:$0xff]
    %v4052 = vld [vmem:[%s4034 + $0x88] sm:$0xff]
    %v4053 = vld [vmem:[%s4034 + $0x90] sm:$0xff]
    %v4054 = vld [vmem:[%s4034 + $0x98] sm:$0xff]
    %v4055 = vld [vmem:[%s4034 + $0xa0] sm:$0xff]
    %v4056 = vld [vmem:[%s4034 + $0xa8] sm:$0xff]
    %v4057 = vld [vmem:[%s4034 + $0xb0] sm:$0xff]
    %v4058 = vld [vmem:[%s4034 + $0xb8] sm:$0xff]
    %v4059 = vld [vmem:[%s4034 + $0xc0] sm:$0xff]
    %v4060 = vld [vmem:[%s4034 + $0xc8] sm:$0xff]
    %v4061 = vld [vmem:[%s4034 + $0xd0] sm:$0xff]
    %v4062 = vld [vmem:[%s4034 + $0xd8] sm:$0xff]
    %v4063 = vld [vmem:[%s4034 + $0xe0] sm:$0xff]
    %v4064 = vld [vmem:[%s4034 + $0xe8] sm:$0xff]
    %v4065 = vld [vmem:[%s4034 + $0xf0] sm:$0xff]
    %v4066 = vld [vmem:[%s4034 + $0xf8] sm:$0xff]
    %v4067 = vld [vmem:[%s4034 + $0x100] sm:$0xff]
    %v4068 = vld [vmem:[%s4034 + $0x108] sm:$0xff]
    %v4069 = vld [vmem:[%s4034 + $0x110] sm:$0xff]
    %v4070 = vld [vmem:[%s4034 + $0x118] sm:$0xff]
    %v4071 = vld [vmem:[%s4034 + $0x120] sm:$0xff]
    %v4072 = vld [vmem:[%s4034 + $0x128] sm:$0xff]
    %v4073 = vld [vmem:[%s4034 + $0x130] sm:$0xff]
    %v4074 = vld [vmem:[%s4034 + $0x138] sm:$0xff]
    %v4075 = vld [vmem:[%s4034 + $0x140] sm:$0xff]
    %v4076 = vld [vmem:[%s4034 + $0x148] sm:$0xff]
    %v4077 = vld [vmem:[%s4034 + $0x150] sm:$0xff]
    %v4078 = vld [vmem:[%s4034 + $0x158] sm:$0xff]
    %v4079 = vld [vmem:[%s4034 + $0x160] sm:$0xff]
    %v4080 = vld [vmem:[%s4034 + $0x168] sm:$0xff]
    %v4081 = vld [vmem:[%s4034 + $0x170] sm:$0xff]
    %v4082 = vld [vmem:[%s4034 + $0x178] sm:$0xff]
    %v4083 = vld [vmem:[%s4034 + $0x180] sm:$0xff]
    %v4084 = vld [vmem:[%s4034 + $0x188] sm:$0xff]
    %v4085 = vld [vmem:[%s4034 + $0x190] sm:$0xff]
    %v4086 = vld [vmem:[%s4034 + $0x198] sm:$0xff]
    %v4087 = vld [vmem:[%s4034 + $0x1a0] sm:$0xff]
    %v4088 = vld [vmem:[%s4034 + $0x1a8] sm:$0xff]
    %v4089 = vld [vmem:[%s4034 + $0x1b0] sm:$0xff]
    %v4090 = vld [vmem:[%s4034 + $0x1b8] sm:$0xff]
    %v4091 = vld [vmem:[%s4034 + $0x1c0] sm:$0xff]
    %v4092 = vld [vmem:[%s4034 + $0x1c8] sm:$0xff]
    %v4093 = vld [vmem:[%s4034 + $0x1d0] sm:$0xff]
    %v4094 = vld [vmem:[%s4034 + $0x1d8] sm:$0xff]
    %v4095 = vld [vmem:[%s4034 + $0x1e0] sm:$0xff]
    %v4096 = vld [vmem:[%s4034 + $0x1e8] sm:$0xff]
    %v4097 = vld [vmem:[%s4034 + $0x1f0] sm:$0xff]
    %v4098 = vld [vmem:[%s4034 + $0x1f8] sm:$0xff]
    %4099 = vmatprep.subr.mxu0 0.0
    %4100 = vmatpush1.msra.mxu0 %v4050
    %4101 = vmatprep.subr.mxu0 0.0
    %4102 = vmatpush1.msra.mxu0 %v4049
    %4103 = vmatprep.subr.mxu0 0.0
    %4104 = vmatpush1.msra.mxu0 %v4048
    %4105 = vmatprep.subr.mxu0 0.0
    %4106 = vmatpush1.msra.mxu0 %v4047
    %4107 = vmatprep.subr.mxu0 0.0
    %4108 = vmatpush1.msra.mxu0 %v4046
    %4109 = vmatprep.subr.mxu0 0.0
    %4110 = vmatpush1.msra.mxu0 %v4045
    %4111 = vmatprep.subr.mxu0 0.0
    %4112 = vmatpush1.msra.mxu0 %v4044
    %4113 = vmatprep.subr.mxu0 0.0
    %4114 = vmatpush1.msra.mxu0 %v4043
    %4115 = vmatprep.subr.mxu0 0.0
    %4116 = vmatpush1.msra.mxu0 %v4042
    %4117 = vmatprep.subr.mxu0 0.0
    %4118 = vmatpush1.msra.mxu0 %v4041
    %4119 = vmatprep.subr.mxu0 0.0
    %4120 = vmatpush1.msra.mxu0 %v4040
    %4121 = vmatprep.subr.mxu0 0.0
    %4122 = vmatpush1.msra.mxu0 %v4039
    %4123 = vmatprep.subr.mxu0 0.0
    %4124 = vmatpush1.msra.mxu0 %v4038
    %4125 = vmatprep.subr.mxu0 0.0
    %4126 = vmatpush1.msra.mxu0 %v4037
    %4127 = vmatprep.subr.mxu0 0.0
    %4128 = vmatpush1.msra.mxu0 %v4036
    %4129 = vmatprep.subr.mxu0 0.0
    %4130 = vmatpush1.msra.mxu0 %v4035
    %4131 = vmatprep.subr.mxu0 0.0
    %4132 = vmatpush2.msra.mxu0 %v4066
    %4133 = vmatprep.subr.mxu0 0.0
    %4134 = vmatpush2.msra.mxu0 %v4065
    %4135 = vmatprep.subr.mxu0 0.0
    %4136 = vmatpush2.msra.mxu0 %v4064
    %4137 = vmatprep.subr.mxu0 0.0
    %4138 = vmatpush2.msra.mxu0 %v4063
    %4139 = vmatprep.subr.mxu0 0.0
    %4140 = vmatpush2.msra.mxu0 %v4062
    %4141 = vmatprep.subr.mxu0 0.0
    %4142 = vmatpush2.msra.mxu0 %v4061
    %4143 = vmatprep.subr.mxu0 0.0
    %4144 = vmatpush2.msra.mxu0 %v4060
    %4145 = vmatprep.subr.mxu0 0.0
    %4146 = vmatpush2.msra.mxu0 %v4059
    %4147 = vmatprep.subr.mxu0 0.0
    %4148 = vmatpush2.msra.mxu0 %v4058
    %4149 = vmatprep.subr.mxu0 0.0
    %4150 = vmatpush2.msra.mxu0 %v4057
    %4151 = vmatprep.subr.mxu0 0.0
    %4152 = vmatpush2.msra.mxu0 %v4056
    %4153 = vmatprep.subr.mxu0 0.0
    %4154 = vmatpush2.msra.mxu0 %v4055
    %4155 = vmatprep.subr.mxu0 0.0
    %4156 = vmatpush2.msra.mxu0 %v4054
    %4157 = vmatprep.subr.mxu0 0.0
    %4158 = vmatpush2.msra.mxu0 %v4053
    %4159 = vmatprep.subr.mxu0 0.0
    %4160 = vmatpush2.msra.mxu0 %v4052
    %4161 = vmatprep.subr.mxu0 0.0
    %4162 = vmatpush2.msra.mxu0 %v4051
    %4163 = vmatprep.mubr.f32.mxu0 %v2921
    %4164 = vmatmul.mubr.f32.gmra.mxu0 %v2669
    %v4165 = vpop.f32.mrf.mxu0
    %v4166 = vadd.f32 0.0, %v4165
    %v4167 = vpop.f32.mrf.mxu0
    %4168 = vmatprep.mubr.f32.mxu0 %v2938
    %4169 = vmatmul.mubr.f32.gmra.mxu0 %v2686
    %v4170 = vpop.f32.mrf.mxu0
    %v4171 = vadd.f32 0.0, %v4170
    %v4172 = vpop.f32.mrf.mxu0
    %4173 = vmatprep.mubr.f32.mxu0 %v2955
    %4174 = vmatmul.mubr.f32.gmra.mxu0 %v2703
    %v4175 = vpop.f32.mrf.mxu0
    %v4176 = vadd.f32 0.0, %v4175
    %v4177 = vpop.f32.mrf.mxu0
    %4178 = vmatprep.mubr.f32.mxu0 %v2972
    %4179 = vmatmul.mubr.f32.gmra.mxu0 %v2720
    %v4180 = vpop.f32.mrf.mxu0
    %v4181 = vadd.f32 0.0, %v4180
    %v4182 = vpop.f32.mrf.mxu0
    %4183 = vmatprep.mubr.f32.mxu0 %v2989
    %4184 = vmatmul.mubr.f32.gmra.mxu0 %v2737
    %v4185 = vpop.f32.mrf.mxu0
    %v4186 = vadd.f32 0.0, %v4185
    %v4187 = vpop.f32.mrf.mxu0
    %4188 = vmatprep.mubr.f32.mxu0 %v3006
    %4189 = vmatmul.mubr.f32.gmra.mxu0 %v2754
    %v4190 = vpop.f32.mrf.mxu0
    %v4191 = vadd.f32 0.0, %v4190
    %v4192 = vpop.f32.mrf.mxu0
    %4193 = vmatprep.mubr.f32.mxu0 %v3023
    %4194 = vmatmul.mubr.f32.gmra.mxu0 %v2771
    %v4195 = vpop.f32.mrf.mxu0
    %v4196 = vadd.f32 0.0, %v4195
    %v4197 = vpop.f32.mrf.mxu0
    %4198 = vmatprep.mubr.f32.mxu0 %v3040
    %4199 = vmatmul.mubr.f32.gmra.mxu0 %v2788
    %v4200 = vpop.f32.mrf.mxu0
    %v4201 = vadd.f32 0.0, %v4200
    %v4202 = vpop.f32.mrf.mxu0
    %4203 = vmatprep.mubr.f32.mxu0 %v3057
    %4204 = vmatmul.mubr.f32.gmra.mxu0 %v2805
    %v4205 = vpop.f32.mrf.mxu0
    %v4206 = vadd.f32 0.0, %v4205
    %v4207 = vpop.f32.mrf.mxu0
    %4208 = vmatprep.mubr.f32.mxu0 %v3074
    %4209 = vmatmul.mubr.f32.gmra.mxu0 %v2822
    %v4210 = vpop.f32.mrf.mxu0
    %v4211 = vadd.f32 0.0, %v4210
    %v4212 = vpop.f32.mrf.mxu0
    %4213 = vmatprep.mubr.f32.mxu0 %v3091
    %4214 = vmatmul.mubr.f32.gmra.mxu0 %v2839
    %v4215 = vpop.f32.mrf.mxu0
    %v4216 = vadd.f32 0.0, %v4215
    %v4217 = vpop.f32.mrf.mxu0
    %4218 = vmatprep.mubr.f32.mxu0 %v3108
    %4219 = vmatmul.mubr.f32.gmra.mxu0 %v2856
    %v4220 = vpop.f32.mrf.mxu0
    %v4221 = vadd.f32 0.0, %v4220
    %v4222 = vpop.f32.mrf.mxu0
    %4223 = vmatprep.mubr.f32.mxu0 %v3125
    %4224 = vmatmul.mubr.f32.gmra.mxu0 %v2873
    %v4225 = vpop.f32.mrf.mxu0
    %v4226 = vadd.f32 0.0, %v4225
    %v4227 = vpop.f32.mrf.mxu0
    %4228 = vmatprep.mubr.f32.mxu0 %v3142
    %4229 = vmatmul.mubr.f32.gmra.mxu0 %v2890
    %v4230 = vpop.f32.mrf.mxu0
    %v4231 = vadd.f32 0.0, %v4230
    %v4232 = vpop.f32.mrf.mxu0
    %4233 = vmatprep.mubr.f32.mxu0 %v3209
    %4234 = vmatmul.mubr.f32.gmra.mxu0 %v3173
    %v4235 = vpop.f32.mrf.mxu0
    %v4236 = vadd.f32 0.0, %v4235
    %v4237 = vpop.f32.mrf.mxu0
    %4238 = vmatprep.mubr.f32.mxu0 %v3226
    %4239 = vmatmul.mubr.f32.gmra.mxu0 %v3190
    %v4240 = vpop.f32.mrf.mxu0
    %v4241 = vadd.f32 0.0, %v4240
    %v4242 = vpop.f32.mrf.mxu0
    %4243 = vdwg.mxu0
    %4244 = vmatprep.subr.mxu0 0.0
    %4245 = vmatpush1.msra.mxu0 %v4082
    %4246 = vmatprep.subr.mxu0 0.0
    %4247 = vmatpush1.msra.mxu0 %v4081
    %4248 = vmatprep.subr.mxu0 0.0
    %4249 = vmatpush1.msra.mxu0 %v4080
    %4250 = vmatprep.subr.mxu0 0.0
    %4251 = vmatpush1.msra.mxu0 %v4079
    %4252 = vmatprep.subr.mxu0 0.0
    %4253 = vmatpush1.msra.mxu0 %v4078
    %4254 = vmatprep.subr.mxu0 0.0
    %4255 = vmatpush1.msra.mxu0 %v4077
    %4256 = vmatprep.subr.mxu0 0.0
    %4257 = vmatpush1.msra.mxu0 %v4076
    %4258 = vmatprep.subr.mxu0 0.0
    %4259 = vmatpush1.msra.mxu0 %v4075
    %4260 = vmatprep.subr.mxu0 0.0
    %4261 = vmatpush1.msra.mxu0 %v4074
    %4262 = vmatprep.subr.mxu0 0.0
    %4263 = vmatpush1.msra.mxu0 %v4073
    %4264 = vmatprep.subr.mxu0 0.0
    %4265 = vmatpush1.msra.mxu0 %v4072
    %4266 = vmatprep.subr.mxu0 0.0
    %4267 = vmatpush1.msra.mxu0 %v4071
    %4268 = vmatprep.subr.mxu0 0.0
    %4269 = vmatpush1.msra.mxu0 %v4070
    %4270 = vmatprep.subr.mxu0 0.0
    %4271 = vmatpush1.msra.mxu0 %v4069
    %4272 = vmatprep.subr.mxu0 0.0
    %4273 = vmatpush1.msra.mxu0 %v4068
    %4274 = vmatprep.subr.mxu0 0.0
    %4275 = vmatpush1.msra.mxu0 %v4067
    %4276 = vmatprep.subr.mxu0 0.0
    %4277 = vmatpush2.msra.mxu0 %v4098
    %4278 = vmatprep.subr.mxu0 0.0
    %4279 = vmatpush2.msra.mxu0 %v4097
    %4280 = vmatprep.subr.mxu0 0.0
    %4281 = vmatpush2.msra.mxu0 %v4096
    %4282 = vmatprep.subr.mxu0 0.0
    %4283 = vmatpush2.msra.mxu0 %v4095
    %4284 = vmatprep.subr.mxu0 0.0
    %4285 = vmatpush2.msra.mxu0 %v4094
    %4286 = vmatprep.subr.mxu0 0.0
    %4287 = vmatpush2.msra.mxu0 %v4093
    %4288 = vmatprep.subr.mxu0 0.0
    %4289 = vmatpush2.msra.mxu0 %v4092
    %4290 = vmatprep.subr.mxu0 0.0
    %4291 = vmatpush2.msra.mxu0 %v4091
    %4292 = vmatprep.subr.mxu0 0.0
    %4293 = vmatpush2.msra.mxu0 %v4090
    %4294 = vmatprep.subr.mxu0 0.0
    %4295 = vmatpush2.msra.mxu0 %v4089
    %4296 = vmatprep.subr.mxu0 0.0
    %4297 = vmatpush2.msra.mxu0 %v4088
    %4298 = vmatprep.subr.mxu0 0.0
    %4299 = vmatpush2.msra.mxu0 %v4087
    %4300 = vmatprep.subr.mxu0 0.0
    %4301 = vmatpush2.msra.mxu0 %v4086
    %4302 = vmatprep.subr.mxu0 0.0
    %4303 = vmatpush2.msra.mxu0 %v4085
    %4304 = vmatprep.subr.mxu0 0.0
    %4305 = vmatpush2.msra.mxu0 %v4084
    %4306 = vmatprep.subr.mxu0 0.0
    %4307 = vmatpush2.msra.mxu0 %v4083
    %4308 = vmatprep.mubr.f32.mxu0 %v2955
    %4309 = vmatmul.mubr.f32.gmra.mxu0 %v2703
    %v4310 = vpop.f32.mrf.mxu0
    %v4311 = vadd.f32 %v4166, %v4310
    %v4312 = vpop.f32.mrf.mxu0
    %4313 = vmatprep.mubr.f32.mxu0 %v2972
    %4314 = vmatmul.mubr.f32.gmra.mxu0 %v2720
    %v4315 = vpop.f32.mrf.mxu0
    %v4316 = vadd.f32 %v4171, %v4315
    %v4317 = vpop.f32.mrf.mxu0
    %4318 = vmatprep.mubr.f32.mxu0 %v2989
    %4319 = vmatmul.mubr.f32.gmra.mxu0 %v2737
    %v4320 = vpop.f32.mrf.mxu0
    %v4321 = vadd.f32 %v4176, %v4320
    %v4322 = vpop.f32.mrf.mxu0
    %4323 = vmatprep.mubr.f32.mxu0 %v3006
    %4324 = vmatmul.mubr.f32.gmra.mxu0 %v2754
    %v4325 = vpop.f32.mrf.mxu0
    %v4326 = vadd.f32 %v4181, %v4325
    %v4327 = vpop.f32.mrf.mxu0
    %4328 = vmatprep.mubr.f32.mxu0 %v3023
    %4329 = vmatmul.mubr.f32.gmra.mxu0 %v2771
    %v4330 = vpop.f32.mrf.mxu0
    %v4331 = vadd.f32 %v4186, %v4330
    %v4332 = vpop.f32.mrf.mxu0
    %4333 = vmatprep.mubr.f32.mxu0 %v3040
    %4334 = vmatmul.mubr.f32.gmra.mxu0 %v2788
    %v4335 = vpop.f32.mrf.mxu0
    %v4336 = vadd.f32 %v4191, %v4335
    %v4337 = vpop.f32.mrf.mxu0
    %4338 = vmatprep.mubr.f32.mxu0 %v3057
    %4339 = vmatmul.mubr.f32.gmra.mxu0 %v2805
    %v4340 = vpop.f32.mrf.mxu0
    %v4341 = vadd.f32 %v4196, %v4340
    %v4342 = vpop.f32.mrf.mxu0
    %4343 = vmatprep.mubr.f32.mxu0 %v3074
    %4344 = vmatmul.mubr.f32.gmra.mxu0 %v2822
    %v4345 = vpop.f32.mrf.mxu0
    %v4346 = vadd.f32 %v4201, %v4345
    %v4347 = vpop.f32.mrf.mxu0
    %4348 = vmatprep.mubr.f32.mxu0 %v3091
    %4349 = vmatmul.mubr.f32.gmra.mxu0 %v2839
    %v4350 = vpop.f32.mrf.mxu0
    %v4351 = vadd.f32 %v4206, %v4350
    %v4352 = vpop.f32.mrf.mxu0
    %4353 = vmatprep.mubr.f32.mxu0 %v3108
    %4354 = vmatmul.mubr.f32.gmra.mxu0 %v2856
    %v4355 = vpop.f32.mrf.mxu0
    %v4356 = vadd.f32 %v4211, %v4355
    %v4357 = vpop.f32.mrf.mxu0
    %4358 = vmatprep.mubr.f32.mxu0 %v3125
    %4359 = vmatmul.mubr.f32.gmra.mxu0 %v2873
    %v4360 = vpop.f32.mrf.mxu0
    %v4361 = vadd.f32 %v4216, %v4360
    %v4362 = vpop.f32.mrf.mxu0
    %4363 = vmatprep.mubr.f32.mxu0 %v3142
    %4364 = vmatmul.mubr.f32.gmra.mxu0 %v2890
    %v4365 = vpop.f32.mrf.mxu0
    %v4366 = vadd.f32 %v4221, %v4365
    %v4367 = vpop.f32.mrf.mxu0
    %4368 = vmatprep.mubr.f32.mxu0 %v3209
    %4369 = vmatmul.mubr.f32.gmra.mxu0 %v3173
    %v4370 = vpop.f32.mrf.mxu0
    %v4371 = vadd.f32 %v4226, %v4370
    %v4372 = vpop.f32.mrf.mxu0
    %4373 = vmatprep.mubr.f32.mxu0 %v3226
    %4374 = vmatmul.mubr.f32.gmra.mxu0 %v3190
    %v4375 = vpop.f32.mrf.mxu0
    %v4376 = vadd.f32 %v4231, %v4375
    %v4377 = vpop.f32.mrf.mxu0
    %4378 = vmatprep.mubr.f32.mxu0 %v1068
    %4379 = vmatmul.mubr.f32.gmra.mxu0 %v1068
    %v4380 = vpop.f32.mrf.mxu0
    %v4381 = vadd.f32 %v4236, %v4380
    %v4382 = vpop.f32.mrf.mxu0
    %4383 = vmatprep.mubr.f32.mxu0 %v1068
    %4384 = vmatmul.mubr.f32.gmra.mxu0 %v1068
    %v4385 = vpop.f32.mrf.mxu0
    %v4386 = vadd.f32 %v4241, %v4385
    %v4387 = vpop.f32.mrf.mxu0
    %4388 = vdwg.mxu0
    %s4389 = scalar_lea.vmem [#allocation4], 1536
    %v4390 = vld [vmem:[%s4389] sm:$0xff]
    %v4391 = vld [vmem:[%s4389 + $0x8] sm:$0xff]
    %v4392 = vld [vmem:[%s4389 + $0x10] sm:$0xff]
    %v4393 = vld [vmem:[%s4389 + $0x18] sm:$0xff]
    %v4394 = vld [vmem:[%s4389 + $0x20] sm:$0xff]
    %v4395 = vld [vmem:[%s4389 + $0x28] sm:$0xff]
    %v4396 = vld [vmem:[%s4389 + $0x30] sm:$0xff]
    %v4397 = vld [vmem:[%s4389 + $0x38] sm:$0xff]
    %v4398 = vld [vmem:[%s4389 + $0x40] sm:$0xff]
    %v4399 = vld [vmem:[%s4389 + $0x48] sm:$0xff]
    %v4400 = vld [vmem:[%s4389 + $0x50] sm:$0xff]
    %v4401 = vld [vmem:[%s4389 + $0x58] sm:$0xff]
    %v4402 = vld [vmem:[%s4389 + $0x60] sm:$0xff]
    %v4403 = vld [vmem:[%s4389 + $0x68] sm:$0xff]
    %v4404 = vld [vmem:[%s4389 + $0x70] sm:$0xff]
    %v4405 = vld [vmem:[%s4389 + $0x78] sm:$0xff]
    %v4406 = vld [vmem:[%s4389 + $0x80] sm:$0xff]
    %v4407 = vld [vmem:[%s4389 + $0x88] sm:$0xff]
    %v4408 = vld [vmem:[%s4389 + $0x90] sm:$0xff]
    %v4409 = vld [vmem:[%s4389 + $0x98] sm:$0xff]
    %v4410 = vld [vmem:[%s4389 + $0xa0] sm:$0xff]
    %v4411 = vld [vmem:[%s4389 + $0xa8] sm:$0xff]
    %v4412 = vld [vmem:[%s4389 + $0xb0] sm:$0xff]
    %v4413 = vld [vmem:[%s4389 + $0xb8] sm:$0xff]
    %v4414 = vld [vmem:[%s4389 + $0xc0] sm:$0xff]
    %v4415 = vld [vmem:[%s4389 + $0xc8] sm:$0xff]
    %v4416 = vld [vmem:[%s4389 + $0xd0] sm:$0xff]
    %v4417 = vld [vmem:[%s4389 + $0xd8] sm:$0xff]
    %v4418 = vld [vmem:[%s4389 + $0xe0] sm:$0xff]
    %v4419 = vld [vmem:[%s4389 + $0xe8] sm:$0xff]
    %v4420 = vld [vmem:[%s4389 + $0xf0] sm:$0xff]
    %v4421 = vld [vmem:[%s4389 + $0xf8] sm:$0xff]
    %v4422 = vld [vmem:[%s4389 + $0x100] sm:$0xff]
    %v4423 = vld [vmem:[%s4389 + $0x108] sm:$0xff]
    %v4424 = vld [vmem:[%s4389 + $0x110] sm:$0xff]
    %v4425 = vld [vmem:[%s4389 + $0x118] sm:$0xff]
    %v4426 = vld [vmem:[%s4389 + $0x120] sm:$0xff]
    %v4427 = vld [vmem:[%s4389 + $0x128] sm:$0xff]
    %v4428 = vld [vmem:[%s4389 + $0x130] sm:$0xff]
    %v4429 = vld [vmem:[%s4389 + $0x138] sm:$0xff]
    %v4430 = vld [vmem:[%s4389 + $0x140] sm:$0xff]
    %v4431 = vld [vmem:[%s4389 + $0x148] sm:$0xff]
    %v4432 = vld [vmem:[%s4389 + $0x150] sm:$0xff]
    %v4433 = vld [vmem:[%s4389 + $0x158] sm:$0xff]
    %v4434 = vld [vmem:[%s4389 + $0x160] sm:$0xff]
    %v4435 = vld [vmem:[%s4389 + $0x168] sm:$0xff]
    %v4436 = vld [vmem:[%s4389 + $0x170] sm:$0xff]
    %v4437 = vld [vmem:[%s4389 + $0x178] sm:$0xff]
    %v4438 = vld [vmem:[%s4389 + $0x180] sm:$0xff]
    %v4439 = vld [vmem:[%s4389 + $0x188] sm:$0xff]
    %v4440 = vld [vmem:[%s4389 + $0x190] sm:$0xff]
    %v4441 = vld [vmem:[%s4389 + $0x198] sm:$0xff]
    %v4442 = vld [vmem:[%s4389 + $0x1a0] sm:$0xff]
    %v4443 = vld [vmem:[%s4389 + $0x1a8] sm:$0xff]
    %v4444 = vld [vmem:[%s4389 + $0x1b0] sm:$0xff]
    %v4445 = vld [vmem:[%s4389 + $0x1b8] sm:$0xff]
    %v4446 = vld [vmem:[%s4389 + $0x1c0] sm:$0xff]
    %v4447 = vld [vmem:[%s4389 + $0x1c8] sm:$0xff]
    %v4448 = vld [vmem:[%s4389 + $0x1d0] sm:$0xff]
    %v4449 = vld [vmem:[%s4389 + $0x1d8] sm:$0xff]
    %v4450 = vld [vmem:[%s4389 + $0x1e0] sm:$0xff]
    %v4451 = vld [vmem:[%s4389 + $0x1e8] sm:$0xff]
    %v4452 = vld [vmem:[%s4389 + $0x1f0] sm:$0xff]
    %v4453 = vld [vmem:[%s4389 + $0x1f8] sm:$0xff]
    %4454 = vmatprep.subr.mxu0 0.0
    %4455 = vmatpush1.msra.mxu0 %v4405
    %4456 = vmatprep.subr.mxu0 0.0
    %4457 = vmatpush1.msra.mxu0 %v4404
    %4458 = vmatprep.subr.mxu0 0.0
    %4459 = vmatpush1.msra.mxu0 %v4403
    %4460 = vmatprep.subr.mxu0 0.0
    %4461 = vmatpush1.msra.mxu0 %v4402
    %4462 = vmatprep.subr.mxu0 0.0
    %4463 = vmatpush1.msra.mxu0 %v4401
    %4464 = vmatprep.subr.mxu0 0.0
    %4465 = vmatpush1.msra.mxu0 %v4400
    %4466 = vmatprep.subr.mxu0 0.0
    %4467 = vmatpush1.msra.mxu0 %v4399
    %4468 = vmatprep.subr.mxu0 0.0
    %4469 = vmatpush1.msra.mxu0 %v4398
    %4470 = vmatprep.subr.mxu0 0.0
    %4471 = vmatpush1.msra.mxu0 %v4397
    %4472 = vmatprep.subr.mxu0 0.0
    %4473 = vmatpush1.msra.mxu0 %v4396
    %4474 = vmatprep.subr.mxu0 0.0
    %4475 = vmatpush1.msra.mxu0 %v4395
    %4476 = vmatprep.subr.mxu0 0.0
    %4477 = vmatpush1.msra.mxu0 %v4394
    %4478 = vmatprep.subr.mxu0 0.0
    %4479 = vmatpush1.msra.mxu0 %v4393
    %4480 = vmatprep.subr.mxu0 0.0
    %4481 = vmatpush1.msra.mxu0 %v4392
    %4482 = vmatprep.subr.mxu0 0.0
    %4483 = vmatpush1.msra.mxu0 %v4391
    %4484 = vmatprep.subr.mxu0 0.0
    %4485 = vmatpush1.msra.mxu0 %v4390
    %4486 = vmatprep.subr.mxu0 0.0
    %4487 = vmatpush2.msra.mxu0 %v4421
    %4488 = vmatprep.subr.mxu0 0.0
    %4489 = vmatpush2.msra.mxu0 %v4420
    %4490 = vmatprep.subr.mxu0 0.0
    %4491 = vmatpush2.msra.mxu0 %v4419
    %4492 = vmatprep.subr.mxu0 0.0
    %4493 = vmatpush2.msra.mxu0 %v4418
    %4494 = vmatprep.subr.mxu0 0.0
    %4495 = vmatpush2.msra.mxu0 %v4417
    %4496 = vmatprep.subr.mxu0 0.0
    %4497 = vmatpush2.msra.mxu0 %v4416
    %4498 = vmatprep.subr.mxu0 0.0
    %4499 = vmatpush2.msra.mxu0 %v4415
    %4500 = vmatprep.subr.mxu0 0.0
    %4501 = vmatpush2.msra.mxu0 %v4414
    %4502 = vmatprep.subr.mxu0 0.0
    %4503 = vmatpush2.msra.mxu0 %v4413
    %4504 = vmatprep.subr.mxu0 0.0
    %4505 = vmatpush2.msra.mxu0 %v4412
    %4506 = vmatprep.subr.mxu0 0.0
    %4507 = vmatpush2.msra.mxu0 %v4411
    %4508 = vmatprep.subr.mxu0 0.0
    %4509 = vmatpush2.msra.mxu0 %v4410
    %4510 = vmatprep.subr.mxu0 0.0
    %4511 = vmatpush2.msra.mxu0 %v4409
    %4512 = vmatprep.subr.mxu0 0.0
    %4513 = vmatpush2.msra.mxu0 %v4408
    %4514 = vmatprep.subr.mxu0 0.0
    %4515 = vmatpush2.msra.mxu0 %v4407
    %4516 = vmatprep.subr.mxu0 0.0
    %4517 = vmatpush2.msra.mxu0 %v4406
    %4518 = vmatprep.mubr.f32.mxu0 %v3583
    %4519 = vmatmul.mubr.f32.gmra.mxu0 %v2921
    %v4520 = vpop.f32.mrf.mxu0
    %v4521 = vadd.f32 0.0, %v4520
    %v4522 = vpop.f32.mrf.mxu0
    %4523 = vmatprep.mubr.f32.mxu0 %v3592
    %4524 = vmatmul.mubr.f32.gmra.mxu0 %v2938
    %v4525 = vpop.f32.mrf.mxu0
    %v4526 = vadd.f32 0.0, %v4525
    %v4527 = vpop.f32.mrf.mxu0
    %4528 = vmatprep.mubr.f32.mxu0 %v3593
    %4529 = vmatmul.mubr.f32.gmra.mxu0 %v2955
    %v4530 = vpop.f32.mrf.mxu0
    %v4531 = vadd.f32 0.0, %v4530
    %v4532 = vpop.f32.mrf.mxu0
    %4533 = vmatprep.mubr.f32.mxu0 %v3602
    %4534 = vmatmul.mubr.f32.gmra.mxu0 %v2972
    %v4535 = vpop.f32.mrf.mxu0
    %v4536 = vadd.f32 0.0, %v4535
    %v4537 = vpop.f32.mrf.mxu0
    %4538 = vmatprep.mubr.f32.mxu0 %v3603
    %4539 = vmatmul.mubr.f32.gmra.mxu0 %v2989
    %v4540 = vpop.f32.mrf.mxu0
    %v4541 = vadd.f32 0.0, %v4540
    %v4542 = vpop.f32.mrf.mxu0
    %4543 = vmatprep.mubr.f32.mxu0 %v3612
    %4544 = vmatmul.mubr.f32.gmra.mxu0 %v3006
    %v4545 = vpop.f32.mrf.mxu0
    %v4546 = vadd.f32 0.0, %v4545
    %v4547 = vpop.f32.mrf.mxu0
    %4548 = vmatprep.mubr.f32.mxu0 %v3613
    %4549 = vmatmul.mubr.f32.gmra.mxu0 %v3023
    %v4550 = vpop.f32.mrf.mxu0
    %v4551 = vadd.f32 0.0, %v4550
    %v4552 = vpop.f32.mrf.mxu0
    %4553 = vmatprep.mubr.f32.mxu0 %v3622
    %4554 = vmatmul.mubr.f32.gmra.mxu0 %v3040
    %v4555 = vpop.f32.mrf.mxu0
    %v4556 = vadd.f32 0.0, %v4555
    %v4557 = vpop.f32.mrf.mxu0
    %4558 = vmatprep.mubr.f32.mxu0 %v3623
    %4559 = vmatmul.mubr.f32.gmra.mxu0 %v3057
    %v4560 = vpop.f32.mrf.mxu0
    %v4561 = vadd.f32 0.0, %v4560
    %v4562 = vpop.f32.mrf.mxu0
    %4563 = vmatprep.mubr.f32.mxu0 %v3632
    %4564 = vmatmul.mubr.f32.gmra.mxu0 %v3074
    %v4565 = vpop.f32.mrf.mxu0
    %v4566 = vadd.f32 0.0, %v4565
    %v4567 = vpop.f32.mrf.mxu0
    %4568 = vmatprep.mubr.f32.mxu0 %v3633
    %4569 = vmatmul.mubr.f32.gmra.mxu0 %v3091
    %v4570 = vpop.f32.mrf.mxu0
    %v4571 = vadd.f32 0.0, %v4570
    %v4572 = vpop.f32.mrf.mxu0
    %4573 = vmatprep.mubr.f32.mxu0 %v3642
    %4574 = vmatmul.mubr.f32.gmra.mxu0 %v3108
    %v4575 = vpop.f32.mrf.mxu0
    %v4576 = vadd.f32 0.0, %v4575
    %v4577 = vpop.f32.mrf.mxu0
    %4578 = vmatprep.mubr.f32.mxu0 %v3643
    %4579 = vmatmul.mubr.f32.gmra.mxu0 %v3125
    %v4580 = vpop.f32.mrf.mxu0
    %v4581 = vadd.f32 0.0, %v4580
    %v4582 = vpop.f32.mrf.mxu0
    %4583 = vmatprep.mubr.f32.mxu0 %v3652
    %4584 = vmatmul.mubr.f32.gmra.mxu0 %v3142
    %v4585 = vpop.f32.mrf.mxu0
    %v4586 = vadd.f32 0.0, %v4585
    %v4587 = vpop.f32.mrf.mxu0
    %4588 = vmatprep.mubr.f32.mxu0 %v3667
    %4589 = vmatmul.mubr.f32.gmra.mxu0 %v3209
    %v4590 = vpop.f32.mrf.mxu0
    %v4591 = vadd.f32 0.0, %v4590
    %v4592 = vpop.f32.mrf.mxu0
    %4593 = vmatprep.mubr.f32.mxu0 %v3676
    %4594 = vmatmul.mubr.f32.gmra.mxu0 %v3226
    %v4595 = vpop.f32.mrf.mxu0
    %v4596 = vadd.f32 0.0, %v4595
    %v4597 = vpop.f32.mrf.mxu0
    %4598 = vdwg.mxu0
    %4599 = vmatprep.subr.mxu0 0.0
    %4600 = vmatpush1.msra.mxu0 %v4437
    %4601 = vmatprep.subr.mxu0 0.0
    %4602 = vmatpush1.msra.mxu0 %v4436
    %4603 = vmatprep.subr.mxu0 0.0
    %4604 = vmatpush1.msra.mxu0 %v4435
    %4605 = vmatprep.subr.mxu0 0.0
    %4606 = vmatpush1.msra.mxu0 %v4434
    %4607 = vmatprep.subr.mxu0 0.0
    %4608 = vmatpush1.msra.mxu0 %v4433
    %4609 = vmatprep.subr.mxu0 0.0
    %4610 = vmatpush1.msra.mxu0 %v4432
    %4611 = vmatprep.subr.mxu0 0.0
    %4612 = vmatpush1.msra.mxu0 %v4431
    %4613 = vmatprep.subr.mxu0 0.0
    %4614 = vmatpush1.msra.mxu0 %v4430
    %4615 = vmatprep.subr.mxu0 0.0
    %4616 = vmatpush1.msra.mxu0 %v4429
    %4617 = vmatprep.subr.mxu0 0.0
    %4618 = vmatpush1.msra.mxu0 %v4428
    %4619 = vmatprep.subr.mxu0 0.0
    %4620 = vmatpush1.msra.mxu0 %v4427
    %4621 = vmatprep.subr.mxu0 0.0
    %4622 = vmatpush1.msra.mxu0 %v4426
    %4623 = vmatprep.subr.mxu0 0.0
    %4624 = vmatpush1.msra.mxu0 %v4425
    %4625 = vmatprep.subr.mxu0 0.0
    %4626 = vmatpush1.msra.mxu0 %v4424
    %4627 = vmatprep.subr.mxu0 0.0
    %4628 = vmatpush1.msra.mxu0 %v4423
    %4629 = vmatprep.subr.mxu0 0.0
    %4630 = vmatpush1.msra.mxu0 %v4422
    %4631 = vmatprep.subr.mxu0 0.0
    %4632 = vmatpush2.msra.mxu0 %v4453
    %4633 = vmatprep.subr.mxu0 0.0
    %4634 = vmatpush2.msra.mxu0 %v4452
    %4635 = vmatprep.subr.mxu0 0.0
    %4636 = vmatpush2.msra.mxu0 %v4451
    %4637 = vmatprep.subr.mxu0 0.0
    %4638 = vmatpush2.msra.mxu0 %v4450
    %4639 = vmatprep.subr.mxu0 0.0
    %4640 = vmatpush2.msra.mxu0 %v4449
    %4641 = vmatprep.subr.mxu0 0.0
    %4642 = vmatpush2.msra.mxu0 %v4448
    %4643 = vmatprep.subr.mxu0 0.0
    %4644 = vmatpush2.msra.mxu0 %v4447
    %4645 = vmatprep.subr.mxu0 0.0
    %4646 = vmatpush2.msra.mxu0 %v4446
    %4647 = vmatprep.subr.mxu0 0.0
    %4648 = vmatpush2.msra.mxu0 %v4445
    %4649 = vmatprep.subr.mxu0 0.0
    %4650 = vmatpush2.msra.mxu0 %v4444
    %4651 = vmatprep.subr.mxu0 0.0
    %4652 = vmatpush2.msra.mxu0 %v4443
    %4653 = vmatprep.subr.mxu0 0.0
    %4654 = vmatpush2.msra.mxu0 %v4442
    %4655 = vmatprep.subr.mxu0 0.0
    %4656 = vmatpush2.msra.mxu0 %v4441
    %4657 = vmatprep.subr.mxu0 0.0
    %4658 = vmatpush2.msra.mxu0 %v4440
    %4659 = vmatprep.subr.mxu0 0.0
    %4660 = vmatpush2.msra.mxu0 %v4439
    %4661 = vmatprep.subr.mxu0 0.0
    %4662 = vmatpush2.msra.mxu0 %v4438
    %4663 = vmatprep.mubr.f32.mxu0 %v3593
    %4664 = vmatmul.mubr.f32.gmra.mxu0 %v2955
    %v4665 = vpop.f32.mrf.mxu0
    %v4666 = vadd.f32 %v4521, %v4665
    %v4667 = vpop.f32.mrf.mxu0
    %4668 = vmatprep.mubr.f32.mxu0 %v3602
    %4669 = vmatmul.mubr.f32.gmra.mxu0 %v2972
    %v4670 = vpop.f32.mrf.mxu0
    %v4671 = vadd.f32 %v4526, %v4670
    %v4672 = vpop.f32.mrf.mxu0
    %4673 = vmatprep.mubr.f32.mxu0 %v3603
    %4674 = vmatmul.mubr.f32.gmra.mxu0 %v2989
    %v4675 = vpop.f32.mrf.mxu0
    %v4676 = vadd.f32 %v4531, %v4675
    %v4677 = vpop.f32.mrf.mxu0
    %4678 = vmatprep.mubr.f32.mxu0 %v3612
    %4679 = vmatmul.mubr.f32.gmra.mxu0 %v3006
    %v4680 = vpop.f32.mrf.mxu0
    %v4681 = vadd.f32 %v4536, %v4680
    %v4682 = vpop.f32.mrf.mxu0
    %4683 = vmatprep.mubr.f32.mxu0 %v3613
    %4684 = vmatmul.mubr.f32.gmra.mxu0 %v3023
    %v4685 = vpop.f32.mrf.mxu0
    %v4686 = vadd.f32 %v4541, %v4685
    %v4687 = vpop.f32.mrf.mxu0
    %4688 = vmatprep.mubr.f32.mxu0 %v3622
    %4689 = vmatmul.mubr.f32.gmra.mxu0 %v3040
    %v4690 = vpop.f32.mrf.mxu0
    %v4691 = vadd.f32 %v4546, %v4690
    %v4692 = vpop.f32.mrf.mxu0
    %4693 = vmatprep.mubr.f32.mxu0 %v3623
    %4694 = vmatmul.mubr.f32.gmra.mxu0 %v3057
    %v4695 = vpop.f32.mrf.mxu0
    %v4696 = vadd.f32 %v4551, %v4695
    %v4697 = vpop.f32.mrf.mxu0
    %4698 = vmatprep.mubr.f32.mxu0 %v3632
    %4699 = vmatmul.mubr.f32.gmra.mxu0 %v3074
    %v4700 = vpop.f32.mrf.mxu0
    %v4701 = vadd.f32 %v4556, %v4700
    %v4702 = vpop.f32.mrf.mxu0
    %4703 = vmatprep.mubr.f32.mxu0 %v3633
    %4704 = vmatmul.mubr.f32.gmra.mxu0 %v3091
    %v4705 = vpop.f32.mrf.mxu0
    %v4706 = vadd.f32 %v4561, %v4705
    %v4707 = vpop.f32.mrf.mxu0
    %4708 = vmatprep.mubr.f32.mxu0 %v3642
    %4709 = vmatmul.mubr.f32.gmra.mxu0 %v3108
    %v4710 = vpop.f32.mrf.mxu0
    %v4711 = vadd.f32 %v4566, %v4710
    %v4712 = vpop.f32.mrf.mxu0
    %4713 = vmatprep.mubr.f32.mxu0 %v3643
    %4714 = vmatmul.mubr.f32.gmra.mxu0 %v3125
    %v4715 = vpop.f32.mrf.mxu0
    %v4716 = vadd.f32 %v4571, %v4715
    %v4717 = vpop.f32.mrf.mxu0
    %4718 = vmatprep.mubr.f32.mxu0 %v3652
    %4719 = vmatmul.mubr.f32.gmra.mxu0 %v3142
    %v4720 = vpop.f32.mrf.mxu0
    %v4721 = vadd.f32 %v4576, %v4720
    %v4722 = vpop.f32.mrf.mxu0
    %4723 = vmatprep.mubr.f32.mxu0 %v3667
    %4724 = vmatmul.mubr.f32.gmra.mxu0 %v3209
    %v4725 = vpop.f32.mrf.mxu0
    %v4726 = vadd.f32 %v4581, %v4725
    %v4727 = vpop.f32.mrf.mxu0
    %4728 = vmatprep.mubr.f32.mxu0 %v3676
    %4729 = vmatmul.mubr.f32.gmra.mxu0 %v3226
    %v4730 = vpop.f32.mrf.mxu0
    %v4731 = vadd.f32 %v4586, %v4730
    %v4732 = vpop.f32.mrf.mxu0
    %4733 = vmatprep.mubr.f32.mxu0 %v1068
    %4734 = vmatmul.mubr.f32.gmra.mxu0 %v1068
    %v4735 = vpop.f32.mrf.mxu0
    %v4736 = vadd.f32 %v4591, %v4735
    %v4737 = vpop.f32.mrf.mxu0
    %4738 = vmatprep.mubr.f32.mxu0 %v1068
    %4739 = vmatmul.mubr.f32.gmra.mxu0 %v1068
    %v4740 = vpop.f32.mrf.mxu0
    %v4741 = vadd.f32 %v4596, %v4740
    %v4742 = vpop.f32.mrf.mxu0
    %4743 = vdwg.mxu0
    %v4744 = vadd.f32 %v3505, %v3510
    %v4745 = vadd.f32 %v4744, %v3515
    %v4746 = vadd.f32 %v4745, %v3520
    %v4747 = vadd.f32 %v4746, %v3525
    %v4748 = vadd.f32 %v4747, %v3530
    %v4749 = vadd.f32 %v4748, %v3535
    %v4750 = vadd.f32 %v4749, %v3540
    %v4751 = vadd.f32 %v4750, %v3545
    %v4752 = vadd.f32 %v4751, %v3550
    %v4753 = vadd.f32 %v4752, %v3555
    %v4754 = vadd.f32 %v4753, %v3560
    %v4755 = vadd.f32 %v4754, %v3565
    %v4756 = vadd.f32 %v4755, %v3570
    %v4757 = vadd.f32 %v4756, %v3575
    %v4758 = vadd.f32 %v4757, %v3580
    %v4759 = vrot.slane %v4758, 4
    %v4760 = vadd.f32 %v4758, %v4759
    %v4761 = vrot.slane %v4760, 2
    %v4762 = vadd.f32 %v4760, %v4761
    %v4763 = vrot.slane %v4762, 1
    %v4764 = vadd.f32 %v4762, %v4763
    %v4765 = vadd.f32 %v4764, 0.0
    %v4766 = vadd.f32 %v3956, %v3961
    %v4767 = vadd.f32 %v4766, %v3966
    %v4768 = vadd.f32 %v4767, %v3971
    %v4769 = vadd.f32 %v4768, %v3976
    %v4770 = vadd.f32 %v4769, %v3981
    %v4771 = vadd.f32 %v4770, %v3986
    %v4772 = vadd.f32 %v4771, %v3991
    %v4773 = vadd.f32 %v4772, %v3996
    %v4774 = vadd.f32 %v4773, %v4001
    %v4775 = vadd.f32 %v4774, %v4006
    %v4776 = vadd.f32 %v4775, %v4011
    %v4777 = vadd.f32 %v4776, %v4016
    %v4778 = vadd.f32 %v4777, %v4021
    %v4779 = vadd.f32 %v4778, %v4026
    %v4780 = vadd.f32 %v4779, %v4031
    %v4781 = vrot.slane %v4780, 4
    %v4782 = vadd.f32 %v4780, %v4781
    %v4783 = vrot.slane %v4782, 2
    %v4784 = vadd.f32 %v4782, %v4783
    %v4785 = vrot.slane %v4784, 1
    %v4786 = vadd.f32 %v4784, %v4785
    %v4787 = vadd.f32 %v4765, %v4786
    %v4788 = vadd.f32 %v4311, %v4316
    %v4789 = vadd.f32 %v4788, %v4321
    %v4790 = vadd.f32 %v4789, %v4326
    %v4791 = vadd.f32 %v4790, %v4331
    %v4792 = vadd.f32 %v4791, %v4336
    %v4793 = vadd.f32 %v4792, %v4341
    %v4794 = vadd.f32 %v4793, %v4346
    %v4795 = vadd.f32 %v4794, %v4351
    %v4796 = vadd.f32 %v4795, %v4356
    %v4797 = vadd.f32 %v4796, %v4361
    %v4798 = vadd.f32 %v4797, %v4366
    %v4799 = vadd.f32 %v4798, %v4371
    %v4800 = vadd.f32 %v4799, %v4376
    %v4801 = vadd.f32 %v4800, %v4381
    %v4802 = vadd.f32 %v4801, %v4386
    %v4803 = vrot.slane %v4802, 4
    %v4804 = vadd.f32 %v4802, %v4803
    %v4805 = vrot.slane %v4804, 2
    %v4806 = vadd.f32 %v4804, %v4805
    %v4807 = vrot.slane %v4806, 1
    %v4808 = vadd.f32 %v4806, %v4807
    %v4809 = vadd.f32 %v4787, %v4808
    %v4810 = vadd.f32 %v4666, %v4671
    %v4811 = vadd.f32 %v4810, %v4676
    %v4812 = vadd.f32 %v4811, %v4681
    %v4813 = vadd.f32 %v4812, %v4686
    %v4814 = vadd.f32 %v4813, %v4691
    %v4815 = vadd.f32 %v4814, %v4696
    %v4816 = vadd.f32 %v4815, %v4701
    %v4817 = vadd.f32 %v4816, %v4706
    %v4818 = vadd.f32 %v4817, %v4711
    %v4819 = vadd.f32 %v4818, %v4716
    %v4820 = vadd.f32 %v4819, %v4721
    %v4821 = vadd.f32 %v4820, %v4726
    %v4822 = vadd.f32 %v4821, %v4731
    %v4823 = vadd.f32 %v4822, %v4736
    %v4824 = vadd.f32 %v4823, %v4741
    %v4825 = vrot.slane %v4824, 4
    %v4826 = vadd.f32 %v4824, %v4825
    %v4827 = vrot.slane %v4826, 2
    %v4828 = vadd.f32 %v4826, %v4827
    %v4829 = vrot.slane %v4828, 1
    %v4830 = vadd.f32 %v4828, %v4829
    %v4831 = vadd.f32 %v4809, %v4830
    %v4832 = vmul.f32 %v3505, %v3505
    %v4833 = vmul.f32 %v3510, %v3510
    %v4834 = vmul.f32 %v3515, %v3515
    %v4835 = vmul.f32 %v3520, %v3520
    %v4836 = vmul.f32 %v3525, %v3525
    %v4837 = vmul.f32 %v3530, %v3530
    %v4838 = vmul.f32 %v3535, %v3535
    %v4839 = vmul.f32 %v3540, %v3540
    %v4840 = vmul.f32 %v3545, %v3545
    %v4841 = vmul.f32 %v3550, %v3550
    %v4842 = vmul.f32 %v3555, %v3555
    %v4843 = vmul.f32 %v3560, %v3560
    %v4844 = vmul.f32 %v3565, %v3565
    %v4845 = vmul.f32 %v3570, %v3570
    %v4846 = vmul.f32 %v3575, %v3575
    %v4847 = vmul.f32 %v3580, %v3580
    %v4848 = vadd.f32 %v4832, %v4833
    %v4849 = vadd.f32 %v4848, %v4834
    %v4850 = vadd.f32 %v4849, %v4835
    %v4851 = vadd.f32 %v4850, %v4836
    %v4852 = vadd.f32 %v4851, %v4837
    %v4853 = vadd.f32 %v4852, %v4838
    %v4854 = vadd.f32 %v4853, %v4839
    %v4855 = vadd.f32 %v4854, %v4840
    %v4856 = vadd.f32 %v4855, %v4841
    %v4857 = vadd.f32 %v4856, %v4842
    %v4858 = vadd.f32 %v4857, %v4843
    %v4859 = vadd.f32 %v4858, %v4844
    %v4860 = vadd.f32 %v4859, %v4845
    %v4861 = vadd.f32 %v4860, %v4846
    %v4862 = vadd.f32 %v4861, %v4847
    %v4863 = vrot.slane %v4862, 4
    %v4864 = vadd.f32 %v4862, %v4863
    %v4865 = vrot.slane %v4864, 2
    %v4866 = vadd.f32 %v4864, %v4865
    %v4867 = vrot.slane %v4866, 1
    %v4868 = vadd.f32 %v4866, %v4867
    %v4869 = vadd.f32 %v4868, 0.0
    %v4870 = vmul.f32 %v3956, %v3956
    %v4871 = vmul.f32 %v3961, %v3961
    %v4872 = vmul.f32 %v3966, %v3966
    %v4873 = vmul.f32 %v3971, %v3971
    %v4874 = vmul.f32 %v3976, %v3976
    %v4875 = vmul.f32 %v3981, %v3981
    %v4876 = vmul.f32 %v3986, %v3986
    %v4877 = vmul.f32 %v3991, %v3991
    %v4878 = vmul.f32 %v3996, %v3996
    %v4879 = vmul.f32 %v4001, %v4001
    %v4880 = vmul.f32 %v4006, %v4006
    %v4881 = vmul.f32 %v4011, %v4011
    %v4882 = vmul.f32 %v4016, %v4016
    %v4883 = vmul.f32 %v4021, %v4021
    %v4884 = vmul.f32 %v4026, %v4026
    %v4885 = vmul.f32 %v4031, %v4031
    %v4886 = vadd.f32 %v4870, %v4871
    %v4887 = vadd.f32 %v4886, %v4872
    %v4888 = vadd.f32 %v4887, %v4873
    %v4889 = vadd.f32 %v4888, %v4874
    %v4890 = vadd.f32 %v4889, %v4875
    %v4891 = vadd.f32 %v4890, %v4876
    %v4892 = vadd.f32 %v4891, %v4877
    %v4893 = vadd.f32 %v4892, %v4878
    %v4894 = vadd.f32 %v4893, %v4879
    %v4895 = vadd.f32 %v4894, %v4880
    %v4896 = vadd.f32 %v4895, %v4881
    %v4897 = vadd.f32 %v4896, %v4882
    %v4898 = vadd.f32 %v4897, %v4883
    %v4899 = vadd.f32 %v4898, %v4884
    %v4900 = vadd.f32 %v4899, %v4885
    %v4901 = vrot.slane %v4900, 4
    %v4902 = vadd.f32 %v4900, %v4901
    %v4903 = vrot.slane %v4902, 2
    %v4904 = vadd.f32 %v4902, %v4903
    %v4905 = vrot.slane %v4904, 1
    %v4906 = vadd.f32 %v4904, %v4905
    %v4907 = vadd.f32 %v4869, %v4906
    %v4908 = vmul.f32 %v4311, %v4311
    %v4909 = vmul.f32 %v4316, %v4316
    %v4910 = vmul.f32 %v4321, %v4321
    %v4911 = vmul.f32 %v4326, %v4326
    %v4912 = vmul.f32 %v4331, %v4331
    %v4913 = vmul.f32 %v4336, %v4336
    %v4914 = vmul.f32 %v4341, %v4341
    %v4915 = vmul.f32 %v4346, %v4346
    %v4916 = vmul.f32 %v4351, %v4351
    %v4917 = vmul.f32 %v4356, %v4356
    %v4918 = vmul.f32 %v4361, %v4361
    %v4919 = vmul.f32 %v4366, %v4366
    %v4920 = vmul.f32 %v4371, %v4371
    %v4921 = vmul.f32 %v4376, %v4376
    %v4922 = vmul.f32 %v4381, %v4381
    %v4923 = vmul.f32 %v4386, %v4386
    %v4924 = vadd.f32 %v4908, %v4909
    %v4925 = vadd.f32 %v4924, %v4910
    %v4926 = vadd.f32 %v4925, %v4911
    %v4927 = vadd.f32 %v4926, %v4912
    %v4928 = vadd.f32 %v4927, %v4913
    %v4929 = vadd.f32 %v4928, %v4914
    %v4930 = vadd.f32 %v4929, %v4915
    %v4931 = vadd.f32 %v4930, %v4916
    %v4932 = vadd.f32 %v4931, %v4917
    %v4933 = vadd.f32 %v4932, %v4918
    %v4934 = vadd.f32 %v4933, %v4919
    %v4935 = vadd.f32 %v4934, %v4920
    %v4936 = vadd.f32 %v4935, %v4921
    %v4937 = vadd.f32 %v4936, %v4922
    %v4938 = vadd.f32 %v4937, %v4923
    %v4939 = vrot.slane %v4938, 4
    %v4940 = vadd.f32 %v4938, %v4939
    %v4941 = vrot.slane %v4940, 2
    %v4942 = vadd.f32 %v4940, %v4941
    %v4943 = vrot.slane %v4942, 1
    %v4944 = vadd.f32 %v4942, %v4943
    %v4945 = vadd.f32 %v4907, %v4944
    %v4946 = vmul.f32 %v4666, %v4666
    %v4947 = vmul.f32 %v4671, %v4671
    %v4948 = vmul.f32 %v4676, %v4676
    %v4949 = vmul.f32 %v4681, %v4681
    %v4950 = vmul.f32 %v4686, %v4686
    %v4951 = vmul.f32 %v4691, %v4691
    %v4952 = vmul.f32 %v4696, %v4696
    %v4953 = vmul.f32 %v4701, %v4701
    %v4954 = vmul.f32 %v4706, %v4706
    %v4955 = vmul.f32 %v4711, %v4711
    %v4956 = vmul.f32 %v4716, %v4716
    %v4957 = vmul.f32 %v4721, %v4721
    %v4958 = vmul.f32 %v4726, %v4726
    %v4959 = vmul.f32 %v4731, %v4731
    %v4960 = vmul.f32 %v4736, %v4736
    %v4961 = vmul.f32 %v4741, %v4741
    %v4962 = vadd.f32 %v4946, %v4947
    %v4963 = vadd.f32 %v4962, %v4948
    %v4964 = vadd.f32 %v4963, %v4949
    %v4965 = vadd.f32 %v4964, %v4950
    %v4966 = vadd.f32 %v4965, %v4951
    %v4967 = vadd.f32 %v4966, %v4952
    %v4968 = vadd.f32 %v4967, %v4953
    %v4969 = vadd.f32 %v4968, %v4954
    %v4970 = vadd.f32 %v4969, %v4955
    %v4971 = vadd.f32 %v4970, %v4956
    %v4972 = vadd.f32 %v4971, %v4957
    %v4973 = vadd.f32 %v4972, %v4958
    %v4974 = vadd.f32 %v4973, %v4959
    %v4975 = vadd.f32 %v4974, %v4960
    %v4976 = vadd.f32 %v4975, %v4961
    %v4977 = vrot.slane %v4976, 4
    %v4978 = vadd.f32 %v4976, %v4977
    %v4979 = vrot.slane %v4978, 2
    %v4980 = vadd.f32 %v4978, %v4979
    %v4981 = vrot.slane %v4980, 1
    %v4982 = vadd.f32 %v4980, %v4981
    %v4983 = vadd.f32 %v4945, %v4982
    %v4984 = vmul.f32 %v4831, 0.001953125
    %v4985 = vmul.f32 %v4983, 0.001953125
    %v4986 = vmul.f32 %v4984, %v4984
    %v4987 = vsub.f32 %v4985, %v4986
    %v4988 = vadd.f32 %v4987, 1e-05
    %v4989 = vrsqrt.pop %v4988
    %v4990 = vmul.f32 %v4989, %v2651
    %v4991 = vmul.f32 %v4984, %v4990
    %v4992 = vsub.f32 %v2652, %v4991
    %v4993 = vlaneseq
    %v4994 = vshrl.u32 %v4993, 7
    %v4995 = vsub.s32 0, %v4994
    %v4996 = vrot.slane %v4990, %v4995
    %v4997 = vmul.f32 %v3505, %v4996
    %v4998 = vmul.f32 %v3510, %v4996
    %v4999 = vmul.f32 %v3515, %v4996
    %v5000 = vmul.f32 %v3520, %v4996
    %v5001 = vmul.f32 %v3525, %v4996
    %v5002 = vmul.f32 %v3530, %v4996
    %v5003 = vmul.f32 %v3535, %v4996
    %v5004 = vmul.f32 %v3540, %v4996
    %v5005 = vmul.f32 %v3545, %v4996
    %v5006 = vmul.f32 %v3550, %v4996
    %v5007 = vmul.f32 %v3555, %v4996
    %v5008 = vmul.f32 %v3560, %v4996
    %v5009 = vmul.f32 %v3565, %v4996
    %v5010 = vmul.f32 %v3570, %v4996
    %v5011 = vmul.f32 %v3575, %v4996
    %v5012 = vmul.f32 %v3580, %v4996
    %v5014 = vlaneseq
    %v5015 = vshrl.u32 %v5014, 7
    %v5016 = vsub.s32 0, %v5015
    %v5017 = vrot.slane %v4992, %v5016
    %v5019 = vadd.f32 %v4997, %v5017
    %v5020 = vadd.f32 %v4998, %v5017
    %v5021 = vadd.f32 %v4999, %v5017
    %v5022 = vadd.f32 %v5000, %v5017
    %v5023 = vadd.f32 %v5001, %v5017
    %v5024 = vadd.f32 %v5002, %v5017
    %v5025 = vadd.f32 %v5003, %v5017
    %v5026 = vadd.f32 %v5004, %v5017
    %v5027 = vadd.f32 %v5005, %v5017
    %v5028 = vadd.f32 %v5006, %v5017
    %v5029 = vadd.f32 %v5007, %v5017
    %v5030 = vadd.f32 %v5008, %v5017
    %v5031 = vadd.f32 %v5009, %v5017
    %v5032 = vadd.f32 %v5010, %v5017
    %v5033 = vadd.f32 %v5011, %v5017
    %v5034 = vadd.f32 %v5012, %v5017
    %v5035 = vmax.f32 %v5019, 0.0
    %v5036 = vmax.f32 %v5020, 0.0
    %v5037 = vmax.f32 %v5021, 0.0
    %v5038 = vmax.f32 %v5022, 0.0
    %v5039 = vmax.f32 %v5023, 0.0
    %v5040 = vmax.f32 %v5024, 0.0
    %v5041 = vmax.f32 %v5025, 0.0
    %v5042 = vmax.f32 %v5026, 0.0
    %v5043 = vmax.f32 %v5027, 0.0
    %v5044 = vmax.f32 %v5028, 0.0
    %v5045 = vmax.f32 %v5029, 0.0
    %v5046 = vmax.f32 %v5030, 0.0
    %v5047 = vmax.f32 %v5031, 0.0
    %v5048 = vmax.f32 %v5032, 0.0
    %v5049 = vmax.f32 %v5033, 0.0
    %v5050 = vmax.f32 %v5034, 0.0
    %v5051 = vmul.f32 %v3956, %v4996
    %v5052 = vmul.f32 %v3961, %v4996
    %v5053 = vmul.f32 %v3966, %v4996
    %v5054 = vmul.f32 %v3971, %v4996
    %v5055 = vmul.f32 %v3976, %v4996
    %v5056 = vmul.f32 %v3981, %v4996
    %v5057 = vmul.f32 %v3986, %v4996
    %v5058 = vmul.f32 %v3991, %v4996
    %v5059 = vmul.f32 %v3996, %v4996
    %v5060 = vmul.f32 %v4001, %v4996
    %v5061 = vmul.f32 %v4006, %v4996
    %v5062 = vmul.f32 %v4011, %v4996
    %v5063 = vmul.f32 %v4016, %v4996
    %v5064 = vmul.f32 %v4021, %v4996
    %v5065 = vmul.f32 %v4026, %v4996
    %v5066 = vmul.f32 %v4031, %v4996
    %v5067 = vadd.f32 %v5051, %v5017
    %v5068 = vadd.f32 %v5052, %v5017
    %v5069 = vadd.f32 %v5053, %v5017
    %v5070 = vadd.f32 %v5054, %v5017
    %v5071 = vadd.f32 %v5055, %v5017
    %v5072 = vadd.f32 %v5056, %v5017
    %v5073 = vadd.f32 %v5057, %v5017
    %v5074 = vadd.f32 %v5058, %v5017
    %v5075 = vadd.f32 %v5059, %v5017
    %v5076 = vadd.f32 %v5060, %v5017
    %v5077 = vadd.f32 %v5061, %v5017
    %v5078 = vadd.f32 %v5062, %v5017
    %v5079 = vadd.f32 %v5063, %v5017
    %v5080 = vadd.f32 %v5064, %v5017
    %v5081 = vadd.f32 %v5065, %v5017
    %v5082 = vadd.f32 %v5066, %v5017
    %v5083 = vmax.f32 %v5067, 0.0
    %v5084 = vmax.f32 %v5068, 0.0
    %v5085 = vmax.f32 %v5069, 0.0
    %v5086 = vmax.f32 %v5070, 0.0
    %v5087 = vmax.f32 %v5071, 0.0
    %v5088 = vmax.f32 %v5072, 0.0
    %v5089 = vmax.f32 %v5073, 0.0
    %v5090 = vmax.f32 %v5074, 0.0
    %v5091 = vmax.f32 %v5075, 0.0
    %v5092 = vmax.f32 %v5076, 0.0
    %v5093 = vmax.f32 %v5077, 0.0
    %v5094 = vmax.f32 %v5078, 0.0
    %v5095 = vmax.f32 %v5079, 0.0
    %v5096 = vmax.f32 %v5080, 0.0
    %v5097 = vmax.f32 %v5081, 0.0
    %v5098 = vmax.f32 %v5082, 0.0
    %v5099 = vmul.f32 %v4311, %v4996
    %v5100 = vmul.f32 %v4316, %v4996
    %v5101 = vmul.f32 %v4321, %v4996
    %v5102 = vmul.f32 %v4326, %v4996
    %v5103 = vmul.f32 %v4331, %v4996
    %v5104 = vmul.f32 %v4336, %v4996
    %v5105 = vmul.f32 %v4341, %v4996
    %v5106 = vmul.f32 %v4346, %v4996
    %v5107 = vmul.f32 %v4351, %v4996
    %v5108 = vmul.f32 %v4356, %v4996
    %v5109 = vmul.f32 %v4361, %v4996
    %v5110 = vmul.f32 %v4366, %v4996
    %v5111 = vmul.f32 %v4371, %v4996
    %v5112 = vmul.f32 %v4376, %v4996
    %v5113 = vmul.f32 %v4381, %v4996
    %v5114 = vmul.f32 %v4386, %v4996
    %v5115 = vadd.f32 %v5099, %v5017
    %v5116 = vadd.f32 %v5100, %v5017
    %v5117 = vadd.f32 %v5101, %v5017
    %v5118 = vadd.f32 %v5102, %v5017
    %v5119 = vadd.f32 %v5103, %v5017
    %v5120 = vadd.f32 %v5104, %v5017
    %v5121 = vadd.f32 %v5105, %v5017
    %v5122 = vadd.f32 %v5106, %v5017
    %v5123 = vadd.f32 %v5107, %v5017
    %v5124 = vadd.f32 %v5108, %v5017
    %v5125 = vadd.f32 %v5109, %v5017
    %v5126 = vadd.f32 %v5110, %v5017
    %v5127 = vadd.f32 %v5111, %v5017
    %v5128 = vadd.f32 %v5112, %v5017
    %v5129 = vadd.f32 %v5113, %v5017
    %v5130 = vadd.f32 %v5114, %v5017
    %v5131 = vmax.f32 %v5115, 0.0
    %v5132 = vmax.f32 %v5116, 0.0
    %v5133 = vmax.f32 %v5117, 0.0
    %v5134 = vmax.f32 %v5118, 0.0
    %v5135 = vmax.f32 %v5119, 0.0
    %v5136 = vmax.f32 %v5120, 0.0
    %v5137 = vmax.f32 %v5121, 0.0
    %v5138 = vmax.f32 %v5122, 0.0
    %v5139 = vmax.f32 %v5123, 0.0
    %v5140 = vmax.f32 %v5124, 0.0
    %v5141 = vmax.f32 %v5125, 0.0
    %v5142 = vmax.f32 %v5126, 0.0
    %v5143 = vmax.f32 %v5127, 0.0
    %v5144 = vmax.f32 %v5128, 0.0
    %v5145 = vmax.f32 %v5129, 0.0
    %v5146 = vmax.f32 %v5130, 0.0
    %v5147 = vmul.f32 %v4666, %v4996
    %v5148 = vmul.f32 %v4671, %v4996
    %v5149 = vmul.f32 %v4676, %v4996
    %v5150 = vmul.f32 %v4681, %v4996
    %v5151 = vmul.f32 %v4686, %v4996
    %v5152 = vmul.f32 %v4691, %v4996
    %v5153 = vmul.f32 %v4696, %v4996
    %v5154 = vmul.f32 %v4701, %v4996
    %v5155 = vmul.f32 %v4706, %v4996
    %v5156 = vmul.f32 %v4711, %v4996
    %v5157 = vmul.f32 %v4716, %v4996
    %v5158 = vmul.f32 %v4721, %v4996
    %v5159 = vmul.f32 %v4726, %v4996
    %v5160 = vmul.f32 %v4731, %v4996
    %v5161 = vmul.f32 %v4736, %v4996
    %v5162 = vmul.f32 %v4741, %v4996
    %v5163 = vadd.f32 %v5147, %v5017
    %v5164 = vadd.f32 %v5148, %v5017
    %v5165 = vadd.f32 %v5149, %v5017
    %v5166 = vadd.f32 %v5150, %v5017
    %v5167 = vadd.f32 %v5151, %v5017
    %v5168 = vadd.f32 %v5152, %v5017
    %v5169 = vadd.f32 %v5153, %v5017
    %v5170 = vadd.f32 %v5154, %v5017
    %v5171 = vadd.f32 %v5155, %v5017
    %v5172 = vadd.f32 %v5156, %v5017
    %v5173 = vadd.f32 %v5157, %v5017
    %v5174 = vadd.f32 %v5158, %v5017
    %v5175 = vadd.f32 %v5159, %v5017
    %v5176 = vadd.f32 %v5160, %v5017
    %v5177 = vadd.f32 %v5161, %v5017
    %v5178 = vadd.f32 %v5162, %v5017
    %v5179 = vmax.f32 %v5163, 0.0
    %v5180 = vmax.f32 %v5164, 0.0
    %v5181 = vmax.f32 %v5165, 0.0
    %v5182 = vmax.f32 %v5166, 0.0
    %v5183 = vmax.f32 %v5167, 0.0
    %v5184 = vmax.f32 %v5168, 0.0
    %v5185 = vmax.f32 %v5169, 0.0
    %v5186 = vmax.f32 %v5170, 0.0
    %v5187 = vmax.f32 %v5171, 0.0
    %v5188 = vmax.f32 %v5172, 0.0
    %v5189 = vmax.f32 %v5173, 0.0
    %v5190 = vmax.f32 %v5174, 0.0
    %v5191 = vmax.f32 %v5175, 0.0
    %v5192 = vmax.f32 %v5176, 0.0
    %v5193 = vmax.f32 %v5177, 0.0
    %v5194 = vmax.f32 %v5178, 0.0
    %v5211 = vcombine.high %v5035, %v5035
    %v5213 = vunpack.c.l.s4 1983009808
    %v5214 = vunpack.c.0.s8 %v5213
    %v5215 = vlaneseq
    %v5216 = vshrl.u32 %v5215, 7
    %v5217 = vsub.s32 %v5214, %v5216
    %v5218 = vrot.slane %v5035, %v5217
    %v5220 = vunpack.c.l.s4 1983009808
    %v5221 = vunpack.c.0.s8 %v5220
    %v5222 = vlaneseq
    %v5223 = vshrl.u32 %v5222, 7
    %v5224 = vsub.s32 %v5221, %v5223
    %v5225 = vrot.slane %v5211, %v5224
    %v5226 = vcombine.high %v5218, %v5218
    %v5227 = vcombine.high %v5225, %v5225
    %v5228 = vcombine.high %v5036, %v5036
    %v5230 = vunpack.c.l.s4 1983009808
    %v5231 = vunpack.c.0.s8 %v5230
    %v5232 = vlaneseq
    %v5233 = vshrl.u32 %v5232, 7
    %v5234 = vsub.s32 %v5231, %v5233
    %v5235 = vrot.slane %v5036, %v5234
    %v5237 = vunpack.c.l.s4 1983009808
    %v5238 = vunpack.c.0.s8 %v5237
    %v5239 = vlaneseq
    %v5240 = vshrl.u32 %v5239, 7
    %v5241 = vsub.s32 %v5238, %v5240
    %v5242 = vrot.slane %v5228, %v5241
    %v5243 = vcombine.high %v5235, %v5235
    %v5244 = vcombine.high %v5242, %v5242
    %v5245 = vcombine.high %v5037, %v5037
    %v5247 = vunpack.c.l.s4 1983009808
    %v5248 = vunpack.c.0.s8 %v5247
    %v5249 = vlaneseq
    %v5250 = vshrl.u32 %v5249, 7
    %v5251 = vsub.s32 %v5248, %v5250
    %v5252 = vrot.slane %v5037, %v5251
    %v5254 = vunpack.c.l.s4 1983009808
    %v5255 = vunpack.c.0.s8 %v5254
    %v5256 = vlaneseq
    %v5257 = vshrl.u32 %v5256, 7
    %v5258 = vsub.s32 %v5255, %v5257
    %v5259 = vrot.slane %v5245, %v5258
    %v5260 = vcombine.high %v5252, %v5252
    %v5261 = vcombine.high %v5259, %v5259
    %v5262 = vcombine.high %v5038, %v5038
    %v5264 = vunpack.c.l.s4 1983009808
    %v5265 = vunpack.c.0.s8 %v5264
    %v5266 = vlaneseq
    %v5267 = vshrl.u32 %v5266, 7
    %v5268 = vsub.s32 %v5265, %v5267
    %v5269 = vrot.slane %v5038, %v5268
    %v5271 = vunpack.c.l.s4 1983009808
    %v5272 = vunpack.c.0.s8 %v5271
    %v5273 = vlaneseq
    %v5274 = vshrl.u32 %v5273, 7
    %v5275 = vsub.s32 %v5272, %v5274
    %v5276 = vrot.slane %v5262, %v5275
    %v5277 = vcombine.high %v5269, %v5269
    %v5278 = vcombine.high %v5276, %v5276
    %v5279 = vcombine.high %v5039, %v5039
    %v5281 = vunpack.c.l.s4 1983009808
    %v5282 = vunpack.c.0.s8 %v5281
    %v5283 = vlaneseq
    %v5284 = vshrl.u32 %v5283, 7
    %v5285 = vsub.s32 %v5282, %v5284
    %v5286 = vrot.slane %v5039, %v5285
    %v5288 = vunpack.c.l.s4 1983009808
    %v5289 = vunpack.c.0.s8 %v5288
    %v5290 = vlaneseq
    %v5291 = vshrl.u32 %v5290, 7
    %v5292 = vsub.s32 %v5289, %v5291
    %v5293 = vrot.slane %v5279, %v5292
    %v5294 = vcombine.high %v5286, %v5286
    %v5295 = vcombine.high %v5293, %v5293
    %v5296 = vcombine.high %v5040, %v5040
    %v5298 = vunpack.c.l.s4 1983009808
    %v5299 = vunpack.c.0.s8 %v5298
    %v5300 = vlaneseq
    %v5301 = vshrl.u32 %v5300, 7
    %v5302 = vsub.s32 %v5299, %v5301
    %v5303 = vrot.slane %v5040, %v5302
    %v5305 = vunpack.c.l.s4 1983009808
    %v5306 = vunpack.c.0.s8 %v5305
    %v5307 = vlaneseq
    %v5308 = vshrl.u32 %v5307, 7
    %v5309 = vsub.s32 %v5306, %v5308
    %v5310 = vrot.slane %v5296, %v5309
    %v5311 = vcombine.high %v5303, %v5303
    %v5312 = vcombine.high %v5310, %v5310
    %v5313 = vcombine.high %v5041, %v5041
    %v5315 = vunpack.c.l.s4 1983009808
    %v5316 = vunpack.c.0.s8 %v5315
    %v5317 = vlaneseq
    %v5318 = vshrl.u32 %v5317, 7
    %v5319 = vsub.s32 %v5316, %v5318
    %v5320 = vrot.slane %v5041, %v5319
    %v5322 = vunpack.c.l.s4 1983009808
    %v5323 = vunpack.c.0.s8 %v5322
    %v5324 = vlaneseq
    %v5325 = vshrl.u32 %v5324, 7
    %v5326 = vsub.s32 %v5323, %v5325
    %v5327 = vrot.slane %v5313, %v5326
    %v5328 = vcombine.high %v5320, %v5320
    %v5329 = vcombine.high %v5327, %v5327
    %v5330 = vcombine.high %v5042, %v5042
    %v5332 = vunpack.c.l.s4 1983009808
    %v5333 = vunpack.c.0.s8 %v5332
    %v5334 = vlaneseq
    %v5335 = vshrl.u32 %v5334, 7
    %v5336 = vsub.s32 %v5333, %v5335
    %v5337 = vrot.slane %v5042, %v5336
    %v5339 = vunpack.c.l.s4 1983009808
    %v5340 = vunpack.c.0.s8 %v5339
    %v5341 = vlaneseq
    %v5342 = vshrl.u32 %v5341, 7
    %v5343 = vsub.s32 %v5340, %v5342
    %v5344 = vrot.slane %v5330, %v5343
    %v5345 = vcombine.high %v5337, %v5337
    %v5346 = vcombine.high %v5344, %v5344
    %v5347 = vcombine.high %v5043, %v5043
    %v5349 = vunpack.c.l.s4 1983009808
    %v5350 = vunpack.c.0.s8 %v5349
    %v5351 = vlaneseq
    %v5352 = vshrl.u32 %v5351, 7
    %v5353 = vsub.s32 %v5350, %v5352
    %v5354 = vrot.slane %v5043, %v5353
    %v5356 = vunpack.c.l.s4 1983009808
    %v5357 = vunpack.c.0.s8 %v5356
    %v5358 = vlaneseq
    %v5359 = vshrl.u32 %v5358, 7
    %v5360 = vsub.s32 %v5357, %v5359
    %v5361 = vrot.slane %v5347, %v5360
    %v5362 = vcombine.high %v5354, %v5354
    %v5363 = vcombine.high %v5361, %v5361
    %v5364 = vcombine.high %v5044, %v5044
    %v5366 = vunpack.c.l.s4 1983009808
    %v5367 = vunpack.c.0.s8 %v5366
    %v5368 = vlaneseq
    %v5369 = vshrl.u32 %v5368, 7
    %v5370 = vsub.s32 %v5367, %v5369
    %v5371 = vrot.slane %v5044, %v5370
    %v5373 = vunpack.c.l.s4 1983009808
    %v5374 = vunpack.c.0.s8 %v5373
    %v5375 = vlaneseq
    %v5376 = vshrl.u32 %v5375, 7
    %v5377 = vsub.s32 %v5374, %v5376
    %v5378 = vrot.slane %v5364, %v5377
    %v5379 = vcombine.high %v5371, %v5371
    %v5380 = vcombine.high %v5378, %v5378
    %v5381 = vcombine.high %v5045, %v5045
    %v5383 = vunpack.c.l.s4 1983009808
    %v5384 = vunpack.c.0.s8 %v5383
    %v5385 = vlaneseq
    %v5386 = vshrl.u32 %v5385, 7
    %v5387 = vsub.s32 %v5384, %v5386
    %v5388 = vrot.slane %v5045, %v5387
    %v5390 = vunpack.c.l.s4 1983009808
    %v5391 = vunpack.c.0.s8 %v5390
    %v5392 = vlaneseq
    %v5393 = vshrl.u32 %v5392, 7
    %v5394 = vsub.s32 %v5391, %v5393
    %v5395 = vrot.slane %v5381, %v5394
    %v5396 = vcombine.high %v5388, %v5388
    %v5397 = vcombine.high %v5395, %v5395
    %v5398 = vcombine.high %v5046, %v5046
    %v5400 = vunpack.c.l.s4 1983009808
    %v5401 = vunpack.c.0.s8 %v5400
    %v5402 = vlaneseq
    %v5403 = vshrl.u32 %v5402, 7
    %v5404 = vsub.s32 %v5401, %v5403
    %v5405 = vrot.slane %v5046, %v5404
    %v5407 = vunpack.c.l.s4 1983009808
    %v5408 = vunpack.c.0.s8 %v5407
    %v5409 = vlaneseq
    %v5410 = vshrl.u32 %v5409, 7
    %v5411 = vsub.s32 %v5408, %v5410
    %v5412 = vrot.slane %v5398, %v5411
    %v5413 = vcombine.high %v5405, %v5405
    %v5414 = vcombine.high %v5412, %v5412
    %v5415 = vcombine.high %v5047, %v5047
    %v5417 = vunpack.c.l.s4 1983009808
    %v5418 = vunpack.c.0.s8 %v5417
    %v5419 = vlaneseq
    %v5420 = vshrl.u32 %v5419, 7
    %v5421 = vsub.s32 %v5418, %v5420
    %v5422 = vrot.slane %v5047, %v5421
    %v5424 = vunpack.c.l.s4 1983009808
    %v5425 = vunpack.c.0.s8 %v5424
    %v5426 = vlaneseq
    %v5427 = vshrl.u32 %v5426, 7
    %v5428 = vsub.s32 %v5425, %v5427
    %v5429 = vrot.slane %v5415, %v5428
    %v5430 = vcombine.high %v5422, %v5422
    %v5431 = vcombine.high %v5429, %v5429
    %v5432 = vcombine.high %v5048, %v5048
    %v5434 = vunpack.c.l.s4 1983009808
    %v5435 = vunpack.c.0.s8 %v5434
    %v5436 = vlaneseq
    %v5437 = vshrl.u32 %v5436, 7
    %v5438 = vsub.s32 %v5435, %v5437
    %v5439 = vrot.slane %v5048, %v5438
    %v5441 = vunpack.c.l.s4 1983009808
    %v5442 = vunpack.c.0.s8 %v5441
    %v5443 = vlaneseq
    %v5444 = vshrl.u32 %v5443, 7
    %v5445 = vsub.s32 %v5442, %v5444
    %v5446 = vrot.slane %v5432, %v5445
    %v5447 = vcombine.high %v5439, %v5439
    %v5448 = vcombine.high %v5446, %v5446
    %v5449 = vcombine.high %v5049, %v5049
    %v5451 = vunpack.c.l.s4 1983009808
    %v5452 = vunpack.c.0.s8 %v5451
    %v5453 = vlaneseq
    %v5454 = vshrl.u32 %v5453, 7
    %v5455 = vsub.s32 %v5452, %v5454
    %v5456 = vrot.slane %v5049, %v5455
    %v5458 = vunpack.c.l.s4 1983009808
    %v5459 = vunpack.c.0.s8 %v5458
    %v5460 = vlaneseq
    %v5461 = vshrl.u32 %v5460, 7
    %v5462 = vsub.s32 %v5459, %v5461
    %v5463 = vrot.slane %v5449, %v5462
    %v5464 = vcombine.high %v5456, %v5456
    %v5465 = vcombine.high %v5463, %v5463
    %v5466 = vcombine.high %v5050, %v5050
    %v5468 = vunpack.c.l.s4 1983009808
    %v5469 = vunpack.c.0.s8 %v5468
    %v5470 = vlaneseq
    %v5471 = vshrl.u32 %v5470, 7
    %v5472 = vsub.s32 %v5469, %v5471
    %v5473 = vrot.slane %v5050, %v5472
    %v5475 = vunpack.c.l.s4 1983009808
    %v5476 = vunpack.c.0.s8 %v5475
    %v5477 = vlaneseq
    %v5478 = vshrl.u32 %v5477, 7
    %v5479 = vsub.s32 %v5476, %v5478
    %v5480 = vrot.slane %v5466, %v5479
    %v5481 = vcombine.high %v5473, %v5473
    %v5482 = vcombine.high %v5480, %v5480
    %v5499 = vcombine.high %v5083, %v5083
    %v5501 = vunpack.c.l.s4 1983009808
    %v5502 = vunpack.c.0.s8 %v5501
    %v5503 = vlaneseq
    %v5504 = vshrl.u32 %v5503, 7
    %v5505 = vsub.s32 %v5502, %v5504
    %v5506 = vrot.slane %v5083, %v5505
    %v5508 = vunpack.c.l.s4 1983009808
    %v5509 = vunpack.c.0.s8 %v5508
    %v5510 = vlaneseq
    %v5511 = vshrl.u32 %v5510, 7
    %v5512 = vsub.s32 %v5509, %v5511
    %v5513 = vrot.slane %v5499, %v5512
    %v5514 = vcombine.high %v5506, %v5506
    %v5515 = vcombine.high %v5513, %v5513
    %v5516 = vcombine.high %v5084, %v5084
    %v5518 = vunpack.c.l.s4 1983009808
    %v5519 = vunpack.c.0.s8 %v5518
    %v5520 = vlaneseq
    %v5521 = vshrl.u32 %v5520, 7
    %v5522 = vsub.s32 %v5519, %v5521
    %v5523 = vrot.slane %v5084, %v5522
    %v5525 = vunpack.c.l.s4 1983009808
    %v5526 = vunpack.c.0.s8 %v5525
    %v5527 = vlaneseq
    %v5528 = vshrl.u32 %v5527, 7
    %v5529 = vsub.s32 %v5526, %v5528
    %v5530 = vrot.slane %v5516, %v5529
    %v5531 = vcombine.high %v5523, %v5523
    %v5532 = vcombine.high %v5530, %v5530
    %v5533 = vcombine.high %v5085, %v5085
    %v5535 = vunpack.c.l.s4 1983009808
    %v5536 = vunpack.c.0.s8 %v5535
    %v5537 = vlaneseq
    %v5538 = vshrl.u32 %v5537, 7
    %v5539 = vsub.s32 %v5536, %v5538
    %v5540 = vrot.slane %v5085, %v5539
    %v5542 = vunpack.c.l.s4 1983009808
    %v5543 = vunpack.c.0.s8 %v5542
    %v5544 = vlaneseq
    %v5545 = vshrl.u32 %v5544, 7
    %v5546 = vsub.s32 %v5543, %v5545
    %v5547 = vrot.slane %v5533, %v5546
    %v5548 = vcombine.high %v5540, %v5540
    %v5549 = vcombine.high %v5547, %v5547
    %v5550 = vcombine.high %v5086, %v5086
    %v5552 = vunpack.c.l.s4 1983009808
    %v5553 = vunpack.c.0.s8 %v5552
    %v5554 = vlaneseq
    %v5555 = vshrl.u32 %v5554, 7
    %v5556 = vsub.s32 %v5553, %v5555
    %v5557 = vrot.slane %v5086, %v5556
    %v5559 = vunpack.c.l.s4 1983009808
    %v5560 = vunpack.c.0.s8 %v5559
    %v5561 = vlaneseq
    %v5562 = vshrl.u32 %v5561, 7
    %v5563 = vsub.s32 %v5560, %v5562
    %v5564 = vrot.slane %v5550, %v5563
    %v5565 = vcombine.high %v5557, %v5557
    %v5566 = vcombine.high %v5564, %v5564
    %v5567 = vcombine.high %v5087, %v5087
    %v5569 = vunpack.c.l.s4 1983009808
    %v5570 = vunpack.c.0.s8 %v5569
    %v5571 = vlaneseq
    %v5572 = vshrl.u32 %v5571, 7
    %v5573 = vsub.s32 %v5570, %v5572
    %v5574 = vrot.slane %v5087, %v5573
    %v5576 = vunpack.c.l.s4 1983009808
    %v5577 = vunpack.c.0.s8 %v5576
    %v5578 = vlaneseq
    %v5579 = vshrl.u32 %v5578, 7
    %v5580 = vsub.s32 %v5577, %v5579
    %v5581 = vrot.slane %v5567, %v5580
    %v5582 = vcombine.high %v5574, %v5574
    %v5583 = vcombine.high %v5581, %v5581
    %v5584 = vcombine.high %v5088, %v5088
    %v5586 = vunpack.c.l.s4 1983009808
    %v5587 = vunpack.c.0.s8 %v5586
    %v5588 = vlaneseq
    %v5589 = vshrl.u32 %v5588, 7
    %v5590 = vsub.s32 %v5587, %v5589
    %v5591 = vrot.slane %v5088, %v5590
    %v5593 = vunpack.c.l.s4 1983009808
    %v5594 = vunpack.c.0.s8 %v5593
    %v5595 = vlaneseq
    %v5596 = vshrl.u32 %v5595, 7
    %v5597 = vsub.s32 %v5594, %v5596
    %v5598 = vrot.slane %v5584, %v5597
    %v5599 = vcombine.high %v5591, %v5591
    %v5600 = vcombine.high %v5598, %v5598
    %v5601 = vcombine.high %v5089, %v5089
    %v5603 = vunpack.c.l.s4 1983009808
    %v5604 = vunpack.c.0.s8 %v5603
    %v5605 = vlaneseq
    %v5606 = vshrl.u32 %v5605, 7
    %v5607 = vsub.s32 %v5604, %v5606
    %v5608 = vrot.slane %v5089, %v5607
    %v5610 = vunpack.c.l.s4 1983009808
    %v5611 = vunpack.c.0.s8 %v5610
    %v5612 = vlaneseq
    %v5613 = vshrl.u32 %v5612, 7
    %v5614 = vsub.s32 %v5611, %v5613
    %v5615 = vrot.slane %v5601, %v5614
    %v5616 = vcombine.high %v5608, %v5608
    %v5617 = vcombine.high %v5615, %v5615
    %v5618 = vcombine.high %v5090, %v5090
    %v5620 = vunpack.c.l.s4 1983009808
    %v5621 = vunpack.c.0.s8 %v5620
    %v5622 = vlaneseq
    %v5623 = vshrl.u32 %v5622, 7
    %v5624 = vsub.s32 %v5621, %v5623
    %v5625 = vrot.slane %v5090, %v5624
    %v5627 = vunpack.c.l.s4 1983009808
    %v5628 = vunpack.c.0.s8 %v5627
    %v5629 = vlaneseq
    %v5630 = vshrl.u32 %v5629, 7
    %v5631 = vsub.s32 %v5628, %v5630
    %v5632 = vrot.slane %v5618, %v5631
    %v5633 = vcombine.high %v5625, %v5625
    %v5634 = vcombine.high %v5632, %v5632
    %v5635 = vcombine.high %v5091, %v5091
    %v5637 = vunpack.c.l.s4 1983009808
    %v5638 = vunpack.c.0.s8 %v5637
    %v5639 = vlaneseq
    %v5640 = vshrl.u32 %v5639, 7
    %v5641 = vsub.s32 %v5638, %v5640
    %v5642 = vrot.slane %v5091, %v5641
    %v5644 = vunpack.c.l.s4 1983009808
    %v5645 = vunpack.c.0.s8 %v5644
    %v5646 = vlaneseq
    %v5647 = vshrl.u32 %v5646, 7
    %v5648 = vsub.s32 %v5645, %v5647
    %v5649 = vrot.slane %v5635, %v5648
    %v5650 = vcombine.high %v5642, %v5642
    %v5651 = vcombine.high %v5649, %v5649
    %v5652 = vcombine.high %v5092, %v5092
    %v5654 = vunpack.c.l.s4 1983009808
    %v5655 = vunpack.c.0.s8 %v5654
    %v5656 = vlaneseq
    %v5657 = vshrl.u32 %v5656, 7
    %v5658 = vsub.s32 %v5655, %v5657
    %v5659 = vrot.slane %v5092, %v5658
    %v5661 = vunpack.c.l.s4 1983009808
    %v5662 = vunpack.c.0.s8 %v5661
    %v5663 = vlaneseq
    %v5664 = vshrl.u32 %v5663, 7
    %v5665 = vsub.s32 %v5662, %v5664
    %v5666 = vrot.slane %v5652, %v5665
    %v5667 = vcombine.high %v5659, %v5659
    %v5668 = vcombine.high %v5666, %v5666
    %v5669 = vcombine.high %v5093, %v5093
    %v5671 = vunpack.c.l.s4 1983009808
    %v5672 = vunpack.c.0.s8 %v5671
    %v5673 = vlaneseq
    %v5674 = vshrl.u32 %v5673, 7
    %v5675 = vsub.s32 %v5672, %v5674
    %v5676 = vrot.slane %v5093, %v5675
    %v5678 = vunpack.c.l.s4 1983009808
    %v5679 = vunpack.c.0.s8 %v5678
    %v5680 = vlaneseq
    %v5681 = vshrl.u32 %v5680, 7
    %v5682 = vsub.s32 %v5679, %v5681
    %v5683 = vrot.slane %v5669, %v5682
    %v5684 = vcombine.high %v5676, %v5676
    %v5685 = vcombine.high %v5683, %v5683
    %v5686 = vcombine.high %v5094, %v5094
    %v5688 = vunpack.c.l.s4 1983009808
    %v5689 = vunpack.c.0.s8 %v5688
    %v5690 = vlaneseq
    %v5691 = vshrl.u32 %v5690, 7
    %v5692 = vsub.s32 %v5689, %v5691
    %v5693 = vrot.slane %v5094, %v5692
    %v5695 = vunpack.c.l.s4 1983009808
    %v5696 = vunpack.c.0.s8 %v5695
    %v5697 = vlaneseq
    %v5698 = vshrl.u32 %v5697, 7
    %v5699 = vsub.s32 %v5696, %v5698
    %v5700 = vrot.slane %v5686, %v5699
    %v5701 = vcombine.high %v5693, %v5693
    %v5702 = vcombine.high %v5700, %v5700
    %v5703 = vcombine.high %v5095, %v5095
    %v5705 = vunpack.c.l.s4 1983009808
    %v5706 = vunpack.c.0.s8 %v5705
    %v5707 = vlaneseq
    %v5708 = vshrl.u32 %v5707, 7
    %v5709 = vsub.s32 %v5706, %v5708
    %v5710 = vrot.slane %v5095, %v5709
    %v5712 = vunpack.c.l.s4 1983009808
    %v5713 = vunpack.c.0.s8 %v5712
    %v5714 = vlaneseq
    %v5715 = vshrl.u32 %v5714, 7
    %v5716 = vsub.s32 %v5713, %v5715
    %v5717 = vrot.slane %v5703, %v5716
    %v5718 = vcombine.high %v5710, %v5710
    %v5719 = vcombine.high %v5717, %v5717
    %v5720 = vcombine.high %v5096, %v5096
    %v5722 = vunpack.c.l.s4 1983009808
    %v5723 = vunpack.c.0.s8 %v5722
    %v5724 = vlaneseq
    %v5725 = vshrl.u32 %v5724, 7
    %v5726 = vsub.s32 %v5723, %v5725
    %v5727 = vrot.slane %v5096, %v5726
    %v5729 = vunpack.c.l.s4 1983009808
    %v5730 = vunpack.c.0.s8 %v5729
    %v5731 = vlaneseq
    %v5732 = vshrl.u32 %v5731, 7
    %v5733 = vsub.s32 %v5730, %v5732
    %v5734 = vrot.slane %v5720, %v5733
    %v5735 = vcombine.high %v5727, %v5727
    %v5736 = vcombine.high %v5734, %v5734
    %v5737 = vcombine.high %v5097, %v5097
    %v5739 = vunpack.c.l.s4 1983009808
    %v5740 = vunpack.c.0.s8 %v5739
    %v5741 = vlaneseq
    %v5742 = vshrl.u32 %v5741, 7
    %v5743 = vsub.s32 %v5740, %v5742
    %v5744 = vrot.slane %v5097, %v5743
    %v5746 = vunpack.c.l.s4 1983009808
    %v5747 = vunpack.c.0.s8 %v5746
    %v5748 = vlaneseq
    %v5749 = vshrl.u32 %v5748, 7
    %v5750 = vsub.s32 %v5747, %v5749
    %v5751 = vrot.slane %v5737, %v5750
    %v5752 = vcombine.high %v5744, %v5744
    %v5753 = vcombine.high %v5751, %v5751
    %v5754 = vcombine.high %v5098, %v5098
    %v5756 = vunpack.c.l.s4 1983009808
    %v5757 = vunpack.c.0.s8 %v5756
    %v5758 = vlaneseq
    %v5759 = vshrl.u32 %v5758, 7
    %v5760 = vsub.s32 %v5757, %v5759
    %v5761 = vrot.slane %v5098, %v5760
    %v5763 = vunpack.c.l.s4 1983009808
    %v5764 = vunpack.c.0.s8 %v5763
    %v5765 = vlaneseq
    %v5766 = vshrl.u32 %v5765, 7
    %v5767 = vsub.s32 %v5764, %v5766
    %v5768 = vrot.slane %v5754, %v5767
    %v5769 = vcombine.high %v5761, %v5761
    %v5770 = vcombine.high %v5768, %v5768
    %v5787 = vcombine.high %v5131, %v5131
    %v5789 = vunpack.c.l.s4 1983009808
    %v5790 = vunpack.c.0.s8 %v5789
    %v5791 = vlaneseq
    %v5792 = vshrl.u32 %v5791, 7
    %v5793 = vsub.s32 %v5790, %v5792
    %v5794 = vrot.slane %v5131, %v5793
    %v5796 = vunpack.c.l.s4 1983009808
    %v5797 = vunpack.c.0.s8 %v5796
    %v5798 = vlaneseq
    %v5799 = vshrl.u32 %v5798, 7
    %v5800 = vsub.s32 %v5797, %v5799
    %v5801 = vrot.slane %v5787, %v5800
    %v5802 = vcombine.high %v5794, %v5794
    %v5803 = vcombine.high %v5801, %v5801
    %v5804 = vcombine.high %v5132, %v5132
    %v5806 = vunpack.c.l.s4 1983009808
    %v5807 = vunpack.c.0.s8 %v5806
    %v5808 = vlaneseq
    %v5809 = vshrl.u32 %v5808, 7
    %v5810 = vsub.s32 %v5807, %v5809
    %v5811 = vrot.slane %v5132, %v5810
    %v5813 = vunpack.c.l.s4 1983009808
    %v5814 = vunpack.c.0.s8 %v5813
    %v5815 = vlaneseq
    %v5816 = vshrl.u32 %v5815, 7
    %v5817 = vsub.s32 %v5814, %v5816
    %v5818 = vrot.slane %v5804, %v5817
    %v5819 = vcombine.high %v5811, %v5811
    %v5820 = vcombine.high %v5818, %v5818
    %v5821 = vcombine.high %v5133, %v5133
    %v5823 = vunpack.c.l.s4 1983009808
    %v5824 = vunpack.c.0.s8 %v5823
    %v5825 = vlaneseq
    %v5826 = vshrl.u32 %v5825, 7
    %v5827 = vsub.s32 %v5824, %v5826
    %v5828 = vrot.slane %v5133, %v5827
    %v5830 = vunpack.c.l.s4 1983009808
    %v5831 = vunpack.c.0.s8 %v5830
    %v5832 = vlaneseq
    %v5833 = vshrl.u32 %v5832, 7
    %v5834 = vsub.s32 %v5831, %v5833
    %v5835 = vrot.slane %v5821, %v5834
    %v5836 = vcombine.high %v5828, %v5828
    %v5837 = vcombine.high %v5835, %v5835
    %v5838 = vcombine.high %v5134, %v5134
    %v5840 = vunpack.c.l.s4 1983009808
    %v5841 = vunpack.c.0.s8 %v5840
    %v5842 = vlaneseq
    %v5843 = vshrl.u32 %v5842, 7
    %v5844 = vsub.s32 %v5841, %v5843
    %v5845 = vrot.slane %v5134, %v5844
    %v5847 = vunpack.c.l.s4 1983009808
    %v5848 = vunpack.c.0.s8 %v5847
    %v5849 = vlaneseq
    %v5850 = vshrl.u32 %v5849, 7
    %v5851 = vsub.s32 %v5848, %v5850
    %v5852 = vrot.slane %v5838, %v5851
    %v5853 = vcombine.high %v5845, %v5845
    %v5854 = vcombine.high %v5852, %v5852
    %v5855 = vcombine.high %v5135, %v5135
    %v5857 = vunpack.c.l.s4 1983009808
    %v5858 = vunpack.c.0.s8 %v5857
    %v5859 = vlaneseq
    %v5860 = vshrl.u32 %v5859, 7
    %v5861 = vsub.s32 %v5858, %v5860
    %v5862 = vrot.slane %v5135, %v5861
    %v5864 = vunpack.c.l.s4 1983009808
    %v5865 = vunpack.c.0.s8 %v5864
    %v5866 = vlaneseq
    %v5867 = vshrl.u32 %v5866, 7
    %v5868 = vsub.s32 %v5865, %v5867
    %v5869 = vrot.slane %v5855, %v5868
    %v5870 = vcombine.high %v5862, %v5862
    %v5871 = vcombine.high %v5869, %v5869
    %v5872 = vcombine.high %v5136, %v5136
    %v5874 = vunpack.c.l.s4 1983009808
    %v5875 = vunpack.c.0.s8 %v5874
    %v5876 = vlaneseq
    %v5877 = vshrl.u32 %v5876, 7
    %v5878 = vsub.s32 %v5875, %v5877
    %v5879 = vrot.slane %v5136, %v5878
    %v5881 = vunpack.c.l.s4 1983009808
    %v5882 = vunpack.c.0.s8 %v5881
    %v5883 = vlaneseq
    %v5884 = vshrl.u32 %v5883, 7
    %v5885 = vsub.s32 %v5882, %v5884
    %v5886 = vrot.slane %v5872, %v5885
    %v5887 = vcombine.high %v5879, %v5879
    %v5888 = vcombine.high %v5886, %v5886
    %v5889 = vcombine.high %v5137, %v5137
    %v5891 = vunpack.c.l.s4 1983009808
    %v5892 = vunpack.c.0.s8 %v5891
    %v5893 = vlaneseq
    %v5894 = vshrl.u32 %v5893, 7
    %v5895 = vsub.s32 %v5892, %v5894
    %v5896 = vrot.slane %v5137, %v5895
    %v5898 = vunpack.c.l.s4 1983009808
    %v5899 = vunpack.c.0.s8 %v5898
    %v5900 = vlaneseq
    %v5901 = vshrl.u32 %v5900, 7
    %v5902 = vsub.s32 %v5899, %v5901
    %v5903 = vrot.slane %v5889, %v5902
    %v5904 = vcombine.high %v5896, %v5896
    %v5905 = vcombine.high %v5903, %v5903
    %v5906 = vcombine.high %v5138, %v5138
    %v5908 = vunpack.c.l.s4 1983009808
    %v5909 = vunpack.c.0.s8 %v5908
    %v5910 = vlaneseq
    %v5911 = vshrl.u32 %v5910, 7
    %v5912 = vsub.s32 %v5909, %v5911
    %v5913 = vrot.slane %v5138, %v5912
    %v5915 = vunpack.c.l.s4 1983009808
    %v5916 = vunpack.c.0.s8 %v5915
    %v5917 = vlaneseq
    %v5918 = vshrl.u32 %v5917, 7
    %v5919 = vsub.s32 %v5916, %v5918
    %v5920 = vrot.slane %v5906, %v5919
    %v5921 = vcombine.high %v5913, %v5913
    %v5922 = vcombine.high %v5920, %v5920
    %v5923 = vcombine.high %v5139, %v5139
    %v5925 = vunpack.c.l.s4 1983009808
    %v5926 = vunpack.c.0.s8 %v5925
    %v5927 = vlaneseq
    %v5928 = vshrl.u32 %v5927, 7
    %v5929 = vsub.s32 %v5926, %v5928
    %v5930 = vrot.slane %v5139, %v5929
    %v5932 = vunpack.c.l.s4 1983009808
    %v5933 = vunpack.c.0.s8 %v5932
    %v5934 = vlaneseq
    %v5935 = vshrl.u32 %v5934, 7
    %v5936 = vsub.s32 %v5933, %v5935
    %v5937 = vrot.slane %v5923, %v5936
    %v5938 = vcombine.high %v5930, %v5930
    %v5939 = vcombine.high %v5937, %v5937
    %v5940 = vcombine.high %v5140, %v5140
    %v5942 = vunpack.c.l.s4 1983009808
    %v5943 = vunpack.c.0.s8 %v5942
    %v5944 = vlaneseq
    %v5945 = vshrl.u32 %v5944, 7
    %v5946 = vsub.s32 %v5943, %v5945
    %v5947 = vrot.slane %v5140, %v5946
    %v5949 = vunpack.c.l.s4 1983009808
    %v5950 = vunpack.c.0.s8 %v5949
    %v5951 = vlaneseq
    %v5952 = vshrl.u32 %v5951, 7
    %v5953 = vsub.s32 %v5950, %v5952
    %v5954 = vrot.slane %v5940, %v5953
    %v5955 = vcombine.high %v5947, %v5947
    %v5956 = vcombine.high %v5954, %v5954
    %v5957 = vcombine.high %v5141, %v5141
    %v5959 = vunpack.c.l.s4 1983009808
    %v5960 = vunpack.c.0.s8 %v5959
    %v5961 = vlaneseq
    %v5962 = vshrl.u32 %v5961, 7
    %v5963 = vsub.s32 %v5960, %v5962
    %v5964 = vrot.slane %v5141, %v5963
    %v5966 = vunpack.c.l.s4 1983009808
    %v5967 = vunpack.c.0.s8 %v5966
    %v5968 = vlaneseq
    %v5969 = vshrl.u32 %v5968, 7
    %v5970 = vsub.s32 %v5967, %v5969
    %v5971 = vrot.slane %v5957, %v5970
    %v5972 = vcombine.high %v5964, %v5964
    %v5973 = vcombine.high %v5971, %v5971
    %v5974 = vcombine.high %v5142, %v5142
    %v5976 = vunpack.c.l.s4 1983009808
    %v5977 = vunpack.c.0.s8 %v5976
    %v5978 = vlaneseq
    %v5979 = vshrl.u32 %v5978, 7
    %v5980 = vsub.s32 %v5977, %v5979
    %v5981 = vrot.slane %v5142, %v5980
    %v5983 = vunpack.c.l.s4 1983009808
    %v5984 = vunpack.c.0.s8 %v5983
    %v5985 = vlaneseq
    %v5986 = vshrl.u32 %v5985, 7
    %v5987 = vsub.s32 %v5984, %v5986
    %v5988 = vrot.slane %v5974, %v5987
    %v5989 = vcombine.high %v5981, %v5981
    %v5990 = vcombine.high %v5988, %v5988
    %v5991 = vcombine.high %v5143, %v5143
    %v5993 = vunpack.c.l.s4 1983009808
    %v5994 = vunpack.c.0.s8 %v5993
    %v5995 = vlaneseq
    %v5996 = vshrl.u32 %v5995, 7
    %v5997 = vsub.s32 %v5994, %v5996
    %v5998 = vrot.slane %v5143, %v5997
    %v6000 = vunpack.c.l.s4 1983009808
    %v6001 = vunpack.c.0.s8 %v6000
    %v6002 = vlaneseq
    %v6003 = vshrl.u32 %v6002, 7
    %v6004 = vsub.s32 %v6001, %v6003
    %v6005 = vrot.slane %v5991, %v6004
    %v6006 = vcombine.high %v5998, %v5998
    %v6007 = vcombine.high %v6005, %v6005
    %v6008 = vcombine.high %v5144, %v5144
    %v6010 = vunpack.c.l.s4 1983009808
    %v6011 = vunpack.c.0.s8 %v6010
    %v6012 = vlaneseq
    %v6013 = vshrl.u32 %v6012, 7
    %v6014 = vsub.s32 %v6011, %v6013
    %v6015 = vrot.slane %v5144, %v6014
    %v6017 = vunpack.c.l.s4 1983009808
    %v6018 = vunpack.c.0.s8 %v6017
    %v6019 = vlaneseq
    %v6020 = vshrl.u32 %v6019, 7
    %v6021 = vsub.s32 %v6018, %v6020
    %v6022 = vrot.slane %v6008, %v6021
    %v6023 = vcombine.high %v6015, %v6015
    %v6024 = vcombine.high %v6022, %v6022
    %v6025 = vcombine.high %v5145, %v5145
    %v6027 = vunpack.c.l.s4 1983009808
    %v6028 = vunpack.c.0.s8 %v6027
    %v6029 = vlaneseq
    %v6030 = vshrl.u32 %v6029, 7
    %v6031 = vsub.s32 %v6028, %v6030
    %v6032 = vrot.slane %v5145, %v6031
    %v6034 = vunpack.c.l.s4 1983009808
    %v6035 = vunpack.c.0.s8 %v6034
    %v6036 = vlaneseq
    %v6037 = vshrl.u32 %v6036, 7
    %v6038 = vsub.s32 %v6035, %v6037
    %v6039 = vrot.slane %v6025, %v6038
    %v6040 = vcombine.high %v6032, %v6032
    %v6041 = vcombine.high %v6039, %v6039
    %v6042 = vcombine.high %v5146, %v5146
    %v6044 = vunpack.c.l.s4 1983009808
    %v6045 = vunpack.c.0.s8 %v6044
    %v6046 = vlaneseq
    %v6047 = vshrl.u32 %v6046, 7
    %v6048 = vsub.s32 %v6045, %v6047
    %v6049 = vrot.slane %v5146, %v6048
    %v6051 = vunpack.c.l.s4 1983009808
    %v6052 = vunpack.c.0.s8 %v6051
    %v6053 = vlaneseq
    %v6054 = vshrl.u32 %v6053, 7
    %v6055 = vsub.s32 %v6052, %v6054
    %v6056 = vrot.slane %v6042, %v6055
    %v6057 = vcombine.high %v6049, %v6049
    %v6058 = vcombine.high %v6056, %v6056
    %v6075 = vcombine.high %v5179, %v5179
    %v6077 = vunpack.c.l.s4 1983009808
    %v6078 = vunpack.c.0.s8 %v6077
    %v6079 = vlaneseq
    %v6080 = vshrl.u32 %v6079, 7
    %v6081 = vsub.s32 %v6078, %v6080
    %v6082 = vrot.slane %v5179, %v6081
    %v6084 = vunpack.c.l.s4 1983009808
    %v6085 = vunpack.c.0.s8 %v6084
    %v6086 = vlaneseq
    %v6087 = vshrl.u32 %v6086, 7
    %v6088 = vsub.s32 %v6085, %v6087
    %v6089 = vrot.slane %v6075, %v6088
    %v6090 = vcombine.high %v6082, %v6082
    %v6091 = vcombine.high %v6089, %v6089
    %v6092 = vcombine.high %v5180, %v5180
    %v6094 = vunpack.c.l.s4 1983009808
    %v6095 = vunpack.c.0.s8 %v6094
    %v6096 = vlaneseq
    %v6097 = vshrl.u32 %v6096, 7
    %v6098 = vsub.s32 %v6095, %v6097
    %v6099 = vrot.slane %v5180, %v6098
    %v6101 = vunpack.c.l.s4 1983009808
    %v6102 = vunpack.c.0.s8 %v6101
    %v6103 = vlaneseq
    %v6104 = vshrl.u32 %v6103, 7
    %v6105 = vsub.s32 %v6102, %v6104
    %v6106 = vrot.slane %v6092, %v6105
    %v6107 = vcombine.high %v6099, %v6099
    %v6108 = vcombine.high %v6106, %v6106
    %v6109 = vcombine.high %v5181, %v5181
    %v6111 = vunpack.c.l.s4 1983009808
    %v6112 = vunpack.c.0.s8 %v6111
    %v6113 = vlaneseq
    %v6114 = vshrl.u32 %v6113, 7
    %v6115 = vsub.s32 %v6112, %v6114
    %v6116 = vrot.slane %v5181, %v6115
    %v6118 = vunpack.c.l.s4 1983009808
    %v6119 = vunpack.c.0.s8 %v6118
    %v6120 = vlaneseq
    %v6121 = vshrl.u32 %v6120, 7
    %v6122 = vsub.s32 %v6119, %v6121
    %v6123 = vrot.slane %v6109, %v6122
    %v6124 = vcombine.high %v6116, %v6116
    %v6125 = vcombine.high %v6123, %v6123
    %v6126 = vcombine.high %v5182, %v5182
    %v6128 = vunpack.c.l.s4 1983009808
    %v6129 = vunpack.c.0.s8 %v6128
    %v6130 = vlaneseq
    %v6131 = vshrl.u32 %v6130, 7
    %v6132 = vsub.s32 %v6129, %v6131
    %v6133 = vrot.slane %v5182, %v6132
    %v6135 = vunpack.c.l.s4 1983009808
    %v6136 = vunpack.c.0.s8 %v6135
    %v6137 = vlaneseq
    %v6138 = vshrl.u32 %v6137, 7
    %v6139 = vsub.s32 %v6136, %v6138
    %v6140 = vrot.slane %v6126, %v6139
    %v6141 = vcombine.high %v6133, %v6133
    %v6142 = vcombine.high %v6140, %v6140
    %v6143 = vcombine.high %v5183, %v5183
    %v6145 = vunpack.c.l.s4 1983009808
    %v6146 = vunpack.c.0.s8 %v6145
    %v6147 = vlaneseq
    %v6148 = vshrl.u32 %v6147, 7
    %v6149 = vsub.s32 %v6146, %v6148
    %v6150 = vrot.slane %v5183, %v6149
    %v6152 = vunpack.c.l.s4 1983009808
    %v6153 = vunpack.c.0.s8 %v6152
    %v6154 = vlaneseq
    %v6155 = vshrl.u32 %v6154, 7
    %v6156 = vsub.s32 %v6153, %v6155
    %v6157 = vrot.slane %v6143, %v6156
    %v6158 = vcombine.high %v6150, %v6150
    %v6159 = vcombine.high %v6157, %v6157
    %v6160 = vcombine.high %v5184, %v5184
    %v6162 = vunpack.c.l.s4 1983009808
    %v6163 = vunpack.c.0.s8 %v6162
    %v6164 = vlaneseq
    %v6165 = vshrl.u32 %v6164, 7
    %v6166 = vsub.s32 %v6163, %v6165
    %v6167 = vrot.slane %v5184, %v6166
    %v6169 = vunpack.c.l.s4 1983009808
    %v6170 = vunpack.c.0.s8 %v6169
    %v6171 = vlaneseq
    %v6172 = vshrl.u32 %v6171, 7
    %v6173 = vsub.s32 %v6170, %v6172
    %v6174 = vrot.slane %v6160, %v6173
    %v6175 = vcombine.high %v6167, %v6167
    %v6176 = vcombine.high %v6174, %v6174
    %v6177 = vcombine.high %v5185, %v5185
    %v6179 = vunpack.c.l.s4 1983009808
    %v6180 = vunpack.c.0.s8 %v6179
    %v6181 = vlaneseq
    %v6182 = vshrl.u32 %v6181, 7
    %v6183 = vsub.s32 %v6180, %v6182
    %v6184 = vrot.slane %v5185, %v6183
    %v6186 = vunpack.c.l.s4 1983009808
    %v6187 = vunpack.c.0.s8 %v6186
    %v6188 = vlaneseq
    %v6189 = vshrl.u32 %v6188, 7
    %v6190 = vsub.s32 %v6187, %v6189
    %v6191 = vrot.slane %v6177, %v6190
    %v6192 = vcombine.high %v6184, %v6184
    %v6193 = vcombine.high %v6191, %v6191
    %v6194 = vcombine.high %v5186, %v5186
    %v6196 = vunpack.c.l.s4 1983009808
    %v6197 = vunpack.c.0.s8 %v6196
    %v6198 = vlaneseq
    %v6199 = vshrl.u32 %v6198, 7
    %v6200 = vsub.s32 %v6197, %v6199
    %v6201 = vrot.slane %v5186, %v6200
    %v6203 = vunpack.c.l.s4 1983009808
    %v6204 = vunpack.c.0.s8 %v6203
    %v6205 = vlaneseq
    %v6206 = vshrl.u32 %v6205, 7
    %v6207 = vsub.s32 %v6204, %v6206
    %v6208 = vrot.slane %v6194, %v6207
    %v6209 = vcombine.high %v6201, %v6201
    %v6210 = vcombine.high %v6208, %v6208
    %v6211 = vcombine.high %v5187, %v5187
    %v6213 = vunpack.c.l.s4 1983009808
    %v6214 = vunpack.c.0.s8 %v6213
    %v6215 = vlaneseq
    %v6216 = vshrl.u32 %v6215, 7
    %v6217 = vsub.s32 %v6214, %v6216
    %v6218 = vrot.slane %v5187, %v6217
    %v6220 = vunpack.c.l.s4 1983009808
    %v6221 = vunpack.c.0.s8 %v6220
    %v6222 = vlaneseq
    %v6223 = vshrl.u32 %v6222, 7
    %v6224 = vsub.s32 %v6221, %v6223
    %v6225 = vrot.slane %v6211, %v6224
    %v6226 = vcombine.high %v6218, %v6218
    %v6227 = vcombine.high %v6225, %v6225
    %v6228 = vcombine.high %v5188, %v5188
    %v6230 = vunpack.c.l.s4 1983009808
    %v6231 = vunpack.c.0.s8 %v6230
    %v6232 = vlaneseq
    %v6233 = vshrl.u32 %v6232, 7
    %v6234 = vsub.s32 %v6231, %v6233
    %v6235 = vrot.slane %v5188, %v6234
    %v6237 = vunpack.c.l.s4 1983009808
    %v6238 = vunpack.c.0.s8 %v6237
    %v6239 = vlaneseq
    %v6240 = vshrl.u32 %v6239, 7
    %v6241 = vsub.s32 %v6238, %v6240
    %v6242 = vrot.slane %v6228, %v6241
    %v6243 = vcombine.high %v6235, %v6235
    %v6244 = vcombine.high %v6242, %v6242
    %v6245 = vcombine.high %v5189, %v5189
    %v6247 = vunpack.c.l.s4 1983009808
    %v6248 = vunpack.c.0.s8 %v6247
    %v6249 = vlaneseq
    %v6250 = vshrl.u32 %v6249, 7
    %v6251 = vsub.s32 %v6248, %v6250
    %v6252 = vrot.slane %v5189, %v6251
    %v6254 = vunpack.c.l.s4 1983009808
    %v6255 = vunpack.c.0.s8 %v6254
    %v6256 = vlaneseq
    %v6257 = vshrl.u32 %v6256, 7
    %v6258 = vsub.s32 %v6255, %v6257
    %v6259 = vrot.slane %v6245, %v6258
    %v6260 = vcombine.high %v6252, %v6252
    %v6261 = vcombine.high %v6259, %v6259
    %v6262 = vcombine.high %v5190, %v5190
    %v6264 = vunpack.c.l.s4 1983009808
    %v6265 = vunpack.c.0.s8 %v6264
    %v6266 = vlaneseq
    %v6267 = vshrl.u32 %v6266, 7
    %v6268 = vsub.s32 %v6265, %v6267
    %v6269 = vrot.slane %v5190, %v6268
    %v6271 = vunpack.c.l.s4 1983009808
    %v6272 = vunpack.c.0.s8 %v6271
    %v6273 = vlaneseq
    %v6274 = vshrl.u32 %v6273, 7
    %v6275 = vsub.s32 %v6272, %v6274
    %v6276 = vrot.slane %v6262, %v6275
    %v6277 = vcombine.high %v6269, %v6269
    %v6278 = vcombine.high %v6276, %v6276
    %v6279 = vcombine.high %v5191, %v5191
    %v6281 = vunpack.c.l.s4 1983009808
    %v6282 = vunpack.c.0.s8 %v6281
    %v6283 = vlaneseq
    %v6284 = vshrl.u32 %v6283, 7
    %v6285 = vsub.s32 %v6282, %v6284
    %v6286 = vrot.slane %v5191, %v6285
    %v6288 = vunpack.c.l.s4 1983009808
    %v6289 = vunpack.c.0.s8 %v6288
    %v6290 = vlaneseq
    %v6291 = vshrl.u32 %v6290, 7
    %v6292 = vsub.s32 %v6289, %v6291
    %v6293 = vrot.slane %v6279, %v6292
    %v6294 = vcombine.high %v6286, %v6286
    %v6295 = vcombine.high %v6293, %v6293
    %v6296 = vcombine.high %v5192, %v5192
    %v6298 = vunpack.c.l.s4 1983009808
    %v6299 = vunpack.c.0.s8 %v6298
    %v6300 = vlaneseq
    %v6301 = vshrl.u32 %v6300, 7
    %v6302 = vsub.s32 %v6299, %v6301
    %v6303 = vrot.slane %v5192, %v6302
    %v6305 = vunpack.c.l.s4 1983009808
    %v6306 = vunpack.c.0.s8 %v6305
    %v6307 = vlaneseq
    %v6308 = vshrl.u32 %v6307, 7
    %v6309 = vsub.s32 %v6306, %v6308
    %v6310 = vrot.slane %v6296, %v6309
    %v6311 = vcombine.high %v6303, %v6303
    %v6312 = vcombine.high %v6310, %v6310
    %v6313 = vcombine.high %v5193, %v5193
    %v6315 = vunpack.c.l.s4 1983009808
    %v6316 = vunpack.c.0.s8 %v6315
    %v6317 = vlaneseq
    %v6318 = vshrl.u32 %v6317, 7
    %v6319 = vsub.s32 %v6316, %v6318
    %v6320 = vrot.slane %v5193, %v6319
    %v6322 = vunpack.c.l.s4 1983009808
    %v6323 = vunpack.c.0.s8 %v6322
    %v6324 = vlaneseq
    %v6325 = vshrl.u32 %v6324, 7
    %v6326 = vsub.s32 %v6323, %v6325
    %v6327 = vrot.slane %v6313, %v6326
    %v6328 = vcombine.high %v6320, %v6320
    %v6329 = vcombine.high %v6327, %v6327
    %v6330 = vcombine.high %v5194, %v5194
    %v6332 = vunpack.c.l.s4 1983009808
    %v6333 = vunpack.c.0.s8 %v6332
    %v6334 = vlaneseq
    %v6335 = vshrl.u32 %v6334, 7
    %v6336 = vsub.s32 %v6333, %v6335
    %v6337 = vrot.slane %v5194, %v6336
    %v6339 = vunpack.c.l.s4 1983009808
    %v6340 = vunpack.c.0.s8 %v6339
    %v6341 = vlaneseq
    %v6342 = vshrl.u32 %v6341, 7
    %v6343 = vsub.s32 %v6340, %v6342
    %v6344 = vrot.slane %v6330, %v6343
    %v6345 = vcombine.high %v6337, %v6337
    %v6346 = vcombine.high %v6344, %v6344
    %v6347 = vcombine.low 0.0, %v5218
    %v6348 = vcombine.low %v5506, %v5226
    %v6350 = vunpack.c.l.s4 1983009808
    %v6351 = vunpack.c.0.s8 %v6350
    %v6352 = vlaneseq
    %v6353 = vshrl.u32 %v6352, 7
    %v6354 = vsub.s32 %v6351, %v6353
    %v6355 = vrot.slane %v6347, %v6354
    %v6357 = vunpack.c.l.s4 1983009808
    %v6358 = vunpack.c.0.s8 %v6357
    %v6359 = vlaneseq
    %v6360 = vshrl.u32 %v6359, 7
    %v6361 = vsub.s32 %v6358, %v6360
    %v6362 = vrot.slane %v6348, %v6361
    %v6363 = vcombine.low %v6355, %v6362
    %v6364 = vcombine.low %v5514, %v5225
    %v6365 = vcombine.low %v5513, %v5227
    %v6367 = vunpack.c.l.s4 1983009808
    %v6368 = vunpack.c.0.s8 %v6367
    %v6369 = vlaneseq
    %v6370 = vshrl.u32 %v6369, 7
    %v6371 = vsub.s32 %v6368, %v6370
    %v6372 = vrot.slane %v6364, %v6371
    %v6374 = vunpack.c.l.s4 1983009808
    %v6375 = vunpack.c.0.s8 %v6374
    %v6376 = vlaneseq
    %v6377 = vshrl.u32 %v6376, 7
    %v6378 = vsub.s32 %v6375, %v6377
    %v6379 = vrot.slane %v6365, %v6378
    %v6380 = vcombine.low %v6372, %v6379
    %v6381 = vcombine.low %v5515, %v5235
    %v6382 = vcombine.low %v5523, %v5243
    %v6384 = vunpack.c.l.s4 1983009808
    %v6385 = vunpack.c.0.s8 %v6384
    %v6386 = vlaneseq
    %v6387 = vshrl.u32 %v6386, 7
    %v6388 = vsub.s32 %v6385, %v6387
    %v6389 = vrot.slane %v6381, %v6388
    %v6391 = vunpack.c.l.s4 1983009808
    %v6392 = vunpack.c.0.s8 %v6391
    %v6393 = vlaneseq
    %v6394 = vshrl.u32 %v6393, 7
    %v6395 = vsub.s32 %v6392, %v6394
    %v6396 = vrot.slane %v6382, %v6395
    %v6397 = vcombine.low %v6389, %v6396
    %v6398 = vcombine.low %v5531, %v5242
    %v6399 = vcombine.low %v5530, %v5244
    %v6401 = vunpack.c.l.s4 1983009808
    %v6402 = vunpack.c.0.s8 %v6401
    %v6403 = vlaneseq
    %v6404 = vshrl.u32 %v6403, 7
    %v6405 = vsub.s32 %v6402, %v6404
    %v6406 = vrot.slane %v6398, %v6405
    %v6408 = vunpack.c.l.s4 1983009808
    %v6409 = vunpack.c.0.s8 %v6408
    %v6410 = vlaneseq
    %v6411 = vshrl.u32 %v6410, 7
    %v6412 = vsub.s32 %v6409, %v6411
    %v6413 = vrot.slane %v6399, %v6412
    %v6414 = vcombine.low %v6406, %v6413
    %v6415 = vcombine.low 0.0, %v5794
    %v6416 = vcombine.low %v6082, %v5802
    %v6418 = vunpack.c.l.s4 1983009808
    %v6419 = vunpack.c.0.s8 %v6418
    %v6420 = vlaneseq
    %v6421 = vshrl.u32 %v6420, 7
    %v6422 = vsub.s32 %v6419, %v6421
    %v6423 = vrot.slane %v6415, %v6422
    %v6425 = vunpack.c.l.s4 1983009808
    %v6426 = vunpack.c.0.s8 %v6425
    %v6427 = vlaneseq
    %v6428 = vshrl.u32 %v6427, 7
    %v6429 = vsub.s32 %v6426, %v6428
    %v6430 = vrot.slane %v6416, %v6429
    %v6431 = vcombine.low %v6423, %v6430
    %v6432 = vcombine.low %v6090, %v5801
    %v6433 = vcombine.low %v6089, %v5803
    %v6435 = vunpack.c.l.s4 1983009808
    %v6436 = vunpack.c.0.s8 %v6435
    %v6437 = vlaneseq
    %v6438 = vshrl.u32 %v6437, 7
    %v6439 = vsub.s32 %v6436, %v6438
    %v6440 = vrot.slane %v6432, %v6439
    %v6442 = vunpack.c.l.s4 1983009808
    %v6443 = vunpack.c.0.s8 %v6442
    %v6444 = vlaneseq
    %v6445 = vshrl.u32 %v6444, 7
    %v6446 = vsub.s32 %v6443, %v6445
    %v6447 = vrot.slane %v6433, %v6446
    %v6448 = vcombine.low %v6440, %v6447
    %v6449 = vcombine.low %v6091, %v5811
    %v6450 = vcombine.low %v6099, %v5819
    %v6452 = vunpack.c.l.s4 1983009808
    %v6453 = vunpack.c.0.s8 %v6452
    %v6454 = vlaneseq
    %v6455 = vshrl.u32 %v6454, 7
    %v6456 = vsub.s32 %v6453, %v6455
    %v6457 = vrot.slane %v6449, %v6456
    %v6459 = vunpack.c.l.s4 1983009808
    %v6460 = vunpack.c.0.s8 %v6459
    %v6461 = vlaneseq
    %v6462 = vshrl.u32 %v6461, 7
    %v6463 = vsub.s32 %v6460, %v6462
    %v6464 = vrot.slane %v6450, %v6463
    %v6465 = vcombine.low %v6457, %v6464
    %v6466 = vcombine.low %v6107, %v5818
    %v6467 = vcombine.low %v6106, %v5820
    %v6469 = vunpack.c.l.s4 1983009808
    %v6470 = vunpack.c.0.s8 %v6469
    %v6471 = vlaneseq
    %v6472 = vshrl.u32 %v6471, 7
    %v6473 = vsub.s32 %v6470, %v6472
    %v6474 = vrot.slane %v6466, %v6473
    %v6476 = vunpack.c.l.s4 1983009808
    %v6477 = vunpack.c.0.s8 %v6476
    %v6478 = vlaneseq
    %v6479 = vshrl.u32 %v6478, 7
    %v6480 = vsub.s32 %v6477, %v6479
    %v6481 = vrot.slane %v6467, %v6480
    %v6482 = vcombine.low %v6474, %v6481
    %v6483 = vcombine.low 0.0, %v5252
    %v6484 = vcombine.low %v5540, %v5260
    %v6486 = vunpack.c.l.s4 1983009808
    %v6487 = vunpack.c.0.s8 %v6486
    %v6488 = vlaneseq
    %v6489 = vshrl.u32 %v6488, 7
    %v6490 = vsub.s32 %v6487, %v6489
    %v6491 = vrot.slane %v6483, %v6490
    %v6493 = vunpack.c.l.s4 1983009808
    %v6494 = vunpack.c.0.s8 %v6493
    %v6495 = vlaneseq
    %v6496 = vshrl.u32 %v6495, 7
    %v6497 = vsub.s32 %v6494, %v6496
    %v6498 = vrot.slane %v6484, %v6497
    %v6499 = vcombine.low %v6491, %v6498
    %v6500 = vcombine.low %v5548, %v5259
    %v6501 = vcombine.low %v5547, %v5261
    %v6503 = vunpack.c.l.s4 1983009808
    %v6504 = vunpack.c.0.s8 %v6503
    %v6505 = vlaneseq
    %v6506 = vshrl.u32 %v6505, 7
    %v6507 = vsub.s32 %v6504, %v6506
    %v6508 = vrot.slane %v6500, %v6507
    %v6510 = vunpack.c.l.s4 1983009808
    %v6511 = vunpack.c.0.s8 %v6510
    %v6512 = vlaneseq
    %v6513 = vshrl.u32 %v6512, 7
    %v6514 = vsub.s32 %v6511, %v6513
    %v6515 = vrot.slane %v6501, %v6514
    %v6516 = vcombine.low %v6508, %v6515
    %v6517 = vcombine.low %v5549, %v5269
    %v6518 = vcombine.low %v5557, %v5277
    %v6520 = vunpack.c.l.s4 1983009808
    %v6521 = vunpack.c.0.s8 %v6520
    %v6522 = vlaneseq
    %v6523 = vshrl.u32 %v6522, 7
    %v6524 = vsub.s32 %v6521, %v6523
    %v6525 = vrot.slane %v6517, %v6524
    %v6527 = vunpack.c.l.s4 1983009808
    %v6528 = vunpack.c.0.s8 %v6527
    %v6529 = vlaneseq
    %v6530 = vshrl.u32 %v6529, 7
    %v6531 = vsub.s32 %v6528, %v6530
    %v6532 = vrot.slane %v6518, %v6531
    %v6533 = vcombine.low %v6525, %v6532
    %v6534 = vcombine.low %v5565, %v5276
    %v6535 = vcombine.low %v5564, %v5278
    %v6537 = vunpack.c.l.s4 1983009808
    %v6538 = vunpack.c.0.s8 %v6537
    %v6539 = vlaneseq
    %v6540 = vshrl.u32 %v6539, 7
    %v6541 = vsub.s32 %v6538, %v6540
    %v6542 = vrot.slane %v6534, %v6541
    %v6544 = vunpack.c.l.s4 1983009808
    %v6545 = vunpack.c.0.s8 %v6544
    %v6546 = vlaneseq
    %v6547 = vshrl.u32 %v6546, 7
    %v6548 = vsub.s32 %v6545, %v6547
    %v6549 = vrot.slane %v6535, %v6548
    %v6550 = vcombine.low %v6542, %v6549
    %v6551 = vcombine.low 0.0, %v5828
    %v6552 = vcombine.low %v6116, %v5836
    %v6554 = vunpack.c.l.s4 1983009808
    %v6555 = vunpack.c.0.s8 %v6554
    %v6556 = vlaneseq
    %v6557 = vshrl.u32 %v6556, 7
    %v6558 = vsub.s32 %v6555, %v6557
    %v6559 = vrot.slane %v6551, %v6558
    %v6561 = vunpack.c.l.s4 1983009808
    %v6562 = vunpack.c.0.s8 %v6561
    %v6563 = vlaneseq
    %v6564 = vshrl.u32 %v6563, 7
    %v6565 = vsub.s32 %v6562, %v6564
    %v6566 = vrot.slane %v6552, %v6565
    %v6567 = vcombine.low %v6559, %v6566
    %v6568 = vcombine.low %v6124, %v5835
    %v6569 = vcombine.low %v6123, %v5837
    %v6571 = vunpack.c.l.s4 1983009808
    %v6572 = vunpack.c.0.s8 %v6571
    %v6573 = vlaneseq
    %v6574 = vshrl.u32 %v6573, 7
    %v6575 = vsub.s32 %v6572, %v6574
    %v6576 = vrot.slane %v6568, %v6575
    %v6578 = vunpack.c.l.s4 1983009808
    %v6579 = vunpack.c.0.s8 %v6578
    %v6580 = vlaneseq
    %v6581 = vshrl.u32 %v6580, 7
    %v6582 = vsub.s32 %v6579, %v6581
    %v6583 = vrot.slane %v6569, %v6582
    %v6584 = vcombine.low %v6576, %v6583
    %v6585 = vcombine.low %v6125, %v5845
    %v6586 = vcombine.low %v6133, %v5853
    %v6588 = vunpack.c.l.s4 1983009808
    %v6589 = vunpack.c.0.s8 %v6588
    %v6590 = vlaneseq
    %v6591 = vshrl.u32 %v6590, 7
    %v6592 = vsub.s32 %v6589, %v6591
    %v6593 = vrot.slane %v6585, %v6592
    %v6595 = vunpack.c.l.s4 1983009808
    %v6596 = vunpack.c.0.s8 %v6595
    %v6597 = vlaneseq
    %v6598 = vshrl.u32 %v6597, 7
    %v6599 = vsub.s32 %v6596, %v6598
    %v6600 = vrot.slane %v6586, %v6599
    %v6601 = vcombine.low %v6593, %v6600
    %v6602 = vcombine.low %v6141, %v5852
    %v6603 = vcombine.low %v6140, %v5854
    %v6605 = vunpack.c.l.s4 1983009808
    %v6606 = vunpack.c.0.s8 %v6605
    %v6607 = vlaneseq
    %v6608 = vshrl.u32 %v6607, 7
    %v6609 = vsub.s32 %v6606, %v6608
    %v6610 = vrot.slane %v6602, %v6609
    %v6612 = vunpack.c.l.s4 1983009808
    %v6613 = vunpack.c.0.s8 %v6612
    %v6614 = vlaneseq
    %v6615 = vshrl.u32 %v6614, 7
    %v6616 = vsub.s32 %v6613, %v6615
    %v6617 = vrot.slane %v6603, %v6616
    %v6618 = vcombine.low %v6610, %v6617
    %v6619 = vcombine.low 0.0, %v5286
    %v6620 = vcombine.low %v5574, %v5294
    %v6622 = vunpack.c.l.s4 1983009808
    %v6623 = vunpack.c.0.s8 %v6622
    %v6624 = vlaneseq
    %v6625 = vshrl.u32 %v6624, 7
    %v6626 = vsub.s32 %v6623, %v6625
    %v6627 = vrot.slane %v6619, %v6626
    %v6629 = vunpack.c.l.s4 1983009808
    %v6630 = vunpack.c.0.s8 %v6629
    %v6631 = vlaneseq
    %v6632 = vshrl.u32 %v6631, 7
    %v6633 = vsub.s32 %v6630, %v6632
    %v6634 = vrot.slane %v6620, %v6633
    %v6635 = vcombine.low %v6627, %v6634
    %v6636 = vcombine.low %v5582, %v5293
    %v6637 = vcombine.low %v5581, %v5295
    %v6639 = vunpack.c.l.s4 1983009808
    %v6640 = vunpack.c.0.s8 %v6639
    %v6641 = vlaneseq
    %v6642 = vshrl.u32 %v6641, 7
    %v6643 = vsub.s32 %v6640, %v6642
    %v6644 = vrot.slane %v6636, %v6643
    %v6646 = vunpack.c.l.s4 1983009808
    %v6647 = vunpack.c.0.s8 %v6646
    %v6648 = vlaneseq
    %v6649 = vshrl.u32 %v6648, 7
    %v6650 = vsub.s32 %v6647, %v6649
    %v6651 = vrot.slane %v6637, %v6650
    %v6652 = vcombine.low %v6644, %v6651
    %v6653 = vcombine.low %v5583, %v5303
    %v6654 = vcombine.low %v5591, %v5311
    %v6656 = vunpack.c.l.s4 1983009808
    %v6657 = vunpack.c.0.s8 %v6656
    %v6658 = vlaneseq
    %v6659 = vshrl.u32 %v6658, 7
    %v6660 = vsub.s32 %v6657, %v6659
    %v6661 = vrot.slane %v6653, %v6660
    %v6663 = vunpack.c.l.s4 1983009808
    %v6664 = vunpack.c.0.s8 %v6663
    %v6665 = vlaneseq
    %v6666 = vshrl.u32 %v6665, 7
    %v6667 = vsub.s32 %v6664, %v6666
    %v6668 = vrot.slane %v6654, %v6667
    %v6669 = vcombine.low %v6661, %v6668
    %v6670 = vcombine.low %v5599, %v5310
    %v6671 = vcombine.low %v5598, %v5312
    %v6673 = vunpack.c.l.s4 1983009808
    %v6674 = vunpack.c.0.s8 %v6673
    %v6675 = vlaneseq
    %v6676 = vshrl.u32 %v6675, 7
    %v6677 = vsub.s32 %v6674, %v6676
    %v6678 = vrot.slane %v6670, %v6677
    %v6680 = vunpack.c.l.s4 1983009808
    %v6681 = vunpack.c.0.s8 %v6680
    %v6682 = vlaneseq
    %v6683 = vshrl.u32 %v6682, 7
    %v6684 = vsub.s32 %v6681, %v6683
    %v6685 = vrot.slane %v6671, %v6684
    %v6686 = vcombine.low %v6678, %v6685
    %v6687 = vcombine.low 0.0, %v5862
    %v6688 = vcombine.low %v6150, %v5870
    %v6690 = vunpack.c.l.s4 1983009808
    %v6691 = vunpack.c.0.s8 %v6690
    %v6692 = vlaneseq
    %v6693 = vshrl.u32 %v6692, 7
    %v6694 = vsub.s32 %v6691, %v6693
    %v6695 = vrot.slane %v6687, %v6694
    %v6697 = vunpack.c.l.s4 1983009808
    %v6698 = vunpack.c.0.s8 %v6697
    %v6699 = vlaneseq
    %v6700 = vshrl.u32 %v6699, 7
    %v6701 = vsub.s32 %v6698, %v6700
    %v6702 = vrot.slane %v6688, %v6701
    %v6703 = vcombine.low %v6695, %v6702
    %v6704 = vcombine.low %v6158, %v5869
    %v6705 = vcombine.low %v6157, %v5871
    %v6707 = vunpack.c.l.s4 1983009808
    %v6708 = vunpack.c.0.s8 %v6707
    %v6709 = vlaneseq
    %v6710 = vshrl.u32 %v6709, 7
    %v6711 = vsub.s32 %v6708, %v6710
    %v6712 = vrot.slane %v6704, %v6711
    %v6714 = vunpack.c.l.s4 1983009808
    %v6715 = vunpack.c.0.s8 %v6714
    %v6716 = vlaneseq
    %v6717 = vshrl.u32 %v6716, 7
    %v6718 = vsub.s32 %v6715, %v6717
    %v6719 = vrot.slane %v6705, %v6718
    %v6720 = vcombine.low %v6712, %v6719
    %v6721 = vcombine.low %v6159, %v5879
    %v6722 = vcombine.low %v6167, %v5887
    %v6724 = vunpack.c.l.s4 1983009808
    %v6725 = vunpack.c.0.s8 %v6724
    %v6726 = vlaneseq
    %v6727 = vshrl.u32 %v6726, 7
    %v6728 = vsub.s32 %v6725, %v6727
    %v6729 = vrot.slane %v6721, %v6728
    %v6731 = vunpack.c.l.s4 1983009808
    %v6732 = vunpack.c.0.s8 %v6731
    %v6733 = vlaneseq
    %v6734 = vshrl.u32 %v6733, 7
    %v6735 = vsub.s32 %v6732, %v6734
    %v6736 = vrot.slane %v6722, %v6735
    %v6737 = vcombine.low %v6729, %v6736
    %v6738 = vcombine.low %v6175, %v5886
    %v6739 = vcombine.low %v6174, %v5888
    %v6741 = vunpack.c.l.s4 1983009808
    %v6742 = vunpack.c.0.s8 %v6741
    %v6743 = vlaneseq
    %v6744 = vshrl.u32 %v6743, 7
    %v6745 = vsub.s32 %v6742, %v6744
    %v6746 = vrot.slane %v6738, %v6745
    %v6748 = vunpack.c.l.s4 1983009808
    %v6749 = vunpack.c.0.s8 %v6748
    %v6750 = vlaneseq
    %v6751 = vshrl.u32 %v6750, 7
    %v6752 = vsub.s32 %v6749, %v6751
    %v6753 = vrot.slane %v6739, %v6752
    %v6754 = vcombine.low %v6746, %v6753
    %v6755 = vcombine.low 0.0, %v5320
    %v6756 = vcombine.low %v5608, %v5328
    %v6758 = vunpack.c.l.s4 1983009808
    %v6759 = vunpack.c.0.s8 %v6758
    %v6760 = vlaneseq
    %v6761 = vshrl.u32 %v6760, 7
    %v6762 = vsub.s32 %v6759, %v6761
    %v6763 = vrot.slane %v6755, %v6762
    %v6765 = vunpack.c.l.s4 1983009808
    %v6766 = vunpack.c.0.s8 %v6765
    %v6767 = vlaneseq
    %v6768 = vshrl.u32 %v6767, 7
    %v6769 = vsub.s32 %v6766, %v6768
    %v6770 = vrot.slane %v6756, %v6769
    %v6771 = vcombine.low %v6763, %v6770
    %v6772 = vcombine.low %v5616, %v5327
    %v6773 = vcombine.low %v5615, %v5329
    %v6775 = vunpack.c.l.s4 1983009808
    %v6776 = vunpack.c.0.s8 %v6775
    %v6777 = vlaneseq
    %v6778 = vshrl.u32 %v6777, 7
    %v6779 = vsub.s32 %v6776, %v6778
    %v6780 = vrot.slane %v6772, %v6779
    %v6782 = vunpack.c.l.s4 1983009808
    %v6783 = vunpack.c.0.s8 %v6782
    %v6784 = vlaneseq
    %v6785 = vshrl.u32 %v6784, 7
    %v6786 = vsub.s32 %v6783, %v6785
    %v6787 = vrot.slane %v6773, %v6786
    %v6788 = vcombine.low %v6780, %v6787
    %v6789 = vcombine.low %v5617, %v5337
    %v6790 = vcombine.low %v5625, %v5345
    %v6792 = vunpack.c.l.s4 1983009808
    %v6793 = vunpack.c.0.s8 %v6792
    %v6794 = vlaneseq
    %v6795 = vshrl.u32 %v6794, 7
    %v6796 = vsub.s32 %v6793, %v6795
    %v6797 = vrot.slane %v6789, %v6796
    %v6799 = vunpack.c.l.s4 1983009808
    %v6800 = vunpack.c.0.s8 %v6799
    %v6801 = vlaneseq
    %v6802 = vshrl.u32 %v6801, 7
    %v6803 = vsub.s32 %v6800, %v6802
    %v6804 = vrot.slane %v6790, %v6803
    %v6805 = vcombine.low %v6797, %v6804
    %v6806 = vcombine.low %v5633, %v5344
    %v6807 = vcombine.low %v5632, %v5346
    %v6809 = vunpack.c.l.s4 1983009808
    %v6810 = vunpack.c.0.s8 %v6809
    %v6811 = vlaneseq
    %v6812 = vshrl.u32 %v6811, 7
    %v6813 = vsub.s32 %v6810, %v6812
    %v6814 = vrot.slane %v6806, %v6813
    %v6816 = vunpack.c.l.s4 1983009808
    %v6817 = vunpack.c.0.s8 %v6816
    %v6818 = vlaneseq
    %v6819 = vshrl.u32 %v6818, 7
    %v6820 = vsub.s32 %v6817, %v6819
    %v6821 = vrot.slane %v6807, %v6820
    %v6822 = vcombine.low %v6814, %v6821
    %v6823 = vcombine.low 0.0, %v5896
    %v6824 = vcombine.low %v6184, %v5904
    %v6826 = vunpack.c.l.s4 1983009808
    %v6827 = vunpack.c.0.s8 %v6826
    %v6828 = vlaneseq
    %v6829 = vshrl.u32 %v6828, 7
    %v6830 = vsub.s32 %v6827, %v6829
    %v6831 = vrot.slane %v6823, %v6830
    %v6833 = vunpack.c.l.s4 1983009808
    %v6834 = vunpack.c.0.s8 %v6833
    %v6835 = vlaneseq
    %v6836 = vshrl.u32 %v6835, 7
    %v6837 = vsub.s32 %v6834, %v6836
    %v6838 = vrot.slane %v6824, %v6837
    %v6839 = vcombine.low %v6831, %v6838
    %v6840 = vcombine.low %v6192, %v5903
    %v6841 = vcombine.low %v6191, %v5905
    %v6843 = vunpack.c.l.s4 1983009808
    %v6844 = vunpack.c.0.s8 %v6843
    %v6845 = vlaneseq
    %v6846 = vshrl.u32 %v6845, 7
    %v6847 = vsub.s32 %v6844, %v6846
    %v6848 = vrot.slane %v6840, %v6847
    %v6850 = vunpack.c.l.s4 1983009808
    %v6851 = vunpack.c.0.s8 %v6850
    %v6852 = vlaneseq
    %v6853 = vshrl.u32 %v6852, 7
    %v6854 = vsub.s32 %v6851, %v6853
    %v6855 = vrot.slane %v6841, %v6854
    %v6856 = vcombine.low %v6848, %v6855
    %v6857 = vcombine.low %v6193, %v5913
    %v6858 = vcombine.low %v6201, %v5921
    %v6860 = vunpack.c.l.s4 1983009808
    %v6861 = vunpack.c.0.s8 %v6860
    %v6862 = vlaneseq
    %v6863 = vshrl.u32 %v6862, 7
    %v6864 = vsub.s32 %v6861, %v6863
    %v6865 = vrot.slane %v6857, %v6864
    %v6867 = vunpack.c.l.s4 1983009808
    %v6868 = vunpack.c.0.s8 %v6867
    %v6869 = vlaneseq
    %v6870 = vshrl.u32 %v6869, 7
    %v6871 = vsub.s32 %v6868, %v6870
    %v6872 = vrot.slane %v6858, %v6871
    %v6873 = vcombine.low %v6865, %v6872
    %v6874 = vcombine.low %v6209, %v5920
    %v6875 = vcombine.low %v6208, %v5922
    %v6877 = vunpack.c.l.s4 1983009808
    %v6878 = vunpack.c.0.s8 %v6877
    %v6879 = vlaneseq
    %v6880 = vshrl.u32 %v6879, 7
    %v6881 = vsub.s32 %v6878, %v6880
    %v6882 = vrot.slane %v6874, %v6881
    %v6884 = vunpack.c.l.s4 1983009808
    %v6885 = vunpack.c.0.s8 %v6884
    %v6886 = vlaneseq
    %v6887 = vshrl.u32 %v6886, 7
    %v6888 = vsub.s32 %v6885, %v6887
    %v6889 = vrot.slane %v6875, %v6888
    %v6890 = vcombine.low %v6882, %v6889
    %v6891 = vcombine.low 0.0, %v5354
    %v6892 = vcombine.low %v5642, %v5362
    %v6894 = vunpack.c.l.s4 1983009808
    %v6895 = vunpack.c.0.s8 %v6894
    %v6896 = vlaneseq
    %v6897 = vshrl.u32 %v6896, 7
    %v6898 = vsub.s32 %v6895, %v6897
    %v6899 = vrot.slane %v6891, %v6898
    %v6901 = vunpack.c.l.s4 1983009808
    %v6902 = vunpack.c.0.s8 %v6901
    %v6903 = vlaneseq
    %v6904 = vshrl.u32 %v6903, 7
    %v6905 = vsub.s32 %v6902, %v6904
    %v6906 = vrot.slane %v6892, %v6905
    %v6907 = vcombine.low %v6899, %v6906
    %v6908 = vcombine.low %v5650, %v5361
    %v6909 = vcombine.low %v5649, %v5363
    %v6911 = vunpack.c.l.s4 1983009808
    %v6912 = vunpack.c.0.s8 %v6911
    %v6913 = vlaneseq
    %v6914 = vshrl.u32 %v6913, 7
    %v6915 = vsub.s32 %v6912, %v6914
    %v6916 = vrot.slane %v6908, %v6915
    %v6918 = vunpack.c.l.s4 1983009808
    %v6919 = vunpack.c.0.s8 %v6918
    %v6920 = vlaneseq
    %v6921 = vshrl.u32 %v6920, 7
    %v6922 = vsub.s32 %v6919, %v6921
    %v6923 = vrot.slane %v6909, %v6922
    %v6924 = vcombine.low %v6916, %v6923
    %v6925 = vcombine.low %v5651, %v5371
    %v6926 = vcombine.low %v5659, %v5379
    %v6928 = vunpack.c.l.s4 1983009808
    %v6929 = vunpack.c.0.s8 %v6928
    %v6930 = vlaneseq
    %v6931 = vshrl.u32 %v6930, 7
    %v6932 = vsub.s32 %v6929, %v6931
    %v6933 = vrot.slane %v6925, %v6932
    %v6935 = vunpack.c.l.s4 1983009808
    %v6936 = vunpack.c.0.s8 %v6935
    %v6937 = vlaneseq
    %v6938 = vshrl.u32 %v6937, 7
    %v6939 = vsub.s32 %v6936, %v6938
    %v6940 = vrot.slane %v6926, %v6939
    %v6941 = vcombine.low %v6933, %v6940
    %v6942 = vcombine.low %v5667, %v5378
    %v6943 = vcombine.low %v5666, %v5380
    %v6945 = vunpack.c.l.s4 1983009808
    %v6946 = vunpack.c.0.s8 %v6945
    %v6947 = vlaneseq
    %v6948 = vshrl.u32 %v6947, 7
    %v6949 = vsub.s32 %v6946, %v6948
    %v6950 = vrot.slane %v6942, %v6949
    %v6952 = vunpack.c.l.s4 1983009808
    %v6953 = vunpack.c.0.s8 %v6952
    %v6954 = vlaneseq
    %v6955 = vshrl.u32 %v6954, 7
    %v6956 = vsub.s32 %v6953, %v6955
    %v6957 = vrot.slane %v6943, %v6956
    %v6958 = vcombine.low %v6950, %v6957
    %v6959 = vcombine.low 0.0, %v5930
    %v6960 = vcombine.low %v6218, %v5938
    %v6962 = vunpack.c.l.s4 1983009808
    %v6963 = vunpack.c.0.s8 %v6962
    %v6964 = vlaneseq
    %v6965 = vshrl.u32 %v6964, 7
    %v6966 = vsub.s32 %v6963, %v6965
    %v6967 = vrot.slane %v6959, %v6966
    %v6969 = vunpack.c.l.s4 1983009808
    %v6970 = vunpack.c.0.s8 %v6969
    %v6971 = vlaneseq
    %v6972 = vshrl.u32 %v6971, 7
    %v6973 = vsub.s32 %v6970, %v6972
    %v6974 = vrot.slane %v6960, %v6973
    %v6975 = vcombine.low %v6967, %v6974
    %v6976 = vcombine.low %v6226, %v5937
    %v6977 = vcombine.low %v6225, %v5939
    %v6979 = vunpack.c.l.s4 1983009808
    %v6980 = vunpack.c.0.s8 %v6979
    %v6981 = vlaneseq
    %v6982 = vshrl.u32 %v6981, 7
    %v6983 = vsub.s32 %v6980, %v6982
    %v6984 = vrot.slane %v6976, %v6983
    %v6986 = vunpack.c.l.s4 1983009808
    %v6987 = vunpack.c.0.s8 %v6986
    %v6988 = vlaneseq
    %v6989 = vshrl.u32 %v6988, 7
    %v6990 = vsub.s32 %v6987, %v6989
    %v6991 = vrot.slane %v6977, %v6990
    %v6992 = vcombine.low %v6984, %v6991
    %v6993 = vcombine.low %v6227, %v5947
    %v6994 = vcombine.low %v6235, %v5955
    %v6996 = vunpack.c.l.s4 1983009808
    %v6997 = vunpack.c.0.s8 %v6996
    %v6998 = vlaneseq
    %v6999 = vshrl.u32 %v6998, 7
    %v7000 = vsub.s32 %v6997, %v6999
    %v7001 = vrot.slane %v6993, %v7000
    %v7003 = vunpack.c.l.s4 1983009808
    %v7004 = vunpack.c.0.s8 %v7003
    %v7005 = vlaneseq
    %v7006 = vshrl.u32 %v7005, 7
    %v7007 = vsub.s32 %v7004, %v7006
    %v7008 = vrot.slane %v6994, %v7007
    %v7009 = vcombine.low %v7001, %v7008
    %v7010 = vcombine.low %v6243, %v5954
    %v7011 = vcombine.low %v6242, %v5956
    %v7013 = vunpack.c.l.s4 1983009808
    %v7014 = vunpack.c.0.s8 %v7013
    %v7015 = vlaneseq
    %v7016 = vshrl.u32 %v7015, 7
    %v7017 = vsub.s32 %v7014, %v7016
    %v7018 = vrot.slane %v7010, %v7017
    %v7020 = vunpack.c.l.s4 1983009808
    %v7021 = vunpack.c.0.s8 %v7020
    %v7022 = vlaneseq
    %v7023 = vshrl.u32 %v7022, 7
    %v7024 = vsub.s32 %v7021, %v7023
    %v7025 = vrot.slane %v7011, %v7024
    %v7026 = vcombine.low %v7018, %v7025
    %v7027 = vcombine.low 0.0, %v5388
    %v7028 = vcombine.low %v5676, %v5396
    %v7030 = vunpack.c.l.s4 1983009808
    %v7031 = vunpack.c.0.s8 %v7030
    %v7032 = vlaneseq
    %v7033 = vshrl.u32 %v7032, 7
    %v7034 = vsub.s32 %v7031, %v7033
    %v7035 = vrot.slane %v7027, %v7034
    %v7037 = vunpack.c.l.s4 1983009808
    %v7038 = vunpack.c.0.s8 %v7037
    %v7039 = vlaneseq
    %v7040 = vshrl.u32 %v7039, 7
    %v7041 = vsub.s32 %v7038, %v7040
    %v7042 = vrot.slane %v7028, %v7041
    %v7043 = vcombine.low %v7035, %v7042
    %v7044 = vcombine.low %v5684, %v5395
    %v7045 = vcombine.low %v5683, %v5397
    %v7047 = vunpack.c.l.s4 1983009808
    %v7048 = vunpack.c.0.s8 %v7047
    %v7049 = vlaneseq
    %v7050 = vshrl.u32 %v7049, 7
    %v7051 = vsub.s32 %v7048, %v7050
    %v7052 = vrot.slane %v7044, %v7051
    %v7054 = vunpack.c.l.s4 1983009808
    %v7055 = vunpack.c.0.s8 %v7054
    %v7056 = vlaneseq
    %v7057 = vshrl.u32 %v7056, 7
    %v7058 = vsub.s32 %v7055, %v7057
    %v7059 = vrot.slane %v7045, %v7058
    %v7060 = vcombine.low %v7052, %v7059
    %v7061 = vcombine.low %v5685, %v5405
    %v7062 = vcombine.low %v5693, %v5413
    %v7064 = vunpack.c.l.s4 1983009808
    %v7065 = vunpack.c.0.s8 %v7064
    %v7066 = vlaneseq
    %v7067 = vshrl.u32 %v7066, 7
    %v7068 = vsub.s32 %v7065, %v7067
    %v7069 = vrot.slane %v7061, %v7068
    %v7071 = vunpack.c.l.s4 1983009808
    %v7072 = vunpack.c.0.s8 %v7071
    %v7073 = vlaneseq
    %v7074 = vshrl.u32 %v7073, 7
    %v7075 = vsub.s32 %v7072, %v7074
    %v7076 = vrot.slane %v7062, %v7075
    %v7077 = vcombine.low %v7069, %v7076
    %v7078 = vcombine.low %v5701, %v5412
    %v7079 = vcombine.low %v5700, %v5414
    %v7081 = vunpack.c.l.s4 1983009808
    %v7082 = vunpack.c.0.s8 %v7081
    %v7083 = vlaneseq
    %v7084 = vshrl.u32 %v7083, 7
    %v7085 = vsub.s32 %v7082, %v7084
    %v7086 = vrot.slane %v7078, %v7085
    %v7088 = vunpack.c.l.s4 1983009808
    %v7089 = vunpack.c.0.s8 %v7088
    %v7090 = vlaneseq
    %v7091 = vshrl.u32 %v7090, 7
    %v7092 = vsub.s32 %v7089, %v7091
    %v7093 = vrot.slane %v7079, %v7092
    %v7094 = vcombine.low %v7086, %v7093
    %v7095 = vcombine.low 0.0, %v5964
    %v7096 = vcombine.low %v6252, %v5972
    %v7098 = vunpack.c.l.s4 1983009808
    %v7099 = vunpack.c.0.s8 %v7098
    %v7100 = vlaneseq
    %v7101 = vshrl.u32 %v7100, 7
    %v7102 = vsub.s32 %v7099, %v7101
    %v7103 = vrot.slane %v7095, %v7102
    %v7105 = vunpack.c.l.s4 1983009808
    %v7106 = vunpack.c.0.s8 %v7105
    %v7107 = vlaneseq
    %v7108 = vshrl.u32 %v7107, 7
    %v7109 = vsub.s32 %v7106, %v7108
    %v7110 = vrot.slane %v7096, %v7109
    %v7111 = vcombine.low %v7103, %v7110
    %v7112 = vcombine.low %v6260, %v5971
    %v7113 = vcombine.low %v6259, %v5973
    %v7115 = vunpack.c.l.s4 1983009808
    %v7116 = vunpack.c.0.s8 %v7115
    %v7117 = vlaneseq
    %v7118 = vshrl.u32 %v7117, 7
    %v7119 = vsub.s32 %v7116, %v7118
    %v7120 = vrot.slane %v7112, %v7119
    %v7122 = vunpack.c.l.s4 1983009808
    %v7123 = vunpack.c.0.s8 %v7122
    %v7124 = vlaneseq
    %v7125 = vshrl.u32 %v7124, 7
    %v7126 = vsub.s32 %v7123, %v7125
    %v7127 = vrot.slane %v7113, %v7126
    %v7128 = vcombine.low %v7120, %v7127
    %v7129 = vcombine.low %v6261, %v5981
    %v7130 = vcombine.low %v6269, %v5989
    %v7132 = vunpack.c.l.s4 1983009808
    %v7133 = vunpack.c.0.s8 %v7132
    %v7134 = vlaneseq
    %v7135 = vshrl.u32 %v7134, 7
    %v7136 = vsub.s32 %v7133, %v7135
    %v7137 = vrot.slane %v7129, %v7136
    %v7139 = vunpack.c.l.s4 1983009808
    %v7140 = vunpack.c.0.s8 %v7139
    %v7141 = vlaneseq
    %v7142 = vshrl.u32 %v7141, 7
    %v7143 = vsub.s32 %v7140, %v7142
    %v7144 = vrot.slane %v7130, %v7143
    %v7145 = vcombine.low %v7137, %v7144
    %v7146 = vcombine.low %v6277, %v5988
    %v7147 = vcombine.low %v6276, %v5990
    %v7149 = vunpack.c.l.s4 1983009808
    %v7150 = vunpack.c.0.s8 %v7149
    %v7151 = vlaneseq
    %v7152 = vshrl.u32 %v7151, 7
    %v7153 = vsub.s32 %v7150, %v7152
    %v7154 = vrot.slane %v7146, %v7153
    %v7156 = vunpack.c.l.s4 1983009808
    %v7157 = vunpack.c.0.s8 %v7156
    %v7158 = vlaneseq
    %v7159 = vshrl.u32 %v7158, 7
    %v7160 = vsub.s32 %v7157, %v7159
    %v7161 = vrot.slane %v7147, %v7160
    %v7162 = vcombine.low %v7154, %v7161
    %v7163 = vcombine.low 0.0, %v5422
    %v7164 = vcombine.low %v5710, %v5430
    %v7166 = vunpack.c.l.s4 1983009808
    %v7167 = vunpack.c.0.s8 %v7166
    %v7168 = vlaneseq
    %v7169 = vshrl.u32 %v7168, 7
    %v7170 = vsub.s32 %v7167, %v7169
    %v7171 = vrot.slane %v7163, %v7170
    %v7173 = vunpack.c.l.s4 1983009808
    %v7174 = vunpack.c.0.s8 %v7173
    %v7175 = vlaneseq
    %v7176 = vshrl.u32 %v7175, 7
    %v7177 = vsub.s32 %v7174, %v7176
    %v7178 = vrot.slane %v7164, %v7177
    %v7179 = vcombine.low %v7171, %v7178
    %v7180 = vcombine.low %v5718, %v5429
    %v7181 = vcombine.low %v5717, %v5431
    %v7183 = vunpack.c.l.s4 1983009808
    %v7184 = vunpack.c.0.s8 %v7183
    %v7185 = vlaneseq
    %v7186 = vshrl.u32 %v7185, 7
    %v7187 = vsub.s32 %v7184, %v7186
    %v7188 = vrot.slane %v7180, %v7187
    %v7190 = vunpack.c.l.s4 1983009808
    %v7191 = vunpack.c.0.s8 %v7190
    %v7192 = vlaneseq
    %v7193 = vshrl.u32 %v7192, 7
    %v7194 = vsub.s32 %v7191, %v7193
    %v7195 = vrot.slane %v7181, %v7194
    %v7196 = vcombine.low %v7188, %v7195
    %v7197 = vcombine.low %v5719, %v5439
    %v7198 = vcombine.low %v5727, %v5447
    %v7200 = vunpack.c.l.s4 1983009808
    %v7201 = vunpack.c.0.s8 %v7200
    %v7202 = vlaneseq
    %v7203 = vshrl.u32 %v7202, 7
    %v7204 = vsub.s32 %v7201, %v7203
    %v7205 = vrot.slane %v7197, %v7204
    %v7207 = vunpack.c.l.s4 1983009808
    %v7208 = vunpack.c.0.s8 %v7207
    %v7209 = vlaneseq
    %v7210 = vshrl.u32 %v7209, 7
    %v7211 = vsub.s32 %v7208, %v7210
    %v7212 = vrot.slane %v7198, %v7211
    %v7213 = vcombine.low %v7205, %v7212
    %v7214 = vcombine.low %v5735, %v5446
    %v7215 = vcombine.low %v5734, %v5448
    %v7217 = vunpack.c.l.s4 1983009808
    %v7218 = vunpack.c.0.s8 %v7217
    %v7219 = vlaneseq
    %v7220 = vshrl.u32 %v7219, 7
    %v7221 = vsub.s32 %v7218, %v7220
    %v7222 = vrot.slane %v7214, %v7221
    %v7224 = vunpack.c.l.s4 1983009808
    %v7225 = vunpack.c.0.s8 %v7224
    %v7226 = vlaneseq
    %v7227 = vshrl.u32 %v7226, 7
    %v7228 = vsub.s32 %v7225, %v7227
    %v7229 = vrot.slane %v7215, %v7228
    %v7230 = vcombine.low %v7222, %v7229
    %v7231 = vcombine.low 0.0, %v5998
    %v7232 = vcombine.low %v6286, %v6006
    %v7234 = vunpack.c.l.s4 1983009808
    %v7235 = vunpack.c.0.s8 %v7234
    %v7236 = vlaneseq
    %v7237 = vshrl.u32 %v7236, 7
    %v7238 = vsub.s32 %v7235, %v7237
    %v7239 = vrot.slane %v7231, %v7238
    %v7241 = vunpack.c.l.s4 1983009808
    %v7242 = vunpack.c.0.s8 %v7241
    %v7243 = vlaneseq
    %v7244 = vshrl.u32 %v7243, 7
    %v7245 = vsub.s32 %v7242, %v7244
    %v7246 = vrot.slane %v7232, %v7245
    %v7247 = vcombine.low %v7239, %v7246
    %v7248 = vcombine.low %v6294, %v6005
    %v7249 = vcombine.low %v6293, %v6007
    %v7251 = vunpack.c.l.s4 1983009808
    %v7252 = vunpack.c.0.s8 %v7251
    %v7253 = vlaneseq
    %v7254 = vshrl.u32 %v7253, 7
    %v7255 = vsub.s32 %v7252, %v7254
    %v7256 = vrot.slane %v7248, %v7255
    %v7258 = vunpack.c.l.s4 1983009808
    %v7259 = vunpack.c.0.s8 %v7258
    %v7260 = vlaneseq
    %v7261 = vshrl.u32 %v7260, 7
    %v7262 = vsub.s32 %v7259, %v7261
    %v7263 = vrot.slane %v7249, %v7262
    %v7264 = vcombine.low %v7256, %v7263
    %v7265 = vcombine.low %v6295, %v6015
    %v7266 = vcombine.low %v6303, %v6023
    %v7268 = vunpack.c.l.s4 1983009808
    %v7269 = vunpack.c.0.s8 %v7268
    %v7270 = vlaneseq
    %v7271 = vshrl.u32 %v7270, 7
    %v7272 = vsub.s32 %v7269, %v7271
    %v7273 = vrot.slane %v7265, %v7272
    %v7275 = vunpack.c.l.s4 1983009808
    %v7276 = vunpack.c.0.s8 %v7275
    %v7277 = vlaneseq
    %v7278 = vshrl.u32 %v7277, 7
    %v7279 = vsub.s32 %v7276, %v7278
    %v7280 = vrot.slane %v7266, %v7279
    %v7281 = vcombine.low %v7273, %v7280
    %v7282 = vcombine.low %v6311, %v6022
    %v7283 = vcombine.low %v6310, %v6024
    %v7285 = vunpack.c.l.s4 1983009808
    %v7286 = vunpack.c.0.s8 %v7285
    %v7287 = vlaneseq
    %v7288 = vshrl.u32 %v7287, 7
    %v7289 = vsub.s32 %v7286, %v7288
    %v7290 = vrot.slane %v7282, %v7289
    %v7292 = vunpack.c.l.s4 1983009808
    %v7293 = vunpack.c.0.s8 %v7292
    %v7294 = vlaneseq
    %v7295 = vshrl.u32 %v7294, 7
    %v7296 = vsub.s32 %v7293, %v7295
    %v7297 = vrot.slane %v7283, %v7296
    %v7298 = vcombine.low %v7290, %v7297
    %v7299 = vcombine.low 0.0, %v5456
    %v7300 = vcombine.low %v5744, %v5464
    %v7302 = vunpack.c.l.s4 1983009808
    %v7303 = vunpack.c.0.s8 %v7302
    %v7304 = vlaneseq
    %v7305 = vshrl.u32 %v7304, 7
    %v7306 = vsub.s32 %v7303, %v7305
    %v7307 = vrot.slane %v7299, %v7306
    %v7309 = vunpack.c.l.s4 1983009808
    %v7310 = vunpack.c.0.s8 %v7309
    %v7311 = vlaneseq
    %v7312 = vshrl.u32 %v7311, 7
    %v7313 = vsub.s32 %v7310, %v7312
    %v7314 = vrot.slane %v7300, %v7313
    %v7315 = vcombine.low %v7307, %v7314
    %v7316 = vcombine.low %v5752, %v5463
    %v7317 = vcombine.low %v5751, %v5465
    %v7319 = vunpack.c.l.s4 1983009808
    %v7320 = vunpack.c.0.s8 %v7319
    %v7321 = vlaneseq
    %v7322 = vshrl.u32 %v7321, 7
    %v7323 = vsub.s32 %v7320, %v7322
    %v7324 = vrot.slane %v7316, %v7323
    %v7326 = vunpack.c.l.s4 1983009808
    %v7327 = vunpack.c.0.s8 %v7326
    %v7328 = vlaneseq
    %v7329 = vshrl.u32 %v7328, 7
    %v7330 = vsub.s32 %v7327, %v7329
    %v7331 = vrot.slane %v7317, %v7330
    %v7332 = vcombine.low %v7324, %v7331
    %v7333 = vcombine.low %v5753, %v5473
    %v7334 = vcombine.low %v5761, %v5481
    %v7336 = vunpack.c.l.s4 1983009808
    %v7337 = vunpack.c.0.s8 %v7336
    %v7338 = vlaneseq
    %v7339 = vshrl.u32 %v7338, 7
    %v7340 = vsub.s32 %v7337, %v7339
    %v7341 = vrot.slane %v7333, %v7340
    %v7343 = vunpack.c.l.s4 1983009808
    %v7344 = vunpack.c.0.s8 %v7343
    %v7345 = vlaneseq
    %v7346 = vshrl.u32 %v7345, 7
    %v7347 = vsub.s32 %v7344, %v7346
    %v7348 = vrot.slane %v7334, %v7347
    %v7349 = vcombine.low %v7341, %v7348
    %v7350 = vcombine.low %v5769, %v5480
    %v7351 = vcombine.low %v5768, %v5482
    %v7353 = vunpack.c.l.s4 1983009808
    %v7354 = vunpack.c.0.s8 %v7353
    %v7355 = vlaneseq
    %v7356 = vshrl.u32 %v7355, 7
    %v7357 = vsub.s32 %v7354, %v7356
    %v7358 = vrot.slane %v7350, %v7357
    %v7360 = vunpack.c.l.s4 1983009808
    %v7361 = vunpack.c.0.s8 %v7360
    %v7362 = vlaneseq
    %v7363 = vshrl.u32 %v7362, 7
    %v7364 = vsub.s32 %v7361, %v7363
    %v7365 = vrot.slane %v7351, %v7364
    %v7366 = vcombine.low %v7358, %v7365
    %v7427 = vcombine.low %v5218, %v5506
    %v7428 = vcombine.low %v5226, %v5514
    %v7430 = vunpack.c.l.s4 1983009808
    %v7431 = vunpack.c.0.s8 %v7430
    %v7432 = vlaneseq
    %v7433 = vshrl.u32 %v7432, 7
    %v7434 = vsub.s32 %v7431, %v7433
    %v7435 = vrot.slane %v7427, %v7434
    %v7437 = vunpack.c.l.s4 1983009808
    %v7438 = vunpack.c.0.s8 %v7437
    %v7439 = vlaneseq
    %v7440 = vshrl.u32 %v7439, 7
    %v7441 = vsub.s32 %v7438, %v7440
    %v7442 = vrot.slane %v7428, %v7441
    %v7443 = vcombine.low %v7435, %v7442
    %v7444 = vcombine.low %v5225, %v5513
    %v7445 = vcombine.low %v5227, %v5515
    %v7447 = vunpack.c.l.s4 1983009808
    %v7448 = vunpack.c.0.s8 %v7447
    %v7449 = vlaneseq
    %v7450 = vshrl.u32 %v7449, 7
    %v7451 = vsub.s32 %v7448, %v7450
    %v7452 = vrot.slane %v7444, %v7451
    %v7454 = vunpack.c.l.s4 1983009808
    %v7455 = vunpack.c.0.s8 %v7454
    %v7456 = vlaneseq
    %v7457 = vshrl.u32 %v7456, 7
    %v7458 = vsub.s32 %v7455, %v7457
    %v7459 = vrot.slane %v7445, %v7458
    %v7460 = vcombine.low %v7452, %v7459
    %v7461 = vcombine.low %v5235, %v5523
    %v7462 = vcombine.low %v5243, %v5531
    %v7464 = vunpack.c.l.s4 1983009808
    %v7465 = vunpack.c.0.s8 %v7464
    %v7466 = vlaneseq
    %v7467 = vshrl.u32 %v7466, 7
    %v7468 = vsub.s32 %v7465, %v7467
    %v7469 = vrot.slane %v7461, %v7468
    %v7471 = vunpack.c.l.s4 1983009808
    %v7472 = vunpack.c.0.s8 %v7471
    %v7473 = vlaneseq
    %v7474 = vshrl.u32 %v7473, 7
    %v7475 = vsub.s32 %v7472, %v7474
    %v7476 = vrot.slane %v7462, %v7475
    %v7477 = vcombine.low %v7469, %v7476
    %v7478 = vcombine.low %v5242, %v5530
    %v7479 = vcombine.low %v5244, %v5532
    %v7481 = vunpack.c.l.s4 1983009808
    %v7482 = vunpack.c.0.s8 %v7481
    %v7483 = vlaneseq
    %v7484 = vshrl.u32 %v7483, 7
    %v7485 = vsub.s32 %v7482, %v7484
    %v7486 = vrot.slane %v7478, %v7485
    %v7488 = vunpack.c.l.s4 1983009808
    %v7489 = vunpack.c.0.s8 %v7488
    %v7490 = vlaneseq
    %v7491 = vshrl.u32 %v7490, 7
    %v7492 = vsub.s32 %v7489, %v7491
    %v7493 = vrot.slane %v7479, %v7492
    %v7494 = vcombine.low %v7486, %v7493
    %v7495 = vcombine.low %v5794, %v6082
    %v7496 = vcombine.low %v5802, %v6090
    %v7498 = vunpack.c.l.s4 1983009808
    %v7499 = vunpack.c.0.s8 %v7498
    %v7500 = vlaneseq
    %v7501 = vshrl.u32 %v7500, 7
    %v7502 = vsub.s32 %v7499, %v7501
    %v7503 = vrot.slane %v7495, %v7502
    %v7505 = vunpack.c.l.s4 1983009808
    %v7506 = vunpack.c.0.s8 %v7505
    %v7507 = vlaneseq
    %v7508 = vshrl.u32 %v7507, 7
    %v7509 = vsub.s32 %v7506, %v7508
    %v7510 = vrot.slane %v7496, %v7509
    %v7511 = vcombine.low %v7503, %v7510
    %v7512 = vcombine.low %v5801, %v6089
    %v7513 = vcombine.low %v5803, %v6091
    %v7515 = vunpack.c.l.s4 1983009808
    %v7516 = vunpack.c.0.s8 %v7515
    %v7517 = vlaneseq
    %v7518 = vshrl.u32 %v7517, 7
    %v7519 = vsub.s32 %v7516, %v7518
    %v7520 = vrot.slane %v7512, %v7519
    %v7522 = vunpack.c.l.s4 1983009808
    %v7523 = vunpack.c.0.s8 %v7522
    %v7524 = vlaneseq
    %v7525 = vshrl.u32 %v7524, 7
    %v7526 = vsub.s32 %v7523, %v7525
    %v7527 = vrot.slane %v7513, %v7526
    %v7528 = vcombine.low %v7520, %v7527
    %v7529 = vcombine.low %v5811, %v6099
    %v7530 = vcombine.low %v5819, %v6107
    %v7532 = vunpack.c.l.s4 1983009808
    %v7533 = vunpack.c.0.s8 %v7532
    %v7534 = vlaneseq
    %v7535 = vshrl.u32 %v7534, 7
    %v7536 = vsub.s32 %v7533, %v7535
    %v7537 = vrot.slane %v7529, %v7536
    %v7539 = vunpack.c.l.s4 1983009808
    %v7540 = vunpack.c.0.s8 %v7539
    %v7541 = vlaneseq
    %v7542 = vshrl.u32 %v7541, 7
    %v7543 = vsub.s32 %v7540, %v7542
    %v7544 = vrot.slane %v7530, %v7543
    %v7545 = vcombine.low %v7537, %v7544
    %v7546 = vcombine.low %v5818, %v6106
    %v7547 = vcombine.low %v5820, %v6108
    %v7549 = vunpack.c.l.s4 1983009808
    %v7550 = vunpack.c.0.s8 %v7549
    %v7551 = vlaneseq
    %v7552 = vshrl.u32 %v7551, 7
    %v7553 = vsub.s32 %v7550, %v7552
    %v7554 = vrot.slane %v7546, %v7553
    %v7556 = vunpack.c.l.s4 1983009808
    %v7557 = vunpack.c.0.s8 %v7556
    %v7558 = vlaneseq
    %v7559 = vshrl.u32 %v7558, 7
    %v7560 = vsub.s32 %v7557, %v7559
    %v7561 = vrot.slane %v7547, %v7560
    %v7562 = vcombine.low %v7554, %v7561
    %v7563 = vcombine.low %v5252, %v5540
    %v7564 = vcombine.low %v5260, %v5548
    %v7566 = vunpack.c.l.s4 1983009808
    %v7567 = vunpack.c.0.s8 %v7566
    %v7568 = vlaneseq
    %v7569 = vshrl.u32 %v7568, 7
    %v7570 = vsub.s32 %v7567, %v7569
    %v7571 = vrot.slane %v7563, %v7570
    %v7573 = vunpack.c.l.s4 1983009808
    %v7574 = vunpack.c.0.s8 %v7573
    %v7575 = vlaneseq
    %v7576 = vshrl.u32 %v7575, 7
    %v7577 = vsub.s32 %v7574, %v7576
    %v7578 = vrot.slane %v7564, %v7577
    %v7579 = vcombine.low %v7571, %v7578
    %v7580 = vcombine.low %v5259, %v5547
    %v7581 = vcombine.low %v5261, %v5549
    %v7583 = vunpack.c.l.s4 1983009808
    %v7584 = vunpack.c.0.s8 %v7583
    %v7585 = vlaneseq
    %v7586 = vshrl.u32 %v7585, 7
    %v7587 = vsub.s32 %v7584, %v7586
    %v7588 = vrot.slane %v7580, %v7587
    %v7590 = vunpack.c.l.s4 1983009808
    %v7591 = vunpack.c.0.s8 %v7590
    %v7592 = vlaneseq
    %v7593 = vshrl.u32 %v7592, 7
    %v7594 = vsub.s32 %v7591, %v7593
    %v7595 = vrot.slane %v7581, %v7594
    %v7596 = vcombine.low %v7588, %v7595
    %v7597 = vcombine.low %v5269, %v5557
    %v7598 = vcombine.low %v5277, %v5565
    %v7600 = vunpack.c.l.s4 1983009808
    %v7601 = vunpack.c.0.s8 %v7600
    %v7602 = vlaneseq
    %v7603 = vshrl.u32 %v7602, 7
    %v7604 = vsub.s32 %v7601, %v7603
    %v7605 = vrot.slane %v7597, %v7604
    %v7607 = vunpack.c.l.s4 1983009808
    %v7608 = vunpack.c.0.s8 %v7607
    %v7609 = vlaneseq
    %v7610 = vshrl.u32 %v7609, 7
    %v7611 = vsub.s32 %v7608, %v7610
    %v7612 = vrot.slane %v7598, %v7611
    %v7613 = vcombine.low %v7605, %v7612
    %v7614 = vcombine.low %v5276, %v5564
    %v7615 = vcombine.low %v5278, %v5566
    %v7617 = vunpack.c.l.s4 1983009808
    %v7618 = vunpack.c.0.s8 %v7617
    %v7619 = vlaneseq
    %v7620 = vshrl.u32 %v7619, 7
    %v7621 = vsub.s32 %v7618, %v7620
    %v7622 = vrot.slane %v7614, %v7621
    %v7624 = vunpack.c.l.s4 1983009808
    %v7625 = vunpack.c.0.s8 %v7624
    %v7626 = vlaneseq
    %v7627 = vshrl.u32 %v7626, 7
    %v7628 = vsub.s32 %v7625, %v7627
    %v7629 = vrot.slane %v7615, %v7628
    %v7630 = vcombine.low %v7622, %v7629
    %v7631 = vcombine.low %v5828, %v6116
    %v7632 = vcombine.low %v5836, %v6124
    %v7634 = vunpack.c.l.s4 1983009808
    %v7635 = vunpack.c.0.s8 %v7634
    %v7636 = vlaneseq
    %v7637 = vshrl.u32 %v7636, 7
    %v7638 = vsub.s32 %v7635, %v7637
    %v7639 = vrot.slane %v7631, %v7638
    %v7641 = vunpack.c.l.s4 1983009808
    %v7642 = vunpack.c.0.s8 %v7641
    %v7643 = vlaneseq
    %v7644 = vshrl.u32 %v7643, 7
    %v7645 = vsub.s32 %v7642, %v7644
    %v7646 = vrot.slane %v7632, %v7645
    %v7647 = vcombine.low %v7639, %v7646
    %v7648 = vcombine.low %v5835, %v6123
    %v7649 = vcombine.low %v5837, %v6125
    %v7651 = vunpack.c.l.s4 1983009808
    %v7652 = vunpack.c.0.s8 %v7651
    %v7653 = vlaneseq
    %v7654 = vshrl.u32 %v7653, 7
    %v7655 = vsub.s32 %v7652, %v7654
    %v7656 = vrot.slane %v7648, %v7655
    %v7658 = vunpack.c.l.s4 1983009808
    %v7659 = vunpack.c.0.s8 %v7658
    %v7660 = vlaneseq
    %v7661 = vshrl.u32 %v7660, 7
    %v7662 = vsub.s32 %v7659, %v7661
    %v7663 = vrot.slane %v7649, %v7662
    %v7664 = vcombine.low %v7656, %v7663
    %v7665 = vcombine.low %v5845, %v6133
    %v7666 = vcombine.low %v5853, %v6141
    %v7668 = vunpack.c.l.s4 1983009808
    %v7669 = vunpack.c.0.s8 %v7668
    %v7670 = vlaneseq
    %v7671 = vshrl.u32 %v7670, 7
    %v7672 = vsub.s32 %v7669, %v7671
    %v7673 = vrot.slane %v7665, %v7672
    %v7675 = vunpack.c.l.s4 1983009808
    %v7676 = vunpack.c.0.s8 %v7675
    %v7677 = vlaneseq
    %v7678 = vshrl.u32 %v7677, 7
    %v7679 = vsub.s32 %v7676, %v7678
    %v7680 = vrot.slane %v7666, %v7679
    %v7681 = vcombine.low %v7673, %v7680
    %v7682 = vcombine.low %v5852, %v6140
    %v7683 = vcombine.low %v5854, %v6142
    %v7685 = vunpack.c.l.s4 1983009808
    %v7686 = vunpack.c.0.s8 %v7685
    %v7687 = vlaneseq
    %v7688 = vshrl.u32 %v7687, 7
    %v7689 = vsub.s32 %v7686, %v7688
    %v7690 = vrot.slane %v7682, %v7689
    %v7692 = vunpack.c.l.s4 1983009808
    %v7693 = vunpack.c.0.s8 %v7692
    %v7694 = vlaneseq
    %v7695 = vshrl.u32 %v7694, 7
    %v7696 = vsub.s32 %v7693, %v7695
    %v7697 = vrot.slane %v7683, %v7696
    %v7698 = vcombine.low %v7690, %v7697
    %v7699 = vcombine.low %v5286, %v5574
    %v7700 = vcombine.low %v5294, %v5582
    %v7702 = vunpack.c.l.s4 1983009808
    %v7703 = vunpack.c.0.s8 %v7702
    %v7704 = vlaneseq
    %v7705 = vshrl.u32 %v7704, 7
    %v7706 = vsub.s32 %v7703, %v7705
    %v7707 = vrot.slane %v7699, %v7706
    %v7709 = vunpack.c.l.s4 1983009808
    %v7710 = vunpack.c.0.s8 %v7709
    %v7711 = vlaneseq
    %v7712 = vshrl.u32 %v7711, 7
    %v7713 = vsub.s32 %v7710, %v7712
    %v7714 = vrot.slane %v7700, %v7713
    %v7715 = vcombine.low %v7707, %v7714
    %v7716 = vcombine.low %v5293, %v5581
    %v7717 = vcombine.low %v5295, %v5583
    %v7719 = vunpack.c.l.s4 1983009808
    %v7720 = vunpack.c.0.s8 %v7719
    %v7721 = vlaneseq
    %v7722 = vshrl.u32 %v7721, 7
    %v7723 = vsub.s32 %v7720, %v7722
    %v7724 = vrot.slane %v7716, %v7723
    %v7726 = vunpack.c.l.s4 1983009808
    %v7727 = vunpack.c.0.s8 %v7726
    %v7728 = vlaneseq
    %v7729 = vshrl.u32 %v7728, 7
    %v7730 = vsub.s32 %v7727, %v7729
    %v7731 = vrot.slane %v7717, %v7730
    %v7732 = vcombine.low %v7724, %v7731
    %v7733 = vcombine.low %v5303, %v5591
    %v7734 = vcombine.low %v5311, %v5599
    %v7736 = vunpack.c.l.s4 1983009808
    %v7737 = vunpack.c.0.s8 %v7736
    %v7738 = vlaneseq
    %v7739 = vshrl.u32 %v7738, 7
    %v7740 = vsub.s32 %v7737, %v7739
    %v7741 = vrot.slane %v7733, %v7740
    %v7743 = vunpack.c.l.s4 1983009808
    %v7744 = vunpack.c.0.s8 %v7743
    %v7745 = vlaneseq
    %v7746 = vshrl.u32 %v7745, 7
    %v7747 = vsub.s32 %v7744, %v7746
    %v7748 = vrot.slane %v7734, %v7747
    %v7749 = vcombine.low %v7741, %v7748
    %v7750 = vcombine.low %v5310, %v5598
    %v7751 = vcombine.low %v5312, %v5600
    %v7753 = vunpack.c.l.s4 1983009808
    %v7754 = vunpack.c.0.s8 %v7753
    %v7755 = vlaneseq
    %v7756 = vshrl.u32 %v7755, 7
    %v7757 = vsub.s32 %v7754, %v7756
    %v7758 = vrot.slane %v7750, %v7757
    %v7760 = vunpack.c.l.s4 1983009808
    %v7761 = vunpack.c.0.s8 %v7760
    %v7762 = vlaneseq
    %v7763 = vshrl.u32 %v7762, 7
    %v7764 = vsub.s32 %v7761, %v7763
    %v7765 = vrot.slane %v7751, %v7764
    %v7766 = vcombine.low %v7758, %v7765
    %v7767 = vcombine.low %v5862, %v6150
    %v7768 = vcombine.low %v5870, %v6158
    %v7770 = vunpack.c.l.s4 1983009808
    %v7771 = vunpack.c.0.s8 %v7770
    %v7772 = vlaneseq
    %v7773 = vshrl.u32 %v7772, 7
    %v7774 = vsub.s32 %v7771, %v7773
    %v7775 = vrot.slane %v7767, %v7774
    %v7777 = vunpack.c.l.s4 1983009808
    %v7778 = vunpack.c.0.s8 %v7777
    %v7779 = vlaneseq
    %v7780 = vshrl.u32 %v7779, 7
    %v7781 = vsub.s32 %v7778, %v7780
    %v7782 = vrot.slane %v7768, %v7781
    %v7783 = vcombine.low %v7775, %v7782
    %v7784 = vcombine.low %v5869, %v6157
    %v7785 = vcombine.low %v5871, %v6159
    %v7787 = vunpack.c.l.s4 1983009808
    %v7788 = vunpack.c.0.s8 %v7787
    %v7789 = vlaneseq
    %v7790 = vshrl.u32 %v7789, 7
    %v7791 = vsub.s32 %v7788, %v7790
    %v7792 = vrot.slane %v7784, %v7791
    %v7794 = vunpack.c.l.s4 1983009808
    %v7795 = vunpack.c.0.s8 %v7794
    %v7796 = vlaneseq
    %v7797 = vshrl.u32 %v7796, 7
    %v7798 = vsub.s32 %v7795, %v7797
    %v7799 = vrot.slane %v7785, %v7798
    %v7800 = vcombine.low %v7792, %v7799
    %v7801 = vcombine.low %v5879, %v6167
    %v7802 = vcombine.low %v5887, %v6175
    %v7804 = vunpack.c.l.s4 1983009808
    %v7805 = vunpack.c.0.s8 %v7804
    %v7806 = vlaneseq
    %v7807 = vshrl.u32 %v7806, 7
    %v7808 = vsub.s32 %v7805, %v7807
    %v7809 = vrot.slane %v7801, %v7808
    %v7811 = vunpack.c.l.s4 1983009808
    %v7812 = vunpack.c.0.s8 %v7811
    %v7813 = vlaneseq
    %v7814 = vshrl.u32 %v7813, 7
    %v7815 = vsub.s32 %v7812, %v7814
    %v7816 = vrot.slane %v7802, %v7815
    %v7817 = vcombine.low %v7809, %v7816
    %v7818 = vcombine.low %v5886, %v6174
    %v7819 = vcombine.low %v5888, %v6176
    %v7821 = vunpack.c.l.s4 1983009808
    %v7822 = vunpack.c.0.s8 %v7821
    %v7823 = vlaneseq
    %v7824 = vshrl.u32 %v7823, 7
    %v7825 = vsub.s32 %v7822, %v7824
    %v7826 = vrot.slane %v7818, %v7825
    %v7828 = vunpack.c.l.s4 1983009808
    %v7829 = vunpack.c.0.s8 %v7828
    %v7830 = vlaneseq
    %v7831 = vshrl.u32 %v7830, 7
    %v7832 = vsub.s32 %v7829, %v7831
    %v7833 = vrot.slane %v7819, %v7832
    %v7834 = vcombine.low %v7826, %v7833
    %v7835 = vcombine.low %v5320, %v5608
    %v7836 = vcombine.low %v5328, %v5616
    %v7838 = vunpack.c.l.s4 1983009808
    %v7839 = vunpack.c.0.s8 %v7838
    %v7840 = vlaneseq
    %v7841 = vshrl.u32 %v7840, 7
    %v7842 = vsub.s32 %v7839, %v7841
    %v7843 = vrot.slane %v7835, %v7842
    %v7845 = vunpack.c.l.s4 1983009808
    %v7846 = vunpack.c.0.s8 %v7845
    %v7847 = vlaneseq
    %v7848 = vshrl.u32 %v7847, 7
    %v7849 = vsub.s32 %v7846, %v7848
    %v7850 = vrot.slane %v7836, %v7849
    %v7851 = vcombine.low %v7843, %v7850
    %v7852 = vcombine.low %v5327, %v5615
    %v7853 = vcombine.low %v5329, %v5617
    %v7855 = vunpack.c.l.s4 1983009808
    %v7856 = vunpack.c.0.s8 %v7855
    %v7857 = vlaneseq
    %v7858 = vshrl.u32 %v7857, 7
    %v7859 = vsub.s32 %v7856, %v7858
    %v7860 = vrot.slane %v7852, %v7859
    %v7862 = vunpack.c.l.s4 1983009808
    %v7863 = vunpack.c.0.s8 %v7862
    %v7864 = vlaneseq
    %v7865 = vshrl.u32 %v7864, 7
    %v7866 = vsub.s32 %v7863, %v7865
    %v7867 = vrot.slane %v7853, %v7866
    %v7868 = vcombine.low %v7860, %v7867
    %v7869 = vcombine.low %v5337, %v5625
    %v7870 = vcombine.low %v5345, %v5633
    %v7872 = vunpack.c.l.s4 1983009808
    %v7873 = vunpack.c.0.s8 %v7872
    %v7874 = vlaneseq
    %v7875 = vshrl.u32 %v7874, 7
    %v7876 = vsub.s32 %v7873, %v7875
    %v7877 = vrot.slane %v7869, %v7876
    %v7879 = vunpack.c.l.s4 1983009808
    %v7880 = vunpack.c.0.s8 %v7879
    %v7881 = vlaneseq
    %v7882 = vshrl.u32 %v7881, 7
    %v7883 = vsub.s32 %v7880, %v7882
    %v7884 = vrot.slane %v7870, %v7883
    %v7885 = vcombine.low %v7877, %v7884
    %v7886 = vcombine.low %v5344, %v5632
    %v7887 = vcombine.low %v5346, %v5634
    %v7889 = vunpack.c.l.s4 1983009808
    %v7890 = vunpack.c.0.s8 %v7889
    %v7891 = vlaneseq
    %v7892 = vshrl.u32 %v7891, 7
    %v7893 = vsub.s32 %v7890, %v7892
    %v7894 = vrot.slane %v7886, %v7893
    %v7896 = vunpack.c.l.s4 1983009808
    %v7897 = vunpack.c.0.s8 %v7896
    %v7898 = vlaneseq
    %v7899 = vshrl.u32 %v7898, 7
    %v7900 = vsub.s32 %v7897, %v7899
    %v7901 = vrot.slane %v7887, %v7900
    %v7902 = vcombine.low %v7894, %v7901
    %v7903 = vcombine.low %v5896, %v6184
    %v7904 = vcombine.low %v5904, %v6192
    %v7906 = vunpack.c.l.s4 1983009808
    %v7907 = vunpack.c.0.s8 %v7906
    %v7908 = vlaneseq
    %v7909 = vshrl.u32 %v7908, 7
    %v7910 = vsub.s32 %v7907, %v7909
    %v7911 = vrot.slane %v7903, %v7910
    %v7913 = vunpack.c.l.s4 1983009808
    %v7914 = vunpack.c.0.s8 %v7913
    %v7915 = vlaneseq
    %v7916 = vshrl.u32 %v7915, 7
    %v7917 = vsub.s32 %v7914, %v7916
    %v7918 = vrot.slane %v7904, %v7917
    %v7919 = vcombine.low %v7911, %v7918
    %v7920 = vcombine.low %v5903, %v6191
    %v7921 = vcombine.low %v5905, %v6193
    %v7923 = vunpack.c.l.s4 1983009808
    %v7924 = vunpack.c.0.s8 %v7923
    %v7925 = vlaneseq
    %v7926 = vshrl.u32 %v7925, 7
    %v7927 = vsub.s32 %v7924, %v7926
    %v7928 = vrot.slane %v7920, %v7927
    %v7930 = vunpack.c.l.s4 1983009808
    %v7931 = vunpack.c.0.s8 %v7930
    %v7932 = vlaneseq
    %v7933 = vshrl.u32 %v7932, 7
    %v7934 = vsub.s32 %v7931, %v7933
    %v7935 = vrot.slane %v7921, %v7934
    %v7936 = vcombine.low %v7928, %v7935
    %v7937 = vcombine.low %v5913, %v6201
    %v7938 = vcombine.low %v5921, %v6209
    %v7940 = vunpack.c.l.s4 1983009808
    %v7941 = vunpack.c.0.s8 %v7940
    %v7942 = vlaneseq
    %v7943 = vshrl.u32 %v7942, 7
    %v7944 = vsub.s32 %v7941, %v7943
    %v7945 = vrot.slane %v7937, %v7944
    %v7947 = vunpack.c.l.s4 1983009808
    %v7948 = vunpack.c.0.s8 %v7947
    %v7949 = vlaneseq
    %v7950 = vshrl.u32 %v7949, 7
    %v7951 = vsub.s32 %v7948, %v7950
    %v7952 = vrot.slane %v7938, %v7951
    %v7953 = vcombine.low %v7945, %v7952
    %v7954 = vcombine.low %v5920, %v6208
    %v7955 = vcombine.low %v5922, %v6210
    %v7957 = vunpack.c.l.s4 1983009808
    %v7958 = vunpack.c.0.s8 %v7957
    %v7959 = vlaneseq
    %v7960 = vshrl.u32 %v7959, 7
    %v7961 = vsub.s32 %v7958, %v7960
    %v7962 = vrot.slane %v7954, %v7961
    %v7964 = vunpack.c.l.s4 1983009808
    %v7965 = vunpack.c.0.s8 %v7964
    %v7966 = vlaneseq
    %v7967 = vshrl.u32 %v7966, 7
    %v7968 = vsub.s32 %v7965, %v7967
    %v7969 = vrot.slane %v7955, %v7968
    %v7970 = vcombine.low %v7962, %v7969
    %v7971 = vcombine.low %v5354, %v5642
    %v7972 = vcombine.low %v5362, %v5650
    %v7974 = vunpack.c.l.s4 1983009808
    %v7975 = vunpack.c.0.s8 %v7974
    %v7976 = vlaneseq
    %v7977 = vshrl.u32 %v7976, 7
    %v7978 = vsub.s32 %v7975, %v7977
    %v7979 = vrot.slane %v7971, %v7978
    %v7981 = vunpack.c.l.s4 1983009808
    %v7982 = vunpack.c.0.s8 %v7981
    %v7983 = vlaneseq
    %v7984 = vshrl.u32 %v7983, 7
    %v7985 = vsub.s32 %v7982, %v7984
    %v7986 = vrot.slane %v7972, %v7985
    %v7987 = vcombine.low %v7979, %v7986
    %v7988 = vcombine.low %v5361, %v5649
    %v7989 = vcombine.low %v5363, %v5651
    %v7991 = vunpack.c.l.s4 1983009808
    %v7992 = vunpack.c.0.s8 %v7991
    %v7993 = vlaneseq
    %v7994 = vshrl.u32 %v7993, 7
    %v7995 = vsub.s32 %v7992, %v7994
    %v7996 = vrot.slane %v7988, %v7995
    %v7998 = vunpack.c.l.s4 1983009808
    %v7999 = vunpack.c.0.s8 %v7998
    %v8000 = vlaneseq
    %v8001 = vshrl.u32 %v8000, 7
    %v8002 = vsub.s32 %v7999, %v8001
    %v8003 = vrot.slane %v7989, %v8002
    %v8004 = vcombine.low %v7996, %v8003
    %v8005 = vcombine.low %v5371, %v5659
    %v8006 = vcombine.low %v5379, %v5667
    %v8008 = vunpack.c.l.s4 1983009808
    %v8009 = vunpack.c.0.s8 %v8008
    %v8010 = vlaneseq
    %v8011 = vshrl.u32 %v8010, 7
    %v8012 = vsub.s32 %v8009, %v8011
    %v8013 = vrot.slane %v8005, %v8012
    %v8015 = vunpack.c.l.s4 1983009808
    %v8016 = vunpack.c.0.s8 %v8015
    %v8017 = vlaneseq
    %v8018 = vshrl.u32 %v8017, 7
    %v8019 = vsub.s32 %v8016, %v8018
    %v8020 = vrot.slane %v8006, %v8019
    %v8021 = vcombine.low %v8013, %v8020
    %v8022 = vcombine.low %v5378, %v5666
    %v8023 = vcombine.low %v5380, %v5668
    %v8025 = vunpack.c.l.s4 1983009808
    %v8026 = vunpack.c.0.s8 %v8025
    %v8027 = vlaneseq
    %v8028 = vshrl.u32 %v8027, 7
    %v8029 = vsub.s32 %v8026, %v8028
    %v8030 = vrot.slane %v8022, %v8029
    %v8032 = vunpack.c.l.s4 1983009808
    %v8033 = vunpack.c.0.s8 %v8032
    %v8034 = vlaneseq
    %v8035 = vshrl.u32 %v8034, 7
    %v8036 = vsub.s32 %v8033, %v8035
    %v8037 = vrot.slane %v8023, %v8036
    %v8038 = vcombine.low %v8030, %v8037
    %v8039 = vcombine.low %v5930, %v6218
    %v8040 = vcombine.low %v5938, %v6226
    %v8042 = vunpack.c.l.s4 1983009808
    %v8043 = vunpack.c.0.s8 %v8042
    %v8044 = vlaneseq
    %v8045 = vshrl.u32 %v8044, 7
    %v8046 = vsub.s32 %v8043, %v8045
    %v8047 = vrot.slane %v8039, %v8046
    %v8049 = vunpack.c.l.s4 1983009808
    %v8050 = vunpack.c.0.s8 %v8049
    %v8051 = vlaneseq
    %v8052 = vshrl.u32 %v8051, 7
    %v8053 = vsub.s32 %v8050, %v8052
    %v8054 = vrot.slane %v8040, %v8053
    %v8055 = vcombine.low %v8047, %v8054
    %v8056 = vcombine.low %v5937, %v6225
    %v8057 = vcombine.low %v5939, %v6227
    %v8059 = vunpack.c.l.s4 1983009808
    %v8060 = vunpack.c.0.s8 %v8059
    %v8061 = vlaneseq
    %v8062 = vshrl.u32 %v8061, 7
    %v8063 = vsub.s32 %v8060, %v8062
    %v8064 = vrot.slane %v8056, %v8063
    %v8066 = vunpack.c.l.s4 1983009808
    %v8067 = vunpack.c.0.s8 %v8066
    %v8068 = vlaneseq
    %v8069 = vshrl.u32 %v8068, 7
    %v8070 = vsub.s32 %v8067, %v8069
    %v8071 = vrot.slane %v8057, %v8070
    %v8072 = vcombine.low %v8064, %v8071
    %v8073 = vcombine.low %v5947, %v6235
    %v8074 = vcombine.low %v5955, %v6243
    %v8076 = vunpack.c.l.s4 1983009808
    %v8077 = vunpack.c.0.s8 %v8076
    %v8078 = vlaneseq
    %v8079 = vshrl.u32 %v8078, 7
    %v8080 = vsub.s32 %v8077, %v8079
    %v8081 = vrot.slane %v8073, %v8080
    %v8083 = vunpack.c.l.s4 1983009808
    %v8084 = vunpack.c.0.s8 %v8083
    %v8085 = vlaneseq
    %v8086 = vshrl.u32 %v8085, 7
    %v8087 = vsub.s32 %v8084, %v8086
    %v8088 = vrot.slane %v8074, %v8087
    %v8089 = vcombine.low %v8081, %v8088
    %v8090 = vcombine.low %v5954, %v6242
    %v8091 = vcombine.low %v5956, %v6244
    %v8093 = vunpack.c.l.s4 1983009808
    %v8094 = vunpack.c.0.s8 %v8093
    %v8095 = vlaneseq
    %v8096 = vshrl.u32 %v8095, 7
    %v8097 = vsub.s32 %v8094, %v8096
    %v8098 = vrot.slane %v8090, %v8097
    %v8100 = vunpack.c.l.s4 1983009808
    %v8101 = vunpack.c.0.s8 %v8100
    %v8102 = vlaneseq
    %v8103 = vshrl.u32 %v8102, 7
    %v8104 = vsub.s32 %v8101, %v8103
    %v8105 = vrot.slane %v8091, %v8104
    %v8106 = vcombine.low %v8098, %v8105
    %v8107 = vcombine.low %v5388, %v5676
    %v8108 = vcombine.low %v5396, %v5684
    %v8110 = vunpack.c.l.s4 1983009808
    %v8111 = vunpack.c.0.s8 %v8110
    %v8112 = vlaneseq
    %v8113 = vshrl.u32 %v8112, 7
    %v8114 = vsub.s32 %v8111, %v8113
    %v8115 = vrot.slane %v8107, %v8114
    %v8117 = vunpack.c.l.s4 1983009808
    %v8118 = vunpack.c.0.s8 %v8117
    %v8119 = vlaneseq
    %v8120 = vshrl.u32 %v8119, 7
    %v8121 = vsub.s32 %v8118, %v8120
    %v8122 = vrot.slane %v8108, %v8121
    %v8123 = vcombine.low %v8115, %v8122
    %v8124 = vcombine.low %v5395, %v5683
    %v8125 = vcombine.low %v5397, %v5685
    %v8127 = vunpack.c.l.s4 1983009808
    %v8128 = vunpack.c.0.s8 %v8127
    %v8129 = vlaneseq
    %v8130 = vshrl.u32 %v8129, 7
    %v8131 = vsub.s32 %v8128, %v8130
    %v8132 = vrot.slane %v8124, %v8131
    %v8134 = vunpack.c.l.s4 1983009808
    %v8135 = vunpack.c.0.s8 %v8134
    %v8136 = vlaneseq
    %v8137 = vshrl.u32 %v8136, 7
    %v8138 = vsub.s32 %v8135, %v8137
    %v8139 = vrot.slane %v8125, %v8138
    %v8140 = vcombine.low %v8132, %v8139
    %v8141 = vcombine.low %v5405, %v5693
    %v8142 = vcombine.low %v5413, %v5701
    %v8144 = vunpack.c.l.s4 1983009808
    %v8145 = vunpack.c.0.s8 %v8144
    %v8146 = vlaneseq
    %v8147 = vshrl.u32 %v8146, 7
    %v8148 = vsub.s32 %v8145, %v8147
    %v8149 = vrot.slane %v8141, %v8148
    %v8151 = vunpack.c.l.s4 1983009808
    %v8152 = vunpack.c.0.s8 %v8151
    %v8153 = vlaneseq
    %v8154 = vshrl.u32 %v8153, 7
    %v8155 = vsub.s32 %v8152, %v8154
    %v8156 = vrot.slane %v8142, %v8155
    %v8157 = vcombine.low %v8149, %v8156
    %v8158 = vcombine.low %v5412, %v5700
    %v8159 = vcombine.low %v5414, %v5702
    %v8161 = vunpack.c.l.s4 1983009808
    %v8162 = vunpack.c.0.s8 %v8161
    %v8163 = vlaneseq
    %v8164 = vshrl.u32 %v8163, 7
    %v8165 = vsub.s32 %v8162, %v8164
    %v8166 = vrot.slane %v8158, %v8165
    %v8168 = vunpack.c.l.s4 1983009808
    %v8169 = vunpack.c.0.s8 %v8168
    %v8170 = vlaneseq
    %v8171 = vshrl.u32 %v8170, 7
    %v8172 = vsub.s32 %v8169, %v8171
    %v8173 = vrot.slane %v8159, %v8172
    %v8174 = vcombine.low %v8166, %v8173
    %v8175 = vcombine.low %v5964, %v6252
    %v8176 = vcombine.low %v5972, %v6260
    %v8178 = vunpack.c.l.s4 1983009808
    %v8179 = vunpack.c.0.s8 %v8178
    %v8180 = vlaneseq
    %v8181 = vshrl.u32 %v8180, 7
    %v8182 = vsub.s32 %v8179, %v8181
    %v8183 = vrot.slane %v8175, %v8182
    %v8185 = vunpack.c.l.s4 1983009808
    %v8186 = vunpack.c.0.s8 %v8185
    %v8187 = vlaneseq
    %v8188 = vshrl.u32 %v8187, 7
    %v8189 = vsub.s32 %v8186, %v8188
    %v8190 = vrot.slane %v8176, %v8189
    %v8191 = vcombine.low %v8183, %v8190
    %v8192 = vcombine.low %v5971, %v6259
    %v8193 = vcombine.low %v5973, %v6261
    %v8195 = vunpack.c.l.s4 1983009808
    %v8196 = vunpack.c.0.s8 %v8195
    %v8197 = vlaneseq
    %v8198 = vshrl.u32 %v8197, 7
    %v8199 = vsub.s32 %v8196, %v8198
    %v8200 = vrot.slane %v8192, %v8199
    %v8202 = vunpack.c.l.s4 1983009808
    %v8203 = vunpack.c.0.s8 %v8202
    %v8204 = vlaneseq
    %v8205 = vshrl.u32 %v8204, 7
    %v8206 = vsub.s32 %v8203, %v8205
    %v8207 = vrot.slane %v8193, %v8206
    %v8208 = vcombine.low %v8200, %v8207
    %v8209 = vcombine.low %v5981, %v6269
    %v8210 = vcombine.low %v5989, %v6277
    %v8212 = vunpack.c.l.s4 1983009808
    %v8213 = vunpack.c.0.s8 %v8212
    %v8214 = vlaneseq
    %v8215 = vshrl.u32 %v8214, 7
    %v8216 = vsub.s32 %v8213, %v8215
    %v8217 = vrot.slane %v8209, %v8216
    %v8219 = vunpack.c.l.s4 1983009808
    %v8220 = vunpack.c.0.s8 %v8219
    %v8221 = vlaneseq
    %v8222 = vshrl.u32 %v8221, 7
    %v8223 = vsub.s32 %v8220, %v8222
    %v8224 = vrot.slane %v8210, %v8223
    %v8225 = vcombine.low %v8217, %v8224
    %v8226 = vcombine.low %v5988, %v6276
    %v8227 = vcombine.low %v5990, %v6278
    %v8229 = vunpack.c.l.s4 1983009808
    %v8230 = vunpack.c.0.s8 %v8229
    %v8231 = vlaneseq
    %v8232 = vshrl.u32 %v8231, 7
    %v8233 = vsub.s32 %v8230, %v8232
    %v8234 = vrot.slane %v8226, %v8233
    %v8236 = vunpack.c.l.s4 1983009808
    %v8237 = vunpack.c.0.s8 %v8236
    %v8238 = vlaneseq
    %v8239 = vshrl.u32 %v8238, 7
    %v8240 = vsub.s32 %v8237, %v8239
    %v8241 = vrot.slane %v8227, %v8240
    %v8242 = vcombine.low %v8234, %v8241
    %v8243 = vcombine.low %v5422, %v5710
    %v8244 = vcombine.low %v5430, %v5718
    %v8246 = vunpack.c.l.s4 1983009808
    %v8247 = vunpack.c.0.s8 %v8246
    %v8248 = vlaneseq
    %v8249 = vshrl.u32 %v8248, 7
    %v8250 = vsub.s32 %v8247, %v8249
    %v8251 = vrot.slane %v8243, %v8250
    %v8253 = vunpack.c.l.s4 1983009808
    %v8254 = vunpack.c.0.s8 %v8253
    %v8255 = vlaneseq
    %v8256 = vshrl.u32 %v8255, 7
    %v8257 = vsub.s32 %v8254, %v8256
    %v8258 = vrot.slane %v8244, %v8257
    %v8259 = vcombine.low %v8251, %v8258
    %v8260 = vcombine.low %v5429, %v5717
    %v8261 = vcombine.low %v5431, %v5719
    %v8263 = vunpack.c.l.s4 1983009808
    %v8264 = vunpack.c.0.s8 %v8263
    %v8265 = vlaneseq
    %v8266 = vshrl.u32 %v8265, 7
    %v8267 = vsub.s32 %v8264, %v8266
    %v8268 = vrot.slane %v8260, %v8267
    %v8270 = vunpack.c.l.s4 1983009808
    %v8271 = vunpack.c.0.s8 %v8270
    %v8272 = vlaneseq
    %v8273 = vshrl.u32 %v8272, 7
    %v8274 = vsub.s32 %v8271, %v8273
    %v8275 = vrot.slane %v8261, %v8274
    %v8276 = vcombine.low %v8268, %v8275
    %v8277 = vcombine.low %v5439, %v5727
    %v8278 = vcombine.low %v5447, %v5735
    %v8280 = vunpack.c.l.s4 1983009808
    %v8281 = vunpack.c.0.s8 %v8280
    %v8282 = vlaneseq
    %v8283 = vshrl.u32 %v8282, 7
    %v8284 = vsub.s32 %v8281, %v8283
    %v8285 = vrot.slane %v8277, %v8284
    %v8287 = vunpack.c.l.s4 1983009808
    %v8288 = vunpack.c.0.s8 %v8287
    %v8289 = vlaneseq
    %v8290 = vshrl.u32 %v8289, 7
    %v8291 = vsub.s32 %v8288, %v8290
    %v8292 = vrot.slane %v8278, %v8291
    %v8293 = vcombine.low %v8285, %v8292
    %v8294 = vcombine.low %v5446, %v5734
    %v8295 = vcombine.low %v5448, %v5736
    %v8297 = vunpack.c.l.s4 1983009808
    %v8298 = vunpack.c.0.s8 %v8297
    %v8299 = vlaneseq
    %v8300 = vshrl.u32 %v8299, 7
    %v8301 = vsub.s32 %v8298, %v8300
    %v8302 = vrot.slane %v8294, %v8301
    %v8304 = vunpack.c.l.s4 1983009808
    %v8305 = vunpack.c.0.s8 %v8304
    %v8306 = vlaneseq
    %v8307 = vshrl.u32 %v8306, 7
    %v8308 = vsub.s32 %v8305, %v8307
    %v8309 = vrot.slane %v8295, %v8308
    %v8310 = vcombine.low %v8302, %v8309
    %v8311 = vcombine.low %v5998, %v6286
    %v8312 = vcombine.low %v6006, %v6294
    %v8314 = vunpack.c.l.s4 1983009808
    %v8315 = vunpack.c.0.s8 %v8314
    %v8316 = vlaneseq
    %v8317 = vshrl.u32 %v8316, 7
    %v8318 = vsub.s32 %v8315, %v8317
    %v8319 = vrot.slane %v8311, %v8318
    %v8321 = vunpack.c.l.s4 1983009808
    %v8322 = vunpack.c.0.s8 %v8321
    %v8323 = vlaneseq
    %v8324 = vshrl.u32 %v8323, 7
    %v8325 = vsub.s32 %v8322, %v8324
    %v8326 = vrot.slane %v8312, %v8325
    %v8327 = vcombine.low %v8319, %v8326
    %v8328 = vcombine.low %v6005, %v6293
    %v8329 = vcombine.low %v6007, %v6295
    %v8331 = vunpack.c.l.s4 1983009808
    %v8332 = vunpack.c.0.s8 %v8331
    %v8333 = vlaneseq
    %v8334 = vshrl.u32 %v8333, 7
    %v8335 = vsub.s32 %v8332, %v8334
    %v8336 = vrot.slane %v8328, %v8335
    %v8338 = vunpack.c.l.s4 1983009808
    %v8339 = vunpack.c.0.s8 %v8338
    %v8340 = vlaneseq
    %v8341 = vshrl.u32 %v8340, 7
    %v8342 = vsub.s32 %v8339, %v8341
    %v8343 = vrot.slane %v8329, %v8342
    %v8344 = vcombine.low %v8336, %v8343
    %v8345 = vcombine.low %v6015, %v6303
    %v8346 = vcombine.low %v6023, %v6311
    %v8348 = vunpack.c.l.s4 1983009808
    %v8349 = vunpack.c.0.s8 %v8348
    %v8350 = vlaneseq
    %v8351 = vshrl.u32 %v8350, 7
    %v8352 = vsub.s32 %v8349, %v8351
    %v8353 = vrot.slane %v8345, %v8352
    %v8355 = vunpack.c.l.s4 1983009808
    %v8356 = vunpack.c.0.s8 %v8355
    %v8357 = vlaneseq
    %v8358 = vshrl.u32 %v8357, 7
    %v8359 = vsub.s32 %v8356, %v8358
    %v8360 = vrot.slane %v8346, %v8359
    %v8361 = vcombine.low %v8353, %v8360
    %v8362 = vcombine.low %v6022, %v6310
    %v8363 = vcombine.low %v6024, %v6312
    %v8365 = vunpack.c.l.s4 1983009808
    %v8366 = vunpack.c.0.s8 %v8365
    %v8367 = vlaneseq
    %v8368 = vshrl.u32 %v8367, 7
    %v8369 = vsub.s32 %v8366, %v8368
    %v8370 = vrot.slane %v8362, %v8369
    %v8372 = vunpack.c.l.s4 1983009808
    %v8373 = vunpack.c.0.s8 %v8372
    %v8374 = vlaneseq
    %v8375 = vshrl.u32 %v8374, 7
    %v8376 = vsub.s32 %v8373, %v8375
    %v8377 = vrot.slane %v8363, %v8376
    %v8378 = vcombine.low %v8370, %v8377
    %v8379 = vcombine.low %v5456, %v5744
    %v8380 = vcombine.low %v5464, %v5752
    %v8382 = vunpack.c.l.s4 1983009808
    %v8383 = vunpack.c.0.s8 %v8382
    %v8384 = vlaneseq
    %v8385 = vshrl.u32 %v8384, 7
    %v8386 = vsub.s32 %v8383, %v8385
    %v8387 = vrot.slane %v8379, %v8386
    %v8389 = vunpack.c.l.s4 1983009808
    %v8390 = vunpack.c.0.s8 %v8389
    %v8391 = vlaneseq
    %v8392 = vshrl.u32 %v8391, 7
    %v8393 = vsub.s32 %v8390, %v8392
    %v8394 = vrot.slane %v8380, %v8393
    %v8395 = vcombine.low %v8387, %v8394
    %v8396 = vcombine.low %v5463, %v5751
    %v8397 = vcombine.low %v5465, %v5753
    %v8399 = vunpack.c.l.s4 1983009808
    %v8400 = vunpack.c.0.s8 %v8399
    %v8401 = vlaneseq
    %v8402 = vshrl.u32 %v8401, 7
    %v8403 = vsub.s32 %v8400, %v8402
    %v8404 = vrot.slane %v8396, %v8403
    %v8406 = vunpack.c.l.s4 1983009808
    %v8407 = vunpack.c.0.s8 %v8406
    %v8408 = vlaneseq
    %v8409 = vshrl.u32 %v8408, 7
    %v8410 = vsub.s32 %v8407, %v8409
    %v8411 = vrot.slane %v8397, %v8410
    %v8412 = vcombine.low %v8404, %v8411
    %v8413 = vcombine.low %v5473, %v5761
    %v8414 = vcombine.low %v5481, %v5769
    %v8416 = vunpack.c.l.s4 1983009808
    %v8417 = vunpack.c.0.s8 %v8416
    %v8418 = vlaneseq
    %v8419 = vshrl.u32 %v8418, 7
    %v8420 = vsub.s32 %v8417, %v8419
    %v8421 = vrot.slane %v8413, %v8420
    %v8423 = vunpack.c.l.s4 1983009808
    %v8424 = vunpack.c.0.s8 %v8423
    %v8425 = vlaneseq
    %v8426 = vshrl.u32 %v8425, 7
    %v8427 = vsub.s32 %v8424, %v8426
    %v8428 = vrot.slane %v8414, %v8427
    %v8429 = vcombine.low %v8421, %v8428
    %v8430 = vcombine.low %v5480, %v5768
    %v8431 = vcombine.low %v5482, %v5770
    %v8433 = vunpack.c.l.s4 1983009808
    %v8434 = vunpack.c.0.s8 %v8433
    %v8435 = vlaneseq
    %v8436 = vshrl.u32 %v8435, 7
    %v8437 = vsub.s32 %v8434, %v8436
    %v8438 = vrot.slane %v8430, %v8437
    %v8440 = vunpack.c.l.s4 1983009808
    %v8441 = vunpack.c.0.s8 %v8440
    %v8442 = vlaneseq
    %v8443 = vshrl.u32 %v8442, 7
    %v8444 = vsub.s32 %v8441, %v8443
    %v8445 = vrot.slane %v8431, %v8444
    %v8446 = vcombine.low %v8438, %v8445
    %v8507 = vcombine.low %v6362, %v6372
    %v8508 = vcombine.low %v6379, %v6389
    %v8509 = vcombine.low %v6396, %v6406
    %v8510 = vcombine.low %v5532, 0.0
    %v8512 = vunpack.c.l.s4 1983009808
    %v8513 = vunpack.c.0.s8 %v8512
    %v8514 = vlaneseq
    %v8515 = vshrl.u32 %v8514, 7
    %v8516 = vsub.s32 %v8513, %v8515
    %v8517 = vrot.slane %v8510, %v8516
    %v8518 = vcombine.low %v6413, %v8517
    %v8519 = vcombine.low %v6430, %v6440
    %v8520 = vcombine.low %v6447, %v6457
    %v8521 = vcombine.low %v6464, %v6474
    %v8522 = vcombine.low %v6108, 0.0
    %v8524 = vunpack.c.l.s4 1983009808
    %v8525 = vunpack.c.0.s8 %v8524
    %v8526 = vlaneseq
    %v8527 = vshrl.u32 %v8526, 7
    %v8528 = vsub.s32 %v8525, %v8527
    %v8529 = vrot.slane %v8522, %v8528
    %v8530 = vcombine.low %v6481, %v8529
    %v8531 = vcombine.low %v6498, %v6508
    %v8532 = vcombine.low %v6515, %v6525
    %v8533 = vcombine.low %v6532, %v6542
    %v8534 = vcombine.low %v5566, 0.0
    %v8536 = vunpack.c.l.s4 1983009808
    %v8537 = vunpack.c.0.s8 %v8536
    %v8538 = vlaneseq
    %v8539 = vshrl.u32 %v8538, 7
    %v8540 = vsub.s32 %v8537, %v8539
    %v8541 = vrot.slane %v8534, %v8540
    %v8542 = vcombine.low %v6549, %v8541
    %v8543 = vcombine.low %v6566, %v6576
    %v8544 = vcombine.low %v6583, %v6593
    %v8545 = vcombine.low %v6600, %v6610
    %v8546 = vcombine.low %v6142, 0.0
    %v8548 = vunpack.c.l.s4 1983009808
    %v8549 = vunpack.c.0.s8 %v8548
    %v8550 = vlaneseq
    %v8551 = vshrl.u32 %v8550, 7
    %v8552 = vsub.s32 %v8549, %v8551
    %v8553 = vrot.slane %v8546, %v8552
    %v8554 = vcombine.low %v6617, %v8553
    %v8555 = vcombine.low %v6634, %v6644
    %v8556 = vcombine.low %v6651, %v6661
    %v8557 = vcombine.low %v6668, %v6678
    %v8558 = vcombine.low %v5600, 0.0
    %v8560 = vunpack.c.l.s4 1983009808
    %v8561 = vunpack.c.0.s8 %v8560
    %v8562 = vlaneseq
    %v8563 = vshrl.u32 %v8562, 7
    %v8564 = vsub.s32 %v8561, %v8563
    %v8565 = vrot.slane %v8558, %v8564
    %v8566 = vcombine.low %v6685, %v8565
    %v8567 = vcombine.low %v6702, %v6712
    %v8568 = vcombine.low %v6719, %v6729
    %v8569 = vcombine.low %v6736, %v6746
    %v8570 = vcombine.low %v6176, 0.0
    %v8572 = vunpack.c.l.s4 1983009808
    %v8573 = vunpack.c.0.s8 %v8572
    %v8574 = vlaneseq
    %v8575 = vshrl.u32 %v8574, 7
    %v8576 = vsub.s32 %v8573, %v8575
    %v8577 = vrot.slane %v8570, %v8576
    %v8578 = vcombine.low %v6753, %v8577
    %v8579 = vcombine.low %v6770, %v6780
    %v8580 = vcombine.low %v6787, %v6797
    %v8581 = vcombine.low %v6804, %v6814
    %v8582 = vcombine.low %v5634, 0.0
    %v8584 = vunpack.c.l.s4 1983009808
    %v8585 = vunpack.c.0.s8 %v8584
    %v8586 = vlaneseq
    %v8587 = vshrl.u32 %v8586, 7
    %v8588 = vsub.s32 %v8585, %v8587
    %v8589 = vrot.slane %v8582, %v8588
    %v8590 = vcombine.low %v6821, %v8589
    %v8591 = vcombine.low %v6838, %v6848
    %v8592 = vcombine.low %v6855, %v6865
    %v8593 = vcombine.low %v6872, %v6882
    %v8594 = vcombine.low %v6210, 0.0
    %v8596 = vunpack.c.l.s4 1983009808
    %v8597 = vunpack.c.0.s8 %v8596
    %v8598 = vlaneseq
    %v8599 = vshrl.u32 %v8598, 7
    %v8600 = vsub.s32 %v8597, %v8599
    %v8601 = vrot.slane %v8594, %v8600
    %v8602 = vcombine.low %v6889, %v8601
    %v8603 = vcombine.low %v6906, %v6916
    %v8604 = vcombine.low %v6923, %v6933
    %v8605 = vcombine.low %v6940, %v6950
    %v8606 = vcombine.low %v5668, 0.0
    %v8608 = vunpack.c.l.s4 1983009808
    %v8609 = vunpack.c.0.s8 %v8608
    %v8610 = vlaneseq
    %v8611 = vshrl.u32 %v8610, 7
    %v8612 = vsub.s32 %v8609, %v8611
    %v8613 = vrot.slane %v8606, %v8612
    %v8614 = vcombine.low %v6957, %v8613
    %v8615 = vcombine.low %v6974, %v6984
    %v8616 = vcombine.low %v6991, %v7001
    %v8617 = vcombine.low %v7008, %v7018
    %v8618 = vcombine.low %v6244, 0.0
    %v8620 = vunpack.c.l.s4 1983009808
    %v8621 = vunpack.c.0.s8 %v8620
    %v8622 = vlaneseq
    %v8623 = vshrl.u32 %v8622, 7
    %v8624 = vsub.s32 %v8621, %v8623
    %v8625 = vrot.slane %v8618, %v8624
    %v8626 = vcombine.low %v7025, %v8625
    %v8627 = vcombine.low %v7042, %v7052
    %v8628 = vcombine.low %v7059, %v7069
    %v8629 = vcombine.low %v7076, %v7086
    %v8630 = vcombine.low %v5702, 0.0
    %v8632 = vunpack.c.l.s4 1983009808
    %v8633 = vunpack.c.0.s8 %v8632
    %v8634 = vlaneseq
    %v8635 = vshrl.u32 %v8634, 7
    %v8636 = vsub.s32 %v8633, %v8635
    %v8637 = vrot.slane %v8630, %v8636
    %v8638 = vcombine.low %v7093, %v8637
    %v8639 = vcombine.low %v7110, %v7120
    %v8640 = vcombine.low %v7127, %v7137
    %v8641 = vcombine.low %v7144, %v7154
    %v8642 = vcombine.low %v6278, 0.0
    %v8644 = vunpack.c.l.s4 1983009808
    %v8645 = vunpack.c.0.s8 %v8644
    %v8646 = vlaneseq
    %v8647 = vshrl.u32 %v8646, 7
    %v8648 = vsub.s32 %v8645, %v8647
    %v8649 = vrot.slane %v8642, %v8648
    %v8650 = vcombine.low %v7161, %v8649
    %v8651 = vcombine.low %v7178, %v7188
    %v8652 = vcombine.low %v7195, %v7205
    %v8653 = vcombine.low %v7212, %v7222
    %v8654 = vcombine.low %v5736, 0.0
    %v8656 = vunpack.c.l.s4 1983009808
    %v8657 = vunpack.c.0.s8 %v8656
    %v8658 = vlaneseq
    %v8659 = vshrl.u32 %v8658, 7
    %v8660 = vsub.s32 %v8657, %v8659
    %v8661 = vrot.slane %v8654, %v8660
    %v8662 = vcombine.low %v7229, %v8661
    %v8663 = vcombine.low %v7246, %v7256
    %v8664 = vcombine.low %v7263, %v7273
    %v8665 = vcombine.low %v7280, %v7290
    %v8666 = vcombine.low %v6312, 0.0
    %v8668 = vunpack.c.l.s4 1983009808
    %v8669 = vunpack.c.0.s8 %v8668
    %v8670 = vlaneseq
    %v8671 = vshrl.u32 %v8670, 7
    %v8672 = vsub.s32 %v8669, %v8671
    %v8673 = vrot.slane %v8666, %v8672
    %v8674 = vcombine.low %v7297, %v8673
    %v8675 = vcombine.low %v7314, %v7324
    %v8676 = vcombine.low %v7331, %v7341
    %v8677 = vcombine.low %v7348, %v7358
    %v8678 = vcombine.low %v5770, 0.0
    %v8680 = vunpack.c.l.s4 1983009808
    %v8681 = vunpack.c.0.s8 %v8680
    %v8682 = vlaneseq
    %v8683 = vshrl.u32 %v8682, 7
    %v8684 = vsub.s32 %v8681, %v8683
    %v8685 = vrot.slane %v8678, %v8684
    %v8686 = vcombine.low %v7365, %v8685
    %v8747 = vcombine.low 0.0, %v6032
    %v8748 = vcombine.low %v6320, %v6040
    %v8750 = vunpack.c.l.s4 1983009808
    %v8751 = vunpack.c.0.s8 %v8750
    %v8752 = vlaneseq
    %v8753 = vshrl.u32 %v8752, 7
    %v8754 = vsub.s32 %v8751, %v8753
    %v8755 = vrot.slane %v8747, %v8754
    %v8757 = vunpack.c.l.s4 1983009808
    %v8758 = vunpack.c.0.s8 %v8757
    %v8759 = vlaneseq
    %v8760 = vshrl.u32 %v8759, 7
    %v8761 = vsub.s32 %v8758, %v8760
    %v8762 = vrot.slane %v8748, %v8761
    %v8763 = vcombine.low %v8755, %v8762
    %v8764 = vcombine.low %v6328, %v6039
    %v8765 = vcombine.low %v6327, %v6041
    %v8767 = vunpack.c.l.s4 1983009808
    %v8768 = vunpack.c.0.s8 %v8767
    %v8769 = vlaneseq
    %v8770 = vshrl.u32 %v8769, 7
    %v8771 = vsub.s32 %v8768, %v8770
    %v8772 = vrot.slane %v8764, %v8771
    %v8774 = vunpack.c.l.s4 1983009808
    %v8775 = vunpack.c.0.s8 %v8774
    %v8776 = vlaneseq
    %v8777 = vshrl.u32 %v8776, 7
    %v8778 = vsub.s32 %v8775, %v8777
    %v8779 = vrot.slane %v8765, %v8778
    %v8780 = vcombine.low %v8772, %v8779
    %v8781 = vcombine.low %v6329, %v6049
    %v8782 = vcombine.low %v6337, %v6057
    %v8784 = vunpack.c.l.s4 1983009808
    %v8785 = vunpack.c.0.s8 %v8784
    %v8786 = vlaneseq
    %v8787 = vshrl.u32 %v8786, 7
    %v8788 = vsub.s32 %v8785, %v8787
    %v8789 = vrot.slane %v8781, %v8788
    %v8791 = vunpack.c.l.s4 1983009808
    %v8792 = vunpack.c.0.s8 %v8791
    %v8793 = vlaneseq
    %v8794 = vshrl.u32 %v8793, 7
    %v8795 = vsub.s32 %v8792, %v8794
    %v8796 = vrot.slane %v8782, %v8795
    %v8797 = vcombine.low %v8789, %v8796
    %v8798 = vcombine.low %v6345, %v6056
    %v8799 = vcombine.low %v6344, %v6058
    %v8801 = vunpack.c.l.s4 1983009808
    %v8802 = vunpack.c.0.s8 %v8801
    %v8803 = vlaneseq
    %v8804 = vshrl.u32 %v8803, 7
    %v8805 = vsub.s32 %v8802, %v8804
    %v8806 = vrot.slane %v8798, %v8805
    %v8808 = vunpack.c.l.s4 1983009808
    %v8809 = vunpack.c.0.s8 %v8808
    %v8810 = vlaneseq
    %v8811 = vshrl.u32 %v8810, 7
    %v8812 = vsub.s32 %v8809, %v8811
    %v8813 = vrot.slane %v8799, %v8812
    %v8814 = vcombine.low %v8806, %v8813
    %v8819 = vcombine.low %v6032, %v6320
    %v8820 = vcombine.low %v6040, %v6328
    %v8822 = vunpack.c.l.s4 1983009808
    %v8823 = vunpack.c.0.s8 %v8822
    %v8824 = vlaneseq
    %v8825 = vshrl.u32 %v8824, 7
    %v8826 = vsub.s32 %v8823, %v8825
    %v8827 = vrot.slane %v8819, %v8826
    %v8829 = vunpack.c.l.s4 1983009808
    %v8830 = vunpack.c.0.s8 %v8829
    %v8831 = vlaneseq
    %v8832 = vshrl.u32 %v8831, 7
    %v8833 = vsub.s32 %v8830, %v8832
    %v8834 = vrot.slane %v8820, %v8833
    %v8835 = vcombine.low %v8827, %v8834
    %v8836 = vcombine.low %v6039, %v6327
    %v8837 = vcombine.low %v6041, %v6329
    %v8839 = vunpack.c.l.s4 1983009808
    %v8840 = vunpack.c.0.s8 %v8839
    %v8841 = vlaneseq
    %v8842 = vshrl.u32 %v8841, 7
    %v8843 = vsub.s32 %v8840, %v8842
    %v8844 = vrot.slane %v8836, %v8843
    %v8846 = vunpack.c.l.s4 1983009808
    %v8847 = vunpack.c.0.s8 %v8846
    %v8848 = vlaneseq
    %v8849 = vshrl.u32 %v8848, 7
    %v8850 = vsub.s32 %v8847, %v8849
    %v8851 = vrot.slane %v8837, %v8850
    %v8852 = vcombine.low %v8844, %v8851
    %v8853 = vcombine.low %v6049, %v6337
    %v8854 = vcombine.low %v6057, %v6345
    %v8856 = vunpack.c.l.s4 1983009808
    %v8857 = vunpack.c.0.s8 %v8856
    %v8858 = vlaneseq
    %v8859 = vshrl.u32 %v8858, 7
    %v8860 = vsub.s32 %v8857, %v8859
    %v8861 = vrot.slane %v8853, %v8860
    %v8863 = vunpack.c.l.s4 1983009808
    %v8864 = vunpack.c.0.s8 %v8863
    %v8865 = vlaneseq
    %v8866 = vshrl.u32 %v8865, 7
    %v8867 = vsub.s32 %v8864, %v8866
    %v8868 = vrot.slane %v8854, %v8867
    %v8869 = vcombine.low %v8861, %v8868
    %v8870 = vcombine.low %v6056, %v6344
    %v8871 = vcombine.low %v6058, %v6346
    %v8873 = vunpack.c.l.s4 1983009808
    %v8874 = vunpack.c.0.s8 %v8873
    %v8875 = vlaneseq
    %v8876 = vshrl.u32 %v8875, 7
    %v8877 = vsub.s32 %v8874, %v8876
    %v8878 = vrot.slane %v8870, %v8877
    %v8880 = vunpack.c.l.s4 1983009808
    %v8881 = vunpack.c.0.s8 %v8880
    %v8882 = vlaneseq
    %v8883 = vshrl.u32 %v8882, 7
    %v8884 = vsub.s32 %v8881, %v8883
    %v8885 = vrot.slane %v8871, %v8884
    %v8886 = vcombine.low %v8878, %v8885
    %v8891 = vcombine.low %v8762, %v8772
    %v8892 = vcombine.low %v8779, %v8789
    %v8893 = vcombine.low %v8796, %v8806
    %v8894 = vcombine.low %v6346, 0.0
    %v8896 = vunpack.c.l.s4 1983009808
    %v8897 = vunpack.c.0.s8 %v8896
    %v8898 = vlaneseq
    %v8899 = vshrl.u32 %v8898, 7
    %v8900 = vsub.s32 %v8897, %v8899
    %v8901 = vrot.slane %v8894, %v8900
    %v8902 = vcombine.low %v8813, %v8901
    %v8907 = vld [vmem:[%s10] sm:$0xff]
    %v8908 = vld [vmem:[%s10 + $0x8] sm:$0xff]
    %v8909 = vld [vmem:[%s10 + $0x10] sm:$0xff]
    %v8910 = vld [vmem:[%s10 + $0x18] sm:$0xff]
    %v8911 = vld [vmem:[%s10 + $0x20] sm:$0xff]
    %v8912 = vld [vmem:[%s10 + $0x28] sm:$0xff]
    %v8913 = vld [vmem:[%s10 + $0x30] sm:$0xff]
    %v8914 = vld [vmem:[%s10 + $0x38] sm:$0xff]
    %v8915 = vld [vmem:[%s10 + $0x40] sm:$0xff]
    %v8916 = vld [vmem:[%s10 + $0x48] sm:$0xff]
    %v8917 = vld [vmem:[%s10 + $0x50] sm:$0xff]
    %v8918 = vld [vmem:[%s10 + $0x58] sm:$0xff]
    %v8919 = vld [vmem:[%s10 + $0x60] sm:$0xff]
    %v8920 = vld [vmem:[%s10 + $0x68] sm:$0xff]
    %v8921 = vld [vmem:[%s10 + $0x70] sm:$0xff]
    %v8922 = vld [vmem:[%s10 + $0x78] sm:$0xff]
    %v8923 = vld [vmem:[%s10 + $0x80] sm:$0xff]
    %v8924 = vld [vmem:[%s10 + $0x88] sm:$0xff]
    %v8925 = vld [vmem:[%s10 + $0x90] sm:$0xff]
    %v8926 = vld [vmem:[%s10 + $0x98] sm:$0xff]
    %v8927 = vld [vmem:[%s10 + $0xa0] sm:$0xff]
    %v8928 = vld [vmem:[%s10 + $0xa8] sm:$0xff]
    %v8929 = vld [vmem:[%s10 + $0xb0] sm:$0xff]
    %v8930 = vld [vmem:[%s10 + $0xb8] sm:$0xff]
    %v8931 = vld [vmem:[%s10 + $0xc0] sm:$0xff]
    %v8932 = vld [vmem:[%s10 + $0xc8] sm:$0xff]
    %v8933 = vld [vmem:[%s10 + $0xd0] sm:$0xff]
    %v8934 = vld [vmem:[%s10 + $0xd8] sm:$0xff]
    %v8935 = vld [vmem:[%s10 + $0xe0] sm:$0xff]
    %v8936 = vld [vmem:[%s10 + $0xe8] sm:$0xff]
    %v8937 = vld [vmem:[%s10 + $0xf0] sm:$0xff]
    %v8938 = vld [vmem:[%s10 + $0xf8] sm:$0xff]
    %v8939 = vld [vmem:[%s10 + $0x100] sm:$0xff]
    %v8940 = vld [vmem:[%s10 + $0x108] sm:$0xff]
    %v8941 = vld [vmem:[%s10 + $0x110] sm:$0xff]
    %v8942 = vld [vmem:[%s10 + $0x118] sm:$0xff]
    %v8943 = vld [vmem:[%s10 + $0x120] sm:$0xff]
    %v8944 = vld [vmem:[%s10 + $0x128] sm:$0xff]
    %v8945 = vld [vmem:[%s10 + $0x130] sm:$0xff]
    %v8946 = vld [vmem:[%s10 + $0x138] sm:$0xff]
    %v8947 = vld [vmem:[%s10 + $0x140] sm:$0xff]
    %v8948 = vld [vmem:[%s10 + $0x148] sm:$0xff]
    %v8949 = vld [vmem:[%s10 + $0x150] sm:$0xff]
    %v8950 = vld [vmem:[%s10 + $0x158] sm:$0xff]
    %v8951 = vld [vmem:[%s10 + $0x160] sm:$0xff]
    %v8952 = vld [vmem:[%s10 + $0x168] sm:$0xff]
    %v8953 = vld [vmem:[%s10 + $0x170] sm:$0xff]
    %v8954 = vld [vmem:[%s10 + $0x178] sm:$0xff]
    %v8955 = vld [vmem:[%s10 + $0x180] sm:$0xff]
    %v8956 = vld [vmem:[%s10 + $0x188] sm:$0xff]
    %v8957 = vld [vmem:[%s10 + $0x190] sm:$0xff]
    %v8958 = vld [vmem:[%s10 + $0x198] sm:$0xff]
    %v8959 = vld [vmem:[%s10 + $0x1a0] sm:$0xff]
    %v8960 = vld [vmem:[%s10 + $0x1a8] sm:$0xff]
    %v8961 = vld [vmem:[%s10 + $0x1b0] sm:$0xff]
    %v8962 = vld [vmem:[%s10 + $0x1b8] sm:$0xff]
    %v8963 = vld [vmem:[%s10 + $0x1c0] sm:$0xff]
    %v8964 = vld [vmem:[%s10 + $0x1c8] sm:$0xff]
    %v8965 = vld [vmem:[%s10 + $0x1d0] sm:$0xff]
    %v8966 = vld [vmem:[%s10 + $0x1d8] sm:$0xff]
    %v8967 = vld [vmem:[%s10 + $0x1e0] sm:$0xff]
    %v8968 = vld [vmem:[%s10 + $0x1e8] sm:$0xff]
    %v8969 = vld [vmem:[%s10 + $0x1f0] sm:$0xff]
    %v8970 = vld [vmem:[%s10 + $0x1f8] sm:$0xff]
    %v8971 = vld [vmem:[%s10 + $0x200] sm:$0xff]
    %v8972 = vld [vmem:[%s10 + $0x208] sm:$0xff]
    %v8973 = vld [vmem:[%s10 + $0x210] sm:$0xff]
    %v8974 = vld [vmem:[%s10 + $0x218] sm:$0xff]
    %v8975 = vld [vmem:[%s10 + $0x220] sm:$0xff]
    %v8976 = vld [vmem:[%s10 + $0x228] sm:$0xff]
    %v8977 = vld [vmem:[%s10 + $0x230] sm:$0xff]
    %v8978 = vld [vmem:[%s10 + $0x238] sm:$0xff]
    %v8979 = vld [vmem:[%s10 + $0x240] sm:$0xff]
    %v8980 = vld [vmem:[%s10 + $0x248] sm:$0xff]
    %v8981 = vld [vmem:[%s10 + $0x250] sm:$0xff]
    %v8982 = vld [vmem:[%s10 + $0x258] sm:$0xff]
    %v8983 = vld [vmem:[%s10 + $0x260] sm:$0xff]
    %v8984 = vld [vmem:[%s10 + $0x268] sm:$0xff]
    %v8985 = vld [vmem:[%s10 + $0x270] sm:$0xff]
    %v8986 = vld [vmem:[%s10 + $0x278] sm:$0xff]
    %v8987 = vld [vmem:[%s10 + $0x280] sm:$0xff]
    %v8988 = vld [vmem:[%s10 + $0x288] sm:$0xff]
    %v8989 = vld [vmem:[%s10 + $0x290] sm:$0xff]
    %v8990 = vld [vmem:[%s10 + $0x298] sm:$0xff]
    %v8991 = vld [vmem:[%s10 + $0x2a0] sm:$0xff]
    %v8992 = vld [vmem:[%s10 + $0x2a8] sm:$0xff]
    %v8993 = vld [vmem:[%s10 + $0x2b0] sm:$0xff]
    %v8994 = vld [vmem:[%s10 + $0x2b8] sm:$0xff]
    %v8995 = vld [vmem:[%s10 + $0x2c0] sm:$0xff]
    %v8996 = vld [vmem:[%s10 + $0x2c8] sm:$0xff]
    %v8997 = vld [vmem:[%s10 + $0x2d0] sm:$0xff]
    %v8998 = vld [vmem:[%s10 + $0x2d8] sm:$0xff]
    %v8999 = vld [vmem:[%s10 + $0x2e0] sm:$0xff]
    %v9000 = vld [vmem:[%s10 + $0x2e8] sm:$0xff]
    %v9001 = vld [vmem:[%s10 + $0x2f0] sm:$0xff]
    %v9002 = vld [vmem:[%s10 + $0x2f8] sm:$0xff]
    %v9003 = vld [vmem:[%s10 + $0x300] sm:$0xff]
    %v9004 = vld [vmem:[%s10 + $0x308] sm:$0xff]
    %v9005 = vld [vmem:[%s10 + $0x310] sm:$0xff]
    %v9006 = vld [vmem:[%s10 + $0x318] sm:$0xff]
    %v9007 = vld [vmem:[%s10 + $0x320] sm:$0xff]
    %v9008 = vld [vmem:[%s10 + $0x328] sm:$0xff]
    %v9009 = vld [vmem:[%s10 + $0x330] sm:$0xff]
    %v9010 = vld [vmem:[%s10 + $0x338] sm:$0xff]
    %v9011 = vld [vmem:[%s10 + $0x340] sm:$0xff]
    %v9012 = vld [vmem:[%s10 + $0x348] sm:$0xff]
    %v9013 = vld [vmem:[%s10 + $0x350] sm:$0xff]
    %v9014 = vld [vmem:[%s10 + $0x358] sm:$0xff]
    %v9015 = vld [vmem:[%s10 + $0x360] sm:$0xff]
    %v9016 = vld [vmem:[%s10 + $0x368] sm:$0xff]
    %v9017 = vld [vmem:[%s10 + $0x370] sm:$0xff]
    %v9018 = vld [vmem:[%s10 + $0x378] sm:$0xff]
    %v9019 = vld [vmem:[%s10 + $0x380] sm:$0xff]
    %v9020 = vld [vmem:[%s10 + $0x388] sm:$0xff]
    %v9021 = vld [vmem:[%s10 + $0x390] sm:$0xff]
    %v9022 = vld [vmem:[%s10 + $0x398] sm:$0xff]
    %v9023 = vld [vmem:[%s10 + $0x3a0] sm:$0xff]
    %v9024 = vld [vmem:[%s10 + $0x3a8] sm:$0xff]
    %v9025 = vld [vmem:[%s10 + $0x3b0] sm:$0xff]
    %v9026 = vld [vmem:[%s10 + $0x3b8] sm:$0xff]
    %v9027 = vld [vmem:[%s10 + $0x3c0] sm:$0xff]
    %v9028 = vld [vmem:[%s10 + $0x3c8] sm:$0xff]
    %v9029 = vld [vmem:[%s10 + $0x3d0] sm:$0xff]
    %v9030 = vld [vmem:[%s10 + $0x3d8] sm:$0xff]
    %v9031 = vld [vmem:[%s10 + $0x3e0] sm:$0xff]
    %v9032 = vld [vmem:[%s10 + $0x3e8] sm:$0xff]
    %v9033 = vld [vmem:[%s10 + $0x3f0] sm:$0xff]
    %v9034 = vld [vmem:[%s10 + $0x3f8] sm:$0xff]
    %v9035 = vld [vmem:[%s10 + $0x400] sm:$0xff]
    %v9036 = vld [vmem:[%s10 + $0x408] sm:$0xff]
    %v9037 = vld [vmem:[%s10 + $0x410] sm:$0xff]
    %v9038 = vld [vmem:[%s10 + $0x418] sm:$0xff]
    %v9039 = vld [vmem:[%s10 + $0x420] sm:$0xff]
    %v9040 = vld [vmem:[%s10 + $0x428] sm:$0xff]
    %v9041 = vld [vmem:[%s10 + $0x430] sm:$0xff]
    %v9042 = vld [vmem:[%s10 + $0x438] sm:$0xff]
    %v9043 = vld [vmem:[%s10 + $0x440] sm:$0xff]
    %v9044 = vld [vmem:[%s10 + $0x448] sm:$0xff]
    %v9045 = vld [vmem:[%s10 + $0x450] sm:$0xff]
    %v9046 = vld [vmem:[%s10 + $0x458] sm:$0xff]
    %v9047 = vld [vmem:[%s10 + $0x460] sm:$0xff]
    %v9048 = vld [vmem:[%s10 + $0x468] sm:$0xff]
    %v9049 = vld [vmem:[%s10 + $0x470] sm:$0xff]
    %v9050 = vld [vmem:[%s10 + $0x478] sm:$0xff]
    %v9051 = vld [vmem:[%s11] sm:$0x1]
    %v9053 = vlaneseq
    %v9054 = vshrl.u32 %v9053, 7
    %v9055 = vsub.s32 0, %v9054
    %v9056 = vrot.slane %v9051, %v9055
    %9058 = vmatprep.subr.mxu0 0.0
    %9059 = vmatpush1.msra.mxu0 %v8922
    %9060 = vmatprep.subr.mxu0 0.0
    %9061 = vmatpush1.msra.mxu0 %v8921
    %9062 = vmatprep.subr.mxu0 0.0
    %9063 = vmatpush1.msra.mxu0 %v8920
    %9064 = vmatprep.subr.mxu0 0.0
    %9065 = vmatpush1.msra.mxu0 %v8919
    %9066 = vmatprep.subr.mxu0 0.0
    %9067 = vmatpush1.msra.mxu0 %v8918
    %9068 = vmatprep.subr.mxu0 0.0
    %9069 = vmatpush1.msra.mxu0 %v8917
    %9070 = vmatprep.subr.mxu0 0.0
    %9071 = vmatpush1.msra.mxu0 %v8916
    %9072 = vmatprep.subr.mxu0 0.0
    %9073 = vmatpush1.msra.mxu0 %v8915
    %9074 = vmatprep.subr.mxu0 0.0
    %9075 = vmatpush1.msra.mxu0 %v8914
    %9076 = vmatprep.subr.mxu0 0.0
    %9077 = vmatpush1.msra.mxu0 %v8913
    %9078 = vmatprep.subr.mxu0 0.0
    %9079 = vmatpush1.msra.mxu0 %v8912
    %9080 = vmatprep.subr.mxu0 0.0
    %9081 = vmatpush1.msra.mxu0 %v8911
    %9082 = vmatprep.subr.mxu0 0.0
    %9083 = vmatpush1.msra.mxu0 %v8910
    %9084 = vmatprep.subr.mxu0 0.0
    %9085 = vmatpush1.msra.mxu0 %v8909
    %9086 = vmatprep.subr.mxu0 0.0
    %9087 = vmatpush1.msra.mxu0 %v8908
    %9088 = vmatprep.subr.mxu0 0.0
    %9089 = vmatpush1.msra.mxu0 %v8907
    %9090 = vmatprep.subr.mxu0 0.0
    %9091 = vmatpush2.msra.mxu0 %v8938
    %9092 = vmatprep.subr.mxu0 0.0
    %9093 = vmatpush2.msra.mxu0 %v8937
    %9094 = vmatprep.subr.mxu0 0.0
    %9095 = vmatpush2.msra.mxu0 %v8936
    %9096 = vmatprep.subr.mxu0 0.0
    %9097 = vmatpush2.msra.mxu0 %v8935
    %9098 = vmatprep.subr.mxu0 0.0
    %9099 = vmatpush2.msra.mxu0 %v8934
    %9100 = vmatprep.subr.mxu0 0.0
    %9101 = vmatpush2.msra.mxu0 %v8933
    %9102 = vmatprep.subr.mxu0 0.0
    %9103 = vmatpush2.msra.mxu0 %v8932
    %9104 = vmatprep.subr.mxu0 0.0
    %9105 = vmatpush2.msra.mxu0 %v8931
    %9106 = vmatprep.subr.mxu0 0.0
    %9107 = vmatpush2.msra.mxu0 %v8930
    %9108 = vmatprep.subr.mxu0 0.0
    %9109 = vmatpush2.msra.mxu0 %v8929
    %9110 = vmatprep.subr.mxu0 0.0
    %9111 = vmatpush2.msra.mxu0 %v8928
    %9112 = vmatprep.subr.mxu0 0.0
    %9113 = vmatpush2.msra.mxu0 %v8927
    %9114 = vmatprep.subr.mxu0 0.0
    %9115 = vmatpush2.msra.mxu0 %v8926
    %9116 = vmatprep.subr.mxu0 0.0
    %9117 = vmatpush2.msra.mxu0 %v8925
    %9118 = vmatprep.subr.mxu0 0.0
    %9119 = vmatpush2.msra.mxu0 %v8924
    %9120 = vmatprep.subr.mxu0 0.0
    %9121 = vmatpush2.msra.mxu0 %v8923
    %9122 = vmatprep.mubr.f32.mxu0 %v1068
    %9123 = vmatmul.mubr.f32.gmra.mxu0 %v1068
    %v9124 = vpop.f32.mrf.mxu0
    %v9125 = vadd.f32 %v9056, %v9124
    %v9126 = vpop.f32.mrf.mxu0
    %9127 = vmatprep.mubr.f32.mxu0 %v1068
    %9128 = vmatmul.mubr.f32.gmra.mxu0 %v1068
    %v9129 = vpop.f32.mrf.mxu0
    %v9130 = vadd.f32 %v9056, %v9129
    %v9131 = vpop.f32.mrf.mxu0
    %9132 = vmatprep.mubr.f32.mxu0 %v1068
    %9133 = vmatmul.mubr.f32.gmra.mxu0 %v1068
    %v9134 = vpop.f32.mrf.mxu0
    %v9135 = vadd.f32 %v9056, %v9134
    %v9136 = vpop.f32.mrf.mxu0
    %9137 = vmatprep.mubr.f32.mxu0 %v1068
    %9138 = vmatmul.mubr.f32.gmra.mxu0 %v1068
    %v9139 = vpop.f32.mrf.mxu0
    %v9140 = vadd.f32 %v9056, %v9139
    %v9141 = vpop.f32.mrf.mxu0
    %9142 = vmatprep.mubr.f32.mxu0 %v7443
    %9143 = vmatmul.mubr.f32.gmra.mxu0 %v6363
    %v9144 = vpop.f32.mrf.mxu0
    %v9145 = vadd.f32 %v9056, %v9144
    %v9146 = vpop.f32.mrf.mxu0
    %9147 = vmatprep.mubr.f32.mxu0 %v7460
    %9148 = vmatmul.mubr.f32.gmra.mxu0 %v6380
    %v9149 = vpop.f32.mrf.mxu0
    %v9150 = vadd.f32 %v9056, %v9149
    %v9151 = vpop.f32.mrf.mxu0
    %9152 = vmatprep.mubr.f32.mxu0 %v7477
    %9153 = vmatmul.mubr.f32.gmra.mxu0 %v6397
    %v9154 = vpop.f32.mrf.mxu0
    %v9155 = vadd.f32 %v9056, %v9154
    %v9156 = vpop.f32.mrf.mxu0
    %9157 = vmatprep.mubr.f32.mxu0 %v7494
    %9158 = vmatmul.mubr.f32.gmra.mxu0 %v6414
    %v9159 = vpop.f32.mrf.mxu0
    %v9160 = vadd.f32 %v9056, %v9159
    %v9161 = vpop.f32.mrf.mxu0
    %9162 = vmatprep.mubr.f32.mxu0 %v7511
    %9163 = vmatmul.mubr.f32.gmra.mxu0 %v6431
    %v9164 = vpop.f32.mrf.mxu0
    %v9165 = vadd.f32 %v9056, %v9164
    %v9166 = vpop.f32.mrf.mxu0
    %9167 = vmatprep.mubr.f32.mxu0 %v7528
    %9168 = vmatmul.mubr.f32.gmra.mxu0 %v6448
    %v9169 = vpop.f32.mrf.mxu0
    %v9170 = vadd.f32 %v9056, %v9169
    %v9171 = vpop.f32.mrf.mxu0
    %9172 = vmatprep.mubr.f32.mxu0 %v7545
    %9173 = vmatmul.mubr.f32.gmra.mxu0 %v6465
    %v9174 = vpop.f32.mrf.mxu0
    %v9175 = vadd.f32 %v9056, %v9174
    %v9176 = vpop.f32.mrf.mxu0
    %9177 = vmatprep.mubr.f32.mxu0 %v7562
    %9178 = vmatmul.mubr.f32.gmra.mxu0 %v6482
    %v9179 = vpop.f32.mrf.mxu0
    %v9180 = vadd.f32 %v9056, %v9179
    %v9181 = vpop.f32.mrf.mxu0
    %9182 = vmatprep.mubr.f32.mxu0 %v7579
    %9183 = vmatmul.mubr.f32.gmra.mxu0 %v6499
    %v9184 = vpop.f32.mrf.mxu0
    %v9185 = vadd.f32 %v9056, %v9184
    %v9186 = vpop.f32.mrf.mxu0
    %9187 = vmatprep.mubr.f32.mxu0 %v7596
    %9188 = vmatmul.mubr.f32.gmra.mxu0 %v6516
    %v9189 = vpop.f32.mrf.mxu0
    %v9190 = vadd.f32 %v9056, %v9189
    %v9191 = vpop.f32.mrf.mxu0
    %9192 = vmatprep.mubr.f32.mxu0 %v7613
    %9193 = vmatmul.mubr.f32.gmra.mxu0 %v6533
    %v9194 = vpop.f32.mrf.mxu0
    %v9195 = vadd.f32 %v9056, %v9194
    %v9196 = vpop.f32.mrf.mxu0
    %9197 = vmatprep.mubr.f32.mxu0 %v7630
    %9198 = vmatmul.mubr.f32.gmra.mxu0 %v6550
    %v9199 = vpop.f32.mrf.mxu0
    %v9200 = vadd.f32 %v9056, %v9199
    %v9201 = vpop.f32.mrf.mxu0
    %9202 = vmatprep.mubr.f32.mxu0 %v7647
    %9203 = vmatmul.mubr.f32.gmra.mxu0 %v6567
    %v9204 = vpop.f32.mrf.mxu0
    %v9205 = vadd.f32 %v9056, %v9204
    %v9206 = vpop.f32.mrf.mxu0
    %9207 = vmatprep.mubr.f32.mxu0 %v7664
    %9208 = vmatmul.mubr.f32.gmra.mxu0 %v6584
    %v9209 = vpop.f32.mrf.mxu0
    %v9210 = vadd.f32 %v9056, %v9209
    %v9211 = vpop.f32.mrf.mxu0
    %9212 = vmatprep.mubr.f32.mxu0 %v7681
    %9213 = vmatmul.mubr.f32.gmra.mxu0 %v6601
    %v9214 = vpop.f32.mrf.mxu0
    %v9215 = vadd.f32 %v9056, %v9214
    %v9216 = vpop.f32.mrf.mxu0
    %9217 = vmatprep.mubr.f32.mxu0 %v7698
    %9218 = vmatmul.mubr.f32.gmra.mxu0 %v6618
    %v9219 = vpop.f32.mrf.mxu0
    %v9220 = vadd.f32 %v9056, %v9219
    %v9221 = vpop.f32.mrf.mxu0
    %9222 = vmatprep.mubr.f32.mxu0 %v7715
    %9223 = vmatmul.mubr.f32.gmra.mxu0 %v6635
    %v9224 = vpop.f32.mrf.mxu0
    %v9225 = vadd.f32 %v9056, %v9224
    %v9226 = vpop.f32.mrf.mxu0
    %9227 = vmatprep.mubr.f32.mxu0 %v7732
    %9228 = vmatmul.mubr.f32.gmra.mxu0 %v6652
    %v9229 = vpop.f32.mrf.mxu0
    %v9230 = vadd.f32 %v9056, %v9229
    %v9231 = vpop.f32.mrf.mxu0
    %9232 = vmatprep.mubr.f32.mxu0 %v7749
    %9233 = vmatmul.mubr.f32.gmra.mxu0 %v6669
    %v9234 = vpop.f32.mrf.mxu0
    %v9235 = vadd.f32 %v9056, %v9234
    %v9236 = vpop.f32.mrf.mxu0
    %9237 = vmatprep.mubr.f32.mxu0 %v7766
    %9238 = vmatmul.mubr.f32.gmra.mxu0 %v6686
    %v9239 = vpop.f32.mrf.mxu0
    %v9240 = vadd.f32 %v9056, %v9239
    %v9241 = vpop.f32.mrf.mxu0
    %9242 = vmatprep.mubr.f32.mxu0 %v7783
    %9243 = vmatmul.mubr.f32.gmra.mxu0 %v6703
    %v9244 = vpop.f32.mrf.mxu0
    %v9245 = vadd.f32 %v9056, %v9244
    %v9246 = vpop.f32.mrf.mxu0
    %9247 = vmatprep.mubr.f32.mxu0 %v7800
    %9248 = vmatmul.mubr.f32.gmra.mxu0 %v6720
    %v9249 = vpop.f32.mrf.mxu0
    %v9250 = vadd.f32 %v9056, %v9249
    %v9251 = vpop.f32.mrf.mxu0
    %9252 = vmatprep.mubr.f32.mxu0 %v7817
    %9253 = vmatmul.mubr.f32.gmra.mxu0 %v6737
    %v9254 = vpop.f32.mrf.mxu0
    %v9255 = vadd.f32 %v9056, %v9254
    %v9256 = vpop.f32.mrf.mxu0
    %9257 = vmatprep.mubr.f32.mxu0 %v7834
    %9258 = vmatmul.mubr.f32.gmra.mxu0 %v6754
    %v9259 = vpop.f32.mrf.mxu0
    %v9260 = vadd.f32 %v9056, %v9259
    %v9261 = vpop.f32.mrf.mxu0
    %9262 = vmatprep.mubr.f32.mxu0 %v7851
    %9263 = vmatmul.mubr.f32.gmra.mxu0 %v6771
    %v9264 = vpop.f32.mrf.mxu0
    %v9265 = vadd.f32 %v9056, %v9264
    %v9266 = vpop.f32.mrf.mxu0
    %9267 = vmatprep.mubr.f32.mxu0 %v7868
    %9268 = vmatmul.mubr.f32.gmra.mxu0 %v6788
    %v9269 = vpop.f32.mrf.mxu0
    %v9270 = vadd.f32 %v9056, %v9269
    %v9271 = vpop.f32.mrf.mxu0
    %9272 = vmatprep.mubr.f32.mxu0 %v7885
    %9273 = vmatmul.mubr.f32.gmra.mxu0 %v6805
    %v9274 = vpop.f32.mrf.mxu0
    %v9275 = vadd.f32 %v9056, %v9274
    %v9276 = vpop.f32.mrf.mxu0
    %9277 = vmatprep.mubr.f32.mxu0 %v7902
    %9278 = vmatmul.mubr.f32.gmra.mxu0 %v6822
    %v9279 = vpop.f32.mrf.mxu0
    %v9280 = vadd.f32 %v9056, %v9279
    %v9281 = vpop.f32.mrf.mxu0
    %9282 = vmatprep.mubr.f32.mxu0 %v7919
    %9283 = vmatmul.mubr.f32.gmra.mxu0 %v6839
    %v9284 = vpop.f32.mrf.mxu0
    %v9285 = vadd.f32 %v9056, %v9284
    %v9286 = vpop.f32.mrf.mxu0
    %9287 = vmatprep.mubr.f32.mxu0 %v7936
    %9288 = vmatmul.mubr.f32.gmra.mxu0 %v6856
    %v9289 = vpop.f32.mrf.mxu0
    %v9290 = vadd.f32 %v9056, %v9289
    %v9291 = vpop.f32.mrf.mxu0
    %9292 = vmatprep.mubr.f32.mxu0 %v7953
    %9293 = vmatmul.mubr.f32.gmra.mxu0 %v6873
    %v9294 = vpop.f32.mrf.mxu0
    %v9295 = vadd.f32 %v9056, %v9294
    %v9296 = vpop.f32.mrf.mxu0
    %9297 = vmatprep.mubr.f32.mxu0 %v7970
    %9298 = vmatmul.mubr.f32.gmra.mxu0 %v6890
    %v9299 = vpop.f32.mrf.mxu0
    %v9300 = vadd.f32 %v9056, %v9299
    %v9301 = vpop.f32.mrf.mxu0
    %9302 = vmatprep.mubr.f32.mxu0 %v7987
    %9303 = vmatmul.mubr.f32.gmra.mxu0 %v6907
    %v9304 = vpop.f32.mrf.mxu0
    %v9305 = vadd.f32 %v9056, %v9304
    %v9306 = vpop.f32.mrf.mxu0
    %9307 = vmatprep.mubr.f32.mxu0 %v8004
    %9308 = vmatmul.mubr.f32.gmra.mxu0 %v6924
    %v9309 = vpop.f32.mrf.mxu0
    %v9310 = vadd.f32 %v9056, %v9309
    %v9311 = vpop.f32.mrf.mxu0
    %9312 = vmatprep.mubr.f32.mxu0 %v8021
    %9313 = vmatmul.mubr.f32.gmra.mxu0 %v6941
    %v9314 = vpop.f32.mrf.mxu0
    %v9315 = vadd.f32 %v9056, %v9314
    %v9316 = vpop.f32.mrf.mxu0
    %9317 = vmatprep.mubr.f32.mxu0 %v8038
    %9318 = vmatmul.mubr.f32.gmra.mxu0 %v6958
    %v9319 = vpop.f32.mrf.mxu0
    %v9320 = vadd.f32 %v9056, %v9319
    %v9321 = vpop.f32.mrf.mxu0
    %9322 = vmatprep.mubr.f32.mxu0 %v8055
    %9323 = vmatmul.mubr.f32.gmra.mxu0 %v6975
    %v9324 = vpop.f32.mrf.mxu0
    %v9325 = vadd.f32 %v9056, %v9324
    %v9326 = vpop.f32.mrf.mxu0
    %9327 = vmatprep.mubr.f32.mxu0 %v8072
    %9328 = vmatmul.mubr.f32.gmra.mxu0 %v6992
    %v9329 = vpop.f32.mrf.mxu0
    %v9330 = vadd.f32 %v9056, %v9329
    %v9331 = vpop.f32.mrf.mxu0
    %9332 = vmatprep.mubr.f32.mxu0 %v8089
    %9333 = vmatmul.mubr.f32.gmra.mxu0 %v7009
    %v9334 = vpop.f32.mrf.mxu0
    %v9335 = vadd.f32 %v9056, %v9334
    %v9336 = vpop.f32.mrf.mxu0
    %9337 = vmatprep.mubr.f32.mxu0 %v8106
    %9338 = vmatmul.mubr.f32.gmra.mxu0 %v7026
    %v9339 = vpop.f32.mrf.mxu0
    %v9340 = vadd.f32 %v9056, %v9339
    %v9341 = vpop.f32.mrf.mxu0
    %9342 = vmatprep.mubr.f32.mxu0 %v8123
    %9343 = vmatmul.mubr.f32.gmra.mxu0 %v7043
    %v9344 = vpop.f32.mrf.mxu0
    %v9345 = vadd.f32 %v9056, %v9344
    %v9346 = vpop.f32.mrf.mxu0
    %9347 = vmatprep.mubr.f32.mxu0 %v8140
    %9348 = vmatmul.mubr.f32.gmra.mxu0 %v7060
    %v9349 = vpop.f32.mrf.mxu0
    %v9350 = vadd.f32 %v9056, %v9349
    %v9351 = vpop.f32.mrf.mxu0
    %9352 = vmatprep.mubr.f32.mxu0 %v8157
    %9353 = vmatmul.mubr.f32.gmra.mxu0 %v7077
    %v9354 = vpop.f32.mrf.mxu0
    %v9355 = vadd.f32 %v9056, %v9354
    %v9356 = vpop.f32.mrf.mxu0
    %9357 = vmatprep.mubr.f32.mxu0 %v8174
    %9358 = vmatmul.mubr.f32.gmra.mxu0 %v7094
    %v9359 = vpop.f32.mrf.mxu0
    %v9360 = vadd.f32 %v9056, %v9359
    %v9361 = vpop.f32.mrf.mxu0
    %9362 = vmatprep.mubr.f32.mxu0 %v8191
    %9363 = vmatmul.mubr.f32.gmra.mxu0 %v7111
    %v9364 = vpop.f32.mrf.mxu0
    %v9365 = vadd.f32 %v9056, %v9364
    %v9366 = vpop.f32.mrf.mxu0
    %9367 = vmatprep.mubr.f32.mxu0 %v8208
    %9368 = vmatmul.mubr.f32.gmra.mxu0 %v7128
    %v9369 = vpop.f32.mrf.mxu0
    %v9370 = vadd.f32 %v9056, %v9369
    %v9371 = vpop.f32.mrf.mxu0
    %9372 = vmatprep.mubr.f32.mxu0 %v8225
    %9373 = vmatmul.mubr.f32.gmra.mxu0 %v7145
    %v9374 = vpop.f32.mrf.mxu0
    %v9375 = vadd.f32 %v9056, %v9374
    %v9376 = vpop.f32.mrf.mxu0
    %9377 = vmatprep.mubr.f32.mxu0 %v8242
    %9378 = vmatmul.mubr.f32.gmra.mxu0 %v7162
    %v9379 = vpop.f32.mrf.mxu0
    %v9380 = vadd.f32 %v9056, %v9379
    %v9381 = vpop.f32.mrf.mxu0
    %9382 = vmatprep.mubr.f32.mxu0 %v8259
    %9383 = vmatmul.mubr.f32.gmra.mxu0 %v7179
    %v9384 = vpop.f32.mrf.mxu0
    %v9385 = vadd.f32 %v9056, %v9384
    %v9386 = vpop.f32.mrf.mxu0
    %9387 = vmatprep.mubr.f32.mxu0 %v8276
    %9388 = vmatmul.mubr.f32.gmra.mxu0 %v7196
    %v9389 = vpop.f32.mrf.mxu0
    %v9390 = vadd.f32 %v9056, %v9389
    %v9391 = vpop.f32.mrf.mxu0
    %9392 = vmatprep.mubr.f32.mxu0 %v8293
    %9393 = vmatmul.mubr.f32.gmra.mxu0 %v7213
    %v9394 = vpop.f32.mrf.mxu0
    %v9395 = vadd.f32 %v9056, %v9394
    %v9396 = vpop.f32.mrf.mxu0
    %9397 = vmatprep.mubr.f32.mxu0 %v8310
    %9398 = vmatmul.mubr.f32.gmra.mxu0 %v7230
    %v9399 = vpop.f32.mrf.mxu0
    %v9400 = vadd.f32 %v9056, %v9399
    %v9401 = vpop.f32.mrf.mxu0
    %9402 = vmatprep.mubr.f32.mxu0 %v8327
    %9403 = vmatmul.mubr.f32.gmra.mxu0 %v7247
    %v9404 = vpop.f32.mrf.mxu0
    %v9405 = vadd.f32 %v9056, %v9404
    %v9406 = vpop.f32.mrf.mxu0
    %9407 = vmatprep.mubr.f32.mxu0 %v8344
    %9408 = vmatmul.mubr.f32.gmra.mxu0 %v7264
    %v9409 = vpop.f32.mrf.mxu0
    %v9410 = vadd.f32 %v9056, %v9409
    %v9411 = vpop.f32.mrf.mxu0
    %9412 = vmatprep.mubr.f32.mxu0 %v8361
    %9413 = vmatmul.mubr.f32.gmra.mxu0 %v7281
    %v9414 = vpop.f32.mrf.mxu0
    %v9415 = vadd.f32 %v9056, %v9414
    %v9416 = vpop.f32.mrf.mxu0
    %9417 = vmatprep.mubr.f32.mxu0 %v8378
    %9418 = vmatmul.mubr.f32.gmra.mxu0 %v7298
    %v9419 = vpop.f32.mrf.mxu0
    %v9420 = vadd.f32 %v9056, %v9419
    %v9421 = vpop.f32.mrf.mxu0
    %9422 = vmatprep.mubr.f32.mxu0 %v8395
    %9423 = vmatmul.mubr.f32.gmra.mxu0 %v7315
    %v9424 = vpop.f32.mrf.mxu0
    %v9425 = vadd.f32 %v9056, %v9424
    %v9426 = vpop.f32.mrf.mxu0
    %9427 = vmatprep.mubr.f32.mxu0 %v8412
    %9428 = vmatmul.mubr.f32.gmra.mxu0 %v7332
    %v9429 = vpop.f32.mrf.mxu0
    %v9430 = vadd.f32 %v9056, %v9429
    %v9431 = vpop.f32.mrf.mxu0
    %9432 = vmatprep.mubr.f32.mxu0 %v8429
    %9433 = vmatmul.mubr.f32.gmra.mxu0 %v7349
    %v9434 = vpop.f32.mrf.mxu0
    %v9435 = vadd.f32 %v9056, %v9434
    %v9436 = vpop.f32.mrf.mxu0
    %9437 = vmatprep.mubr.f32.mxu0 %v8446
    %9438 = vmatmul.mubr.f32.gmra.mxu0 %v7366
    %v9439 = vpop.f32.mrf.mxu0
    %v9440 = vadd.f32 %v9056, %v9439
    %v9441 = vpop.f32.mrf.mxu0
    %9442 = vdwg.mxu0
    %9443 = vmatprep.subr.mxu0 0.0
    %9444 = vmatpush1.msra.mxu0 %v8954
    %9445 = vmatprep.subr.mxu0 0.0
    %9446 = vmatpush1.msra.mxu0 %v8953
    %9447 = vmatprep.subr.mxu0 0.0
    %9448 = vmatpush1.msra.mxu0 %v8952
    %9449 = vmatprep.subr.mxu0 0.0
    %9450 = vmatpush1.msra.mxu0 %v8951
    %9451 = vmatprep.subr.mxu0 0.0
    %9452 = vmatpush1.msra.mxu0 %v8950
    %9453 = vmatprep.subr.mxu0 0.0
    %9454 = vmatpush1.msra.mxu0 %v8949
    %9455 = vmatprep.subr.mxu0 0.0
    %9456 = vmatpush1.msra.mxu0 %v8948
    %9457 = vmatprep.subr.mxu0 0.0
    %9458 = vmatpush1.msra.mxu0 %v8947
    %9459 = vmatprep.subr.mxu0 0.0
    %9460 = vmatpush1.msra.mxu0 %v8946
    %9461 = vmatprep.subr.mxu0 0.0
    %9462 = vmatpush1.msra.mxu0 %v8945
    %9463 = vmatprep.subr.mxu0 0.0
    %9464 = vmatpush1.msra.mxu0 %v8944
    %9465 = vmatprep.subr.mxu0 0.0
    %9466 = vmatpush1.msra.mxu0 %v8943
    %9467 = vmatprep.subr.mxu0 0.0
    %9468 = vmatpush1.msra.mxu0 %v8942
    %9469 = vmatprep.subr.mxu0 0.0
    %9470 = vmatpush1.msra.mxu0 %v8941
    %9471 = vmatprep.subr.mxu0 0.0
    %9472 = vmatpush1.msra.mxu0 %v8940
    %9473 = vmatprep.subr.mxu0 0.0
    %9474 = vmatpush1.msra.mxu0 %v8939
    %9475 = vmatprep.subr.mxu0 0.0
    %9476 = vmatpush2.msra.mxu0 %v8970
    %9477 = vmatprep.subr.mxu0 0.0
    %9478 = vmatpush2.msra.mxu0 %v8969
    %9479 = vmatprep.subr.mxu0 0.0
    %9480 = vmatpush2.msra.mxu0 %v8968
    %9481 = vmatprep.subr.mxu0 0.0
    %9482 = vmatpush2.msra.mxu0 %v8967
    %9483 = vmatprep.subr.mxu0 0.0
    %9484 = vmatpush2.msra.mxu0 %v8966
    %9485 = vmatprep.subr.mxu0 0.0
    %9486 = vmatpush2.msra.mxu0 %v8965
    %9487 = vmatprep.subr.mxu0 0.0
    %9488 = vmatpush2.msra.mxu0 %v8964
    %9489 = vmatprep.subr.mxu0 0.0
    %9490 = vmatpush2.msra.mxu0 %v8963
    %9491 = vmatprep.subr.mxu0 0.0
    %9492 = vmatpush2.msra.mxu0 %v8962
    %9493 = vmatprep.subr.mxu0 0.0
    %9494 = vmatpush2.msra.mxu0 %v8961
    %9495 = vmatprep.subr.mxu0 0.0
    %9496 = vmatpush2.msra.mxu0 %v8960
    %9497 = vmatprep.subr.mxu0 0.0
    %9498 = vmatpush2.msra.mxu0 %v8959
    %9499 = vmatprep.subr.mxu0 0.0
    %9500 = vmatpush2.msra.mxu0 %v8958
    %9501 = vmatprep.subr.mxu0 0.0
    %9502 = vmatpush2.msra.mxu0 %v8957
    %9503 = vmatprep.subr.mxu0 0.0
    %9504 = vmatpush2.msra.mxu0 %v8956
    %9505 = vmatprep.subr.mxu0 0.0
    %9506 = vmatpush2.msra.mxu0 %v8955
    %9507 = vmatprep.mubr.f32.mxu0 %v6363
    %9508 = vmatmul.mubr.f32.gmra.mxu0 %v1068
    %v9509 = vpop.f32.mrf.mxu0
    %v9510 = vadd.f32 %v9125, %v9509
    %v9511 = vpop.f32.mrf.mxu0
    %9512 = vmatprep.mubr.f32.mxu0 %v6380
    %9513 = vmatmul.mubr.f32.gmra.mxu0 %v1068
    %v9514 = vpop.f32.mrf.mxu0
    %v9515 = vadd.f32 %v9130, %v9514
    %v9516 = vpop.f32.mrf.mxu0
    %9517 = vmatprep.mubr.f32.mxu0 %v6397
    %9518 = vmatmul.mubr.f32.gmra.mxu0 %v1068
    %v9519 = vpop.f32.mrf.mxu0
    %v9520 = vadd.f32 %v9135, %v9519
    %v9521 = vpop.f32.mrf.mxu0
    %9522 = vmatprep.mubr.f32.mxu0 %v6414
    %9523 = vmatmul.mubr.f32.gmra.mxu0 %v1068
    %v9524 = vpop.f32.mrf.mxu0
    %v9525 = vadd.f32 %v9140, %v9524
    %v9526 = vpop.f32.mrf.mxu0
    %9527 = vmatprep.mubr.f32.mxu0 %v6431
    %9528 = vmatmul.mubr.f32.gmra.mxu0 %v8507
    %v9529 = vpop.f32.mrf.mxu0
    %v9530 = vadd.f32 %v9145, %v9529
    %v9531 = vpop.f32.mrf.mxu0
    %9532 = vmatprep.mubr.f32.mxu0 %v6448
    %9533 = vmatmul.mubr.f32.gmra.mxu0 %v8508
    %v9534 = vpop.f32.mrf.mxu0
    %v9535 = vadd.f32 %v9150, %v9534
    %v9536 = vpop.f32.mrf.mxu0
    %9537 = vmatprep.mubr.f32.mxu0 %v6465
    %9538 = vmatmul.mubr.f32.gmra.mxu0 %v8509
    %v9539 = vpop.f32.mrf.mxu0
    %v9540 = vadd.f32 %v9155, %v9539
    %v9541 = vpop.f32.mrf.mxu0
    %9542 = vmatprep.mubr.f32.mxu0 %v6482
    %9543 = vmatmul.mubr.f32.gmra.mxu0 %v8518
    %v9544 = vpop.f32.mrf.mxu0
    %v9545 = vadd.f32 %v9160, %v9544
    %v9546 = vpop.f32.mrf.mxu0
    %9547 = vmatprep.mubr.f32.mxu0 %v6499
    %9548 = vmatmul.mubr.f32.gmra.mxu0 %v8519
    %v9549 = vpop.f32.mrf.mxu0
    %v9550 = vadd.f32 %v9165, %v9549
    %v9551 = vpop.f32.mrf.mxu0
    %9552 = vmatprep.mubr.f32.mxu0 %v6516
    %9553 = vmatmul.mubr.f32.gmra.mxu0 %v8520
    %v9554 = vpop.f32.mrf.mxu0
    %v9555 = vadd.f32 %v9170, %v9554
    %v9556 = vpop.f32.mrf.mxu0
    %9557 = vmatprep.mubr.f32.mxu0 %v6533
    %9558 = vmatmul.mubr.f32.gmra.mxu0 %v8521
    %v9559 = vpop.f32.mrf.mxu0
    %v9560 = vadd.f32 %v9175, %v9559
    %v9561 = vpop.f32.mrf.mxu0
    %9562 = vmatprep.mubr.f32.mxu0 %v6550
    %9563 = vmatmul.mubr.f32.gmra.mxu0 %v8530
    %v9564 = vpop.f32.mrf.mxu0
    %v9565 = vadd.f32 %v9180, %v9564
    %v9566 = vpop.f32.mrf.mxu0
    %9567 = vmatprep.mubr.f32.mxu0 %v6567
    %9568 = vmatmul.mubr.f32.gmra.mxu0 %v8531
    %v9569 = vpop.f32.mrf.mxu0
    %v9570 = vadd.f32 %v9185, %v9569
    %v9571 = vpop.f32.mrf.mxu0
    %9572 = vmatprep.mubr.f32.mxu0 %v6584
    %9573 = vmatmul.mubr.f32.gmra.mxu0 %v8532
    %v9574 = vpop.f32.mrf.mxu0
    %v9575 = vadd.f32 %v9190, %v9574
    %v9576 = vpop.f32.mrf.mxu0
    %9577 = vmatprep.mubr.f32.mxu0 %v6601
    %9578 = vmatmul.mubr.f32.gmra.mxu0 %v8533
    %v9579 = vpop.f32.mrf.mxu0
    %v9580 = vadd.f32 %v9195, %v9579
    %v9581 = vpop.f32.mrf.mxu0
    %9582 = vmatprep.mubr.f32.mxu0 %v6618
    %9583 = vmatmul.mubr.f32.gmra.mxu0 %v8542
    %v9584 = vpop.f32.mrf.mxu0
    %v9585 = vadd.f32 %v9200, %v9584
    %v9586 = vpop.f32.mrf.mxu0
    %9587 = vmatprep.mubr.f32.mxu0 %v6635
    %9588 = vmatmul.mubr.f32.gmra.mxu0 %v8543
    %v9589 = vpop.f32.mrf.mxu0
    %v9590 = vadd.f32 %v9205, %v9589
    %v9591 = vpop.f32.mrf.mxu0
    %9592 = vmatprep.mubr.f32.mxu0 %v6652
    %9593 = vmatmul.mubr.f32.gmra.mxu0 %v8544
    %v9594 = vpop.f32.mrf.mxu0
    %v9595 = vadd.f32 %v9210, %v9594
    %v9596 = vpop.f32.mrf.mxu0
    %9597 = vmatprep.mubr.f32.mxu0 %v6669
    %9598 = vmatmul.mubr.f32.gmra.mxu0 %v8545
    %v9599 = vpop.f32.mrf.mxu0
    %v9600 = vadd.f32 %v9215, %v9599
    %v9601 = vpop.f32.mrf.mxu0
    %9602 = vmatprep.mubr.f32.mxu0 %v6686
    %9603 = vmatmul.mubr.f32.gmra.mxu0 %v8554
    %v9604 = vpop.f32.mrf.mxu0
    %v9605 = vadd.f32 %v9220, %v9604
    %v9606 = vpop.f32.mrf.mxu0
    %9607 = vmatprep.mubr.f32.mxu0 %v6703
    %9608 = vmatmul.mubr.f32.gmra.mxu0 %v8555
    %v9609 = vpop.f32.mrf.mxu0
    %v9610 = vadd.f32 %v9225, %v9609
    %v9611 = vpop.f32.mrf.mxu0
    %9612 = vmatprep.mubr.f32.mxu0 %v6720
    %9613 = vmatmul.mubr.f32.gmra.mxu0 %v8556
    %v9614 = vpop.f32.mrf.mxu0
    %v9615 = vadd.f32 %v9230, %v9614
    %v9616 = vpop.f32.mrf.mxu0
    %9617 = vmatprep.mubr.f32.mxu0 %v6737
    %9618 = vmatmul.mubr.f32.gmra.mxu0 %v8557
    %v9619 = vpop.f32.mrf.mxu0
    %v9620 = vadd.f32 %v9235, %v9619
    %v9621 = vpop.f32.mrf.mxu0
    %9622 = vmatprep.mubr.f32.mxu0 %v6754
    %9623 = vmatmul.mubr.f32.gmra.mxu0 %v8566
    %v9624 = vpop.f32.mrf.mxu0
    %v9625 = vadd.f32 %v9240, %v9624
    %v9626 = vpop.f32.mrf.mxu0
    %9627 = vmatprep.mubr.f32.mxu0 %v6771
    %9628 = vmatmul.mubr.f32.gmra.mxu0 %v8567
    %v9629 = vpop.f32.mrf.mxu0
    %v9630 = vadd.f32 %v9245, %v9629
    %v9631 = vpop.f32.mrf.mxu0
    %9632 = vmatprep.mubr.f32.mxu0 %v6788
    %9633 = vmatmul.mubr.f32.gmra.mxu0 %v8568
    %v9634 = vpop.f32.mrf.mxu0
    %v9635 = vadd.f32 %v9250, %v9634
    %v9636 = vpop.f32.mrf.mxu0
    %9637 = vmatprep.mubr.f32.mxu0 %v6805
    %9638 = vmatmul.mubr.f32.gmra.mxu0 %v8569
    %v9639 = vpop.f32.mrf.mxu0
    %v9640 = vadd.f32 %v9255, %v9639
    %v9641 = vpop.f32.mrf.mxu0
    %9642 = vmatprep.mubr.f32.mxu0 %v6822
    %9643 = vmatmul.mubr.f32.gmra.mxu0 %v8578
    %v9644 = vpop.f32.mrf.mxu0
    %v9645 = vadd.f32 %v9260, %v9644
    %v9646 = vpop.f32.mrf.mxu0
    %9647 = vmatprep.mubr.f32.mxu0 %v6839
    %9648 = vmatmul.mubr.f32.gmra.mxu0 %v8579
    %v9649 = vpop.f32.mrf.mxu0
    %v9650 = vadd.f32 %v9265, %v9649
    %v9651 = vpop.f32.mrf.mxu0
    %9652 = vmatprep.mubr.f32.mxu0 %v6856
    %9653 = vmatmul.mubr.f32.gmra.mxu0 %v8580
    %v9654 = vpop.f32.mrf.mxu0
    %v9655 = vadd.f32 %v9270, %v9654
    %v9656 = vpop.f32.mrf.mxu0
    %9657 = vmatprep.mubr.f32.mxu0 %v6873
    %9658 = vmatmul.mubr.f32.gmra.mxu0 %v8581
    %v9659 = vpop.f32.mrf.mxu0
    %v9660 = vadd.f32 %v9275, %v9659
    %v9661 = vpop.f32.mrf.mxu0
    %9662 = vmatprep.mubr.f32.mxu0 %v6890
    %9663 = vmatmul.mubr.f32.gmra.mxu0 %v8590
    %v9664 = vpop.f32.mrf.mxu0
    %v9665 = vadd.f32 %v9280, %v9664
    %v9666 = vpop.f32.mrf.mxu0
    %9667 = vmatprep.mubr.f32.mxu0 %v6907
    %9668 = vmatmul.mubr.f32.gmra.mxu0 %v8591
    %v9669 = vpop.f32.mrf.mxu0
    %v9670 = vadd.f32 %v9285, %v9669
    %v9671 = vpop.f32.mrf.mxu0
    %9672 = vmatprep.mubr.f32.mxu0 %v6924
    %9673 = vmatmul.mubr.f32.gmra.mxu0 %v8592
    %v9674 = vpop.f32.mrf.mxu0
    %v9675 = vadd.f32 %v9290, %v9674
    %v9676 = vpop.f32.mrf.mxu0
    %9677 = vmatprep.mubr.f32.mxu0 %v6941
    %9678 = vmatmul.mubr.f32.gmra.mxu0 %v8593
    %v9679 = vpop.f32.mrf.mxu0
    %v9680 = vadd.f32 %v9295, %v9679
    %v9681 = vpop.f32.mrf.mxu0
    %9682 = vmatprep.mubr.f32.mxu0 %v6958
    %9683 = vmatmul.mubr.f32.gmra.mxu0 %v8602
    %v9684 = vpop.f32.mrf.mxu0
    %v9685 = vadd.f32 %v9300, %v9684
    %v9686 = vpop.f32.mrf.mxu0
    %9687 = vmatprep.mubr.f32.mxu0 %v6975
    %9688 = vmatmul.mubr.f32.gmra.mxu0 %v8603
    %v9689 = vpop.f32.mrf.mxu0
    %v9690 = vadd.f32 %v9305, %v9689
    %v9691 = vpop.f32.mrf.mxu0
    %9692 = vmatprep.mubr.f32.mxu0 %v6992
    %9693 = vmatmul.mubr.f32.gmra.mxu0 %v8604
    %v9694 = vpop.f32.mrf.mxu0
    %v9695 = vadd.f32 %v9310, %v9694
    %v9696 = vpop.f32.mrf.mxu0
    %9697 = vmatprep.mubr.f32.mxu0 %v7009
    %9698 = vmatmul.mubr.f32.gmra.mxu0 %v8605
    %v9699 = vpop.f32.mrf.mxu0
    %v9700 = vadd.f32 %v9315, %v9699
    %v9701 = vpop.f32.mrf.mxu0
    %9702 = vmatprep.mubr.f32.mxu0 %v7026
    %9703 = vmatmul.mubr.f32.gmra.mxu0 %v8614
    %v9704 = vpop.f32.mrf.mxu0
    %v9705 = vadd.f32 %v9320, %v9704
    %v9706 = vpop.f32.mrf.mxu0
    %9707 = vmatprep.mubr.f32.mxu0 %v7043
    %9708 = vmatmul.mubr.f32.gmra.mxu0 %v8615
    %v9709 = vpop.f32.mrf.mxu0
    %v9710 = vadd.f32 %v9325, %v9709
    %v9711 = vpop.f32.mrf.mxu0
    %9712 = vmatprep.mubr.f32.mxu0 %v7060
    %9713 = vmatmul.mubr.f32.gmra.mxu0 %v8616
    %v9714 = vpop.f32.mrf.mxu0
    %v9715 = vadd.f32 %v9330, %v9714
    %v9716 = vpop.f32.mrf.mxu0
    %9717 = vmatprep.mubr.f32.mxu0 %v7077
    %9718 = vmatmul.mubr.f32.gmra.mxu0 %v8617
    %v9719 = vpop.f32.mrf.mxu0
    %v9720 = vadd.f32 %v9335, %v9719
    %v9721 = vpop.f32.mrf.mxu0
    %9722 = vmatprep.mubr.f32.mxu0 %v7094
    %9723 = vmatmul.mubr.f32.gmra.mxu0 %v8626
    %v9724 = vpop.f32.mrf.mxu0
    %v9725 = vadd.f32 %v9340, %v9724
    %v9726 = vpop.f32.mrf.mxu0
    %9727 = vmatprep.mubr.f32.mxu0 %v7111
    %9728 = vmatmul.mubr.f32.gmra.mxu0 %v8627
    %v9729 = vpop.f32.mrf.mxu0
    %v9730 = vadd.f32 %v9345, %v9729
    %v9731 = vpop.f32.mrf.mxu0
    %9732 = vmatprep.mubr.f32.mxu0 %v7128
    %9733 = vmatmul.mubr.f32.gmra.mxu0 %v8628
    %v9734 = vpop.f32.mrf.mxu0
    %v9735 = vadd.f32 %v9350, %v9734
    %v9736 = vpop.f32.mrf.mxu0
    %9737 = vmatprep.mubr.f32.mxu0 %v7145
    %9738 = vmatmul.mubr.f32.gmra.mxu0 %v8629
    %v9739 = vpop.f32.mrf.mxu0
    %v9740 = vadd.f32 %v9355, %v9739
    %v9741 = vpop.f32.mrf.mxu0
    %9742 = vmatprep.mubr.f32.mxu0 %v7162
    %9743 = vmatmul.mubr.f32.gmra.mxu0 %v8638
    %v9744 = vpop.f32.mrf.mxu0
    %v9745 = vadd.f32 %v9360, %v9744
    %v9746 = vpop.f32.mrf.mxu0
    %9747 = vmatprep.mubr.f32.mxu0 %v7179
    %9748 = vmatmul.mubr.f32.gmra.mxu0 %v8639
    %v9749 = vpop.f32.mrf.mxu0
    %v9750 = vadd.f32 %v9365, %v9749
    %v9751 = vpop.f32.mrf.mxu0
    %9752 = vmatprep.mubr.f32.mxu0 %v7196
    %9753 = vmatmul.mubr.f32.gmra.mxu0 %v8640
    %v9754 = vpop.f32.mrf.mxu0
    %v9755 = vadd.f32 %v9370, %v9754
    %v9756 = vpop.f32.mrf.mxu0
    %9757 = vmatprep.mubr.f32.mxu0 %v7213
    %9758 = vmatmul.mubr.f32.gmra.mxu0 %v8641
    %v9759 = vpop.f32.mrf.mxu0
    %v9760 = vadd.f32 %v9375, %v9759
    %v9761 = vpop.f32.mrf.mxu0
    %9762 = vmatprep.mubr.f32.mxu0 %v7230
    %9763 = vmatmul.mubr.f32.gmra.mxu0 %v8650
    %v9764 = vpop.f32.mrf.mxu0
    %v9765 = vadd.f32 %v9380, %v9764
    %v9766 = vpop.f32.mrf.mxu0
    %9767 = vmatprep.mubr.f32.mxu0 %v7247
    %9768 = vmatmul.mubr.f32.gmra.mxu0 %v8651
    %v9769 = vpop.f32.mrf.mxu0
    %v9770 = vadd.f32 %v9385, %v9769
    %v9771 = vpop.f32.mrf.mxu0
    %9772 = vmatprep.mubr.f32.mxu0 %v7264
    %9773 = vmatmul.mubr.f32.gmra.mxu0 %v8652
    %v9774 = vpop.f32.mrf.mxu0
    %v9775 = vadd.f32 %v9390, %v9774
    %v9776 = vpop.f32.mrf.mxu0
    %9777 = vmatprep.mubr.f32.mxu0 %v7281
    %9778 = vmatmul.mubr.f32.gmra.mxu0 %v8653
    %v9779 = vpop.f32.mrf.mxu0
    %v9780 = vadd.f32 %v9395, %v9779
    %v9781 = vpop.f32.mrf.mxu0
    %9782 = vmatprep.mubr.f32.mxu0 %v7298
    %9783 = vmatmul.mubr.f32.gmra.mxu0 %v8662
    %v9784 = vpop.f32.mrf.mxu0
    %v9785 = vadd.f32 %v9400, %v9784
    %v9786 = vpop.f32.mrf.mxu0
    %9787 = vmatprep.mubr.f32.mxu0 %v7315
    %9788 = vmatmul.mubr.f32.gmra.mxu0 %v8663
    %v9789 = vpop.f32.mrf.mxu0
    %v9790 = vadd.f32 %v9405, %v9789
    %v9791 = vpop.f32.mrf.mxu0
    %9792 = vmatprep.mubr.f32.mxu0 %v7332
    %9793 = vmatmul.mubr.f32.gmra.mxu0 %v8664
    %v9794 = vpop.f32.mrf.mxu0
    %v9795 = vadd.f32 %v9410, %v9794
    %v9796 = vpop.f32.mrf.mxu0
    %9797 = vmatprep.mubr.f32.mxu0 %v7349
    %9798 = vmatmul.mubr.f32.gmra.mxu0 %v8665
    %v9799 = vpop.f32.mrf.mxu0
    %v9800 = vadd.f32 %v9415, %v9799
    %v9801 = vpop.f32.mrf.mxu0
    %9802 = vmatprep.mubr.f32.mxu0 %v7366
    %9803 = vmatmul.mubr.f32.gmra.mxu0 %v8674
    %v9804 = vpop.f32.mrf.mxu0
    %v9805 = vadd.f32 %v9420, %v9804
    %v9806 = vpop.f32.mrf.mxu0
    %9807 = vmatprep.mubr.f32.mxu0 %v8763
    %9808 = vmatmul.mubr.f32.gmra.mxu0 %v8675
    %v9809 = vpop.f32.mrf.mxu0
    %v9810 = vadd.f32 %v9425, %v9809
    %v9811 = vpop.f32.mrf.mxu0
    %9812 = vmatprep.mubr.f32.mxu0 %v8780
    %9813 = vmatmul.mubr.f32.gmra.mxu0 %v8676
    %v9814 = vpop.f32.mrf.mxu0
    %v9815 = vadd.f32 %v9430, %v9814
    %v9816 = vpop.f32.mrf.mxu0
    %9817 = vmatprep.mubr.f32.mxu0 %v8797
    %9818 = vmatmul.mubr.f32.gmra.mxu0 %v8677
    %v9819 = vpop.f32.mrf.mxu0
    %v9820 = vadd.f32 %v9435, %v9819
    %v9821 = vpop.f32.mrf.mxu0
    %9822 = vmatprep.mubr.f32.mxu0 %v8814
    %9823 = vmatmul.mubr.f32.gmra.mxu0 %v8686
    %v9824 = vpop.f32.mrf.mxu0
    %v9825 = vadd.f32 %v9440, %v9824
    %v9826 = vpop.f32.mrf.mxu0
    %9827 = vdwg.mxu0
    %9828 = vmatprep.subr.mxu0 0.0
    %9829 = vmatpush1.msra.mxu0 %v8986
    %9830 = vmatprep.subr.mxu0 0.0
    %9831 = vmatpush1.msra.mxu0 %v8985
    %9832 = vmatprep.subr.mxu0 0.0
    %9833 = vmatpush1.msra.mxu0 %v8984
    %9834 = vmatprep.subr.mxu0 0.0
    %9835 = vmatpush1.msra.mxu0 %v8983
    %9836 = vmatprep.subr.mxu0 0.0
    %9837 = vmatpush1.msra.mxu0 %v8982
    %9838 = vmatprep.subr.mxu0 0.0
    %9839 = vmatpush1.msra.mxu0 %v8981
    %9840 = vmatprep.subr.mxu0 0.0
    %9841 = vmatpush1.msra.mxu0 %v8980
    %9842 = vmatprep.subr.mxu0 0.0
    %9843 = vmatpush1.msra.mxu0 %v8979
    %9844 = vmatprep.subr.mxu0 0.0
    %9845 = vmatpush1.msra.mxu0 %v8978
    %9846 = vmatprep.subr.mxu0 0.0
    %9847 = vmatpush1.msra.mxu0 %v8977
    %9848 = vmatprep.subr.mxu0 0.0
    %9849 = vmatpush1.msra.mxu0 %v8976
    %9850 = vmatprep.subr.mxu0 0.0
    %9851 = vmatpush1.msra.mxu0 %v8975
    %9852 = vmatprep.subr.mxu0 0.0
    %9853 = vmatpush1.msra.mxu0 %v8974
    %9854 = vmatprep.subr.mxu0 0.0
    %9855 = vmatpush1.msra.mxu0 %v8973
    %9856 = vmatprep.subr.mxu0 0.0
    %9857 = vmatpush1.msra.mxu0 %v8972
    %9858 = vmatprep.subr.mxu0 0.0
    %9859 = vmatpush1.msra.mxu0 %v8971
    %9860 = vmatprep.subr.mxu0 0.0
    %9861 = vmatpush2.msra.mxu0 %v9002
    %9862 = vmatprep.subr.mxu0 0.0
    %9863 = vmatpush2.msra.mxu0 %v9001
    %9864 = vmatprep.subr.mxu0 0.0
    %9865 = vmatpush2.msra.mxu0 %v9000
    %9866 = vmatprep.subr.mxu0 0.0
    %9867 = vmatpush2.msra.mxu0 %v8999
    %9868 = vmatprep.subr.mxu0 0.0
    %9869 = vmatpush2.msra.mxu0 %v8998
    %9870 = vmatprep.subr.mxu0 0.0
    %9871 = vmatpush2.msra.mxu0 %v8997
    %9872 = vmatprep.subr.mxu0 0.0
    %9873 = vmatpush2.msra.mxu0 %v8996
    %9874 = vmatprep.subr.mxu0 0.0
    %9875 = vmatpush2.msra.mxu0 %v8995
    %9876 = vmatprep.subr.mxu0 0.0
    %9877 = vmatpush2.msra.mxu0 %v8994
    %9878 = vmatprep.subr.mxu0 0.0
    %9879 = vmatpush2.msra.mxu0 %v8993
    %9880 = vmatprep.subr.mxu0 0.0
    %9881 = vmatpush2.msra.mxu0 %v8992
    %9882 = vmatprep.subr.mxu0 0.0
    %9883 = vmatpush2.msra.mxu0 %v8991
    %9884 = vmatprep.subr.mxu0 0.0
    %9885 = vmatpush2.msra.mxu0 %v8990
    %9886 = vmatprep.subr.mxu0 0.0
    %9887 = vmatpush2.msra.mxu0 %v8989
    %9888 = vmatprep.subr.mxu0 0.0
    %9889 = vmatpush2.msra.mxu0 %v8988
    %9890 = vmatprep.subr.mxu0 0.0
    %9891 = vmatpush2.msra.mxu0 %v8987
    %9892 = vmatprep.mubr.f32.mxu0 %v8507
    %9893 = vmatmul.mubr.f32.gmra.mxu0 %v7443
    %v9894 = vpop.f32.mrf.mxu0
    %v9895 = vadd.f32 %v9510, %v9894
    %v9896 = vpop.f32.mrf.mxu0
    %9897 = vmatprep.mubr.f32.mxu0 %v8508
    %9898 = vmatmul.mubr.f32.gmra.mxu0 %v7460
    %v9899 = vpop.f32.mrf.mxu0
    %v9900 = vadd.f32 %v9515, %v9899
    %v9901 = vpop.f32.mrf.mxu0
    %9902 = vmatprep.mubr.f32.mxu0 %v8509
    %9903 = vmatmul.mubr.f32.gmra.mxu0 %v7477
    %v9904 = vpop.f32.mrf.mxu0
    %v9905 = vadd.f32 %v9520, %v9904
    %v9906 = vpop.f32.mrf.mxu0
    %9907 = vmatprep.mubr.f32.mxu0 %v8518
    %9908 = vmatmul.mubr.f32.gmra.mxu0 %v7494
    %v9909 = vpop.f32.mrf.mxu0
    %v9910 = vadd.f32 %v9525, %v9909
    %v9911 = vpop.f32.mrf.mxu0
    %9912 = vmatprep.mubr.f32.mxu0 %v8519
    %9913 = vmatmul.mubr.f32.gmra.mxu0 %v7511
    %v9914 = vpop.f32.mrf.mxu0
    %v9915 = vadd.f32 %v9530, %v9914
    %v9916 = vpop.f32.mrf.mxu0
    %9917 = vmatprep.mubr.f32.mxu0 %v8520
    %9918 = vmatmul.mubr.f32.gmra.mxu0 %v7528
    %v9919 = vpop.f32.mrf.mxu0
    %v9920 = vadd.f32 %v9535, %v9919
    %v9921 = vpop.f32.mrf.mxu0
    %9922 = vmatprep.mubr.f32.mxu0 %v8521
    %9923 = vmatmul.mubr.f32.gmra.mxu0 %v7545
    %v9924 = vpop.f32.mrf.mxu0
    %v9925 = vadd.f32 %v9540, %v9924
    %v9926 = vpop.f32.mrf.mxu0
    %9927 = vmatprep.mubr.f32.mxu0 %v8530
    %9928 = vmatmul.mubr.f32.gmra.mxu0 %v7562
    %v9929 = vpop.f32.mrf.mxu0
    %v9930 = vadd.f32 %v9545, %v9929
    %v9931 = vpop.f32.mrf.mxu0
    %9932 = vmatprep.mubr.f32.mxu0 %v8531
    %9933 = vmatmul.mubr.f32.gmra.mxu0 %v7579
    %v9934 = vpop.f32.mrf.mxu0
    %v9935 = vadd.f32 %v9550, %v9934
    %v9936 = vpop.f32.mrf.mxu0
    %9937 = vmatprep.mubr.f32.mxu0 %v8532
    %9938 = vmatmul.mubr.f32.gmra.mxu0 %v7596
    %v9939 = vpop.f32.mrf.mxu0
    %v9940 = vadd.f32 %v9555, %v9939
    %v9941 = vpop.f32.mrf.mxu0
    %9942 = vmatprep.mubr.f32.mxu0 %v8533
    %9943 = vmatmul.mubr.f32.gmra.mxu0 %v7613
    %v9944 = vpop.f32.mrf.mxu0
    %v9945 = vadd.f32 %v9560, %v9944
    %v9946 = vpop.f32.mrf.mxu0
    %9947 = vmatprep.mubr.f32.mxu0 %v8542
    %9948 = vmatmul.mubr.f32.gmra.mxu0 %v7630
    %v9949 = vpop.f32.mrf.mxu0
    %v9950 = vadd.f32 %v9565, %v9949
    %v9951 = vpop.f32.mrf.mxu0
    %9952 = vmatprep.mubr.f32.mxu0 %v8543
    %9953 = vmatmul.mubr.f32.gmra.mxu0 %v7647
    %v9954 = vpop.f32.mrf.mxu0
    %v9955 = vadd.f32 %v9570, %v9954
    %v9956 = vpop.f32.mrf.mxu0
    %9957 = vmatprep.mubr.f32.mxu0 %v8544
    %9958 = vmatmul.mubr.f32.gmra.mxu0 %v7664
    %v9959 = vpop.f32.mrf.mxu0
    %v9960 = vadd.f32 %v9575, %v9959
    %v9961 = vpop.f32.mrf.mxu0
    %9962 = vmatprep.mubr.f32.mxu0 %v8545
    %9963 = vmatmul.mubr.f32.gmra.mxu0 %v7681
    %v9964 = vpop.f32.mrf.mxu0
    %v9965 = vadd.f32 %v9580, %v9964
    %v9966 = vpop.f32.mrf.mxu0
    %9967 = vmatprep.mubr.f32.mxu0 %v8554
    %9968 = vmatmul.mubr.f32.gmra.mxu0 %v7698
    %v9969 = vpop.f32.mrf.mxu0
    %v9970 = vadd.f32 %v9585, %v9969
    %v9971 = vpop.f32.mrf.mxu0
    %9972 = vmatprep.mubr.f32.mxu0 %v8555
    %9973 = vmatmul.mubr.f32.gmra.mxu0 %v7715
    %v9974 = vpop.f32.mrf.mxu0
    %v9975 = vadd.f32 %v9590, %v9974
    %v9976 = vpop.f32.mrf.mxu0
    %9977 = vmatprep.mubr.f32.mxu0 %v8556
    %9978 = vmatmul.mubr.f32.gmra.mxu0 %v7732
    %v9979 = vpop.f32.mrf.mxu0
    %v9980 = vadd.f32 %v9595, %v9979
    %v9981 = vpop.f32.mrf.mxu0
    %9982 = vmatprep.mubr.f32.mxu0 %v8557
    %9983 = vmatmul.mubr.f32.gmra.mxu0 %v7749
    %v9984 = vpop.f32.mrf.mxu0
    %v9985 = vadd.f32 %v9600, %v9984
    %v9986 = vpop.f32.mrf.mxu0
    %9987 = vmatprep.mubr.f32.mxu0 %v8566
    %9988 = vmatmul.mubr.f32.gmra.mxu0 %v7766
    %v9989 = vpop.f32.mrf.mxu0
    %v9990 = vadd.f32 %v9605, %v9989
    %v9991 = vpop.f32.mrf.mxu0
    %9992 = vmatprep.mubr.f32.mxu0 %v8567
    %9993 = vmatmul.mubr.f32.gmra.mxu0 %v7783
    %v9994 = vpop.f32.mrf.mxu0
    %v9995 = vadd.f32 %v9610, %v9994
    %v9996 = vpop.f32.mrf.mxu0
    %9997 = vmatprep.mubr.f32.mxu0 %v8568
    %9998 = vmatmul.mubr.f32.gmra.mxu0 %v7800
    %v9999 = vpop.f32.mrf.mxu0
    %v10000 = vadd.f32 %v9615, %v9999
    %v10001 = vpop.f32.mrf.mxu0
    %10002 = vmatprep.mubr.f32.mxu0 %v8569
    %10003 = vmatmul.mubr.f32.gmra.mxu0 %v7817
    %v10004 = vpop.f32.mrf.mxu0
    %v10005 = vadd.f32 %v9620, %v10004
    %v10006 = vpop.f32.mrf.mxu0
    %10007 = vmatprep.mubr.f32.mxu0 %v8578
    %10008 = vmatmul.mubr.f32.gmra.mxu0 %v7834
    %v10009 = vpop.f32.mrf.mxu0
    %v10010 = vadd.f32 %v9625, %v10009
    %v10011 = vpop.f32.mrf.mxu0
    %10012 = vmatprep.mubr.f32.mxu0 %v8579
    %10013 = vmatmul.mubr.f32.gmra.mxu0 %v7851
    %v10014 = vpop.f32.mrf.mxu0
    %v10015 = vadd.f32 %v9630, %v10014
    %v10016 = vpop.f32.mrf.mxu0
    %10017 = vmatprep.mubr.f32.mxu0 %v8580
    %10018 = vmatmul.mubr.f32.gmra.mxu0 %v7868
    %v10019 = vpop.f32.mrf.mxu0
    %v10020 = vadd.f32 %v9635, %v10019
    %v10021 = vpop.f32.mrf.mxu0
    %10022 = vmatprep.mubr.f32.mxu0 %v8581
    %10023 = vmatmul.mubr.f32.gmra.mxu0 %v7885
    %v10024 = vpop.f32.mrf.mxu0
    %v10025 = vadd.f32 %v9640, %v10024
    %v10026 = vpop.f32.mrf.mxu0
    %10027 = vmatprep.mubr.f32.mxu0 %v8590
    %10028 = vmatmul.mubr.f32.gmra.mxu0 %v7902
    %v10029 = vpop.f32.mrf.mxu0
    %v10030 = vadd.f32 %v9645, %v10029
    %v10031 = vpop.f32.mrf.mxu0
    %10032 = vmatprep.mubr.f32.mxu0 %v8591
    %10033 = vmatmul.mubr.f32.gmra.mxu0 %v7919
    %v10034 = vpop.f32.mrf.mxu0
    %v10035 = vadd.f32 %v9650, %v10034
    %v10036 = vpop.f32.mrf.mxu0
    %10037 = vmatprep.mubr.f32.mxu0 %v8592
    %10038 = vmatmul.mubr.f32.gmra.mxu0 %v7936
    %v10039 = vpop.f32.mrf.mxu0
    %v10040 = vadd.f32 %v9655, %v10039
    %v10041 = vpop.f32.mrf.mxu0
    %10042 = vmatprep.mubr.f32.mxu0 %v8593
    %10043 = vmatmul.mubr.f32.gmra.mxu0 %v7953
    %v10044 = vpop.f32.mrf.mxu0
    %v10045 = vadd.f32 %v9660, %v10044
    %v10046 = vpop.f32.mrf.mxu0
    %10047 = vmatprep.mubr.f32.mxu0 %v8602
    %10048 = vmatmul.mubr.f32.gmra.mxu0 %v7970
    %v10049 = vpop.f32.mrf.mxu0
    %v10050 = vadd.f32 %v9665, %v10049
    %v10051 = vpop.f32.mrf.mxu0
    %10052 = vmatprep.mubr.f32.mxu0 %v8603
    %10053 = vmatmul.mubr.f32.gmra.mxu0 %v7987
    %v10054 = vpop.f32.mrf.mxu0
    %v10055 = vadd.f32 %v9670, %v10054
    %v10056 = vpop.f32.mrf.mxu0
    %10057 = vmatprep.mubr.f32.mxu0 %v8604
    %10058 = vmatmul.mubr.f32.gmra.mxu0 %v8004
    %v10059 = vpop.f32.mrf.mxu0
    %v10060 = vadd.f32 %v9675, %v10059
    %v10061 = vpop.f32.mrf.mxu0
    %10062 = vmatprep.mubr.f32.mxu0 %v8605
    %10063 = vmatmul.mubr.f32.gmra.mxu0 %v8021
    %v10064 = vpop.f32.mrf.mxu0
    %v10065 = vadd.f32 %v9680, %v10064
    %v10066 = vpop.f32.mrf.mxu0
    %10067 = vmatprep.mubr.f32.mxu0 %v8614
    %10068 = vmatmul.mubr.f32.gmra.mxu0 %v8038
    %v10069 = vpop.f32.mrf.mxu0
    %v10070 = vadd.f32 %v9685, %v10069
    %v10071 = vpop.f32.mrf.mxu0
    %10072 = vmatprep.mubr.f32.mxu0 %v8615
    %10073 = vmatmul.mubr.f32.gmra.mxu0 %v8055
    %v10074 = vpop.f32.mrf.mxu0
    %v10075 = vadd.f32 %v9690, %v10074
    %v10076 = vpop.f32.mrf.mxu0
    %10077 = vmatprep.mubr.f32.mxu0 %v8616
    %10078 = vmatmul.mubr.f32.gmra.mxu0 %v8072
    %v10079 = vpop.f32.mrf.mxu0
    %v10080 = vadd.f32 %v9695, %v10079
    %v10081 = vpop.f32.mrf.mxu0
    %10082 = vmatprep.mubr.f32.mxu0 %v8617
    %10083 = vmatmul.mubr.f32.gmra.mxu0 %v8089
    %v10084 = vpop.f32.mrf.mxu0
    %v10085 = vadd.f32 %v9700, %v10084
    %v10086 = vpop.f32.mrf.mxu0
    %10087 = vmatprep.mubr.f32.mxu0 %v8626
    %10088 = vmatmul.mubr.f32.gmra.mxu0 %v8106
    %v10089 = vpop.f32.mrf.mxu0
    %v10090 = vadd.f32 %v9705, %v10089
    %v10091 = vpop.f32.mrf.mxu0
    %10092 = vmatprep.mubr.f32.mxu0 %v8627
    %10093 = vmatmul.mubr.f32.gmra.mxu0 %v8123
    %v10094 = vpop.f32.mrf.mxu0
    %v10095 = vadd.f32 %v9710, %v10094
    %v10096 = vpop.f32.mrf.mxu0
    %10097 = vmatprep.mubr.f32.mxu0 %v8628
    %10098 = vmatmul.mubr.f32.gmra.mxu0 %v8140
    %v10099 = vpop.f32.mrf.mxu0
    %v10100 = vadd.f32 %v9715, %v10099
    %v10101 = vpop.f32.mrf.mxu0
    %10102 = vmatprep.mubr.f32.mxu0 %v8629
    %10103 = vmatmul.mubr.f32.gmra.mxu0 %v8157
    %v10104 = vpop.f32.mrf.mxu0
    %v10105 = vadd.f32 %v9720, %v10104
    %v10106 = vpop.f32.mrf.mxu0
    %10107 = vmatprep.mubr.f32.mxu0 %v8638
    %10108 = vmatmul.mubr.f32.gmra.mxu0 %v8174
    %v10109 = vpop.f32.mrf.mxu0
    %v10110 = vadd.f32 %v9725, %v10109
    %v10111 = vpop.f32.mrf.mxu0
    %10112 = vmatprep.mubr.f32.mxu0 %v8639
    %10113 = vmatmul.mubr.f32.gmra.mxu0 %v8191
    %v10114 = vpop.f32.mrf.mxu0
    %v10115 = vadd.f32 %v9730, %v10114
    %v10116 = vpop.f32.mrf.mxu0
    %10117 = vmatprep.mubr.f32.mxu0 %v8640
    %10118 = vmatmul.mubr.f32.gmra.mxu0 %v8208
    %v10119 = vpop.f32.mrf.mxu0
    %v10120 = vadd.f32 %v9735, %v10119
    %v10121 = vpop.f32.mrf.mxu0
    %10122 = vmatprep.mubr.f32.mxu0 %v8641
    %10123 = vmatmul.mubr.f32.gmra.mxu0 %v8225
    %v10124 = vpop.f32.mrf.mxu0
    %v10125 = vadd.f32 %v9740, %v10124
    %v10126 = vpop.f32.mrf.mxu0
    %10127 = vmatprep.mubr.f32.mxu0 %v8650
    %10128 = vmatmul.mubr.f32.gmra.mxu0 %v8242
    %v10129 = vpop.f32.mrf.mxu0
    %v10130 = vadd.f32 %v9745, %v10129
    %v10131 = vpop.f32.mrf.mxu0
    %10132 = vmatprep.mubr.f32.mxu0 %v8651
    %10133 = vmatmul.mubr.f32.gmra.mxu0 %v8259
    %v10134 = vpop.f32.mrf.mxu0
    %v10135 = vadd.f32 %v9750, %v10134
    %v10136 = vpop.f32.mrf.mxu0
    %10137 = vmatprep.mubr.f32.mxu0 %v8652
    %10138 = vmatmul.mubr.f32.gmra.mxu0 %v8276
    %v10139 = vpop.f32.mrf.mxu0
    %v10140 = vadd.f32 %v9755, %v10139
    %v10141 = vpop.f32.mrf.mxu0
    %10142 = vmatprep.mubr.f32.mxu0 %v8653
    %10143 = vmatmul.mubr.f32.gmra.mxu0 %v8293
    %v10144 = vpop.f32.mrf.mxu0
    %v10145 = vadd.f32 %v9760, %v10144
    %v10146 = vpop.f32.mrf.mxu0
    %10147 = vmatprep.mubr.f32.mxu0 %v8662
    %10148 = vmatmul.mubr.f32.gmra.mxu0 %v8310
    %v10149 = vpop.f32.mrf.mxu0
    %v10150 = vadd.f32 %v9765, %v10149
    %v10151 = vpop.f32.mrf.mxu0
    %10152 = vmatprep.mubr.f32.mxu0 %v8663
    %10153 = vmatmul.mubr.f32.gmra.mxu0 %v8327
    %v10154 = vpop.f32.mrf.mxu0
    %v10155 = vadd.f32 %v9770, %v10154
    %v10156 = vpop.f32.mrf.mxu0
    %10157 = vmatprep.mubr.f32.mxu0 %v8664
    %10158 = vmatmul.mubr.f32.gmra.mxu0 %v8344
    %v10159 = vpop.f32.mrf.mxu0
    %v10160 = vadd.f32 %v9775, %v10159
    %v10161 = vpop.f32.mrf.mxu0
    %10162 = vmatprep.mubr.f32.mxu0 %v8665
    %10163 = vmatmul.mubr.f32.gmra.mxu0 %v8361
    %v10164 = vpop.f32.mrf.mxu0
    %v10165 = vadd.f32 %v9780, %v10164
    %v10166 = vpop.f32.mrf.mxu0
    %10167 = vmatprep.mubr.f32.mxu0 %v8674
    %10168 = vmatmul.mubr.f32.gmra.mxu0 %v8378
    %v10169 = vpop.f32.mrf.mxu0
    %v10170 = vadd.f32 %v9785, %v10169
    %v10171 = vpop.f32.mrf.mxu0
    %10172 = vmatprep.mubr.f32.mxu0 %v8675
    %10173 = vmatmul.mubr.f32.gmra.mxu0 %v8395
    %v10174 = vpop.f32.mrf.mxu0
    %v10175 = vadd.f32 %v9790, %v10174
    %v10176 = vpop.f32.mrf.mxu0
    %10177 = vmatprep.mubr.f32.mxu0 %v8676
    %10178 = vmatmul.mubr.f32.gmra.mxu0 %v8412
    %v10179 = vpop.f32.mrf.mxu0
    %v10180 = vadd.f32 %v9795, %v10179
    %v10181 = vpop.f32.mrf.mxu0
    %10182 = vmatprep.mubr.f32.mxu0 %v8677
    %10183 = vmatmul.mubr.f32.gmra.mxu0 %v8429
    %v10184 = vpop.f32.mrf.mxu0
    %v10185 = vadd.f32 %v9800, %v10184
    %v10186 = vpop.f32.mrf.mxu0
    %10187 = vmatprep.mubr.f32.mxu0 %v8686
    %10188 = vmatmul.mubr.f32.gmra.mxu0 %v8446
    %v10189 = vpop.f32.mrf.mxu0
    %v10190 = vadd.f32 %v9805, %v10189
    %v10191 = vpop.f32.mrf.mxu0
    %10192 = vmatprep.mubr.f32.mxu0 %v8891
    %10193 = vmatmul.mubr.f32.gmra.mxu0 %v8835
    %v10194 = vpop.f32.mrf.mxu0
    %v10195 = vadd.f32 %v9810, %v10194
    %v10196 = vpop.f32.mrf.mxu0
    %10197 = vmatprep.mubr.f32.mxu0 %v8892
    %10198 = vmatmul.mubr.f32.gmra.mxu0 %v8852
    %v10199 = vpop.f32.mrf.mxu0
    %v10200 = vadd.f32 %v9815, %v10199
    %v10201 = vpop.f32.mrf.mxu0
    %10202 = vmatprep.mubr.f32.mxu0 %v8893
    %10203 = vmatmul.mubr.f32.gmra.mxu0 %v8869
    %v10204 = vpop.f32.mrf.mxu0
    %v10205 = vadd.f32 %v9820, %v10204
    %v10206 = vpop.f32.mrf.mxu0
    %10207 = vmatprep.mubr.f32.mxu0 %v8902
    %10208 = vmatmul.mubr.f32.gmra.mxu0 %v8886
    %v10209 = vpop.f32.mrf.mxu0
    %v10210 = vadd.f32 %v9825, %v10209
    %v10211 = vpop.f32.mrf.mxu0
    %10212 = vdwg.mxu0
    %10213 = vmatprep.subr.mxu0 0.0
    %10214 = vmatpush1.msra.mxu0 %v9018
    %10215 = vmatprep.subr.mxu0 0.0
    %10216 = vmatpush1.msra.mxu0 %v9017
    %10217 = vmatprep.subr.mxu0 0.0
    %10218 = vmatpush1.msra.mxu0 %v9016
    %10219 = vmatprep.subr.mxu0 0.0
    %10220 = vmatpush1.msra.mxu0 %v9015
    %10221 = vmatprep.subr.mxu0 0.0
    %10222 = vmatpush1.msra.mxu0 %v9014
    %10223 = vmatprep.subr.mxu0 0.0
    %10224 = vmatpush1.msra.mxu0 %v9013
    %10225 = vmatprep.subr.mxu0 0.0
    %10226 = vmatpush1.msra.mxu0 %v9012
    %10227 = vmatprep.subr.mxu0 0.0
    %10228 = vmatpush1.msra.mxu0 %v9011
    %10229 = vmatprep.subr.mxu0 0.0
    %10230 = vmatpush1.msra.mxu0 %v9010
    %10231 = vmatprep.subr.mxu0 0.0
    %10232 = vmatpush1.msra.mxu0 %v9009
    %10233 = vmatprep.subr.mxu0 0.0
    %10234 = vmatpush1.msra.mxu0 %v9008
    %10235 = vmatprep.subr.mxu0 0.0
    %10236 = vmatpush1.msra.mxu0 %v9007
    %10237 = vmatprep.subr.mxu0 0.0
    %10238 = vmatpush1.msra.mxu0 %v9006
    %10239 = vmatprep.subr.mxu0 0.0
    %10240 = vmatpush1.msra.mxu0 %v9005
    %10241 = vmatprep.subr.mxu0 0.0
    %10242 = vmatpush1.msra.mxu0 %v9004
    %10243 = vmatprep.subr.mxu0 0.0
    %10244 = vmatpush1.msra.mxu0 %v9003
    %10245 = vmatprep.subr.mxu0 0.0
    %10246 = vmatpush2.msra.mxu0 %v9034
    %10247 = vmatprep.subr.mxu0 0.0
    %10248 = vmatpush2.msra.mxu0 %v9033
    %10249 = vmatprep.subr.mxu0 0.0
    %10250 = vmatpush2.msra.mxu0 %v9032
    %10251 = vmatprep.subr.mxu0 0.0
    %10252 = vmatpush2.msra.mxu0 %v9031
    %10253 = vmatprep.subr.mxu0 0.0
    %10254 = vmatpush2.msra.mxu0 %v9030
    %10255 = vmatprep.subr.mxu0 0.0
    %10256 = vmatpush2.msra.mxu0 %v9029
    %10257 = vmatprep.subr.mxu0 0.0
    %10258 = vmatpush2.msra.mxu0 %v9028
    %10259 = vmatprep.subr.mxu0 0.0
    %10260 = vmatpush2.msra.mxu0 %v9027
    %10261 = vmatprep.subr.mxu0 0.0
    %10262 = vmatpush2.msra.mxu0 %v9026
    %10263 = vmatprep.subr.mxu0 0.0
    %10264 = vmatpush2.msra.mxu0 %v9025
    %10265 = vmatprep.subr.mxu0 0.0
    %10266 = vmatpush2.msra.mxu0 %v9024
    %10267 = vmatprep.subr.mxu0 0.0
    %10268 = vmatpush2.msra.mxu0 %v9023
    %10269 = vmatprep.subr.mxu0 0.0
    %10270 = vmatpush2.msra.mxu0 %v9022
    %10271 = vmatprep.subr.mxu0 0.0
    %10272 = vmatpush2.msra.mxu0 %v9021
    %10273 = vmatprep.subr.mxu0 0.0
    %10274 = vmatpush2.msra.mxu0 %v9020
    %10275 = vmatprep.subr.mxu0 0.0
    %10276 = vmatpush2.msra.mxu0 %v9019
    %10277 = vmatprep.mubr.f32.mxu0 %v7511
    %10278 = vmatmul.mubr.f32.gmra.mxu0 %v6431
    %v10279 = vpop.f32.mrf.mxu0
    %v10280 = vadd.f32 %v9895, %v10279
    %v10281 = vpop.f32.mrf.mxu0
    %10282 = vmatprep.mubr.f32.mxu0 %v7528
    %10283 = vmatmul.mubr.f32.gmra.mxu0 %v6448
    %v10284 = vpop.f32.mrf.mxu0
    %v10285 = vadd.f32 %v9900, %v10284
    %v10286 = vpop.f32.mrf.mxu0
    %10287 = vmatprep.mubr.f32.mxu0 %v7545
    %10288 = vmatmul.mubr.f32.gmra.mxu0 %v6465
    %v10289 = vpop.f32.mrf.mxu0
    %v10290 = vadd.f32 %v9905, %v10289
    %v10291 = vpop.f32.mrf.mxu0
    %10292 = vmatprep.mubr.f32.mxu0 %v7562
    %10293 = vmatmul.mubr.f32.gmra.mxu0 %v6482
    %v10294 = vpop.f32.mrf.mxu0
    %v10295 = vadd.f32 %v9910, %v10294
    %v10296 = vpop.f32.mrf.mxu0
    %10297 = vmatprep.mubr.f32.mxu0 %v7579
    %10298 = vmatmul.mubr.f32.gmra.mxu0 %v6499
    %v10299 = vpop.f32.mrf.mxu0
    %v10300 = vadd.f32 %v9915, %v10299
    %v10301 = vpop.f32.mrf.mxu0
    %10302 = vmatprep.mubr.f32.mxu0 %v7596
    %10303 = vmatmul.mubr.f32.gmra.mxu0 %v6516
    %v10304 = vpop.f32.mrf.mxu0
    %v10305 = vadd.f32 %v9920, %v10304
    %v10306 = vpop.f32.mrf.mxu0
    %10307 = vmatprep.mubr.f32.mxu0 %v7613
    %10308 = vmatmul.mubr.f32.gmra.mxu0 %v6533
    %v10309 = vpop.f32.mrf.mxu0
    %v10310 = vadd.f32 %v9925, %v10309
    %v10311 = vpop.f32.mrf.mxu0
    %10312 = vmatprep.mubr.f32.mxu0 %v7630
    %10313 = vmatmul.mubr.f32.gmra.mxu0 %v6550
    %v10314 = vpop.f32.mrf.mxu0
    %v10315 = vadd.f32 %v9930, %v10314
    %v10316 = vpop.f32.mrf.mxu0
    %10317 = vmatprep.mubr.f32.mxu0 %v7647
    %10318 = vmatmul.mubr.f32.gmra.mxu0 %v6567
    %v10319 = vpop.f32.mrf.mxu0
    %v10320 = vadd.f32 %v9935, %v10319
    %v10321 = vpop.f32.mrf.mxu0
    %10322 = vmatprep.mubr.f32.mxu0 %v7664
    %10323 = vmatmul.mubr.f32.gmra.mxu0 %v6584
    %v10324 = vpop.f32.mrf.mxu0
    %v10325 = vadd.f32 %v9940, %v10324
    %v10326 = vpop.f32.mrf.mxu0
    %10327 = vmatprep.mubr.f32.mxu0 %v7681
    %10328 = vmatmul.mubr.f32.gmra.mxu0 %v6601
    %v10329 = vpop.f32.mrf.mxu0
    %v10330 = vadd.f32 %v9945, %v10329
    %v10331 = vpop.f32.mrf.mxu0
    %10332 = vmatprep.mubr.f32.mxu0 %v7698
    %10333 = vmatmul.mubr.f32.gmra.mxu0 %v6618
    %v10334 = vpop.f32.mrf.mxu0
    %v10335 = vadd.f32 %v9950, %v10334
    %v10336 = vpop.f32.mrf.mxu0
    %10337 = vmatprep.mubr.f32.mxu0 %v7715
    %10338 = vmatmul.mubr.f32.gmra.mxu0 %v6635
    %v10339 = vpop.f32.mrf.mxu0
    %v10340 = vadd.f32 %v9955, %v10339
    %v10341 = vpop.f32.mrf.mxu0
    %10342 = vmatprep.mubr.f32.mxu0 %v7732
    %10343 = vmatmul.mubr.f32.gmra.mxu0 %v6652
    %v10344 = vpop.f32.mrf.mxu0
    %v10345 = vadd.f32 %v9960, %v10344
    %v10346 = vpop.f32.mrf.mxu0
    %10347 = vmatprep.mubr.f32.mxu0 %v7749
    %10348 = vmatmul.mubr.f32.gmra.mxu0 %v6669
    %v10349 = vpop.f32.mrf.mxu0
    %v10350 = vadd.f32 %v9965, %v10349
    %v10351 = vpop.f32.mrf.mxu0
    %10352 = vmatprep.mubr.f32.mxu0 %v7766
    %10353 = vmatmul.mubr.f32.gmra.mxu0 %v6686
    %v10354 = vpop.f32.mrf.mxu0
    %v10355 = vadd.f32 %v9970, %v10354
    %v10356 = vpop.f32.mrf.mxu0
    %10357 = vmatprep.mubr.f32.mxu0 %v7783
    %10358 = vmatmul.mubr.f32.gmra.mxu0 %v6703
    %v10359 = vpop.f32.mrf.mxu0
    %v10360 = vadd.f32 %v9975, %v10359
    %v10361 = vpop.f32.mrf.mxu0
    %10362 = vmatprep.mubr.f32.mxu0 %v7800
    %10363 = vmatmul.mubr.f32.gmra.mxu0 %v6720
    %v10364 = vpop.f32.mrf.mxu0
    %v10365 = vadd.f32 %v9980, %v10364
    %v10366 = vpop.f32.mrf.mxu0
    %10367 = vmatprep.mubr.f32.mxu0 %v7817
    %10368 = vmatmul.mubr.f32.gmra.mxu0 %v6737
    %v10369 = vpop.f32.mrf.mxu0
    %v10370 = vadd.f32 %v9985, %v10369
    %v10371 = vpop.f32.mrf.mxu0
    %10372 = vmatprep.mubr.f32.mxu0 %v7834
    %10373 = vmatmul.mubr.f32.gmra.mxu0 %v6754
    %v10374 = vpop.f32.mrf.mxu0
    %v10375 = vadd.f32 %v9990, %v10374
    %v10376 = vpop.f32.mrf.mxu0
    %10377 = vmatprep.mubr.f32.mxu0 %v7851
    %10378 = vmatmul.mubr.f32.gmra.mxu0 %v6771
    %v10379 = vpop.f32.mrf.mxu0
    %v10380 = vadd.f32 %v9995, %v10379
    %v10381 = vpop.f32.mrf.mxu0
    %10382 = vmatprep.mubr.f32.mxu0 %v7868
    %10383 = vmatmul.mubr.f32.gmra.mxu0 %v6788
    %v10384 = vpop.f32.mrf.mxu0
    %v10385 = vadd.f32 %v10000, %v10384
    %v10386 = vpop.f32.mrf.mxu0
    %10387 = vmatprep.mubr.f32.mxu0 %v7885
    %10388 = vmatmul.mubr.f32.gmra.mxu0 %v6805
    %v10389 = vpop.f32.mrf.mxu0
    %v10390 = vadd.f32 %v10005, %v10389
    %v10391 = vpop.f32.mrf.mxu0
    %10392 = vmatprep.mubr.f32.mxu0 %v7902
    %10393 = vmatmul.mubr.f32.gmra.mxu0 %v6822
    %v10394 = vpop.f32.mrf.mxu0
    %v10395 = vadd.f32 %v10010, %v10394
    %v10396 = vpop.f32.mrf.mxu0
    %10397 = vmatprep.mubr.f32.mxu0 %v7919
    %10398 = vmatmul.mubr.f32.gmra.mxu0 %v6839
    %v10399 = vpop.f32.mrf.mxu0
    %v10400 = vadd.f32 %v10015, %v10399
    %v10401 = vpop.f32.mrf.mxu0
    %10402 = vmatprep.mubr.f32.mxu0 %v7936
    %10403 = vmatmul.mubr.f32.gmra.mxu0 %v6856
    %v10404 = vpop.f32.mrf.mxu0
    %v10405 = vadd.f32 %v10020, %v10404
    %v10406 = vpop.f32.mrf.mxu0
    %10407 = vmatprep.mubr.f32.mxu0 %v7953
    %10408 = vmatmul.mubr.f32.gmra.mxu0 %v6873
    %v10409 = vpop.f32.mrf.mxu0
    %v10410 = vadd.f32 %v10025, %v10409
    %v10411 = vpop.f32.mrf.mxu0
    %10412 = vmatprep.mubr.f32.mxu0 %v7970
    %10413 = vmatmul.mubr.f32.gmra.mxu0 %v6890
    %v10414 = vpop.f32.mrf.mxu0
    %v10415 = vadd.f32 %v10030, %v10414
    %v10416 = vpop.f32.mrf.mxu0
    %10417 = vmatprep.mubr.f32.mxu0 %v7987
    %10418 = vmatmul.mubr.f32.gmra.mxu0 %v6907
    %v10419 = vpop.f32.mrf.mxu0
    %v10420 = vadd.f32 %v10035, %v10419
    %v10421 = vpop.f32.mrf.mxu0
    %10422 = vmatprep.mubr.f32.mxu0 %v8004
    %10423 = vmatmul.mubr.f32.gmra.mxu0 %v6924
    %v10424 = vpop.f32.mrf.mxu0
    %v10425 = vadd.f32 %v10040, %v10424
    %v10426 = vpop.f32.mrf.mxu0
    %10427 = vmatprep.mubr.f32.mxu0 %v8021
    %10428 = vmatmul.mubr.f32.gmra.mxu0 %v6941
    %v10429 = vpop.f32.mrf.mxu0
    %v10430 = vadd.f32 %v10045, %v10429
    %v10431 = vpop.f32.mrf.mxu0
    %10432 = vmatprep.mubr.f32.mxu0 %v8038
    %10433 = vmatmul.mubr.f32.gmra.mxu0 %v6958
    %v10434 = vpop.f32.mrf.mxu0
    %v10435 = vadd.f32 %v10050, %v10434
    %v10436 = vpop.f32.mrf.mxu0
    %10437 = vmatprep.mubr.f32.mxu0 %v8055
    %10438 = vmatmul.mubr.f32.gmra.mxu0 %v6975
    %v10439 = vpop.f32.mrf.mxu0
    %v10440 = vadd.f32 %v10055, %v10439
    %v10441 = vpop.f32.mrf.mxu0
    %10442 = vmatprep.mubr.f32.mxu0 %v8072
    %10443 = vmatmul.mubr.f32.gmra.mxu0 %v6992
    %v10444 = vpop.f32.mrf.mxu0
    %v10445 = vadd.f32 %v10060, %v10444
    %v10446 = vpop.f32.mrf.mxu0
    %10447 = vmatprep.mubr.f32.mxu0 %v8089
    %10448 = vmatmul.mubr.f32.gmra.mxu0 %v7009
    %v10449 = vpop.f32.mrf.mxu0
    %v10450 = vadd.f32 %v10065, %v10449
    %v10451 = vpop.f32.mrf.mxu0
    %10452 = vmatprep.mubr.f32.mxu0 %v8106
    %10453 = vmatmul.mubr.f32.gmra.mxu0 %v7026
    %v10454 = vpop.f32.mrf.mxu0
    %v10455 = vadd.f32 %v10070, %v10454
    %v10456 = vpop.f32.mrf.mxu0
    %10457 = vmatprep.mubr.f32.mxu0 %v8123
    %10458 = vmatmul.mubr.f32.gmra.mxu0 %v7043
    %v10459 = vpop.f32.mrf.mxu0
    %v10460 = vadd.f32 %v10075, %v10459
    %v10461 = vpop.f32.mrf.mxu0
    %10462 = vmatprep.mubr.f32.mxu0 %v8140
    %10463 = vmatmul.mubr.f32.gmra.mxu0 %v7060
    %v10464 = vpop.f32.mrf.mxu0
    %v10465 = vadd.f32 %v10080, %v10464
    %v10466 = vpop.f32.mrf.mxu0
    %10467 = vmatprep.mubr.f32.mxu0 %v8157
    %10468 = vmatmul.mubr.f32.gmra.mxu0 %v7077
    %v10469 = vpop.f32.mrf.mxu0
    %v10470 = vadd.f32 %v10085, %v10469
    %v10471 = vpop.f32.mrf.mxu0
    %10472 = vmatprep.mubr.f32.mxu0 %v8174
    %10473 = vmatmul.mubr.f32.gmra.mxu0 %v7094
    %v10474 = vpop.f32.mrf.mxu0
    %v10475 = vadd.f32 %v10090, %v10474
    %v10476 = vpop.f32.mrf.mxu0
    %10477 = vmatprep.mubr.f32.mxu0 %v8191
    %10478 = vmatmul.mubr.f32.gmra.mxu0 %v7111
    %v10479 = vpop.f32.mrf.mxu0
    %v10480 = vadd.f32 %v10095, %v10479
    %v10481 = vpop.f32.mrf.mxu0
    %10482 = vmatprep.mubr.f32.mxu0 %v8208
    %10483 = vmatmul.mubr.f32.gmra.mxu0 %v7128
    %v10484 = vpop.f32.mrf.mxu0
    %v10485 = vadd.f32 %v10100, %v10484
    %v10486 = vpop.f32.mrf.mxu0
    %10487 = vmatprep.mubr.f32.mxu0 %v8225
    %10488 = vmatmul.mubr.f32.gmra.mxu0 %v7145
    %v10489 = vpop.f32.mrf.mxu0
    %v10490 = vadd.f32 %v10105, %v10489
    %v10491 = vpop.f32.mrf.mxu0
    %10492 = vmatprep.mubr.f32.mxu0 %v8242
    %10493 = vmatmul.mubr.f32.gmra.mxu0 %v7162
    %v10494 = vpop.f32.mrf.mxu0
    %v10495 = vadd.f32 %v10110, %v10494
    %v10496 = vpop.f32.mrf.mxu0
    %10497 = vmatprep.mubr.f32.mxu0 %v8259
    %10498 = vmatmul.mubr.f32.gmra.mxu0 %v7179
    %v10499 = vpop.f32.mrf.mxu0
    %v10500 = vadd.f32 %v10115, %v10499
    %v10501 = vpop.f32.mrf.mxu0
    %10502 = vmatprep.mubr.f32.mxu0 %v8276
    %10503 = vmatmul.mubr.f32.gmra.mxu0 %v7196
    %v10504 = vpop.f32.mrf.mxu0
    %v10505 = vadd.f32 %v10120, %v10504
    %v10506 = vpop.f32.mrf.mxu0
    %10507 = vmatprep.mubr.f32.mxu0 %v8293
    %10508 = vmatmul.mubr.f32.gmra.mxu0 %v7213
    %v10509 = vpop.f32.mrf.mxu0
    %v10510 = vadd.f32 %v10125, %v10509
    %v10511 = vpop.f32.mrf.mxu0
    %10512 = vmatprep.mubr.f32.mxu0 %v8310
    %10513 = vmatmul.mubr.f32.gmra.mxu0 %v7230
    %v10514 = vpop.f32.mrf.mxu0
    %v10515 = vadd.f32 %v10130, %v10514
    %v10516 = vpop.f32.mrf.mxu0
    %10517 = vmatprep.mubr.f32.mxu0 %v8327
    %10518 = vmatmul.mubr.f32.gmra.mxu0 %v7247
    %v10519 = vpop.f32.mrf.mxu0
    %v10520 = vadd.f32 %v10135, %v10519
    %v10521 = vpop.f32.mrf.mxu0
    %10522 = vmatprep.mubr.f32.mxu0 %v8344
    %10523 = vmatmul.mubr.f32.gmra.mxu0 %v7264
    %v10524 = vpop.f32.mrf.mxu0
    %v10525 = vadd.f32 %v10140, %v10524
    %v10526 = vpop.f32.mrf.mxu0
    %10527 = vmatprep.mubr.f32.mxu0 %v8361
    %10528 = vmatmul.mubr.f32.gmra.mxu0 %v7281
    %v10529 = vpop.f32.mrf.mxu0
    %v10530 = vadd.f32 %v10145, %v10529
    %v10531 = vpop.f32.mrf.mxu0
    %10532 = vmatprep.mubr.f32.mxu0 %v8378
    %10533 = vmatmul.mubr.f32.gmra.mxu0 %v7298
    %v10534 = vpop.f32.mrf.mxu0
    %v10535 = vadd.f32 %v10150, %v10534
    %v10536 = vpop.f32.mrf.mxu0
    %10537 = vmatprep.mubr.f32.mxu0 %v8395
    %10538 = vmatmul.mubr.f32.gmra.mxu0 %v7315
    %v10539 = vpop.f32.mrf.mxu0
    %v10540 = vadd.f32 %v10155, %v10539
    %v10541 = vpop.f32.mrf.mxu0
    %10542 = vmatprep.mubr.f32.mxu0 %v8412
    %10543 = vmatmul.mubr.f32.gmra.mxu0 %v7332
    %v10544 = vpop.f32.mrf.mxu0
    %v10545 = vadd.f32 %v10160, %v10544
    %v10546 = vpop.f32.mrf.mxu0
    %10547 = vmatprep.mubr.f32.mxu0 %v8429
    %10548 = vmatmul.mubr.f32.gmra.mxu0 %v7349
    %v10549 = vpop.f32.mrf.mxu0
    %v10550 = vadd.f32 %v10165, %v10549
    %v10551 = vpop.f32.mrf.mxu0
    %10552 = vmatprep.mubr.f32.mxu0 %v8446
    %10553 = vmatmul.mubr.f32.gmra.mxu0 %v7366
    %v10554 = vpop.f32.mrf.mxu0
    %v10555 = vadd.f32 %v10170, %v10554
    %v10556 = vpop.f32.mrf.mxu0
    %10557 = vmatprep.mubr.f32.mxu0 %v8835
    %10558 = vmatmul.mubr.f32.gmra.mxu0 %v8763
    %v10559 = vpop.f32.mrf.mxu0
    %v10560 = vadd.f32 %v10175, %v10559
    %v10561 = vpop.f32.mrf.mxu0
    %10562 = vmatprep.mubr.f32.mxu0 %v8852
    %10563 = vmatmul.mubr.f32.gmra.mxu0 %v8780
    %v10564 = vpop.f32.mrf.mxu0
    %v10565 = vadd.f32 %v10180, %v10564
    %v10566 = vpop.f32.mrf.mxu0
    %10567 = vmatprep.mubr.f32.mxu0 %v8869
    %10568 = vmatmul.mubr.f32.gmra.mxu0 %v8797
    %v10569 = vpop.f32.mrf.mxu0
    %v10570 = vadd.f32 %v10185, %v10569
    %v10571 = vpop.f32.mrf.mxu0
    %10572 = vmatprep.mubr.f32.mxu0 %v8886
    %10573 = vmatmul.mubr.f32.gmra.mxu0 %v8814
    %v10574 = vpop.f32.mrf.mxu0
    %v10575 = vadd.f32 %v10190, %v10574
    %v10576 = vpop.f32.mrf.mxu0
    %10577 = vmatprep.mubr.f32.mxu0 %v1068
    %10578 = vmatmul.mubr.f32.gmra.mxu0 %v1068
    %v10579 = vpop.f32.mrf.mxu0
    %v10580 = vadd.f32 %v10195, %v10579
    %v10581 = vpop.f32.mrf.mxu0
    %10582 = vmatprep.mubr.f32.mxu0 %v1068
    %10583 = vmatmul.mubr.f32.gmra.mxu0 %v1068
    %v10584 = vpop.f32.mrf.mxu0
    %v10585 = vadd.f32 %v10200, %v10584
    %v10586 = vpop.f32.mrf.mxu0
    %10587 = vmatprep.mubr.f32.mxu0 %v1068
    %10588 = vmatmul.mubr.f32.gmra.mxu0 %v1068
    %v10589 = vpop.f32.mrf.mxu0
    %v10590 = vadd.f32 %v10205, %v10589
    %v10591 = vpop.f32.mrf.mxu0
    %10592 = vmatprep.mubr.f32.mxu0 %v1068
    %10593 = vmatmul.mubr.f32.gmra.mxu0 %v1068
    %v10594 = vpop.f32.mrf.mxu0
    %v10595 = vadd.f32 %v10210, %v10594
    %v10596 = vpop.f32.mrf.mxu0
    %10597 = vdwg.mxu0
    %10598 = vmatprep.subr.mxu0 0.0
    %10599 = vmatpush1.msra.mxu0 %v9050
    %10600 = vmatprep.subr.mxu0 0.0
    %10601 = vmatpush1.msra.mxu0 %v9049
    %10602 = vmatprep.subr.mxu0 0.0
    %10603 = vmatpush1.msra.mxu0 %v9048
    %10604 = vmatprep.subr.mxu0 0.0
    %10605 = vmatpush1.msra.mxu0 %v9047
    %10606 = vmatprep.subr.mxu0 0.0
    %10607 = vmatpush1.msra.mxu0 %v9046
    %10608 = vmatprep.subr.mxu0 0.0
    %10609 = vmatpush1.msra.mxu0 %v9045
    %10610 = vmatprep.subr.mxu0 0.0
    %10611 = vmatpush1.msra.mxu0 %v9044
    %10612 = vmatprep.subr.mxu0 0.0
    %10613 = vmatpush1.msra.mxu0 %v9043
    %10614 = vmatprep.subr.mxu0 0.0
    %10615 = vmatpush1.msra.mxu0 %v9042
    %10616 = vmatprep.subr.mxu0 0.0
    %10617 = vmatpush1.msra.mxu0 %v9041
    %10618 = vmatprep.subr.mxu0 0.0
    %10619 = vmatpush1.msra.mxu0 %v9040
    %10620 = vmatprep.subr.mxu0 0.0
    %10621 = vmatpush1.msra.mxu0 %v9039
    %10622 = vmatprep.subr.mxu0 0.0
    %10623 = vmatpush1.msra.mxu0 %v9038
    %10624 = vmatprep.subr.mxu0 0.0
    %10625 = vmatpush1.msra.mxu0 %v9037
    %10626 = vmatprep.subr.mxu0 0.0
    %10627 = vmatpush1.msra.mxu0 %v9036
    %10628 = vmatprep.subr.mxu0 0.0
    %10629 = vmatpush1.msra.mxu0 %v9035
    %10630 = vmatprep.subr.mxu0 0.0
    %10631 = vmatpush2.msra.mxu0 0.0
    %10632 = vmatprep.subr.mxu0 0.0
    %10633 = vmatpush2.msra.mxu0 0.0
    %10634 = vmatprep.subr.mxu0 0.0
    %10635 = vmatpush2.msra.mxu0 0.0
    %10636 = vmatprep.subr.mxu0 0.0
    %10637 = vmatpush2.msra.mxu0 0.0
    %10638 = vmatprep.subr.mxu0 0.0
    %10639 = vmatpush2.msra.mxu0 0.0
    %10640 = vmatprep.subr.mxu0 0.0
    %10641 = vmatpush2.msra.mxu0 0.0
    %10642 = vmatprep.subr.mxu0 0.0
    %10643 = vmatpush2.msra.mxu0 0.0
    %10644 = vmatprep.subr.mxu0 0.0
    %10645 = vmatpush2.msra.mxu0 0.0
    %10646 = vmatprep.subr.mxu0 0.0
    %10647 = vmatpush2.msra.mxu0 0.0
    %10648 = vmatprep.subr.mxu0 0.0
    %10649 = vmatpush2.msra.mxu0 0.0
    %10650 = vmatprep.subr.mxu0 0.0
    %10651 = vmatpush2.msra.mxu0 0.0
    %10652 = vmatprep.subr.mxu0 0.0
    %10653 = vmatpush2.msra.mxu0 0.0
    %10654 = vmatprep.subr.mxu0 0.0
    %10655 = vmatpush2.msra.mxu0 0.0
    %10656 = vmatprep.subr.mxu0 0.0
    %10657 = vmatpush2.msra.mxu0 0.0
    %10658 = vmatprep.subr.mxu0 0.0
    %10659 = vmatpush2.msra.mxu0 0.0
    %10660 = vmatprep.subr.mxu0 0.0
    %10661 = vmatpush2.msra.mxu0 0.0
    %10662 = vmatprep.mubr.f32.mxu0 0.0
    %10663 = vmatmul.mubr.f32.gmra.mxu0 %v8519
    %v10664 = vpop.f32.mrf.mxu0
    %v10665 = vadd.f32 %v10280, %v10664
    %v10666 = vpop.f32.mrf.mxu0
    %10667 = vmatprep.mubr.f32.mxu0 0.0
    %10668 = vmatmul.mubr.f32.gmra.mxu0 %v8520
    %v10669 = vpop.f32.mrf.mxu0
    %v10670 = vadd.f32 %v10285, %v10669
    %v10671 = vpop.f32.mrf.mxu0
    %10672 = vmatprep.mubr.f32.mxu0 0.0
    %10673 = vmatmul.mubr.f32.gmra.mxu0 %v8521
    %v10674 = vpop.f32.mrf.mxu0
    %v10675 = vadd.f32 %v10290, %v10674
    %v10676 = vpop.f32.mrf.mxu0
    %10677 = vmatprep.mubr.f32.mxu0 0.0
    %10678 = vmatmul.mubr.f32.gmra.mxu0 %v8530
    %v10679 = vpop.f32.mrf.mxu0
    %v10680 = vadd.f32 %v10295, %v10679
    %v10681 = vpop.f32.mrf.mxu0
    %10682 = vmatprep.mubr.f32.mxu0 0.0
    %10683 = vmatmul.mubr.f32.gmra.mxu0 %v8531
    %v10684 = vpop.f32.mrf.mxu0
    %v10685 = vadd.f32 %v10300, %v10684
    %v10686 = vpop.f32.mrf.mxu0
    %10687 = vmatprep.mubr.f32.mxu0 0.0
    %10688 = vmatmul.mubr.f32.gmra.mxu0 %v8532
    %v10689 = vpop.f32.mrf.mxu0
    %v10690 = vadd.f32 %v10305, %v10689
    %v10691 = vpop.f32.mrf.mxu0
    %10692 = vmatprep.mubr.f32.mxu0 0.0
    %10693 = vmatmul.mubr.f32.gmra.mxu0 %v8533
    %v10694 = vpop.f32.mrf.mxu0
    %v10695 = vadd.f32 %v10310, %v10694
    %v10696 = vpop.f32.mrf.mxu0
    %10697 = vmatprep.mubr.f32.mxu0 0.0
    %10698 = vmatmul.mubr.f32.gmra.mxu0 %v8542
    %v10699 = vpop.f32.mrf.mxu0
    %v10700 = vadd.f32 %v10315, %v10699
    %v10701 = vpop.f32.mrf.mxu0
    %10702 = vmatprep.mubr.f32.mxu0 0.0
    %10703 = vmatmul.mubr.f32.gmra.mxu0 %v8543
    %v10704 = vpop.f32.mrf.mxu0
    %v10705 = vadd.f32 %v10320, %v10704
    %v10706 = vpop.f32.mrf.mxu0
    %10707 = vmatprep.mubr.f32.mxu0 0.0
    %10708 = vmatmul.mubr.f32.gmra.mxu0 %v8544
    %v10709 = vpop.f32.mrf.mxu0
    %v10710 = vadd.f32 %v10325, %v10709
    %v10711 = vpop.f32.mrf.mxu0
    %10712 = vmatprep.mubr.f32.mxu0 0.0
    %10713 = vmatmul.mubr.f32.gmra.mxu0 %v8545
    %v10714 = vpop.f32.mrf.mxu0
    %v10715 = vadd.f32 %v10330, %v10714
    %v10716 = vpop.f32.mrf.mxu0
    %10717 = vmatprep.mubr.f32.mxu0 0.0
    %10718 = vmatmul.mubr.f32.gmra.mxu0 %v8554
    %v10719 = vpop.f32.mrf.mxu0
    %v10720 = vadd.f32 %v10335, %v10719
    %v10721 = vpop.f32.mrf.mxu0
    %10722 = vmatprep.mubr.f32.mxu0 0.0
    %10723 = vmatmul.mubr.f32.gmra.mxu0 %v8555
    %v10724 = vpop.f32.mrf.mxu0
    %v10725 = vadd.f32 %v10340, %v10724
    %v10726 = vpop.f32.mrf.mxu0
    %10727 = vmatprep.mubr.f32.mxu0 0.0
    %10728 = vmatmul.mubr.f32.gmra.mxu0 %v8556
    %v10729 = vpop.f32.mrf.mxu0
    %v10730 = vadd.f32 %v10345, %v10729
    %v10731 = vpop.f32.mrf.mxu0
    %10732 = vmatprep.mubr.f32.mxu0 0.0
    %10733 = vmatmul.mubr.f32.gmra.mxu0 %v8557
    %v10734 = vpop.f32.mrf.mxu0
    %v10735 = vadd.f32 %v10350, %v10734
    %v10736 = vpop.f32.mrf.mxu0
    %10737 = vmatprep.mubr.f32.mxu0 0.0
    %10738 = vmatmul.mubr.f32.gmra.mxu0 %v8566
    %v10739 = vpop.f32.mrf.mxu0
    %v10740 = vadd.f32 %v10355, %v10739
    %v10741 = vpop.f32.mrf.mxu0
    %10742 = vmatprep.mubr.f32.mxu0 0.0
    %10743 = vmatmul.mubr.f32.gmra.mxu0 %v8567
    %v10744 = vpop.f32.mrf.mxu0
    %v10745 = vadd.f32 %v10360, %v10744
    %v10746 = vpop.f32.mrf.mxu0
    %10747 = vmatprep.mubr.f32.mxu0 0.0
    %10748 = vmatmul.mubr.f32.gmra.mxu0 %v8568
    %v10749 = vpop.f32.mrf.mxu0
    %v10750 = vadd.f32 %v10365, %v10749
    %v10751 = vpop.f32.mrf.mxu0
    %10752 = vmatprep.mubr.f32.mxu0 0.0
    %10753 = vmatmul.mubr.f32.gmra.mxu0 %v8569
    %v10754 = vpop.f32.mrf.mxu0
    %v10755 = vadd.f32 %v10370, %v10754
    %v10756 = vpop.f32.mrf.mxu0
    %10757 = vmatprep.mubr.f32.mxu0 0.0
    %10758 = vmatmul.mubr.f32.gmra.mxu0 %v8578
    %v10759 = vpop.f32.mrf.mxu0
    %v10760 = vadd.f32 %v10375, %v10759
    %v10761 = vpop.f32.mrf.mxu0
    %10762 = vmatprep.mubr.f32.mxu0 0.0
    %10763 = vmatmul.mubr.f32.gmra.mxu0 %v8579
    %v10764 = vpop.f32.mrf.mxu0
    %v10765 = vadd.f32 %v10380, %v10764
    %v10766 = vpop.f32.mrf.mxu0
    %10767 = vmatprep.mubr.f32.mxu0 0.0
    %10768 = vmatmul.mubr.f32.gmra.mxu0 %v8580
    %v10769 = vpop.f32.mrf.mxu0
    %v10770 = vadd.f32 %v10385, %v10769
    %v10771 = vpop.f32.mrf.mxu0
    %10772 = vmatprep.mubr.f32.mxu0 0.0
    %10773 = vmatmul.mubr.f32.gmra.mxu0 %v8581
    %v10774 = vpop.f32.mrf.mxu0
    %v10775 = vadd.f32 %v10390, %v10774
    %v10776 = vpop.f32.mrf.mxu0
    %10777 = vmatprep.mubr.f32.mxu0 0.0
    %10778 = vmatmul.mubr.f32.gmra.mxu0 %v8590
    %v10779 = vpop.f32.mrf.mxu0
    %v10780 = vadd.f32 %v10395, %v10779
    %v10781 = vpop.f32.mrf.mxu0
    %10782 = vmatprep.mubr.f32.mxu0 0.0
    %10783 = vmatmul.mubr.f32.gmra.mxu0 %v8591
    %v10784 = vpop.f32.mrf.mxu0
    %v10785 = vadd.f32 %v10400, %v10784
    %v10786 = vpop.f32.mrf.mxu0
    %10787 = vmatprep.mubr.f32.mxu0 0.0
    %10788 = vmatmul.mubr.f32.gmra.mxu0 %v8592
    %v10789 = vpop.f32.mrf.mxu0
    %v10790 = vadd.f32 %v10405, %v10789
    %v10791 = vpop.f32.mrf.mxu0
    %10792 = vmatprep.mubr.f32.mxu0 0.0
    %10793 = vmatmul.mubr.f32.gmra.mxu0 %v8593
    %v10794 = vpop.f32.mrf.mxu0
    %v10795 = vadd.f32 %v10410, %v10794
    %v10796 = vpop.f32.mrf.mxu0
    %10797 = vmatprep.mubr.f32.mxu0 0.0
    %10798 = vmatmul.mubr.f32.gmra.mxu0 %v8602
    %v10799 = vpop.f32.mrf.mxu0
    %v10800 = vadd.f32 %v10415, %v10799
    %v10801 = vpop.f32.mrf.mxu0
    %10802 = vmatprep.mubr.f32.mxu0 0.0
    %10803 = vmatmul.mubr.f32.gmra.mxu0 %v8603
    %v10804 = vpop.f32.mrf.mxu0
    %v10805 = vadd.f32 %v10420, %v10804
    %v10806 = vpop.f32.mrf.mxu0
    %10807 = vmatprep.mubr.f32.mxu0 0.0
    %10808 = vmatmul.mubr.f32.gmra.mxu0 %v8604
    %v10809 = vpop.f32.mrf.mxu0
    %v10810 = vadd.f32 %v10425, %v10809
    %v10811 = vpop.f32.mrf.mxu0
    %10812 = vmatprep.mubr.f32.mxu0 0.0
    %10813 = vmatmul.mubr.f32.gmra.mxu0 %v8605
    %v10814 = vpop.f32.mrf.mxu0
    %v10815 = vadd.f32 %v10430, %v10814
    %v10816 = vpop.f32.mrf.mxu0
    %10817 = vmatprep.mubr.f32.mxu0 0.0
    %10818 = vmatmul.mubr.f32.gmra.mxu0 %v8614
    %v10819 = vpop.f32.mrf.mxu0
    %v10820 = vadd.f32 %v10435, %v10819
    %v10821 = vpop.f32.mrf.mxu0
    %10822 = vmatprep.mubr.f32.mxu0 0.0
    %10823 = vmatmul.mubr.f32.gmra.mxu0 %v8615
    %v10824 = vpop.f32.mrf.mxu0
    %v10825 = vadd.f32 %v10440, %v10824
    %v10826 = vpop.f32.mrf.mxu0
    %10827 = vmatprep.mubr.f32.mxu0 0.0
    %10828 = vmatmul.mubr.f32.gmra.mxu0 %v8616
    %v10829 = vpop.f32.mrf.mxu0
    %v10830 = vadd.f32 %v10445, %v10829
    %v10831 = vpop.f32.mrf.mxu0
    %10832 = vmatprep.mubr.f32.mxu0 0.0
    %10833 = vmatmul.mubr.f32.gmra.mxu0 %v8617
    %v10834 = vpop.f32.mrf.mxu0
    %v10835 = vadd.f32 %v10450, %v10834
    %v10836 = vpop.f32.mrf.mxu0
    %10837 = vmatprep.mubr.f32.mxu0 0.0
    %10838 = vmatmul.mubr.f32.gmra.mxu0 %v8626
    %v10839 = vpop.f32.mrf.mxu0
    %v10840 = vadd.f32 %v10455, %v10839
    %v10841 = vpop.f32.mrf.mxu0
    %10842 = vmatprep.mubr.f32.mxu0 0.0
    %10843 = vmatmul.mubr.f32.gmra.mxu0 %v8627
    %v10844 = vpop.f32.mrf.mxu0
    %v10845 = vadd.f32 %v10460, %v10844
    %v10846 = vpop.f32.mrf.mxu0
    %10847 = vmatprep.mubr.f32.mxu0 0.0
    %10848 = vmatmul.mubr.f32.gmra.mxu0 %v8628
    %v10849 = vpop.f32.mrf.mxu0
    %v10850 = vadd.f32 %v10465, %v10849
    %v10851 = vpop.f32.mrf.mxu0
    %10852 = vmatprep.mubr.f32.mxu0 0.0
    %10853 = vmatmul.mubr.f32.gmra.mxu0 %v8629
    %v10854 = vpop.f32.mrf.mxu0
    %v10855 = vadd.f32 %v10470, %v10854
    %v10856 = vpop.f32.mrf.mxu0
    %10857 = vmatprep.mubr.f32.mxu0 0.0
    %10858 = vmatmul.mubr.f32.gmra.mxu0 %v8638
    %v10859 = vpop.f32.mrf.mxu0
    %v10860 = vadd.f32 %v10475, %v10859
    %v10861 = vpop.f32.mrf.mxu0
    %10862 = vmatprep.mubr.f32.mxu0 0.0
    %10863 = vmatmul.mubr.f32.gmra.mxu0 %v8639
    %v10864 = vpop.f32.mrf.mxu0
    %v10865 = vadd.f32 %v10480, %v10864
    %v10866 = vpop.f32.mrf.mxu0
    %10867 = vmatprep.mubr.f32.mxu0 0.0
    %10868 = vmatmul.mubr.f32.gmra.mxu0 %v8640
    %v10869 = vpop.f32.mrf.mxu0
    %v10870 = vadd.f32 %v10485, %v10869
    %v10871 = vpop.f32.mrf.mxu0
    %10872 = vmatprep.mubr.f32.mxu0 0.0
    %10873 = vmatmul.mubr.f32.gmra.mxu0 %v8641
    %v10874 = vpop.f32.mrf.mxu0
    %v10875 = vadd.f32 %v10490, %v10874
    %v10876 = vpop.f32.mrf.mxu0
    %10877 = vmatprep.mubr.f32.mxu0 0.0
    %10878 = vmatmul.mubr.f32.gmra.mxu0 %v8650
    %v10879 = vpop.f32.mrf.mxu0
    %v10880 = vadd.f32 %v10495, %v10879
    %v10881 = vpop.f32.mrf.mxu0
    %10882 = vmatprep.mubr.f32.mxu0 0.0
    %10883 = vmatmul.mubr.f32.gmra.mxu0 %v8651
    %v10884 = vpop.f32.mrf.mxu0
    %v10885 = vadd.f32 %v10500, %v10884
    %v10886 = vpop.f32.mrf.mxu0
    %10887 = vmatprep.mubr.f32.mxu0 0.0
    %10888 = vmatmul.mubr.f32.gmra.mxu0 %v8652
    %v10889 = vpop.f32.mrf.mxu0
    %v10890 = vadd.f32 %v10505, %v10889
    %v10891 = vpop.f32.mrf.mxu0
    %10892 = vmatprep.mubr.f32.mxu0 0.0
    %10893 = vmatmul.mubr.f32.gmra.mxu0 %v8653
    %v10894 = vpop.f32.mrf.mxu0
    %v10895 = vadd.f32 %v10510, %v10894
    %v10896 = vpop.f32.mrf.mxu0
    %10897 = vmatprep.mubr.f32.mxu0 0.0
    %10898 = vmatmul.mubr.f32.gmra.mxu0 %v8662
    %v10899 = vpop.f32.mrf.mxu0
    %v10900 = vadd.f32 %v10515, %v10899
    %v10901 = vpop.f32.mrf.mxu0
    %10902 = vmatprep.mubr.f32.mxu0 0.0
    %10903 = vmatmul.mubr.f32.gmra.mxu0 %v8663
    %v10904 = vpop.f32.mrf.mxu0
    %v10905 = vadd.f32 %v10520, %v10904
    %v10906 = vpop.f32.mrf.mxu0
    %10907 = vmatprep.mubr.f32.mxu0 0.0
    %10908 = vmatmul.mubr.f32.gmra.mxu0 %v8664
    %v10909 = vpop.f32.mrf.mxu0
    %v10910 = vadd.f32 %v10525, %v10909
    %v10911 = vpop.f32.mrf.mxu0
    %10912 = vmatprep.mubr.f32.mxu0 0.0
    %10913 = vmatmul.mubr.f32.gmra.mxu0 %v8665
    %v10914 = vpop.f32.mrf.mxu0
    %v10915 = vadd.f32 %v10530, %v10914
    %v10916 = vpop.f32.mrf.mxu0
    %10917 = vmatprep.mubr.f32.mxu0 0.0
    %10918 = vmatmul.mubr.f32.gmra.mxu0 %v8674
    %v10919 = vpop.f32.mrf.mxu0
    %v10920 = vadd.f32 %v10535, %v10919
    %v10921 = vpop.f32.mrf.mxu0
    %10922 = vmatprep.mubr.f32.mxu0 0.0
    %10923 = vmatmul.mubr.f32.gmra.mxu0 %v8675
    %v10924 = vpop.f32.mrf.mxu0
    %v10925 = vadd.f32 %v10540, %v10924
    %v10926 = vpop.f32.mrf.mxu0
    %10927 = vmatprep.mubr.f32.mxu0 0.0
    %10928 = vmatmul.mubr.f32.gmra.mxu0 %v8676
    %v10929 = vpop.f32.mrf.mxu0
    %v10930 = vadd.f32 %v10545, %v10929
    %v10931 = vpop.f32.mrf.mxu0
    %10932 = vmatprep.mubr.f32.mxu0 0.0
    %10933 = vmatmul.mubr.f32.gmra.mxu0 %v8677
    %v10934 = vpop.f32.mrf.mxu0
    %v10935 = vadd.f32 %v10550, %v10934
    %v10936 = vpop.f32.mrf.mxu0
    %10937 = vmatprep.mubr.f32.mxu0 0.0
    %10938 = vmatmul.mubr.f32.gmra.mxu0 %v8686
    %v10939 = vpop.f32.mrf.mxu0
    %v10940 = vadd.f32 %v10555, %v10939
    %v10941 = vpop.f32.mrf.mxu0
    %10942 = vmatprep.mubr.f32.mxu0 0.0
    %10943 = vmatmul.mubr.f32.gmra.mxu0 %v8891
    %v10944 = vpop.f32.mrf.mxu0
    %v10945 = vadd.f32 %v10560, %v10944
    %v10946 = vpop.f32.mrf.mxu0
    %10947 = vmatprep.mubr.f32.mxu0 0.0
    %10948 = vmatmul.mubr.f32.gmra.mxu0 %v8892
    %v10949 = vpop.f32.mrf.mxu0
    %v10950 = vadd.f32 %v10565, %v10949
    %v10951 = vpop.f32.mrf.mxu0
    %10952 = vmatprep.mubr.f32.mxu0 0.0
    %10953 = vmatmul.mubr.f32.gmra.mxu0 %v8893
    %v10954 = vpop.f32.mrf.mxu0
    %v10955 = vadd.f32 %v10570, %v10954
    %v10956 = vpop.f32.mrf.mxu0
    %10957 = vmatprep.mubr.f32.mxu0 0.0
    %10958 = vmatmul.mubr.f32.gmra.mxu0 %v8902
    %v10959 = vpop.f32.mrf.mxu0
    %v10960 = vadd.f32 %v10575, %v10959
    %v10961 = vpop.f32.mrf.mxu0
    %10962 = vmatprep.mubr.f32.mxu0 0.0
    %10963 = vmatmul.mubr.f32.gmra.mxu0 %v1068
    %v10964 = vpop.f32.mrf.mxu0
    %v10965 = vadd.f32 %v10580, %v10964
    %v10966 = vpop.f32.mrf.mxu0
    %10967 = vmatprep.mubr.f32.mxu0 0.0
    %10968 = vmatmul.mubr.f32.gmra.mxu0 %v1068
    %v10969 = vpop.f32.mrf.mxu0
    %v10970 = vadd.f32 %v10585, %v10969
    %v10971 = vpop.f32.mrf.mxu0
    %10972 = vmatprep.mubr.f32.mxu0 0.0
    %10973 = vmatmul.mubr.f32.gmra.mxu0 %v1068
    %v10974 = vpop.f32.mrf.mxu0
    %v10975 = vadd.f32 %v10590, %v10974
    %v10976 = vpop.f32.mrf.mxu0
    %10977 = vmatprep.mubr.f32.mxu0 0.0
    %10978 = vmatmul.mubr.f32.gmra.mxu0 %v1068
    %v10979 = vpop.f32.mrf.mxu0
    %v10980 = vadd.f32 %v10595, %v10979
    %v10981 = vpop.f32.mrf.mxu0
    %10982 = vdwg.mxu0
    %v10983 = vtanh.pop %v10665
    %v10984 = vtanh.pop %v10670
    %v10985 = vtanh.pop %v10675
    %v10986 = vtanh.pop %v10680
    %v10987 = vtanh.pop %v10685
    %v10988 = vtanh.pop %v10690
    %v10989 = vtanh.pop %v10695
    %v10990 = vtanh.pop %v10700
    %v10991 = vtanh.pop %v10705
    %v10992 = vtanh.pop %v10710
    %v10993 = vtanh.pop %v10715
    %v10994 = vtanh.pop %v10720
    %v10995 = vtanh.pop %v10725
    %v10996 = vtanh.pop %v10730
    %v10997 = vtanh.pop %v10735
    %v10998 = vtanh.pop %v10740
    %v10999 = vtanh.pop %v10745
    %v11000 = vtanh.pop %v10750
    %v11001 = vtanh.pop %v10755
    %v11002 = vtanh.pop %v10760
    %v11003 = vtanh.pop %v10765
    %v11004 = vtanh.pop %v10770
    %v11005 = vtanh.pop %v10775
    %v11006 = vtanh.pop %v10780
    %v11007 = vtanh.pop %v10785
    %v11008 = vtanh.pop %v10790
    %v11009 = vtanh.pop %v10795
    %v11010 = vtanh.pop %v10800
    %v11011 = vtanh.pop %v10805
    %v11012 = vtanh.pop %v10810
    %v11013 = vtanh.pop %v10815
    %v11014 = vtanh.pop %v10820
    %v11015 = vtanh.pop %v10825
    %v11016 = vtanh.pop %v10830
    %v11017 = vtanh.pop %v10835
    %v11018 = vtanh.pop %v10840
    %v11019 = vtanh.pop %v10845
    %v11020 = vtanh.pop %v10850
    %v11021 = vtanh.pop %v10855
    %v11022 = vtanh.pop %v10860
    %v11023 = vtanh.pop %v10865
    %v11024 = vtanh.pop %v10870
    %v11025 = vtanh.pop %v10875
    %v11026 = vtanh.pop %v10880
    %v11027 = vtanh.pop %v10885
    %v11028 = vtanh.pop %v10890
    %v11029 = vtanh.pop %v10895
    %v11030 = vtanh.pop %v10900
    %v11031 = vtanh.pop %v10905
    %v11032 = vtanh.pop %v10910
    %v11033 = vtanh.pop %v10915
    %v11034 = vtanh.pop %v10920
    %v11035 = vtanh.pop %v10925
    %v11036 = vtanh.pop %v10930
    %v11037 = vtanh.pop %v10935
    %v11038 = vtanh.pop %v10940
    %v11039 = vtanh.pop %v10945
    %v11040 = vtanh.pop %v10950
    %v11041 = vtanh.pop %v10955
    %v11042 = vtanh.pop %v10960
    %v11043 = vtanh.pop %v10965
    %v11044 = vtanh.pop %v10970
    %v11045 = vtanh.pop %v10975
    %v11046 = vtanh.pop %v10980
    %vm11047 = vcmask 23552
    %11048 = vst.msk [vmem:[%s12] sm:$0xff] %vm11047, %v10983
    %11049 = vst.msk [vmem:[%s12 + $0x8] sm:$0xff] %vm11047, %v10984
    %11050 = vst.msk [vmem:[%s12 + $0x10] sm:$0xff] %vm11047, %v10985
    %11051 = vst.msk [vmem:[%s12 + $0x18] sm:$0xff] %vm11047, %v10986
    %11052 = vst.msk [vmem:[%s12 + $0x20] sm:$0xff] %vm11047, %v10987
    %11053 = vst.msk [vmem:[%s12 + $0x28] sm:$0xff] %vm11047, %v10988
    %11054 = vst.msk [vmem:[%s12 + $0x30] sm:$0xff] %vm11047, %v10989
    %11055 = vst.msk [vmem:[%s12 + $0x38] sm:$0xff] %vm11047, %v10990
    %11056 = vst.msk [vmem:[%s12 + $0x40] sm:$0xff] %vm11047, %v10991
    %11057 = vst.msk [vmem:[%s12 + $0x48] sm:$0xff] %vm11047, %v10992
    %11058 = vst.msk [vmem:[%s12 + $0x50] sm:$0xff] %vm11047, %v10993
    %11059 = vst.msk [vmem:[%s12 + $0x58] sm:$0xff] %vm11047, %v10994
    %11060 = vst.msk [vmem:[%s12 + $0x60] sm:$0xff] %vm11047, %v10995
    %11061 = vst.msk [vmem:[%s12 + $0x68] sm:$0xff] %vm11047, %v10996
    %11062 = vst.msk [vmem:[%s12 + $0x70] sm:$0xff] %vm11047, %v10997
    %11063 = vst.msk [vmem:[%s12 + $0x78] sm:$0xff] %vm11047, %v10998
    %11064 = vst.msk [vmem:[%s12 + $0x80] sm:$0xff] %vm11047, %v10999
    %11065 = vst.msk [vmem:[%s12 + $0x88] sm:$0xff] %vm11047, %v11000
    %11066 = vst.msk [vmem:[%s12 + $0x90] sm:$0xff] %vm11047, %v11001
    %11067 = vst.msk [vmem:[%s12 + $0x98] sm:$0xff] %vm11047, %v11002
    %11068 = vst.msk [vmem:[%s12 + $0xa0] sm:$0xff] %vm11047, %v11003
    %11069 = vst.msk [vmem:[%s12 + $0xa8] sm:$0xff] %vm11047, %v11004
    %11070 = vst.msk [vmem:[%s12 + $0xb0] sm:$0xff] %vm11047, %v11005
    %11071 = vst.msk [vmem:[%s12 + $0xb8] sm:$0xff] %vm11047, %v11006
    %11072 = vst.msk [vmem:[%s12 + $0xc0] sm:$0xff] %vm11047, %v11007
    %11073 = vst.msk [vmem:[%s12 + $0xc8] sm:$0xff] %vm11047, %v11008
    %11074 = vst.msk [vmem:[%s12 + $0xd0] sm:$0xff] %vm11047, %v11009
    %11075 = vst.msk [vmem:[%s12 + $0xd8] sm:$0xff] %vm11047, %v11010
    %11076 = vst.msk [vmem:[%s12 + $0xe0] sm:$0xff] %vm11047, %v11011
    %11077 = vst.msk [vmem:[%s12 + $0xe8] sm:$0xff] %vm11047, %v11012
    %11078 = vst.msk [vmem:[%s12 + $0xf0] sm:$0xff] %vm11047, %v11013
    %11079 = vst.msk [vmem:[%s12 + $0xf8] sm:$0xff] %vm11047, %v11014
    %11080 = vst.msk [vmem:[%s12 + $0x100] sm:$0xff] %vm11047, %v11015
    %11081 = vst.msk [vmem:[%s12 + $0x108] sm:$0xff] %vm11047, %v11016
    %11082 = vst.msk [vmem:[%s12 + $0x110] sm:$0xff] %vm11047, %v11017
    %11083 = vst.msk [vmem:[%s12 + $0x118] sm:$0xff] %vm11047, %v11018
    %11084 = vst.msk [vmem:[%s12 + $0x120] sm:$0xff] %vm11047, %v11019
    %11085 = vst.msk [vmem:[%s12 + $0x128] sm:$0xff] %vm11047, %v11020
    %11086 = vst.msk [vmem:[%s12 + $0x130] sm:$0xff] %vm11047, %v11021
    %11087 = vst.msk [vmem:[%s12 + $0x138] sm:$0xff] %vm11047, %v11022
    %11088 = vst.msk [vmem:[%s12 + $0x140] sm:$0xff] %vm11047, %v11023
    %11089 = vst.msk [vmem:[%s12 + $0x148] sm:$0xff] %vm11047, %v11024
    %11090 = vst.msk [vmem:[%s12 + $0x150] sm:$0xff] %vm11047, %v11025
    %11091 = vst.msk [vmem:[%s12 + $0x158] sm:$0xff] %vm11047, %v11026
    %11092 = vst.msk [vmem:[%s12 + $0x160] sm:$0xff] %vm11047, %v11027
    %11093 = vst.msk [vmem:[%s12 + $0x168] sm:$0xff] %vm11047, %v11028
    %11094 = vst.msk [vmem:[%s12 + $0x170] sm:$0xff] %vm11047, %v11029
    %11095 = vst.msk [vmem:[%s12 + $0x178] sm:$0xff] %vm11047, %v11030
    %11096 = vst.msk [vmem:[%s12 + $0x180] sm:$0xff] %vm11047, %v11031
    %11097 = vst.msk [vmem:[%s12 + $0x188] sm:$0xff] %vm11047, %v11032
    %11098 = vst.msk [vmem:[%s12 + $0x190] sm:$0xff] %vm11047, %v11033
    %11099 = vst.msk [vmem:[%s12 + $0x198] sm:$0xff] %vm11047, %v11034
    %11100 = vst.msk [vmem:[%s12 + $0x1a0] sm:$0xff] %vm11047, %v11035
    %11101 = vst.msk [vmem:[%s12 + $0x1a8] sm:$0xff] %vm11047, %v11036
    %11102 = vst.msk [vmem:[%s12 + $0x1b0] sm:$0xff] %vm11047, %v11037
    %11103 = vst.msk [vmem:[%s12 + $0x1b8] sm:$0xff] %vm11047, %v11038
    %11104 = vst.msk [vmem:[%s12 + $0x1c0] sm:$0xff] %vm11047, %v11039
    %11105 = vst.msk [vmem:[%s12 + $0x1c8] sm:$0xff] %vm11047, %v11040
    %11106 = vst.msk [vmem:[%s12 + $0x1d0] sm:$0xff] %vm11047, %v11041
    %11107 = vst.msk [vmem:[%s12 + $0x1d8] sm:$0xff] %vm11047, %v11042
    %11108 = vst.msk [vmem:[%s12 + $0x1e0] sm:$0xff] %vm11047, %v11043
    %11109 = vst.msk [vmem:[%s12 + $0x1e8] sm:$0xff] %vm11047, %v11044
    %11110 = vst.msk [vmem:[%s12 + $0x1f0] sm:$0xff] %vm11047, %v11045
    %11111 = vst.msk [vmem:[%s12 + $0x1f8] sm:$0xff] %vm11047, %v11046
    // Predicated region
    $region58: #{dc_generator_forward.1} parent=1 // pred_check
      _
    $region59: #{dc_generator_forward.1} parent=1 // pred_check_branch
      %11113 = sbr.rel (0) target = $region61
    $region60: #{dc_generator_forward.1} parent=1 // pred_region
      _
    $region61: #{dc_generator_forward.1} parent=1 // pred_fallthru
      _
    // Predicated region
    $region62: #{dc_generator_forward.1} parent=1 // pred_check
      _
    $region63: #{dc_generator_forward.1} parent=1 // pred_check_branch
      %11115 = sbr.rel (0) target = $region65
    $region64: #{dc_generator_forward.1} parent=1 // pred_region
      _
    $region65: #{dc_generator_forward.1} parent=1 // pred_fallthru
      _
    %11116 = vsyncpa [#allocation3], 1
    %11117 = vsyncpa [#allocation5], 1

</llo_original>
